<compile_context>
chip_gen: v7x
topology: tpu7x:2x2x1
jax: 0.10.0
libtpu: 0.0.40
codegen_flags: <defaults>
</compile_context>

<pallas_src>
import functools

import jax
import jax.numpy as jnp
from jax.experimental import pallas as pl
from jax.experimental.pallas import tpu as pltpu

_EPS = 1e-5
_LANE = 128
_SUBLANE = 8
_TAPS = tuple((i, j) for i in range(3) for j in range(3))


def _round_up(x, m):
    return (x + m - 1) // m * m


def _pad_axis(a, axis, new_size):
    pad = [(0, 0)] * a.ndim
    pad[axis] = (0, new_size - a.shape[axis])
    return jnp.pad(a, pad)


@functools.lru_cache(maxsize=1)
def _vmem_capacity_bytes():
    try:
        cap = int(getattr(pltpu.get_tpu_info(), "vmem_capacity_bytes", 0))
        if cap > 0:
            return cap
    except Exception:
        pass
    return 64 * 1024 * 1024  # conservative default (v7x per-core VMEM)


# ----------------------------- Pallas kernels ------------------------------ #

def _conv3x3_sum(x_ref, w_ref, shift_ref, *, th, ow, stride, r0):
    """BN-shift + sum over 9 taps of (th*ow, Cin) @ (Cin, tn), f32 value.

    Returned as a pure value (no explicit VMEM accumulator): the chained
    matmul+adds let Mosaic keep partials in vregs / the MXU result buffer.
    """
    cin = x_ref.shape[-1]

    def tap(k, ki, kj):
        if stride == 1:
            win = x_ref[pl.ds(r0 + ki, th), pl.ds(kj, ow), :]
        else:
            win = x_ref[pl.ds(stride * r0 + ki, th, stride=stride),
                        pl.ds(kj, ow, stride=stride), :]
        return jnp.dot(win.reshape(th * ow, cin), w_ref[k],
                       preferred_element_type=jnp.float32)

    acc = tap(0, 0, 0) + shift_ref[...]            # fold shift into first tap
    for k, (ki, kj) in enumerate(_TAPS[1:], start=1):
        acc = acc + tap(k, ki, kj)
    return acc


def _conv_bn_relu_kernel(x_ref, w_ref, shift_ref, o_ref, *, th, ow, stride):
    """conv3x3 (BN scale folded into w) + shift + ReLU."""
    r0 = pl.program_id(2) * th
    acc = _conv3x3_sum(x_ref, w_ref, shift_ref,
                       th=th, ow=ow, stride=stride, r0=r0)
    y = jnp.maximum(acc, 0.0)
    o_ref[...] = y.reshape(th, ow, y.shape[-1]).astype(o_ref.dtype)


def _conv_bn_add_id_relu_kernel(x_ref, w_ref, shift_ref, res_ref, o_ref,
                                *, th, ow):
    """conv3x3 + shift + identity-shortcut add (f32, row-tiled) + ReLU."""
    r0 = pl.program_id(2) * th
    acc = _conv3x3_sum(x_ref, w_ref, shift_ref, th=th, ow=ow, stride=1, r0=r0)
    res = res_ref[...].reshape(th * ow, res_ref.shape[-1])
    y = jnp.maximum(acc + res, 0.0)
    o_ref[...] = y.reshape(th, ow, y.shape[-1]).astype(o_ref.dtype)


def _conv_bn_add_proj_relu_kernel(x_ref, w_ref, shift_ref, xs_ref, ws_ref,
                                  shifts_ref, o_ref, *, th, ow):
    """conv3x3 + shift + fused (1x1 conv + BN) projection shortcut + ReLU."""
    r0 = pl.program_id(2) * th
    acc = _conv3x3_sum(x_ref, w_ref, shift_ref, th=th, ow=ow, stride=1, r0=r0)
    xs = xs_ref[...].reshape(th * ow, xs_ref.shape[-1])
    sc = jnp.dot(xs, ws_ref[...],
                 preferred_element_type=jnp.float32) + shifts_ref[...]
    y = jnp.maximum(acc + sc, 0.0)
    o_ref[...] = y.reshape(th, ow, y.shape[-1]).astype(o_ref.dtype)


# ------------------------------- call helper -------------------------------- #

def _conv_block_call(kernel, x_pad, w, shift, extra_inputs, extra_specs,
                     out_dtype, *, n, ohp, owp, th, tn, vmem_limit):
    cout_p = w.shape[-1]
    hx, wx, cx = x_pad.shape[1:]
    # grid (n, cout-tiles, row-tiles): weights/shift DMA'd once per (image, c)
    grid = (n, cout_p // tn, ohp // th)
    in_specs = [
        # full padded activation, resident per image (index depends on n only)
        pl.BlockSpec((None, hx, wx, cx), lambda nn, c, r: (nn, 0, 0, 0)),
        # BN-scale-folded weights, tiled over Cout (lane dense)
        pl.BlockSpec((9, w.shape[1], tn), lambda nn, c, r: (0, 0, c)),
        # BN shift, tiled over Cout
        pl.BlockSpec((1, tn), lambda nn, c, r: (0, c)),
    ] + extra_specs
    return pl.pallas_call(
        kernel,
        out_shape=jax.ShapeDtypeStruct((n, ohp, owp, cout_p), out_dtype),
        grid=grid,
        in_specs=in_specs,
        out_specs=pl.BlockSpec((None, th, owp, tn),
                               lambda nn, c, r: (nn, r, 0, c)),
        compiler_params=pltpu.CompilerParams(
            dimension_semantics=("parallel", "parallel", "parallel"),
            vmem_limit_bytes=vmem_limit,
        ),
    )(x_pad, w, shift, *extra_inputs)


# ------------------------------ JAX glue ----------------------------------- #

def _fold_bn_into_weight(w_hwio, bn):
    """Fold BN scale into the conv weight; return (scaled weight, shift)."""
    gamma, beta, mean, var = bn
    scale = gamma / jnp.sqrt(var + _EPS)
    shift = beta - mean * scale
    return w_hwio * scale, shift


def residual_block_forward(x_nchw, params, stride=1):
    """Pallas implementation of ResidualBlock.forward. Input NCHW, output NCHW."""
    x = jnp.transpose(x_nchw, (0, 2, 3, 1)).astype(jnp.float32)  # NHWC
    N, H, W, Cin = x.shape
    Cout = params["w1"].shape[-1]
    cin_p = _round_up(Cin, _LANE)
    cout_p = _round_up(Cout, _LANE)
    tn = 256 if cout_p % 256 == 0 else _LANE       # full-width MXU on v6e/v7x

    vmem_cap = _vmem_capacity_bytes()
    vmem_limit = min(int(vmem_cap * 0.85), 112 * 1024 * 1024)
    target_m = 1024 if vmem_cap >= 96 * 1024 * 1024 else 512

    OH = (H + 2 - 3) // stride + 1
    OW = (W + 2 - 3) // stride + 1
    OWp = _round_up(OW, _SUBLANE)                  # free (th, ow) reshapes
    th = min(OH, max(1, target_m // OWp))
    OHp = _round_up(OH, th)

    # --- conv1 input: channel pad to lanes, spatial halo pad, bf16 ---
    rows1 = max(H + 2, stride * (OHp - 1) + 3)     # tail-tile taps in bounds
    cols1 = max(W + 2, stride * (OWp - 1) + 3)
    x_pad = jnp.pad(_pad_axis(x, 3, cin_p),
                    ((0, 0), (1, rows1 - H - 1), (1, cols1 - W - 1), (0, 0)))
    x_pad = x_pad.astype(jnp.bfloat16)

    # --- weights / BN folded, padded, bf16 ---
    w1s, b1 = _fold_bn_into_weight(params["w1"], params["bn1"])
    w2s, b2 = _fold_bn_into_weight(params["w2"], params["bn2"])
    w1m = _pad_axis(_pad_axis(w1s, 2, cin_p), 3, cout_p)
    w1m = w1m.reshape(9, cin_p, cout_p).astype(jnp.bfloat16)
    b1p = _pad_axis(b1, 0, cout_p).reshape(1, cout_p).astype(jnp.float32)
    w2m = _pad_axis(_pad_axis(w2s, 2, cout_p), 3, cout_p)
    w2m = w2m.reshape(9, cout_p, cout_p).astype(jnp.bfloat16)
    b2p = _pad_axis(b2, 0, cout_p).reshape(1, cout_p).astype(jnp.float32)

    # --- conv1 + bn1 + relu (bf16 intermediate) ---
    out1 = _conv_block_call(
        functools.partial(_conv_bn_relu_kernel, th=th, ow=OWp, stride=stride),
        x_pad, w1m, b1p, [], [], jnp.bfloat16,
        n=N, ohp=OHp, owp=OWp, th=th, tn=tn, vmem_limit=vmem_limit)

    # re-pad the conv1 output with its halo for conv2 (single bf16 copy)
    out1_pad = jnp.pad(out1[:, :OH, :OW],
                       ((0, 0), (1, OHp - OH + 1), (1, OWp - OW + 1), (0, 0)))

    # --- shortcut operand at output resolution, row-tiled (not full image) ---
    use_proj = (stride != 1) or (Cin != Cout)
    x_out_res = x[:, ::stride, ::stride, :]        # (N, OH, OW, Cin)
    if use_proj:
        wss, bs = _fold_bn_into_weight(params["ws"], params["bns"])
        wsm = _pad_axis(_pad_axis(wss, 2, cin_p), 3, cout_p)
        wsm = wsm.reshape(cin_p, cout_p).astype(jnp.bfloat16)
        bsp = _pad_axis(bs, 0, cout_p).reshape(1, cout_p).astype(jnp.float32)
        x_sc = jnp.pad(_pad_axis(x_out_res, 3, cin_p),
                       ((0, 0), (0, OHp - OH), (0, OWp - OW), (0, 0)))
        x_sc = x_sc.astype(jnp.bfloat16)
        extra_inputs = [x_sc, wsm, bsp]
        extra_specs = [
            pl.BlockSpec((None, th, OWp, cin_p), lambda nn, c, r: (nn, r, 0, 0)),
            pl.BlockSpec((cin_p, tn), lambda nn, c, r: (0, c)),
            pl.BlockSpec((1, tn), lambda nn, c, r: (0, c)),
        ]
        kernel = functools.partial(_conv_bn_add_proj_relu_kernel,
                                   th=th, ow=OWp)
    else:
        # identity residual kept in f32 so the shortcut add is exact
        x_res = jnp.pad(_pad_axis(x_out_res, 3, cout_p),
                        ((0, 0), (0, OHp - OH), (0, OWp - OW), (0, 0)))
        extra_inputs = [x_res]
        extra_specs = [
            pl.BlockSpec((None, th, OWp, tn), lambda nn, c, r: (nn, r, 0, c)),
        ]
        kernel = functools.partial(_conv_bn_add_id_relu_kernel, th=th, ow=OWp)

    out = _conv_block_call(kernel, out1_pad, w2m, b2p, extra_inputs,
                           extra_specs, jnp.float32,
                           n=N, ohp=OHp, owp=OWp, th=th, tn=tn,
                           vmem_limit=vmem_limit)

    out = out[:, :OH, :OW, :Cout]                  # drop row/col/channel padding
    return jnp.transpose(out, (0, 3, 1, 2))        # back to NCHW


# ---------------------------- reference (lax) ------------------------------ #

def _ref_forward(x_nchw, params, stride=1):
    def conv(x, w, s, pad):
        return jax.lax.conv_general_dilated(
            x, w, (s, s), [(pad, pad), (pad, pad)],
            dimension_numbers=("NHWC", "HWIO", "NHWC"))

    def bn(x, p):
        gamma, beta, mean, var = p
        return (x - mean) / jnp.sqrt(var + _EPS) * gamma + beta

    x = jnp.transpose(x_nchw, (0, 2, 3, 1)).astype(jnp.float32)
    Cin = x.shape[-1]
    Cout = params["w1"].shape[-1]
    out = jax.nn.relu(bn(conv(x, params["w1"], stride, 1), params["bn1"]))
    out = bn(conv(out, params["w2"], 1, 1), params["bn2"])
    if stride != 1 or Cin != Cout:
        sc = bn(conv(x, params["ws"], stride, 0), params["bns"])
    else:
        sc = x
    out = jax.nn.relu(out + sc)
    return jnp.transpose(out, (0, 3, 1, 2))


# --------------------------------- main ------------------------------------ #

def _make_params(key, cin, cout, stride):
    ks = jax.random.split(key, 16)

    def bn_params(k):
        k0, k1, k2, k3 = jax.random.split(k, 4)
        gamma = 1.0 + 0.1 * jax.random.normal(k0, (cout,), jnp.float32)
        beta = 0.1 * jax.random.normal(k1, (cout,), jnp.float32)
        mean = 0.1 * jax.random.normal(k2, (cout,), jnp.float32)
        var = 0.5 + jnp.abs(jax.random.normal(k3, (cout,), jnp.float32)) * 0.1
        return (gamma, beta, mean, var)

    params = {
        "w1": 0.2 * jax.random.normal(ks[0], (3, 3, cin, cout), jnp.float32),
        "bn1": bn_params(ks[1]),
        "w2": 0.2 * jax.random.normal(ks[2], (3, 3, cout, cout), jnp.float32),
        "bn2": bn_params(ks[3]),
    }
    if stride != 1 or cin != cout:
        params["ws"] = 0.2 * jax.random.normal(ks[4], (1, 1, cin, cout), jnp.float32)
        params["bns"] = bn_params(ks[5])
    return params


def _run_case(key, n, cin, h, w, cout, stride):
    kx, kp = jax.random.split(key)
    x = jax.random.normal(kx, (n, cin, h, w), jnp.float32)
    params = _make_params(kp, cin, cout, stride)

    fwd = jax.jit(functools.partial(residual_block_forward, stride=stride))
    out = jax.block_until_ready(fwd(x, params))
    ref = jax.block_until_ready(_ref_forward(x, params, stride=stride))

    assert out.shape == ref.shape, (out.shape, ref.shape)
    # bf16 matmul inputs (f32 accumulation) -> loosened tolerance vs f32 ref
    err = float(jnp.max(jnp.abs(out - ref)))
    assert jnp.allclose(out, ref, rtol=5e-2, atol=5e-2), err


if __name__ == "__main__":
    key = jax.random.PRNGKey(0)
    k1, k2 = jax.random.split(key)
    # projection shortcut path (Cin != Cout -> 1x1 conv + BN fused into conv2)
    _run_case(k1, 2, 4, 16, 16, 8, 1)
    # identity shortcut path (Cin == Cout, stride == 1)
    _run_case(k2, 2, 8, 16, 16, 8, 1)
    print("KERNEL_OK")
</pallas_src>

<mosaic_0001>
module attributes {stable_mosaic.version = 11 : i64} {
  func.func @_conv_bn_relu_kernel(%arg0: i32, %arg1: i32, %arg2: i32, %arg3: memref<1x18x18x128xbf16, #tpu.memory_space<vmem>>, %arg4: memref<9x128x128xbf16, #tpu.memory_space<vmem>>, %arg5: memref<1x128xf32, #tpu.memory_space<vmem>>, %arg6: memref<1x16x16x128xbf16, #tpu.memory_space<vmem>>) attributes {dimension_semantics = [#tpu.dimension_semantics<parallel>, #tpu.dimension_semantics<parallel>, #tpu.dimension_semantics<parallel>], iteration_bounds = array<i64: 2, 1, 1>, scalar_prefetch = 0 : i64, scratch_operands = 0 : i64, tpu.core_type = #tpu.core_type<tc>, window_params = [{transform_indices = @transform_0, window_bounds = array<i64: 1, 18, 18, 128>}, {transform_indices = @transform_1, window_bounds = array<i64: 9, 128, 128>}, {transform_indices = @transform_2, window_bounds = array<i64: 1, 128>}, {transform_indices = @transform_3, window_bounds = array<i64: 1, 16, 16, 128>}]} {
    %c16_i32 = arith.constant 16 : i32
    %0 = arith.muli %arg2, %c16_i32 : i32
    %c0_i32 = arith.constant 0 : i32
    %1 = arith.addi %0, %c0_i32 : i32
    %c0 = arith.constant 0 : index
    %2 = arith.index_cast %1 : i32 to index
    %c0_0 = arith.constant 0 : index
    %c0_1 = arith.constant 0 : index
    %3 = vector.load %arg3[%c0, %2, %c0_0, %c0_1] : memref<1x18x18x128xbf16, #tpu.memory_space<vmem>>, vector<1x16x16x128xbf16>
    %4 = vector.shape_cast %3 : vector<1x16x16x128xbf16> to vector<16x16x128xbf16>
    %5 = vector.shape_cast %4 : vector<16x16x128xbf16> to vector<256x128xbf16>
    %c0_2 = arith.constant 0 : index
    %c0_3 = arith.constant 0 : index
    %c0_4 = arith.constant 0 : index
    %6 = vector.load %arg4[%c0_2, %c0_3, %c0_4] : memref<9x128x128xbf16, #tpu.memory_space<vmem>>, vector<1x128x128xbf16>
    %7 = vector.shape_cast %6 : vector<1x128x128xbf16> to vector<128x128xbf16>
    %cst = arith.constant dense<0.000000e+00> : vector<256x128xf32>
    %8 = tpu.matmul %5, %7, %cst {dimension_numbers = #tpu.dot_dimension_numbers<[1], [0], [0], [1], [0, 0, 1, 1], [], []>} : vector<256x128xbf16>, vector<128x128xbf16>, vector<256x128xf32> -> vector<256x128xf32>
    %c0_5 = arith.constant 0 : index
    %c0_6 = arith.constant 0 : index
    %9 = vector.load %arg5[%c0_5, %c0_6] : memref<1x128xf32, #tpu.memory_space<vmem>>, vector<1x128xf32>
    %10 = vector.broadcast %9 : vector<1x128xf32> to vector<256x128xf32>
    %11 = arith.addf %8, %10 : vector<256x128xf32>
    %c0_i32_7 = arith.constant 0 : i32
    %12 = arith.addi %0, %c0_i32_7 : i32
    %c0_8 = arith.constant 0 : index
    %13 = arith.index_cast %12 : i32 to index
    %c1 = arith.constant 1 : index
    %c0_9 = arith.constant 0 : index
    %14 = vector.load %arg3[%c0_8, %13, %c1, %c0_9] : memref<1x18x18x128xbf16, #tpu.memory_space<vmem>>, vector<1x16x16x128xbf16>
    %15 = vector.shape_cast %14 : vector<1x16x16x128xbf16> to vector<16x16x128xbf16>
    %16 = vector.shape_cast %15 : vector<16x16x128xbf16> to vector<256x128xbf16>
    %c1_10 = arith.constant 1 : index
    %c0_11 = arith.constant 0 : index
    %c0_12 = arith.constant 0 : index
    %17 = vector.load %arg4[%c1_10, %c0_11, %c0_12] : memref<9x128x128xbf16, #tpu.memory_space<vmem>>, vector<1x128x128xbf16>
    %18 = vector.shape_cast %17 : vector<1x128x128xbf16> to vector<128x128xbf16>
    %cst_13 = arith.constant dense<0.000000e+00> : vector<256x128xf32>
    %19 = tpu.matmul %16, %18, %cst_13 {dimension_numbers = #tpu.dot_dimension_numbers<[1], [0], [0], [1], [0, 0, 1, 1], [], []>} : vector<256x128xbf16>, vector<128x128xbf16>, vector<256x128xf32> -> vector<256x128xf32>
    %20 = arith.addf %11, %19 : vector<256x128xf32>
    %c0_i32_14 = arith.constant 0 : i32
    %21 = arith.addi %0, %c0_i32_14 : i32
    %c0_15 = arith.constant 0 : index
    %22 = arith.index_cast %21 : i32 to index
    %c2 = arith.constant 2 : index
    %c0_16 = arith.constant 0 : index
    %23 = vector.load %arg3[%c0_15, %22, %c2, %c0_16] : memref<1x18x18x128xbf16, #tpu.memory_space<vmem>>, vector<1x16x16x128xbf16>
    %24 = vector.shape_cast %23 : vector<1x16x16x128xbf16> to vector<16x16x128xbf16>
    %25 = vector.shape_cast %24 : vector<16x16x128xbf16> to vector<256x128xbf16>
    %c2_17 = arith.constant 2 : index
    %c0_18 = arith.constant 0 : index
    %c0_19 = arith.constant 0 : index
    %26 = vector.load %arg4[%c2_17, %c0_18, %c0_19] : memref<9x128x128xbf16, #tpu.memory_space<vmem>>, vector<1x128x128xbf16>
    %27 = vector.shape_cast %26 : vector<1x128x128xbf16> to vector<128x128xbf16>
    %cst_20 = arith.constant dense<0.000000e+00> : vector<256x128xf32>
    %28 = tpu.matmul %25, %27, %cst_20 {dimension_numbers = #tpu.dot_dimension_numbers<[1], [0], [0], [1], [0, 0, 1, 1], [], []>} : vector<256x128xbf16>, vector<128x128xbf16>, vector<256x128xf32> -> vector<256x128xf32>
    %29 = arith.addf %20, %28 : vector<256x128xf32>
    %c1_i32 = arith.constant 1 : i32
    %30 = arith.addi %0, %c1_i32 : i32
    %c0_21 = arith.constant 0 : index
    %31 = arith.index_cast %30 : i32 to index
    %c0_22 = arith.constant 0 : index
    %c0_23 = arith.constant 0 : index
    %32 = vector.load %arg3[%c0_21, %31, %c0_22, %c0_23] : memref<1x18x18x128xbf16, #tpu.memory_space<vmem>>, vector<1x16x16x128xbf16>
    %33 = vector.shape_cast %32 : vector<1x16x16x128xbf16> to vector<16x16x128xbf16>
    %34 = vector.shape_cast %33 : vector<16x16x128xbf16> to vector<256x128xbf16>
    %c3 = arith.constant 3 : index
    %c0_24 = arith.constant 0 : index
    %c0_25 = arith.constant 0 : index
    %35 = vector.load %arg4[%c3, %c0_24, %c0_25] : memref<9x128x128xbf16, #tpu.memory_space<vmem>>, vector<1x128x128xbf16>
    %36 = vector.shape_cast %35 : vector<1x128x128xbf16> to vector<128x128xbf16>
    %cst_26 = arith.constant dense<0.000000e+00> : vector<256x128xf32>
    %37 = tpu.matmul %34, %36, %cst_26 {dimension_numbers = #tpu.dot_dimension_numbers<[1], [0], [0], [1], [0, 0, 1, 1], [], []>} : vector<256x128xbf16>, vector<128x128xbf16>, vector<256x128xf32> -> vector<256x128xf32>
    %38 = arith.addf %29, %37 : vector<256x128xf32>
    %c1_i32_27 = arith.constant 1 : i32
    %39 = arith.addi %0, %c1_i32_27 : i32
    %c0_28 = arith.constant 0 : index
    %40 = arith.index_cast %39 : i32 to index
    %c1_29 = arith.constant 1 : index
    %c0_30 = arith.constant 0 : index
    %41 = vector.load %arg3[%c0_28, %40, %c1_29, %c0_30] : memref<1x18x18x128xbf16, #tpu.memory_space<vmem>>, vector<1x16x16x128xbf16>
    %42 = vector.shape_cast %41 : vector<1x16x16x128xbf16> to vector<16x16x128xbf16>
    %43 = vector.shape_cast %42 : vector<16x16x128xbf16> to vector<256x128xbf16>
    %c4 = arith.constant 4 : index
    %c0_31 = arith.constant 0 : index
    %c0_32 = arith.constant 0 : index
    %44 = vector.load %arg4[%c4, %c0_31, %c0_32] : memref<9x128x128xbf16, #tpu.memory_space<vmem>>, vector<1x128x128xbf16>
    %45 = vector.shape_cast %44 : vector<1x128x128xbf16> to vector<128x128xbf16>
    %cst_33 = arith.constant dense<0.000000e+00> : vector<256x128xf32>
    %46 = tpu.matmul %43, %45, %cst_33 {dimension_numbers = #tpu.dot_dimension_numbers<[1], [0], [0], [1], [0, 0, 1, 1], [], []>} : vector<256x128xbf16>, vector<128x128xbf16>, vector<256x128xf32> -> vector<256x128xf32>
    %47 = arith.addf %38, %46 : vector<256x128xf32>
    %c1_i32_34 = arith.constant 1 : i32
    %48 = arith.addi %0, %c1_i32_34 : i32
    %c0_35 = arith.constant 0 : index
    %49 = arith.index_cast %48 : i32 to index
    %c2_36 = arith.constant 2 : index
    %c0_37 = arith.constant 0 : index
    %50 = vector.load %arg3[%c0_35, %49, %c2_36, %c0_37] : memref<1x18x18x128xbf16, #tpu.memory_space<vmem>>, vector<1x16x16x128xbf16>
    %51 = vector.shape_cast %50 : vector<1x16x16x128xbf16> to vector<16x16x128xbf16>
    %52 = vector.shape_cast %51 : vector<16x16x128xbf16> to vector<256x128xbf16>
    %c5 = arith.constant 5 : index
    %c0_38 = arith.constant 0 : index
    %c0_39 = arith.constant 0 : index
    %53 = vector.load %arg4[%c5, %c0_38, %c0_39] : memref<9x128x128xbf16, #tpu.memory_space<vmem>>, vector<1x128x128xbf16>
    %54 = vector.shape_cast %53 : vector<1x128x128xbf16> to vector<128x128xbf16>
    %cst_40 = arith.constant dense<0.000000e+00> : vector<256x128xf32>
    %55 = tpu.matmul %52, %54, %cst_40 {dimension_numbers = #tpu.dot_dimension_numbers<[1], [0], [0], [1], [0, 0, 1, 1], [], []>} : vector<256x128xbf16>, vector<128x128xbf16>, vector<256x128xf32> -> vector<256x128xf32>
    %56 = arith.addf %47, %55 : vector<256x128xf32>
    %c2_i32 = arith.constant 2 : i32
    %57 = arith.addi %0, %c2_i32 : i32
    %c0_41 = arith.constant 0 : index
    %58 = arith.index_cast %57 : i32 to index
    %c0_42 = arith.constant 0 : index
    %c0_43 = arith.constant 0 : index
    %59 = vector.load %arg3[%c0_41, %58, %c0_42, %c0_43] : memref<1x18x18x128xbf16, #tpu.memory_space<vmem>>, vector<1x16x16x128xbf16>
    %60 = vector.shape_cast %59 : vector<1x16x16x128xbf16> to vector<16x16x128xbf16>
    %61 = vector.shape_cast %60 : vector<16x16x128xbf16> to vector<256x128xbf16>
    %c6 = arith.constant 6 : index
    %c0_44 = arith.constant 0 : index
    %c0_45 = arith.constant 0 : index
    %62 = vector.load %arg4[%c6, %c0_44, %c0_45] : memref<9x128x128xbf16, #tpu.memory_space<vmem>>, vector<1x128x128xbf16>
    %63 = vector.shape_cast %62 : vector<1x128x128xbf16> to vector<128x128xbf16>
    %cst_46 = arith.constant dense<0.000000e+00> : vector<256x128xf32>
    %64 = tpu.matmul %61, %63, %cst_46 {dimension_numbers = #tpu.dot_dimension_numbers<[1], [0], [0], [1], [0, 0, 1, 1], [], []>} : vector<256x128xbf16>, vector<128x128xbf16>, vector<256x128xf32> -> vector<256x128xf32>
    %65 = arith.addf %56, %64 : vector<256x128xf32>
    %c2_i32_47 = arith.constant 2 : i32
    %66 = arith.addi %0, %c2_i32_47 : i32
    %c0_48 = arith.constant 0 : index
    %67 = arith.index_cast %66 : i32 to index
    %c1_49 = arith.constant 1 : index
    %c0_50 = arith.constant 0 : index
    %68 = vector.load %arg3[%c0_48, %67, %c1_49, %c0_50] : memref<1x18x18x128xbf16, #tpu.memory_space<vmem>>, vector<1x16x16x128xbf16>
    %69 = vector.shape_cast %68 : vector<1x16x16x128xbf16> to vector<16x16x128xbf16>
    %70 = vector.shape_cast %69 : vector<16x16x128xbf16> to vector<256x128xbf16>
    %c7 = arith.constant 7 : index
    %c0_51 = arith.constant 0 : index
    %c0_52 = arith.constant 0 : index
    %71 = vector.load %arg4[%c7, %c0_51, %c0_52] : memref<9x128x128xbf16, #tpu.memory_space<vmem>>, vector<1x128x128xbf16>
    %72 = vector.shape_cast %71 : vector<1x128x128xbf16> to vector<128x128xbf16>
    %cst_53 = arith.constant dense<0.000000e+00> : vector<256x128xf32>
    %73 = tpu.matmul %70, %72, %cst_53 {dimension_numbers = #tpu.dot_dimension_numbers<[1], [0], [0], [1], [0, 0, 1, 1], [], []>} : vector<256x128xbf16>, vector<128x128xbf16>, vector<256x128xf32> -> vector<256x128xf32>
    %74 = arith.addf %65, %73 : vector<256x128xf32>
    %c2_i32_54 = arith.constant 2 : i32
    %75 = arith.addi %0, %c2_i32_54 : i32
    %c0_55 = arith.constant 0 : index
    %76 = arith.index_cast %75 : i32 to index
    %c2_56 = arith.constant 2 : index
    %c0_57 = arith.constant 0 : index
    %77 = vector.load %arg3[%c0_55, %76, %c2_56, %c0_57] : memref<1x18x18x128xbf16, #tpu.memory_space<vmem>>, vector<1x16x16x128xbf16>
    %78 = vector.shape_cast %77 : vector<1x16x16x128xbf16> to vector<16x16x128xbf16>
    %79 = vector.shape_cast %78 : vector<16x16x128xbf16> to vector<256x128xbf16>
    %c8 = arith.constant 8 : index
    %c0_58 = arith.constant 0 : index
    %c0_59 = arith.constant 0 : index
    %80 = vector.load %arg4[%c8, %c0_58, %c0_59] : memref<9x128x128xbf16, #tpu.memory_space<vmem>>, vector<1x128x128xbf16>
    %81 = vector.shape_cast %80 : vector<1x128x128xbf16> to vector<128x128xbf16>
    %cst_60 = arith.constant dense<0.000000e+00> : vector<256x128xf32>
    %82 = tpu.matmul %79, %81, %cst_60 {dimension_numbers = #tpu.dot_dimension_numbers<[1], [0], [0], [1], [0, 0, 1, 1], [], []>} : vector<256x128xbf16>, vector<128x128xbf16>, vector<256x128xf32> -> vector<256x128xf32>
    %83 = arith.addf %74, %82 : vector<256x128xf32>
    %cst_61 = arith.constant 0.000000e+00 : f32
    %84 = vector.broadcast %cst_61 : f32 to vector<256x128xf32>
    %85 = arith.maximumf %83, %84 : vector<256x128xf32>
    %86 = vector.shape_cast %85 : vector<256x128xf32> to vector<16x16x128xf32>
    %87 = arith.truncf %86 : vector<16x16x128xf32> to vector<16x16x128xbf16>
    %c0_62 = arith.constant 0 : index
    %c0_63 = arith.constant 0 : index
    %c0_64 = arith.constant 0 : index
    %c0_65 = arith.constant 0 : index
    %88 = vector.load %arg6[%c0_62, %c0_63, %c0_64, %c0_65] : memref<1x16x16x128xbf16, #tpu.memory_space<vmem>>, vector<1x16x16x128xbf16>
    %89 = vector.shape_cast %88 : vector<1x16x16x128xbf16> to vector<16x16x128xbf16>
    %90 = vector.shape_cast %87 : vector<16x16x128xbf16> to vector<1x16x16x128xbf16>
    tpu.vector_store %arg6[%c0_62, %c0_63, %c0_64, %c0_65], %90 {strides = array<i32>} : memref<1x16x16x128xbf16, #tpu.memory_space<vmem>>, vector<1x16x16x128xbf16>,
    return
  }
  func.func @transform_0(%arg0: i32, %arg1: i32, %arg2: i32) -> (i32, i32, i32, i32) {
    %c0_i32 = arith.constant 0 : i32
    %c0_i32_0 = arith.constant 0 : i32
    %c0_i32_1 = arith.constant 0 : i32
    %c0_i32_2 = arith.constant 0 : i32
    return %arg0, %c0_i32, %c0_i32_0, %c0_i32_1 : i32, i32, i32, i32
  }
  func.func @transform_1(%arg0: i32, %arg1: i32, %arg2: i32) -> (i32, i32, i32) {
    %c0_i32 = arith.constant 0 : i32
    %c0_i32_0 = arith.constant 0 : i32
    %c0_i32_1 = arith.constant 0 : i32
    return %c0_i32, %c0_i32_0, %arg1 : i32, i32, i32
  }
  func.func @transform_2(%arg0: i32, %arg1: i32, %arg2: i32) -> (i32, i32) {
    %c0_i32 = arith.constant 0 : i32
    %c0_i32_0 = arith.constant 0 : i32
    return %c0_i32, %arg1 : i32, i32
  }
  func.func @transform_3(%arg0: i32, %arg1: i32, %arg2: i32) -> (i32, i32, i32, i32) {
    %c0_i32 = arith.constant 0 : i32
    %c0_i32_0 = arith.constant 0 : i32
    return %arg0, %arg2, %c0_i32, %arg1 : i32, i32, i32, i32
  }
}

module attributes {stable_mosaic.version = 11 : i64} {
  func.func @_conv_bn_add_proj_relu_kernel(%arg0: i32, %arg1: i32, %arg2: i32, %arg3: memref<1x18x18x128xbf16, #tpu.memory_space<vmem>>, %arg4: memref<9x128x128xbf16, #tpu.memory_space<vmem>>, %arg5: memref<1x128xf32, #tpu.memory_space<vmem>>, %arg6: memref<1x16x16x128xbf16, #tpu.memory_space<vmem>>, %arg7: memref<128x128xbf16, #tpu.memory_space<vmem>>, %arg8: memref<1x128xf32, #tpu.memory_space<vmem>>, %arg9: memref<1x16x16x128xf32, #tpu.memory_space<vmem>>) attributes {dimension_semantics = [#tpu.dimension_semantics<parallel>, #tpu.dimension_semantics<parallel>, #tpu.dimension_semantics<parallel>], iteration_bounds = array<i64: 2, 1, 1>, scalar_prefetch = 0 : i64, scratch_operands = 0 : i64, tpu.core_type = #tpu.core_type<tc>, window_params = [{transform_indices = @transform_0, window_bounds = array<i64: 1, 18, 18, 128>}, {transform_indices = @transform_1, window_bounds = array<i64: 9, 128, 128>}, {transform_indices = @transform_2, window_bounds = array<i64: 1, 128>}, {transform_indices = @transform_3, window_bounds = array<i64: 1, 16, 16, 128>}, {transform_indices = @transform_4, window_bounds = array<i64: 128, 128>}, {transform_indices = @transform_5, window_bounds = array<i64: 1, 128>}, {transform_indices = @transform_6, window_bounds = array<i64: 1, 16, 16, 128>}]} {
    %c16_i32 = arith.constant 16 : i32
    %0 = arith.muli %arg2, %c16_i32 : i32
    %c0_i32 = arith.constant 0 : i32
    %1 = arith.addi %0, %c0_i32 : i32
    %c0 = arith.constant 0 : index
    %2 = arith.index_cast %1 : i32 to index
    %c0_0 = arith.constant 0 : index
    %c0_1 = arith.constant 0 : index
    %3 = vector.load %arg3[%c0, %2, %c0_0, %c0_1] : memref<1x18x18x128xbf16, #tpu.memory_space<vmem>>, vector<1x16x16x128xbf16>
    %4 = vector.shape_cast %3 : vector<1x16x16x128xbf16> to vector<16x16x128xbf16>
    %5 = vector.shape_cast %4 : vector<16x16x128xbf16> to vector<256x128xbf16>
    %c0_2 = arith.constant 0 : index
    %c0_3 = arith.constant 0 : index
    %c0_4 = arith.constant 0 : index
    %6 = vector.load %arg4[%c0_2, %c0_3, %c0_4] : memref<9x128x128xbf16, #tpu.memory_space<vmem>>, vector<1x128x128xbf16>
    %7 = vector.shape_cast %6 : vector<1x128x128xbf16> to vector<128x128xbf16>
    %cst = arith.constant dense<0.000000e+00> : vector<256x128xf32>
    %8 = tpu.matmul %5, %7, %cst {dimension_numbers = #tpu.dot_dimension_numbers<[1], [0], [0], [1], [0, 0, 1, 1], [], []>} : vector<256x128xbf16>, vector<128x128xbf16>, vector<256x128xf32> -> vector<256x128xf32>
    %c0_5 = arith.constant 0 : index
    %c0_6 = arith.constant 0 : index
    %9 = vector.load %arg5[%c0_5, %c0_6] : memref<1x128xf32, #tpu.memory_space<vmem>>, vector<1x128xf32>
    %10 = vector.broadcast %9 : vector<1x128xf32> to vector<256x128xf32>
    %11 = arith.addf %8, %10 : vector<256x128xf32>
    %c0_i32_7 = arith.constant 0 : i32
    %12 = arith.addi %0, %c0_i32_7 : i32
    %c0_8 = arith.constant 0 : index
    %13 = arith.index_cast %12 : i32 to index
    %c1 = arith.constant 1 : index
    %c0_9 = arith.constant 0 : index
    %14 = vector.load %arg3[%c0_8, %13, %c1, %c0_9] : memref<1x18x18x128xbf16, #tpu.memory_space<vmem>>, vector<1x16x16x128xbf16>
    %15 = vector.shape_cast %14 : vector<1x16x16x128xbf16> to vector<16x16x128xbf16>
    %16 = vector.shape_cast %15 : vector<16x16x128xbf16> to vector<256x128xbf16>
    %c1_10 = arith.constant 1 : index
    %c0_11 = arith.constant 0 : index
    %c0_12 = arith.constant 0 : index
    %17 = vector.load %arg4[%c1_10, %c0_11, %c0_12] : memref<9x128x128xbf16, #tpu.memory_space<vmem>>, vector<1x128x128xbf16>
    %18 = vector.shape_cast %17 : vector<1x128x128xbf16> to vector<128x128xbf16>
    %cst_13 = arith.constant dense<0.000000e+00> : vector<256x128xf32>
    %19 = tpu.matmul %16, %18, %cst_13 {dimension_numbers = #tpu.dot_dimension_numbers<[1], [0], [0], [1], [0, 0, 1, 1], [], []>} : vector<256x128xbf16>, vector<128x128xbf16>, vector<256x128xf32> -> vector<256x128xf32>
    %20 = arith.addf %11, %19 : vector<256x128xf32>
    %c0_i32_14 = arith.constant 0 : i32
    %21 = arith.addi %0, %c0_i32_14 : i32
    %c0_15 = arith.constant 0 : index
    %22 = arith.index_cast %21 : i32 to index
    %c2 = arith.constant 2 : index
    %c0_16 = arith.constant 0 : index
    %23 = vector.load %arg3[%c0_15, %22, %c2, %c0_16] : memref<1x18x18x128xbf16, #tpu.memory_space<vmem>>, vector<1x16x16x128xbf16>
    %24 = vector.shape_cast %23 : vector<1x16x16x128xbf16> to vector<16x16x128xbf16>
    %25 = vector.shape_cast %24 : vector<16x16x128xbf16> to vector<256x128xbf16>
    %c2_17 = arith.constant 2 : index
    %c0_18 = arith.constant 0 : index
    %c0_19 = arith.constant 0 : index
    %26 = vector.load %arg4[%c2_17, %c0_18, %c0_19] : memref<9x128x128xbf16, #tpu.memory_space<vmem>>, vector<1x128x128xbf16>
    %27 = vector.shape_cast %26 : vector<1x128x128xbf16> to vector<128x128xbf16>
    %cst_20 = arith.constant dense<0.000000e+00> : vector<256x128xf32>
    %28 = tpu.matmul %25, %27, %cst_20 {dimension_numbers = #tpu.dot_dimension_numbers<[1], [0], [0], [1], [0, 0, 1, 1], [], []>} : vector<256x128xbf16>, vector<128x128xbf16>, vector<256x128xf32> -> vector<256x128xf32>
    %29 = arith.addf %20, %28 : vector<256x128xf32>
    %c1_i32 = arith.constant 1 : i32
    %30 = arith.addi %0, %c1_i32 : i32
    %c0_21 = arith.constant 0 : index
    %31 = arith.index_cast %30 : i32 to index
    %c0_22 = arith.constant 0 : index
    %c0_23 = arith.constant 0 : index
    %32 = vector.load %arg3[%c0_21, %31, %c0_22, %c0_23] : memref<1x18x18x128xbf16, #tpu.memory_space<vmem>>, vector<1x16x16x128xbf16>
    %33 = vector.shape_cast %32 : vector<1x16x16x128xbf16> to vector<16x16x128xbf16>
    %34 = vector.shape_cast %33 : vector<16x16x128xbf16> to vector<256x128xbf16>
    %c3 = arith.constant 3 : index
    %c0_24 = arith.constant 0 : index
    %c0_25 = arith.constant 0 : index
    %35 = vector.load %arg4[%c3, %c0_24, %c0_25] : memref<9x128x128xbf16, #tpu.memory_space<vmem>>, vector<1x128x128xbf16>
    %36 = vector.shape_cast %35 : vector<1x128x128xbf16> to vector<128x128xbf16>
    %cst_26 = arith.constant dense<0.000000e+00> : vector<256x128xf32>
    %37 = tpu.matmul %34, %36, %cst_26 {dimension_numbers = #tpu.dot_dimension_numbers<[1], [0], [0], [1], [0, 0, 1, 1], [], []>} : vector<256x128xbf16>, vector<128x128xbf16>, vector<256x128xf32> -> vector<256x128xf32>
    %38 = arith.addf %29, %37 : vector<256x128xf32>
    %c1_i32_27 = arith.constant 1 : i32
    %39 = arith.addi %0, %c1_i32_27 : i32
    %c0_28 = arith.constant 0 : index
    %40 = arith.index_cast %39 : i32 to index
    %c1_29 = arith.constant 1 : index
    %c0_30 = arith.constant 0 : index
    %41 = vector.load %arg3[%c0_28, %40, %c1_29, %c0_30] : memref<1x18x18x128xbf16, #tpu.memory_space<vmem>>, vector<1x16x16x128xbf16>
    %42 = vector.shape_cast %41 : vector<1x16x16x128xbf16> to vector<16x16x128xbf16>
    %43 = vector.shape_cast %42 : vector<16x16x128xbf16> to vector<256x128xbf16>
    %c4 = arith.constant 4 : index
    %c0_31 = arith.constant 0 : index
    %c0_32 = arith.constant 0 : index
    %44 = vector.load %arg4[%c4, %c0_31, %c0_32] : memref<9x128x128xbf16, #tpu.memory_space<vmem>>, vector<1x128x128xbf16>
    %45 = vector.shape_cast %44 : vector<1x128x128xbf16> to vector<128x128xbf16>
    %cst_33 = arith.constant dense<0.000000e+00> : vector<256x128xf32>
    %46 = tpu.matmul %43, %45, %cst_33 {dimension_numbers = #tpu.dot_dimension_numbers<[1], [0], [0], [1], [0, 0, 1, 1], [], []>} : vector<256x128xbf16>, vector<128x128xbf16>, vector<256x128xf32> -> vector<256x128xf32>
    %47 = arith.addf %38, %46 : vector<256x128xf32>
    %c1_i32_34 = arith.constant 1 : i32
    %48 = arith.addi %0, %c1_i32_34 : i32
    %c0_35 = arith.constant 0 : index
    %49 = arith.index_cast %48 : i32 to index
    %c2_36 = arith.constant 2 : index
    %c0_37 = arith.constant 0 : index
    %50 = vector.load %arg3[%c0_35, %49, %c2_36, %c0_37] : memref<1x18x18x128xbf16, #tpu.memory_space<vmem>>, vector<1x16x16x128xbf16>
    %51 = vector.shape_cast %50 : vector<1x16x16x128xbf16> to vector<16x16x128xbf16>
    %52 = vector.shape_cast %51 : vector<16x16x128xbf16> to vector<256x128xbf16>
    %c5 = arith.constant 5 : index
    %c0_38 = arith.constant 0 : index
    %c0_39 = arith.constant 0 : index
    %53 = vector.load %arg4[%c5, %c0_38, %c0_39] : memref<9x128x128xbf16, #tpu.memory_space<vmem>>, vector<1x128x128xbf16>
    %54 = vector.shape_cast %53 : vector<1x128x128xbf16> to vector<128x128xbf16>
    %cst_40 = arith.constant dense<0.000000e+00> : vector<256x128xf32>
    %55 = tpu.matmul %52, %54, %cst_40 {dimension_numbers = #tpu.dot_dimension_numbers<[1], [0], [0], [1], [0, 0, 1, 1], [], []>} : vector<256x128xbf16>, vector<128x128xbf16>, vector<256x128xf32> -> vector<256x128xf32>
    %56 = arith.addf %47, %55 : vector<256x128xf32>
    %c2_i32 = arith.constant 2 : i32
    %57 = arith.addi %0, %c2_i32 : i32
    %c0_41 = arith.constant 0 : index
    %58 = arith.index_cast %57 : i32 to index
    %c0_42 = arith.constant 0 : index
    %c0_43 = arith.constant 0 : index
    %59 = vector.load %arg3[%c0_41, %58, %c0_42, %c0_43] : memref<1x18x18x128xbf16, #tpu.memory_space<vmem>>, vector<1x16x16x128xbf16>
    %60 = vector.shape_cast %59 : vector<1x16x16x128xbf16> to vector<16x16x128xbf16>
    %61 = vector.shape_cast %60 : vector<16x16x128xbf16> to vector<256x128xbf16>
    %c6 = arith.constant 6 : index
    %c0_44 = arith.constant 0 : index
    %c0_45 = arith.constant 0 : index
    %62 = vector.load %arg4[%c6, %c0_44, %c0_45] : memref<9x128x128xbf16, #tpu.memory_space<vmem>>, vector<1x128x128xbf16>
    %63 = vector.shape_cast %62 : vector<1x128x128xbf16> to vector<128x128xbf16>
    %cst_46 = arith.constant dense<0.000000e+00> : vector<256x128xf32>
    %64 = tpu.matmul %61, %63, %cst_46 {dimension_numbers = #tpu.dot_dimension_numbers<[1], [0], [0], [1], [0, 0, 1, 1], [], []>} : vector<256x128xbf16>, vector<128x128xbf16>, vector<256x128xf32> -> vector<256x128xf32>
    %65 = arith.addf %56, %64 : vector<256x128xf32>
    %c2_i32_47 = arith.constant 2 : i32
    %66 = arith.addi %0, %c2_i32_47 : i32
    %c0_48 = arith.constant 0 : index
    %67 = arith.index_cast %66 : i32 to index
    %c1_49 = arith.constant 1 : index
    %c0_50 = arith.constant 0 : index
    %68 = vector.load %arg3[%c0_48, %67, %c1_49, %c0_50] : memref<1x18x18x128xbf16, #tpu.memory_space<vmem>>, vector<1x16x16x128xbf16>
    %69 = vector.shape_cast %68 : vector<1x16x16x128xbf16> to vector<16x16x128xbf16>
    %70 = vector.shape_cast %69 : vector<16x16x128xbf16> to vector<256x128xbf16>
    %c7 = arith.constant 7 : index
    %c0_51 = arith.constant 0 : index
    %c0_52 = arith.constant 0 : index
    %71 = vector.load %arg4[%c7, %c0_51, %c0_52] : memref<9x128x128xbf16, #tpu.memory_space<vmem>>, vector<1x128x128xbf16>
    %72 = vector.shape_cast %71 : vector<1x128x128xbf16> to vector<128x128xbf16>
    %cst_53 = arith.constant dense<0.000000e+00> : vector<256x128xf32>
    %73 = tpu.matmul %70, %72, %cst_53 {dimension_numbers = #tpu.dot_dimension_numbers<[1], [0], [0], [1], [0, 0, 1, 1], [], []>} : vector<256x128xbf16>, vector<128x128xbf16>, vector<256x128xf32> -> vector<256x128xf32>
    %74 = arith.addf %65, %73 : vector<256x128xf32>
    %c2_i32_54 = arith.constant 2 : i32
    %75 = arith.addi %0, %c2_i32_54 : i32
    %c0_55 = arith.constant 0 : index
    %76 = arith.index_cast %75 : i32 to index
    %c2_56 = arith.constant 2 : index
    %c0_57 = arith.constant 0 : index
    %77 = vector.load %arg3[%c0_55, %76, %c2_56, %c0_57] : memref<1x18x18x128xbf16, #tpu.memory_space<vmem>>, vector<1x16x16x128xbf16>
    %78 = vector.shape_cast %77 : vector<1x16x16x128xbf16> to vector<16x16x128xbf16>
    %79 = vector.shape_cast %78 : vector<16x16x128xbf16> to vector<256x128xbf16>
    %c8 = arith.constant 8 : index
    %c0_58 = arith.constant 0 : index
    %c0_59 = arith.constant 0 : index
    %80 = vector.load %arg4[%c8, %c0_58, %c0_59] : memref<9x128x128xbf16, #tpu.memory_space<vmem>>, vector<1x128x128xbf16>
    %81 = vector.shape_cast %80 : vector<1x128x128xbf16> to vector<128x128xbf16>
    %cst_60 = arith.constant dense<0.000000e+00> : vector<256x128xf32>
    %82 = tpu.matmul %79, %81, %cst_60 {dimension_numbers = #tpu.dot_dimension_numbers<[1], [0], [0], [1], [0, 0, 1, 1], [], []>} : vector<256x128xbf16>, vector<128x128xbf16>, vector<256x128xf32> -> vector<256x128xf32>
    %83 = arith.addf %74, %82 : vector<256x128xf32>
    %c0_61 = arith.constant 0 : index
    %c0_62 = arith.constant 0 : index
    %c0_63 = arith.constant 0 : index
    %c0_64 = arith.constant 0 : index
    %84 = vector.load %arg6[%c0_61, %c0_62, %c0_63, %c0_64] : memref<1x16x16x128xbf16, #tpu.memory_space<vmem>>, vector<1x16x16x128xbf16>
    %85 = vector.shape_cast %84 : vector<1x16x16x128xbf16> to vector<16x16x128xbf16>
    %86 = vector.shape_cast %85 : vector<16x16x128xbf16> to vector<256x128xbf16>
    %c0_65 = arith.constant 0 : index
    %c0_66 = arith.constant 0 : index
    %87 = vector.load %arg7[%c0_65, %c0_66] : memref<128x128xbf16, #tpu.memory_space<vmem>>, vector<128x128xbf16>
    %cst_67 = arith.constant dense<0.000000e+00> : vector<256x128xf32>
    %88 = tpu.matmul %86, %87, %cst_67 {dimension_numbers = #tpu.dot_dimension_numbers<[1], [0], [0], [1], [0, 0, 1, 1], [], []>} : vector<256x128xbf16>, vector<128x128xbf16>, vector<256x128xf32> -> vector<256x128xf32>
    %c0_68 = arith.constant 0 : index
    %c0_69 = arith.constant 0 : index
    %89 = vector.load %arg8[%c0_68, %c0_69] : memref<1x128xf32, #tpu.memory_space<vmem>>, vector<1x128xf32>
    %90 = vector.broadcast %89 : vector<1x128xf32> to vector<256x128xf32>
    %91 = arith.addf %88, %90 : vector<256x128xf32>
    %92 = arith.addf %83, %91 : vector<256x128xf32>
    %cst_70 = arith.constant 0.000000e+00 : f32
    %93 = vector.broadcast %cst_70 : f32 to vector<256x128xf32>
    %94 = arith.maximumf %92, %93 : vector<256x128xf32>
    %95 = vector.shape_cast %94 : vector<256x128xf32> to vector<16x16x128xf32>
    %c0_71 = arith.constant 0 : index
    %c0_72 = arith.constant 0 : index
    %c0_73 = arith.constant 0 : index
    %c0_74 = arith.constant 0 : index
    %96 = vector.load %arg9[%c0_71, %c0_72, %c0_73, %c0_74] : memref<1x16x16x128xf32, #tpu.memory_space<vmem>>, vector<1x16x16x128xf32>
    %97 = vector.shape_cast %96 : vector<1x16x16x128xf32> to vector<16x16x128xf32>
    %98 = vector.shape_cast %95 : vector<16x16x128xf32> to vector<1x16x16x128xf32>
    tpu.vector_store %arg9[%c0_71, %c0_72, %c0_73, %c0_74], %98 {strides = array<i32>} : memref<1x16x16x128xf32, #tpu.memory_space<vmem>>, vector<1x16x16x128xf32>,
    return
  }
  func.func @transform_0(%arg0: i32, %arg1: i32, %arg2: i32) -> (i32, i32, i32, i32) {
    %c0_i32 = arith.constant 0 : i32
    %c0_i32_0 = arith.constant 0 : i32
    %c0_i32_1 = arith.constant 0 : i32
    %c0_i32_2 = arith.constant 0 : i32
    return %arg0, %c0_i32, %c0_i32_0, %c0_i32_1 : i32, i32, i32, i32
  }
  func.func @transform_1(%arg0: i32, %arg1: i32, %arg2: i32) -> (i32, i32, i32) {
    %c0_i32 = arith.constant 0 : i32
    %c0_i32_0 = arith.constant 0 : i32
    %c0_i32_1 = arith.constant 0 : i32
    return %c0_i32, %c0_i32_0, %arg1 : i32, i32, i32
  }
  func.func @transform_2(%arg0: i32, %arg1: i32, %arg2: i32) -> (i32, i32) {
    %c0_i32 = arith.constant 0 : i32
    %c0_i32_0 = arith.constant 0 : i32
    return %c0_i32, %arg1 : i32, i32
  }
  func.func @transform_3(%arg0: i32, %arg1: i32, %arg2: i32) -> (i32, i32, i32, i32) {
    %c0_i32 = arith.constant 0 : i32
    %c0_i32_0 = arith.constant 0 : i32
    %c0_i32_1 = arith.constant 0 : i32
    return %arg0, %arg2, %c0_i32, %c0_i32_0 : i32, i32, i32, i32
  }
  func.func @transform_4(%arg0: i32, %arg1: i32, %arg2: i32) -> (i32, i32) {
    %c0_i32 = arith.constant 0 : i32
    %c0_i32_0 = arith.constant 0 : i32
    return %c0_i32, %arg1 : i32, i32
  }
  func.func @transform_5(%arg0: i32, %arg1: i32, %arg2: i32) -> (i32, i32) {
    %c0_i32 = arith.constant 0 : i32
    %c0_i32_0 = arith.constant 0 : i32
    return %c0_i32, %arg1 : i32, i32
  }
  func.func @transform_6(%arg0: i32, %arg1: i32, %arg2: i32) -> (i32, i32, i32, i32) {
    %c0_i32 = arith.constant 0 : i32
    %c0_i32_0 = arith.constant 0 : i32
    return %arg0, %arg2, %c0_i32, %arg1 : i32, i32, i32, i32
  }
}

</mosaic_0001>

<llo_original>
// kernel: residual_block_forward.2
$region0: #{residual_block_forward.2}
  #allocation0 [shape = 'u32[]', space=smem, size = 0x4, offset = 0x4, fixed_abs, tag = 'smem constant byte address 0x4 - core index']
  #allocation1 [shape = 'u32[144,128]{1,0:T(1,128)}', space=vmem, size = 0x12000, scoped, tag = 'internal scratch']
  %s0 = inlined_call_operand.vmem [shape: bf16[2,18,18,128], index: 0, kind: input, shape index: {}]
  %s1 = inlined_call_operand.vmem [shape: bf16[9,128,128], index: 1, kind: input, shape index: {}]
  %s2 = inlined_call_operand.vmem [shape: f32[1,128], index: 2, kind: input, shape index: {}]
  %s3 = inlined_call_operand.vmem [shape: bf16[2,16,16,128], index: 3, kind: output, shape index: {}]
  %s4 = sld [smem:[#allocation0]]
  $region45: #{residual_block_forward.2} parent=0
    _
  %s6 = ssub.s32 1, %s4
  %s7 = scalar_select 0, %s6, %s4
  loop: start=0, step=1, limit=4
  $region2: #{residual_block_forward.2} parent=0 // loop_pre_header
    _
  $region3: #{residual_block_forward.2} parent=0 // loop_header
    %s9 = sphi 0, %s13
    %p10 = scmp.ge.s32.totalorder %s9, 4
    %s16 = sphi 0, %s35
    %s17 = sphi 0, %s31
    %s18 = sphi 0, %s27
    %s19 = sphi 0, %s16
    %s20 = sphi 0, %s17
    %s21 = sphi 0, %s18
    %s22 = sphi 0, %s19
    %s23 = sphi 0, %s20
    %s24 = sphi 0, %s21
    %s38 = sphi 0, %s40
    %s41 = sphi 0, %s38
    %s42 = sphi 0, %s41
    %s58 = sphi 0, %s42
    %s64 = sphi 0, %s66
    %s67 = sphi 0, %s64
    %s68 = sphi 0, %s67
    %s84 = sphi 0, %s68
    %s90 = sphi 0, %s92
    %s93 = sphi 0, %s90
    %s94 = sphi 0, %s93
    %s110 = sphi 0, %s94
    %s120 = sphi 0, %s122
    %s123 = sphi 0, %s120
    %s124 = sphi 0, %s123
    %s140 = sphi 0, %s124
  $region4: #{residual_block_forward.2} parent=0 // loop_header_branch
    %12 = sbr.rel (%p10) target = $region8
  $region5: #{residual_block_forward.2} parent=0 // loop_body
    %s14 = ssub.s32 %s9, 1
    %s15 = ssub.s32 %s9, 2
    %s25 = sadd.s32 1, %s18
    %p26 = scmp.ge.s32.totalorder %s25, 1
    %s27 = scalar_select %p26, 0, %s25
    %s28 = sadd.s32 1, %s17
    %s29 = scalar_select %p26, %s28, %s17
    %p30 = scmp.ge.s32.totalorder %s29, 1
    %s31 = scalar_select %p30, 0, %s29
    %s32 = sadd.s32 1, %s16
    %s33 = scalar_select %p30, %s32, %s16
    %p34 = scmp.ge.s32.totalorder %s33, 2
    %s35 = scalar_select %p34, 0, %s33
    %s36 = ssub.s32 %s16, %s35
    %p37 = scmp.eq.s32.totalorder %s36, 0
    %s39 = sadd.s32 %s38, 1
    %s40 = scalar_select %p37, %s38, %s39
    %p43 = pneg %p37
    %p44 = scmp.eq.s32.totalorder %s9, 1
    %p45 = por %p43, %p44
    %p46 = scmp.ne.s32.totalorder %s38, %s41
    %p47 = scmp.eq.s32.totalorder %s9, 0
    %p48 = por %p46, %p47
    %p49 = scmp.ne.s32.totalorder %s38, %s41
    %p50 = scmp.eq.s32.totalorder %s14, 1
    %p51 = por %p49, %p50
    %p52 = scmp.ne.s32.totalorder %s41, %s42
    %p53 = scmp.eq.s32.totalorder %s14, 0
    %p54 = por %p52, %p53
    %p55 = scmp.ne.s32.totalorder %s41, %s42
    %p56 = scmp.eq.s32.totalorder %s15, 1
    %p57 = por %p55, %p56
    %p59 = scmp.ne.s32.totalorder %s42, %s58
    %p60 = scmp.eq.s32.totalorder %s15, 0
    %p61 = por %p59, %p60
    %s62 = ssub.s32 %s17, %s31
    %p63 = scmp.eq.s32.totalorder %s62, 0
    %s65 = sadd.s32 %s64, 1
    %s66 = scalar_select %p63, %s64, %s65
    %p69 = pneg %p63
    %p70 = scmp.eq.s32.totalorder %s9, 1
    %p71 = por %p69, %p70
    %p72 = scmp.ne.s32.totalorder %s64, %s67
    %p73 = scmp.eq.s32.totalorder %s9, 0
    %p74 = por %p72, %p73
    %p75 = scmp.ne.s32.totalorder %s64, %s67
    %p76 = scmp.eq.s32.totalorder %s14, 1
    %p77 = por %p75, %p76
    %p78 = scmp.ne.s32.totalorder %s67, %s68
    %p79 = scmp.eq.s32.totalorder %s14, 0
    %p80 = por %p78, %p79
    %p81 = scmp.ne.s32.totalorder %s67, %s68
    %p82 = scmp.eq.s32.totalorder %s15, 1
    %p83 = por %p81, %p82
    %p85 = scmp.ne.s32.totalorder %s68, %s84
    %p86 = scmp.eq.s32.totalorder %s15, 0
    %p87 = por %p85, %p86
    %s88 = ssub.s32 %s17, %s31
    %p89 = scmp.eq.s32.totalorder %s88, 0
    %s91 = sadd.s32 %s90, 1
    %s92 = scalar_select %p89, %s90, %s91
    %p95 = pneg %p89
    %p96 = scmp.eq.s32.totalorder %s9, 1
    %p97 = por %p95, %p96
    %p98 = scmp.ne.s32.totalorder %s90, %s93
    %p99 = scmp.eq.s32.totalorder %s9, 0
    %p100 = por %p98, %p99
    %p101 = scmp.ne.s32.totalorder %s90, %s93
    %p102 = scmp.eq.s32.totalorder %s14, 1
    %p103 = por %p101, %p102
    %p104 = scmp.ne.s32.totalorder %s93, %s94
    %p105 = scmp.eq.s32.totalorder %s14, 0
    %p106 = por %p104, %p105
    %p107 = scmp.ne.s32.totalorder %s93, %s94
    %p108 = scmp.eq.s32.totalorder %s15, 1
    %p109 = por %p107, %p108
    %p111 = scmp.ne.s32.totalorder %s94, %s110
    %p112 = scmp.eq.s32.totalorder %s15, 0
    %p113 = por %p111, %p112
    %s114 = ssub.s32 %s16, %s35
    %s115 = ssub.s32 %s18, %s27
    %s116 = sor.u32 %s114, %s115
    %s117 = ssub.s32 %s17, %s31
    %s118 = sor.u32 %s116, %s117
    %p119 = scmp.eq.s32.totalorder %s118, 0
    %s121 = sadd.s32 %s120, 1
    %s122 = scalar_select %p119, %s120, %s121
    %p125 = pneg %p119
    %p126 = scmp.eq.s32.totalorder %s9, 1
    %p127 = por %p125, %p126
    %p128 = scmp.ne.s32.totalorder %s120, %s123
    %p129 = scmp.eq.s32.totalorder %s9, 0
    %p130 = por %p128, %p129
    %p131 = scmp.ne.s32.totalorder %s120, %s123
    %p132 = scmp.eq.s32.totalorder %s14, 1
    %p133 = por %p131, %p132
    %p134 = scmp.ne.s32.totalorder %s123, %s124
    %p135 = scmp.eq.s32.totalorder %s14, 0
    %p136 = por %p134, %p135
    %p137 = scmp.ne.s32.totalorder %s123, %s124
    %p138 = scmp.eq.s32.totalorder %s15, 1
    %p139 = por %p137, %p138
    %p141 = scmp.ne.s32.totalorder %s124, %s140
    %p142 = scmp.eq.s32.totalorder %s15, 0
    %p143 = por %p141, %p142
    %p144 = scmp.le.s32.totalorder 1, %s9
    %p145 = scmp.lt.s32.totalorder %s9, 3
    %p146 = pnand %p144, %p145
    %p147 = pneg %p146
    // Predicated region
    $region9: #{residual_block_forward.2} parent=5 // pred_check
      _
    $region10: #{residual_block_forward.2} parent=5 // pred_check_branch
      %149 = sbr.rel (%p146) target = $region12
    $region11: #{residual_block_forward.2} parent=5 // pred_region
      %s150 = ssub.s32 %s9, 1
      // Predicated region
      $region13: #{residual_block_forward.2} parent=11 // pred_check
        %p151 = pneg %p80
      $region14: #{residual_block_forward.2} parent=11 // pred_check_branch
        %153 = sbr.rel (%p151) target = $region16
      $region15: #{residual_block_forward.2} parent=11 // pred_region
        %p154 = scmp.lt.s32.totalorder %s20, 0
        %s155 = scalar_select %p154, %s20, 0
        %s156 = smul.addr %s155, 4
        %s157 = scalar_lea.vmem %s1, %s156
      $region16: #{residual_block_forward.2} parent=11 // pred_fallthru
        _
      // Predicated region
      $region17: #{residual_block_forward.2} parent=11 // pred_check
        %p158 = pneg %p106
      $region18: #{residual_block_forward.2} parent=11 // pred_check_branch
        %160 = sbr.rel (%p158) target = $region20
      $region19: #{residual_block_forward.2} parent=11 // pred_region
        %p161 = scmp.lt.s32.totalorder %s20, 0
        %s162 = scalar_select %p161, %s20, 0
        %s163 = scalar_lea.vmem %s2, %s162
      $region20: #{residual_block_forward.2} parent=11 // pred_fallthru
        _
    $region12: #{residual_block_forward.2} parent=5 // pred_fallthru
      _
    %p164 = scmp.lt.s32.totalorder %s9, 2
    // Predicated region
    $region21: #{residual_block_forward.2} parent=5 // pred_check
      %p165 = pneg %p164
    $region22: #{residual_block_forward.2} parent=5 // pred_check_branch
      %167 = sbr.rel (%p165) target = $region24
    $region23: #{residual_block_forward.2} parent=5 // pred_region
      // Predicated region
      $region25: #{residual_block_forward.2} parent=23 // pred_check
        %p168 = pneg %p48
      $region26: #{residual_block_forward.2} parent=23 // pred_check_branch
        %170 = sbr.rel (%p168) target = $region28
      $region27: #{residual_block_forward.2} parent=23 // pred_region
        %p171 = scmp.lt.s32.totalorder %s16, 1
        %s172 = scalar_select %p171, %s16, 1
        %s173 = smul.addr %s172, 54
        %s174 = smul.addr %s173, 4
        %s175 = scalar_lea.vmem %s0, %s174
      $region28: #{residual_block_forward.2} parent=23 // pred_fallthru
        _
    $region24: #{residual_block_forward.2} parent=5 // pred_fallthru
      _
    %p176 = scmp.le.s32.totalorder 1, %s9
    %p177 = scmp.lt.s32.totalorder %s9, 3
    %p178 = pnand %p176, %p177
    %p179 = pneg %p178
    // Predicated region
    $region29: #{residual_block_forward.2} parent=5 // pred_check
      _
    $region30: #{residual_block_forward.2} parent=5 // pred_check_branch
      %181 = sbr.rel (%p178) target = $region32
    $region31: #{residual_block_forward.2} parent=5 // pred_region
      %s182 = ssub.s32 %s9, 1
      %p183 = scmp.lt.s32.totalorder %s19, 1
      %s184 = scalar_select %p183, %s19, 1
      %s185 = smul.addr %s184, 54
      %s186 = smul.addr %s185, 4
      %s187 = scalar_lea.vmem %s0, %s186
      %p188 = pneg %p54
      %p189 = pneg %p51
      %p190 = scmp.lt.s32.totalorder %s20, 0
      %s191 = scalar_select %p190, %s20, 0
      %s192 = smul.addr %s191, 4
      %s193 = scalar_lea.vmem %s1, %s192
      %p194 = pneg %p80
      %p195 = pneg %p77
      %p196 = scmp.lt.s32.totalorder %s20, 0
      %s197 = scalar_select %p196, %s20, 0
      %s198 = scalar_lea.vmem %s2, %s197
      %p199 = pneg %p106
      %p200 = pneg %p103
      %p201 = pneg %p136
      %p202 = pneg %p133
      %s203 = smul.u32 16, %s21
      %p204 = scmp.lt.s32.totalorder %s19, 1
      %s205 = scalar_select %p204, %s19, 1
      %p206 = scmp.lt.s32.totalorder %s203, 15
      %s207 = scalar_select %p206, %s203, 15
      %p208 = scmp.lt.s32.totalorder %s20, 0
      %s209 = scalar_select %p208, %s20, 0
      %s210 = smul.addr %s207, 2
      %s211 = sadd.s32 %s209, %s210
      %s212 = smul.addr %s205, 32
      %s213 = sadd.s32 %s211, %s212
      %s214 = smul.addr %s213, 4
      %s215 = scalar_lea.vmem %s3, %s214
      %p216 = scmp.lt.s32.totalorder %s19, 1
      %s217 = scalar_select %p216, %s19, 1
      %s218 = smul.addr %s217, 54
      %s219 = smul.addr %s218, 4
      %s220 = scalar_lea.vmem %s0, %s219
      %p221 = scmp.lt.s32.totalorder %s20, 0
      %s222 = scalar_select %p221, %s20, 0
      %s223 = smul.addr %s222, 4
      %s224 = scalar_lea.vmem %s1, %s223
      %p225 = scmp.lt.s32.totalorder %s20, 0
      %s226 = scalar_select %p225, %s20, 0
      %s227 = scalar_lea.vmem %s2, %s226
      %s228 = smul.u32 16, %s21
      %p229 = scmp.lt.s32.totalorder %s19, 1
      %s230 = scalar_select %p229, %s19, 1
      %p231 = scmp.lt.s32.totalorder %s228, 15
      %s232 = scalar_select %p231, %s228, 15
      %p233 = scmp.lt.s32.totalorder %s20, 0
      %s234 = scalar_select %p233, %s20, 0
      %s235 = smul.addr %s232, 2
      %s236 = sadd.s32 %s234, %s235
      %s237 = smul.addr %s230, 32
      %s238 = sadd.s32 %s236, %s237
      %s239 = smul.addr %s238, 4
      %s240 = scalar_lea.vmem %s3, %s239
      %s241 = smul.u32 16, %s21
      %s243 = smul.u32 %s21, 16
      %s244 = smul.u32 %s243, 3
      %s245 = smul.addr %s244, 4
      %s246 = scalar_lea.vmem %s220, %s245
      %v247 = vld [vmem:[%s246] sm:$0xf]
      %v248 = vld [vmem:[%s246 + $0x4] sm:$0xf]
      %v249 = vld [vmem:[%s246 + $0xc] sm:$0xf]
      %v250 = vld [vmem:[%s246 + $0x10] sm:$0xf]
      %v251 = vld [vmem:[%s246 + $0x18] sm:$0xf]
      %v252 = vld [vmem:[%s246 + $0x1c] sm:$0xf]
      %v253 = vld [vmem:[%s246 + $0x24] sm:$0xf]
      %v254 = vld [vmem:[%s246 + $0x28] sm:$0xf]
      %v255 = vld [vmem:[%s246 + $0x30] sm:$0xf]
      %v256 = vld [vmem:[%s246 + $0x34] sm:$0xf]
      %v257 = vld [vmem:[%s246 + $0x3c] sm:$0xf]
      %v258 = vld [vmem:[%s246 + $0x40] sm:$0xf]
      %v259 = vld [vmem:[%s246 + $0x48] sm:$0xf]
      %v260 = vld [vmem:[%s246 + $0x4c] sm:$0xf]
      %v261 = vld [vmem:[%s246 + $0x54] sm:$0xf]
      %v262 = vld [vmem:[%s246 + $0x58] sm:$0xf]
      %v263 = vld [vmem:[%s246 + $0x60] sm:$0xf]
      %v264 = vld [vmem:[%s246 + $0x64] sm:$0xf]
      %v265 = vld [vmem:[%s246 + $0x6c] sm:$0xf]
      %v266 = vld [vmem:[%s246 + $0x70] sm:$0xf]
      %v267 = vld [vmem:[%s246 + $0x78] sm:$0xf]
      %v268 = vld [vmem:[%s246 + $0x7c] sm:$0xf]
      %v269 = vld [vmem:[%s246 + $0x84] sm:$0xf]
      %v270 = vld [vmem:[%s246 + $0x88] sm:$0xf]
      %v271 = vld [vmem:[%s246 + $0x90] sm:$0xf]
      %v272 = vld [vmem:[%s246 + $0x94] sm:$0xf]
      %v273 = vld [vmem:[%s246 + $0x9c] sm:$0xf]
      %v274 = vld [vmem:[%s246 + $0xa0] sm:$0xf]
      %v275 = vld [vmem:[%s246 + $0xa8] sm:$0xf]
      %v276 = vld [vmem:[%s246 + $0xac] sm:$0xf]
      %v277 = vld [vmem:[%s246 + $0xb4] sm:$0xf]
      %v278 = vld [vmem:[%s246 + $0xb8] sm:$0xf]
      %v279 = vld [vmem:[%s224] sm:$0xf]
      %v280 = vld [vmem:[%s224 + $0x4] sm:$0xf]
      %v281 = vld [vmem:[%s224 + $0x8] sm:$0xf]
      %v282 = vld [vmem:[%s224 + $0xc] sm:$0xf]
      %v283 = vld [vmem:[%s224 + $0x10] sm:$0xf]
      %v284 = vld [vmem:[%s224 + $0x14] sm:$0xf]
      %v285 = vld [vmem:[%s224 + $0x18] sm:$0xf]
      %v286 = vld [vmem:[%s224 + $0x1c] sm:$0xf]
      %v287 = vld [vmem:[%s224 + $0x20] sm:$0xf]
      %v288 = vld [vmem:[%s224 + $0x24] sm:$0xf]
      %v289 = vld [vmem:[%s224 + $0x28] sm:$0xf]
      %v290 = vld [vmem:[%s224 + $0x2c] sm:$0xf]
      %v291 = vld [vmem:[%s224 + $0x30] sm:$0xf]
      %v292 = vld [vmem:[%s224 + $0x34] sm:$0xf]
      %v293 = vld [vmem:[%s224 + $0x38] sm:$0xf]
      %v294 = vld [vmem:[%s224 + $0x3c] sm:$0xf]
      %v295 = vld [vmem:[%s227] sm:$0x1]
      %v297 = vlaneseq
      %v298 = vshrl.u32 %v297, 7
      %v299 = vsub.s32 0, %v298
      %v300 = vrot.slane %v295, %v299
      %v334 = vunpack.c.l.b16 %v247
      %v335 = vunpack.c.l.b16 %v248
      %v336 = vunpack.c.l.b16 %v249
      %v337 = vunpack.c.l.b16 %v250
      %v338 = vunpack.c.l.b16 %v251
      %v339 = vunpack.c.l.b16 %v252
      %v340 = vunpack.c.l.b16 %v253
      %v341 = vunpack.c.l.b16 %v254
      %v342 = vunpack.c.l.b16 %v255
      %v343 = vunpack.c.l.b16 %v256
      %v344 = vunpack.c.l.b16 %v257
      %v345 = vunpack.c.l.b16 %v258
      %v346 = vunpack.c.l.b16 %v259
      %v347 = vunpack.c.l.b16 %v260
      %v348 = vunpack.c.l.b16 %v261
      %v349 = vunpack.c.l.b16 %v262
      %v350 = vunpack.c.l.b16 %v263
      %v351 = vunpack.c.l.b16 %v264
      %v352 = vunpack.c.l.b16 %v265
      %v353 = vunpack.c.l.b16 %v266
      %v354 = vunpack.c.l.b16 %v267
      %v355 = vunpack.c.l.b16 %v268
      %v356 = vunpack.c.l.b16 %v269
      %v357 = vunpack.c.l.b16 %v270
      %v358 = vunpack.c.l.b16 %v271
      %v359 = vunpack.c.l.b16 %v272
      %v360 = vunpack.c.l.b16 %v273
      %v361 = vunpack.c.l.b16 %v274
      %v362 = vunpack.c.l.b16 %v275
      %v363 = vunpack.c.l.b16 %v276
      %v364 = vunpack.c.l.b16 %v277
      %v365 = vunpack.c.l.b16 %v278
      %v366 = vpack.c.b16 %v335, %v334
      %v367 = vpack.c.b16 %v337, %v336
      %v368 = vpack.c.b16 %v339, %v338
      %v369 = vpack.c.b16 %v341, %v340
      %v370 = vpack.c.b16 %v343, %v342
      %v371 = vpack.c.b16 %v345, %v344
      %v372 = vpack.c.b16 %v347, %v346
      %v373 = vpack.c.b16 %v349, %v348
      %v374 = vpack.c.b16 %v351, %v350
      %v375 = vpack.c.b16 %v353, %v352
      %v376 = vpack.c.b16 %v355, %v354
      %v377 = vpack.c.b16 %v357, %v356
      %v378 = vpack.c.b16 %v359, %v358
      %v379 = vpack.c.b16 %v361, %v360
      %v380 = vpack.c.b16 %v363, %v362
      %v381 = vpack.c.b16 %v365, %v364
      %v414 = vunpack.c.l.b16 %v279
      %v415 = vunpack.c.l.b16 %v280
      %v416 = vunpack.c.l.b16 %v281
      %v417 = vunpack.c.l.b16 %v282
      %v418 = vunpack.c.l.b16 %v283
      %v419 = vunpack.c.l.b16 %v284
      %v420 = vunpack.c.l.b16 %v285
      %v421 = vunpack.c.l.b16 %v286
      %v422 = vunpack.c.l.b16 %v287
      %v423 = vunpack.c.l.b16 %v288
      %v424 = vunpack.c.l.b16 %v289
      %v425 = vunpack.c.l.b16 %v290
      %v426 = vunpack.c.l.b16 %v291
      %v427 = vunpack.c.l.b16 %v292
      %v428 = vunpack.c.l.b16 %v293
      %v429 = vunpack.c.l.b16 %v294
      %v430 = vpack.c.b16 %v415, %v414
      %v431 = vpack.c.b16 %v417, %v416
      %v432 = vpack.c.b16 %v419, %v418
      %v433 = vpack.c.b16 %v421, %v420
      %v434 = vpack.c.b16 %v423, %v422
      %v435 = vpack.c.b16 %v425, %v424
      %v436 = vpack.c.b16 %v427, %v426
      %v437 = vpack.c.b16 %v429, %v428
      %446 = vmatprep.subr.bf16.mxu0 0
      %447 = vmatpush1.bf16.msra.mxu0 %v430
      %448 = vmatprep.subr.bf16.mxu0 0
      %449 = vmatpush1.bf16.msra.mxu0 %v431
      %450 = vmatprep.subr.bf16.mxu0 0
      %451 = vmatpush1.bf16.msra.mxu0 %v432
      %452 = vmatprep.subr.bf16.mxu0 0
      %453 = vmatpush1.bf16.msra.mxu0 %v433
      %454 = vmatprep.subr.bf16.mxu0 0
      %455 = vmatpush1.bf16.msra.mxu0 %v434
      %456 = vmatprep.subr.bf16.mxu0 0
      %457 = vmatpush1.bf16.msra.mxu0 %v435
      %458 = vmatprep.subr.bf16.mxu0 0
      %459 = vmatpush1.bf16.msra.mxu0 %v436
      %460 = vmatprep.subr.bf16.mxu0 0
      %461 = vmatpush1.bf16.msra.mxu0 %v437
      %462 = vmatprep.subr.bf16.mxu0 0
      %463 = vmatpush1.bf16.msra.mxu0 0
      %464 = vmatprep.subr.bf16.mxu0 0
      %465 = vmatpush1.bf16.msra.mxu0 0
      %466 = vmatprep.subr.bf16.mxu0 0
      %467 = vmatpush1.bf16.msra.mxu0 0
      %468 = vmatprep.subr.bf16.mxu0 0
      %469 = vmatpush1.bf16.msra.mxu0 0
      %470 = vmatprep.subr.bf16.mxu0 0
      %471 = vmatpush1.bf16.msra.mxu0 0
      %472 = vmatprep.subr.bf16.mxu0 0
      %473 = vmatpush1.bf16.msra.mxu0 0
      %474 = vmatprep.subr.bf16.mxu0 0
      %475 = vmatpush1.bf16.msra.mxu0 0
      %476 = vmatprep.subr.bf16.mxu0 0
      %477 = vmatpush1.bf16.msra.mxu0 0
      %478 = vmatprep.mubr.bf16.mxu0 0
      %479 = vmatmul.mubr.bf16.gmra.mrb[0].mxu0 %v366
      %v480 = vpop.f32.mrb[0].mxu0
      %v481 = vadd.f32 %v300, %v480
      %v482 = vpop.f32.mrb[0].mxu0
      %v483 = vpop.f32.mrb[0].mxu0
      %v484 = vadd.f32 %v300, %v483
      %v485 = vpop.f32.mrb[0].mxu0
      %486 = vmatprep.mubr.bf16.mxu0 0
      %487 = vmatmul.mubr.bf16.gmra.mrb[0].mxu0 %v367
      %v488 = vpop.f32.mrb[0].mxu0
      %v489 = vadd.f32 %v300, %v488
      %v490 = vpop.f32.mrb[0].mxu0
      %v491 = vpop.f32.mrb[0].mxu0
      %v492 = vadd.f32 %v300, %v491
      %v493 = vpop.f32.mrb[0].mxu0
      %494 = vmatprep.mubr.bf16.mxu0 0
      %495 = vmatmul.mubr.bf16.gmra.mrb[0].mxu0 %v368
      %v496 = vpop.f32.mrb[0].mxu0
      %v497 = vadd.f32 %v300, %v496
      %v498 = vpop.f32.mrb[0].mxu0
      %v499 = vpop.f32.mrb[0].mxu0
      %v500 = vadd.f32 %v300, %v499
      %v501 = vpop.f32.mrb[0].mxu0
      %502 = vmatprep.mubr.bf16.mxu0 0
      %503 = vmatmul.mubr.bf16.gmra.mrb[0].mxu0 %v369
      %v504 = vpop.f32.mrb[0].mxu0
      %v505 = vadd.f32 %v300, %v504
      %v506 = vpop.f32.mrb[0].mxu0
      %v507 = vpop.f32.mrb[0].mxu0
      %v508 = vadd.f32 %v300, %v507
      %v509 = vpop.f32.mrb[0].mxu0
      %510 = vmatprep.mubr.bf16.mxu0 0
      %511 = vmatmul.mubr.bf16.gmra.mrb[0].mxu0 %v370
      %v512 = vpop.f32.mrb[0].mxu0
      %v513 = vadd.f32 %v300, %v512
      %v514 = vpop.f32.mrb[0].mxu0
      %v515 = vpop.f32.mrb[0].mxu0
      %v516 = vadd.f32 %v300, %v515
      %v517 = vpop.f32.mrb[0].mxu0
      %518 = vmatprep.mubr.bf16.mxu0 0
      %519 = vmatmul.mubr.bf16.gmra.mrb[0].mxu0 %v371
      %v520 = vpop.f32.mrb[0].mxu0
      %v521 = vadd.f32 %v300, %v520
      %v522 = vpop.f32.mrb[0].mxu0
      %v523 = vpop.f32.mrb[0].mxu0
      %v524 = vadd.f32 %v300, %v523
      %v525 = vpop.f32.mrb[0].mxu0
      %526 = vmatprep.mubr.bf16.mxu0 0
      %527 = vmatmul.mubr.bf16.gmra.mrb[0].mxu0 %v372
      %v528 = vpop.f32.mrb[0].mxu0
      %v529 = vadd.f32 %v300, %v528
      %v530 = vpop.f32.mrb[0].mxu0
      %v531 = vpop.f32.mrb[0].mxu0
      %v532 = vadd.f32 %v300, %v531
      %v533 = vpop.f32.mrb[0].mxu0
      %534 = vmatprep.mubr.bf16.mxu0 0
      %535 = vmatmul.mubr.bf16.gmra.mrb[0].mxu0 %v373
      %v536 = vpop.f32.mrb[0].mxu0
      %v537 = vadd.f32 %v300, %v536
      %v538 = vpop.f32.mrb[0].mxu0
      %v539 = vpop.f32.mrb[0].mxu0
      %v540 = vadd.f32 %v300, %v539
      %v541 = vpop.f32.mrb[0].mxu0
      %542 = vmatprep.mubr.bf16.mxu0 0
      %543 = vmatmul.mubr.bf16.gmra.mrb[0].mxu0 %v374
      %v544 = vpop.f32.mrb[0].mxu0
      %v545 = vadd.f32 %v300, %v544
      %v546 = vpop.f32.mrb[0].mxu0
      %v547 = vpop.f32.mrb[0].mxu0
      %v548 = vadd.f32 %v300, %v547
      %v549 = vpop.f32.mrb[0].mxu0
      %550 = vmatprep.mubr.bf16.mxu0 0
      %551 = vmatmul.mubr.bf16.gmra.mrb[0].mxu0 %v375
      %v552 = vpop.f32.mrb[0].mxu0
      %v553 = vadd.f32 %v300, %v552
      %v554 = vpop.f32.mrb[0].mxu0
      %v555 = vpop.f32.mrb[0].mxu0
      %v556 = vadd.f32 %v300, %v555
      %v557 = vpop.f32.mrb[0].mxu0
      %558 = vmatprep.mubr.bf16.mxu0 0
      %559 = vmatmul.mubr.bf16.gmra.mrb[0].mxu0 %v376
      %v560 = vpop.f32.mrb[0].mxu0
      %v561 = vadd.f32 %v300, %v560
      %v562 = vpop.f32.mrb[0].mxu0
      %v563 = vpop.f32.mrb[0].mxu0
      %v564 = vadd.f32 %v300, %v563
      %v565 = vpop.f32.mrb[0].mxu0
      %566 = vmatprep.mubr.bf16.mxu0 0
      %567 = vmatmul.mubr.bf16.gmra.mrb[0].mxu0 %v377
      %v568 = vpop.f32.mrb[0].mxu0
      %v569 = vadd.f32 %v300, %v568
      %v570 = vpop.f32.mrb[0].mxu0
      %v571 = vpop.f32.mrb[0].mxu0
      %v572 = vadd.f32 %v300, %v571
      %v573 = vpop.f32.mrb[0].mxu0
      %574 = vmatprep.mubr.bf16.mxu0 0
      %575 = vmatmul.mubr.bf16.gmra.mrb[0].mxu0 %v378
      %v576 = vpop.f32.mrb[0].mxu0
      %v577 = vadd.f32 %v300, %v576
      %v578 = vpop.f32.mrb[0].mxu0
      %v579 = vpop.f32.mrb[0].mxu0
      %v580 = vadd.f32 %v300, %v579
      %v581 = vpop.f32.mrb[0].mxu0
      %582 = vmatprep.mubr.bf16.mxu0 0
      %583 = vmatmul.mubr.bf16.gmra.mrb[0].mxu0 %v379
      %v584 = vpop.f32.mrb[0].mxu0
      %v585 = vadd.f32 %v300, %v584
      %v586 = vpop.f32.mrb[0].mxu0
      %v587 = vpop.f32.mrb[0].mxu0
      %v588 = vadd.f32 %v300, %v587
      %v589 = vpop.f32.mrb[0].mxu0
      %590 = vmatprep.mubr.bf16.mxu0 0
      %591 = vmatmul.mubr.bf16.gmra.mrb[0].mxu0 %v380
      %v592 = vpop.f32.mrb[0].mxu0
      %v593 = vadd.f32 %v300, %v592
      %v594 = vpop.f32.mrb[0].mxu0
      %v595 = vpop.f32.mrb[0].mxu0
      %v596 = vadd.f32 %v300, %v595
      %v597 = vpop.f32.mrb[0].mxu0
      %598 = vmatprep.mubr.bf16.mxu0 0
      %599 = vmatmul.mubr.bf16.gmra.mrb[0].mxu0 %v381
      %v600 = vpop.f32.mrb[0].mxu0
      %v601 = vadd.f32 %v300, %v600
      %v602 = vpop.f32.mrb[0].mxu0
      %v603 = vpop.f32.mrb[0].mxu0
      %v604 = vadd.f32 %v300, %v603
      %v605 = vpop.f32.mrb[0].mxu0
      %606 = vdwg.mxu0
      %v607 = vld [vmem:[%s246] sm:$0xf]
      %v608 = vld [vmem:[%s246 + $0x4] sm:$0xf]
      %v609 = vld [vmem:[%s246 + $0x8] sm:$0x1]
      %v610 = vld [vmem:[%s246 + $0xc] sm:$0xf]
      %v611 = vld [vmem:[%s246 + $0x10] sm:$0xf]
      %v612 = vld [vmem:[%s246 + $0x14] sm:$0x1]
      %v613 = vld [vmem:[%s246 + $0x18] sm:$0xf]
      %v614 = vld [vmem:[%s246 + $0x1c] sm:$0xf]
      %v615 = vld [vmem:[%s246 + $0x20] sm:$0x1]
      %v616 = vld [vmem:[%s246 + $0x24] sm:$0xf]
      %v617 = vld [vmem:[%s246 + $0x28] sm:$0xf]
      %v618 = vld [vmem:[%s246 + $0x2c] sm:$0x1]
      %v619 = vld [vmem:[%s246 + $0x30] sm:$0xf]
      %v620 = vld [vmem:[%s246 + $0x34] sm:$0xf]
      %v621 = vld [vmem:[%s246 + $0x38] sm:$0x1]
      %v622 = vld [vmem:[%s246 + $0x3c] sm:$0xf]
      %v623 = vld [vmem:[%s246 + $0x40] sm:$0xf]
      %v624 = vld [vmem:[%s246 + $0x44] sm:$0x1]
      %v625 = vld [vmem:[%s246 + $0x48] sm:$0xf]
      %v626 = vld [vmem:[%s246 + $0x4c] sm:$0xf]
      %v627 = vld [vmem:[%s246 + $0x50] sm:$0x1]
      %v628 = vld [vmem:[%s246 + $0x54] sm:$0xf]
      %v629 = vld [vmem:[%s246 + $0x58] sm:$0xf]
      %v630 = vld [vmem:[%s246 + $0x5c] sm:$0x1]
      %v631 = vld [vmem:[%s246 + $0x60] sm:$0xf]
      %v632 = vld [vmem:[%s246 + $0x64] sm:$0xf]
      %v633 = vld [vmem:[%s246 + $0x68] sm:$0x1]
      %v634 = vld [vmem:[%s246 + $0x6c] sm:$0xf]
      %v635 = vld [vmem:[%s246 + $0x70] sm:$0xf]
      %v636 = vld [vmem:[%s246 + $0x74] sm:$0x1]
      %v637 = vld [vmem:[%s246 + $0x78] sm:$0xf]
      %v638 = vld [vmem:[%s246 + $0x7c] sm:$0xf]
      %v639 = vld [vmem:[%s246 + $0x80] sm:$0x1]
      %v640 = vld [vmem:[%s246 + $0x84] sm:$0xf]
      %v641 = vld [vmem:[%s246 + $0x88] sm:$0xf]
      %v642 = vld [vmem:[%s246 + $0x8c] sm:$0x1]
      %v643 = vld [vmem:[%s246 + $0x90] sm:$0xf]
      %v644 = vld [vmem:[%s246 + $0x94] sm:$0xf]
      %v645 = vld [vmem:[%s246 + $0x98] sm:$0x1]
      %v646 = vld [vmem:[%s246 + $0x9c] sm:$0xf]
      %v647 = vld [vmem:[%s246 + $0xa0] sm:$0xf]
      %v648 = vld [vmem:[%s246 + $0xa4] sm:$0x1]
      %v649 = vld [vmem:[%s246 + $0xa8] sm:$0xf]
      %v650 = vld [vmem:[%s246 + $0xac] sm:$0xf]
      %v651 = vld [vmem:[%s246 + $0xb0] sm:$0x1]
      %v652 = vld [vmem:[%s246 + $0xb4] sm:$0xf]
      %v653 = vld [vmem:[%s246 + $0xb8] sm:$0xf]
      %v654 = vld [vmem:[%s246 + $0xbc] sm:$0x1]
      %vm655 = vsmask.f32 3328
      %vm656 = vsmask.f32 7440
      %vm657 = vmor %vm655, %vm656
      %v659 = vshrl.u32 %v607, 16
      %v661 = vrot.slane %v659, 4
      %v662 = vshll.u32 %v607, 16
      %v664 = vrot.slane %v662, 5
      %v665 = vor.u32 %v661, %v664
      %v666 = vrot.slane %v665, 4
      %v668 = vshll.u32 %v608, 16
      %v670 = vrot.slane %v668, 5
      %v671 = vsel %vm657, %v666, %v670
      %v672 = vshrl.u32 %v608, 16
      %v674 = vrot.slane %v672, 4
      %v675 = vor.u32 %v674, %v670
      %v676 = vrot.slane %v675, 4
      %v678 = vshll.u32 %v609, 16
      %v680 = vrot.slane %v678, 5
      %v681 = vsel %vm657, %v676, %v680
      %v683 = vshrl.u32 %v610, 16
      %v685 = vrot.slane %v683, 4
      %v686 = vshll.u32 %v610, 16
      %v688 = vrot.slane %v686, 5
      %v689 = vor.u32 %v685, %v688
      %v690 = vrot.slane %v689, 4
      %v692 = vshll.u32 %v611, 16
      %v694 = vrot.slane %v692, 5
      %v695 = vsel %vm657, %v690, %v694
      %v696 = vshrl.u32 %v611, 16
      %v698 = vrot.slane %v696, 4
      %v699 = vor.u32 %v698, %v694
      %v700 = vrot.slane %v699, 4
      %v702 = vshll.u32 %v612, 16
      %v704 = vrot.slane %v702, 5
      %v705 = vsel %vm657, %v700, %v704
      %v707 = vshrl.u32 %v613, 16
      %v709 = vrot.slane %v707, 4
      %v710 = vshll.u32 %v613, 16
      %v712 = vrot.slane %v710, 5
      %v713 = vor.u32 %v709, %v712
      %v714 = vrot.slane %v713, 4
      %v716 = vshll.u32 %v614, 16
      %v718 = vrot.slane %v716, 5
      %v719 = vsel %vm657, %v714, %v718
      %v720 = vshrl.u32 %v614, 16
      %v722 = vrot.slane %v720, 4
      %v723 = vor.u32 %v722, %v718
      %v724 = vrot.slane %v723, 4
      %v726 = vshll.u32 %v615, 16
      %v728 = vrot.slane %v726, 5
      %v729 = vsel %vm657, %v724, %v728
      %v731 = vshrl.u32 %v616, 16
      %v733 = vrot.slane %v731, 4
      %v734 = vshll.u32 %v616, 16
      %v736 = vrot.slane %v734, 5
      %v737 = vor.u32 %v733, %v736
      %v738 = vrot.slane %v737, 4
      %v740 = vshll.u32 %v617, 16
      %v742 = vrot.slane %v740, 5
      %v743 = vsel %vm657, %v738, %v742
      %v744 = vshrl.u32 %v617, 16
      %v746 = vrot.slane %v744, 4
      %v747 = vor.u32 %v746, %v742
      %v748 = vrot.slane %v747, 4
      %v750 = vshll.u32 %v618, 16
      %v752 = vrot.slane %v750, 5
      %v753 = vsel %vm657, %v748, %v752
      %v755 = vshrl.u32 %v619, 16
      %v757 = vrot.slane %v755, 4
      %v758 = vshll.u32 %v619, 16
      %v760 = vrot.slane %v758, 5
      %v761 = vor.u32 %v757, %v760
      %v762 = vrot.slane %v761, 4
      %v764 = vshll.u32 %v620, 16
      %v766 = vrot.slane %v764, 5
      %v767 = vsel %vm657, %v762, %v766
      %v768 = vshrl.u32 %v620, 16
      %v770 = vrot.slane %v768, 4
      %v771 = vor.u32 %v770, %v766
      %v772 = vrot.slane %v771, 4
      %v774 = vshll.u32 %v621, 16
      %v776 = vrot.slane %v774, 5
      %v777 = vsel %vm657, %v772, %v776
      %v779 = vshrl.u32 %v622, 16
      %v781 = vrot.slane %v779, 4
      %v782 = vshll.u32 %v622, 16
      %v784 = vrot.slane %v782, 5
      %v785 = vor.u32 %v781, %v784
      %v786 = vrot.slane %v785, 4
      %v788 = vshll.u32 %v623, 16
      %v790 = vrot.slane %v788, 5
      %v791 = vsel %vm657, %v786, %v790
      %v792 = vshrl.u32 %v623, 16
      %v794 = vrot.slane %v792, 4
      %v795 = vor.u32 %v794, %v790
      %v796 = vrot.slane %v795, 4
      %v798 = vshll.u32 %v624, 16
      %v800 = vrot.slane %v798, 5
      %v801 = vsel %vm657, %v796, %v800
      %v803 = vshrl.u32 %v625, 16
      %v805 = vrot.slane %v803, 4
      %v806 = vshll.u32 %v625, 16
      %v808 = vrot.slane %v806, 5
      %v809 = vor.u32 %v805, %v808
      %v810 = vrot.slane %v809, 4
      %v812 = vshll.u32 %v626, 16
      %v814 = vrot.slane %v812, 5
      %v815 = vsel %vm657, %v810, %v814
      %v816 = vshrl.u32 %v626, 16
      %v818 = vrot.slane %v816, 4
      %v819 = vor.u32 %v818, %v814
      %v820 = vrot.slane %v819, 4
      %v822 = vshll.u32 %v627, 16
      %v824 = vrot.slane %v822, 5
      %v825 = vsel %vm657, %v820, %v824
      %v827 = vshrl.u32 %v628, 16
      %v829 = vrot.slane %v827, 4
      %v830 = vshll.u32 %v628, 16
      %v832 = vrot.slane %v830, 5
      %v833 = vor.u32 %v829, %v832
      %v834 = vrot.slane %v833, 4
      %v836 = vshll.u32 %v629, 16
      %v838 = vrot.slane %v836, 5
      %v839 = vsel %vm657, %v834, %v838
      %v840 = vshrl.u32 %v629, 16
      %v842 = vrot.slane %v840, 4
      %v843 = vor.u32 %v842, %v838
      %v844 = vrot.slane %v843, 4
      %v846 = vshll.u32 %v630, 16
      %v848 = vrot.slane %v846, 5
      %v849 = vsel %vm657, %v844, %v848
      %v851 = vshrl.u32 %v631, 16
      %v853 = vrot.slane %v851, 4
      %v854 = vshll.u32 %v631, 16
      %v856 = vrot.slane %v854, 5
      %v857 = vor.u32 %v853, %v856
      %v858 = vrot.slane %v857, 4
      %v860 = vshll.u32 %v632, 16
      %v862 = vrot.slane %v860, 5
      %v863 = vsel %vm657, %v858, %v862
      %v864 = vshrl.u32 %v632, 16
      %v866 = vrot.slane %v864, 4
      %v867 = vor.u32 %v866, %v862
      %v868 = vrot.slane %v867, 4
      %v870 = vshll.u32 %v633, 16
      %v872 = vrot.slane %v870, 5
      %v873 = vsel %vm657, %v868, %v872
      %v875 = vshrl.u32 %v634, 16
      %v877 = vrot.slane %v875, 4
      %v878 = vshll.u32 %v634, 16
      %v880 = vrot.slane %v878, 5
      %v881 = vor.u32 %v877, %v880
      %v882 = vrot.slane %v881, 4
      %v884 = vshll.u32 %v635, 16
      %v886 = vrot.slane %v884, 5
      %v887 = vsel %vm657, %v882, %v886
      %v888 = vshrl.u32 %v635, 16
      %v890 = vrot.slane %v888, 4
      %v891 = vor.u32 %v890, %v886
      %v892 = vrot.slane %v891, 4
      %v894 = vshll.u32 %v636, 16
      %v896 = vrot.slane %v894, 5
      %v897 = vsel %vm657, %v892, %v896
      %v899 = vshrl.u32 %v637, 16
      %v901 = vrot.slane %v899, 4
      %v902 = vshll.u32 %v637, 16
      %v904 = vrot.slane %v902, 5
      %v905 = vor.u32 %v901, %v904
      %v906 = vrot.slane %v905, 4
      %v908 = vshll.u32 %v638, 16
      %v910 = vrot.slane %v908, 5
      %v911 = vsel %vm657, %v906, %v910
      %v912 = vshrl.u32 %v638, 16
      %v914 = vrot.slane %v912, 4
      %v915 = vor.u32 %v914, %v910
      %v916 = vrot.slane %v915, 4
      %v918 = vshll.u32 %v639, 16
      %v920 = vrot.slane %v918, 5
      %v921 = vsel %vm657, %v916, %v920
      %v923 = vshrl.u32 %v640, 16
      %v925 = vrot.slane %v923, 4
      %v926 = vshll.u32 %v640, 16
      %v928 = vrot.slane %v926, 5
      %v929 = vor.u32 %v925, %v928
      %v930 = vrot.slane %v929, 4
      %v932 = vshll.u32 %v641, 16
      %v934 = vrot.slane %v932, 5
      %v935 = vsel %vm657, %v930, %v934
      %v936 = vshrl.u32 %v641, 16
      %v938 = vrot.slane %v936, 4
      %v939 = vor.u32 %v938, %v934
      %v940 = vrot.slane %v939, 4
      %v942 = vshll.u32 %v642, 16
      %v944 = vrot.slane %v942, 5
      %v945 = vsel %vm657, %v940, %v944
      %v947 = vshrl.u32 %v643, 16
      %v949 = vrot.slane %v947, 4
      %v950 = vshll.u32 %v643, 16
      %v952 = vrot.slane %v950, 5
      %v953 = vor.u32 %v949, %v952
      %v954 = vrot.slane %v953, 4
      %v956 = vshll.u32 %v644, 16
      %v958 = vrot.slane %v956, 5
      %v959 = vsel %vm657, %v954, %v958
      %v960 = vshrl.u32 %v644, 16
      %v962 = vrot.slane %v960, 4
      %v963 = vor.u32 %v962, %v958
      %v964 = vrot.slane %v963, 4
      %v966 = vshll.u32 %v645, 16
      %v968 = vrot.slane %v966, 5
      %v969 = vsel %vm657, %v964, %v968
      %v971 = vshrl.u32 %v646, 16
      %v973 = vrot.slane %v971, 4
      %v974 = vshll.u32 %v646, 16
      %v976 = vrot.slane %v974, 5
      %v977 = vor.u32 %v973, %v976
      %v978 = vrot.slane %v977, 4
      %v980 = vshll.u32 %v647, 16
      %v982 = vrot.slane %v980, 5
      %v983 = vsel %vm657, %v978, %v982
      %v984 = vshrl.u32 %v647, 16
      %v986 = vrot.slane %v984, 4
      %v987 = vor.u32 %v986, %v982
      %v988 = vrot.slane %v987, 4
      %v990 = vshll.u32 %v648, 16
      %v992 = vrot.slane %v990, 5
      %v993 = vsel %vm657, %v988, %v992
      %v995 = vshrl.u32 %v649, 16
      %v997 = vrot.slane %v995, 4
      %v998 = vshll.u32 %v649, 16
      %v1000 = vrot.slane %v998, 5
      %v1001 = vor.u32 %v997, %v1000
      %v1002 = vrot.slane %v1001, 4
      %v1004 = vshll.u32 %v650, 16
      %v1006 = vrot.slane %v1004, 5
      %v1007 = vsel %vm657, %v1002, %v1006
      %v1008 = vshrl.u32 %v650, 16
      %v1010 = vrot.slane %v1008, 4
      %v1011 = vor.u32 %v1010, %v1006
      %v1012 = vrot.slane %v1011, 4
      %v1014 = vshll.u32 %v651, 16
      %v1016 = vrot.slane %v1014, 5
      %v1017 = vsel %vm657, %v1012, %v1016
      %v1019 = vshrl.u32 %v652, 16
      %v1021 = vrot.slane %v1019, 4
      %v1022 = vshll.u32 %v652, 16
      %v1024 = vrot.slane %v1022, 5
      %v1025 = vor.u32 %v1021, %v1024
      %v1026 = vrot.slane %v1025, 4
      %v1028 = vshll.u32 %v653, 16
      %v1030 = vrot.slane %v1028, 5
      %v1031 = vsel %vm657, %v1026, %v1030
      %v1032 = vshrl.u32 %v653, 16
      %v1034 = vrot.slane %v1032, 4
      %v1035 = vor.u32 %v1034, %v1030
      %v1036 = vrot.slane %v1035, 4
      %v1038 = vshll.u32 %v654, 16
      %v1040 = vrot.slane %v1038, 5
      %v1041 = vsel %vm657, %v1036, %v1040
      %s1042 = scalar_lea.vmem %s224, 64
      %v1043 = vld [vmem:[%s1042] sm:$0xf]
      %v1044 = vld [vmem:[%s1042 + $0x4] sm:$0xf]
      %v1045 = vld [vmem:[%s1042 + $0x8] sm:$0xf]
      %v1046 = vld [vmem:[%s1042 + $0xc] sm:$0xf]
      %v1047 = vld [vmem:[%s1042 + $0x10] sm:$0xf]
      %v1048 = vld [vmem:[%s1042 + $0x14] sm:$0xf]
      %v1049 = vld [vmem:[%s1042 + $0x18] sm:$0xf]
      %v1050 = vld [vmem:[%s1042 + $0x1c] sm:$0xf]
      %v1051 = vld [vmem:[%s1042 + $0x20] sm:$0xf]
      %v1052 = vld [vmem:[%s1042 + $0x24] sm:$0xf]
      %v1053 = vld [vmem:[%s1042 + $0x28] sm:$0xf]
      %v1054 = vld [vmem:[%s1042 + $0x2c] sm:$0xf]
      %v1055 = vld [vmem:[%s1042 + $0x30] sm:$0xf]
      %v1056 = vld [vmem:[%s1042 + $0x34] sm:$0xf]
      %v1057 = vld [vmem:[%s1042 + $0x38] sm:$0xf]
      %v1058 = vld [vmem:[%s1042 + $0x3c] sm:$0xf]
      %v1059 = vunpack.c.l.b16 %v671
      %v1060 = vunpack.c.l.b16 %v681
      %v1061 = vunpack.c.l.b16 %v695
      %v1062 = vunpack.c.l.b16 %v705
      %v1063 = vunpack.c.l.b16 %v719
      %v1064 = vunpack.c.l.b16 %v729
      %v1065 = vunpack.c.l.b16 %v743
      %v1066 = vunpack.c.l.b16 %v753
      %v1067 = vunpack.c.l.b16 %v767
      %v1068 = vunpack.c.l.b16 %v777
      %v1069 = vunpack.c.l.b16 %v791
      %v1070 = vunpack.c.l.b16 %v801
      %v1071 = vunpack.c.l.b16 %v815
      %v1072 = vunpack.c.l.b16 %v825
      %v1073 = vunpack.c.l.b16 %v839
      %v1074 = vunpack.c.l.b16 %v849
      %v1075 = vunpack.c.l.b16 %v863
      %v1076 = vunpack.c.l.b16 %v873
      %v1077 = vunpack.c.l.b16 %v887
      %v1078 = vunpack.c.l.b16 %v897
      %v1079 = vunpack.c.l.b16 %v911
      %v1080 = vunpack.c.l.b16 %v921
      %v1081 = vunpack.c.l.b16 %v935
      %v1082 = vunpack.c.l.b16 %v945
      %v1083 = vunpack.c.l.b16 %v959
      %v1084 = vunpack.c.l.b16 %v969
      %v1085 = vunpack.c.l.b16 %v983
      %v1086 = vunpack.c.l.b16 %v993
      %v1087 = vunpack.c.l.b16 %v1007
      %v1088 = vunpack.c.l.b16 %v1017
      %v1089 = vunpack.c.l.b16 %v1031
      %v1090 = vunpack.c.l.b16 %v1041
      %v1091 = vpack.c.b16 %v1060, %v1059
      %v1092 = vpack.c.b16 %v1062, %v1061
      %v1093 = vpack.c.b16 %v1064, %v1063
      %v1094 = vpack.c.b16 %v1066, %v1065
      %v1095 = vpack.c.b16 %v1068, %v1067
      %v1096 = vpack.c.b16 %v1070, %v1069
      %v1097 = vpack.c.b16 %v1072, %v1071
      %v1098 = vpack.c.b16 %v1074, %v1073
      %v1099 = vpack.c.b16 %v1076, %v1075
      %v1100 = vpack.c.b16 %v1078, %v1077
      %v1101 = vpack.c.b16 %v1080, %v1079
      %v1102 = vpack.c.b16 %v1082, %v1081
      %v1103 = vpack.c.b16 %v1084, %v1083
      %v1104 = vpack.c.b16 %v1086, %v1085
      %v1105 = vpack.c.b16 %v1088, %v1087
      %v1106 = vpack.c.b16 %v1090, %v1089
      %v1139 = vunpack.c.l.b16 %v1043
      %v1140 = vunpack.c.l.b16 %v1044
      %v1141 = vunpack.c.l.b16 %v1045
      %v1142 = vunpack.c.l.b16 %v1046
      %v1143 = vunpack.c.l.b16 %v1047
      %v1144 = vunpack.c.l.b16 %v1048
      %v1145 = vunpack.c.l.b16 %v1049
      %v1146 = vunpack.c.l.b16 %v1050
      %v1147 = vunpack.c.l.b16 %v1051
      %v1148 = vunpack.c.l.b16 %v1052
      %v1149 = vunpack.c.l.b16 %v1053
      %v1150 = vunpack.c.l.b16 %v1054
      %v1151 = vunpack.c.l.b16 %v1055
      %v1152 = vunpack.c.l.b16 %v1056
      %v1153 = vunpack.c.l.b16 %v1057
      %v1154 = vunpack.c.l.b16 %v1058
      %v1155 = vpack.c.b16 %v1140, %v1139
      %v1156 = vpack.c.b16 %v1142, %v1141
      %v1157 = vpack.c.b16 %v1144, %v1143
      %v1158 = vpack.c.b16 %v1146, %v1145
      %v1159 = vpack.c.b16 %v1148, %v1147
      %v1160 = vpack.c.b16 %v1150, %v1149
      %v1161 = vpack.c.b16 %v1152, %v1151
      %v1162 = vpack.c.b16 %v1154, %v1153
      %1171 = vmatprep.subr.bf16.mxu0 0
      %1172 = vmatpush1.bf16.msra.mxu0 %v1155
      %1173 = vmatprep.subr.bf16.mxu0 0
      %1174 = vmatpush1.bf16.msra.mxu0 %v1156
      %1175 = vmatprep.subr.bf16.mxu0 0
      %1176 = vmatpush1.bf16.msra.mxu0 %v1157
      %1177 = vmatprep.subr.bf16.mxu0 0
      %1178 = vmatpush1.bf16.msra.mxu0 %v1158
      %1179 = vmatprep.subr.bf16.mxu0 0
      %1180 = vmatpush1.bf16.msra.mxu0 %v1159
      %1181 = vmatprep.subr.bf16.mxu0 0
      %1182 = vmatpush1.bf16.msra.mxu0 %v1160
      %1183 = vmatprep.subr.bf16.mxu0 0
      %1184 = vmatpush1.bf16.msra.mxu0 %v1161
      %1185 = vmatprep.subr.bf16.mxu0 0
      %1186 = vmatpush1.bf16.msra.mxu0 %v1162
      %1187 = vmatprep.subr.bf16.mxu0 0
      %1188 = vmatpush1.bf16.msra.mxu0 0
      %1189 = vmatprep.subr.bf16.mxu0 0
      %1190 = vmatpush1.bf16.msra.mxu0 0
      %1191 = vmatprep.subr.bf16.mxu0 0
      %1192 = vmatpush1.bf16.msra.mxu0 0
      %1193 = vmatprep.subr.bf16.mxu0 0
      %1194 = vmatpush1.bf16.msra.mxu0 0
      %1195 = vmatprep.subr.bf16.mxu0 0
      %1196 = vmatpush1.bf16.msra.mxu0 0
      %1197 = vmatprep.subr.bf16.mxu0 0
      %1198 = vmatpush1.bf16.msra.mxu0 0
      %1199 = vmatprep.subr.bf16.mxu0 0
      %1200 = vmatpush1.bf16.msra.mxu0 0
      %1201 = vmatprep.subr.bf16.mxu0 0
      %1202 = vmatpush1.bf16.msra.mxu0 0
      %1203 = vmatprep.mubr.bf16.mxu0 0
      %1204 = vmatmul.mubr.bf16.gmra.mrb[0].mxu0 %v1091
      %v1205 = vpop.f32.mrb[0].mxu0
      %v1206 = vadd.f32 0.0, %v1205
      %v1207 = vpop.f32.mrb[0].mxu0
      %v1208 = vpop.f32.mrb[0].mxu0
      %v1209 = vadd.f32 0.0, %v1208
      %v1210 = vpop.f32.mrb[0].mxu0
      %1211 = vmatprep.mubr.bf16.mxu0 0
      %1212 = vmatmul.mubr.bf16.gmra.mrb[0].mxu0 %v1092
      %v1213 = vpop.f32.mrb[0].mxu0
      %v1214 = vadd.f32 0.0, %v1213
      %v1215 = vpop.f32.mrb[0].mxu0
      %v1216 = vpop.f32.mrb[0].mxu0
      %v1217 = vadd.f32 0.0, %v1216
      %v1218 = vpop.f32.mrb[0].mxu0
      %1219 = vmatprep.mubr.bf16.mxu0 0
      %1220 = vmatmul.mubr.bf16.gmra.mrb[0].mxu0 %v1093
      %v1221 = vpop.f32.mrb[0].mxu0
      %v1222 = vadd.f32 0.0, %v1221
      %v1223 = vpop.f32.mrb[0].mxu0
      %v1224 = vpop.f32.mrb[0].mxu0
      %v1225 = vadd.f32 0.0, %v1224
      %v1226 = vpop.f32.mrb[0].mxu0
      %1227 = vmatprep.mubr.bf16.mxu0 0
      %1228 = vmatmul.mubr.bf16.gmra.mrb[0].mxu0 %v1094
      %v1229 = vpop.f32.mrb[0].mxu0
      %v1230 = vadd.f32 0.0, %v1229
      %v1231 = vpop.f32.mrb[0].mxu0
      %v1232 = vpop.f32.mrb[0].mxu0
      %v1233 = vadd.f32 0.0, %v1232
      %v1234 = vpop.f32.mrb[0].mxu0
      %1235 = vmatprep.mubr.bf16.mxu0 0
      %1236 = vmatmul.mubr.bf16.gmra.mrb[0].mxu0 %v1095
      %v1237 = vpop.f32.mrb[0].mxu0
      %v1238 = vadd.f32 0.0, %v1237
      %v1239 = vpop.f32.mrb[0].mxu0
      %v1240 = vpop.f32.mrb[0].mxu0
      %v1241 = vadd.f32 0.0, %v1240
      %v1242 = vpop.f32.mrb[0].mxu0
      %1243 = vmatprep.mubr.bf16.mxu0 0
      %1244 = vmatmul.mubr.bf16.gmra.mrb[0].mxu0 %v1096
      %v1245 = vpop.f32.mrb[0].mxu0
      %v1246 = vadd.f32 0.0, %v1245
      %v1247 = vpop.f32.mrb[0].mxu0
      %v1248 = vpop.f32.mrb[0].mxu0
      %v1249 = vadd.f32 0.0, %v1248
      %v1250 = vpop.f32.mrb[0].mxu0
      %1251 = vmatprep.mubr.bf16.mxu0 0
      %1252 = vmatmul.mubr.bf16.gmra.mrb[0].mxu0 %v1097
      %v1253 = vpop.f32.mrb[0].mxu0
      %v1254 = vadd.f32 0.0, %v1253
      %v1255 = vpop.f32.mrb[0].mxu0
      %v1256 = vpop.f32.mrb[0].mxu0
      %v1257 = vadd.f32 0.0, %v1256
      %v1258 = vpop.f32.mrb[0].mxu0
      %1259 = vmatprep.mubr.bf16.mxu0 0
      %1260 = vmatmul.mubr.bf16.gmra.mrb[0].mxu0 %v1098
      %v1261 = vpop.f32.mrb[0].mxu0
      %v1262 = vadd.f32 0.0, %v1261
      %v1263 = vpop.f32.mrb[0].mxu0
      %v1264 = vpop.f32.mrb[0].mxu0
      %v1265 = vadd.f32 0.0, %v1264
      %v1266 = vpop.f32.mrb[0].mxu0
      %1267 = vmatprep.mubr.bf16.mxu0 0
      %1268 = vmatmul.mubr.bf16.gmra.mrb[0].mxu0 %v1099
      %v1269 = vpop.f32.mrb[0].mxu0
      %v1270 = vadd.f32 0.0, %v1269
      %v1271 = vpop.f32.mrb[0].mxu0
      %v1272 = vpop.f32.mrb[0].mxu0
      %v1273 = vadd.f32 0.0, %v1272
      %v1274 = vpop.f32.mrb[0].mxu0
      %1275 = vmatprep.mubr.bf16.mxu0 0
      %1276 = vmatmul.mubr.bf16.gmra.mrb[0].mxu0 %v1100
      %v1277 = vpop.f32.mrb[0].mxu0
      %v1278 = vadd.f32 0.0, %v1277
      %v1279 = vpop.f32.mrb[0].mxu0
      %v1280 = vpop.f32.mrb[0].mxu0
      %v1281 = vadd.f32 0.0, %v1280
      %v1282 = vpop.f32.mrb[0].mxu0
      %1283 = vmatprep.mubr.bf16.mxu0 0
      %1284 = vmatmul.mubr.bf16.gmra.mrb[0].mxu0 %v1101
      %v1285 = vpop.f32.mrb[0].mxu0
      %v1286 = vadd.f32 0.0, %v1285
      %v1287 = vpop.f32.mrb[0].mxu0
      %v1288 = vpop.f32.mrb[0].mxu0
      %v1289 = vadd.f32 0.0, %v1288
      %v1290 = vpop.f32.mrb[0].mxu0
      %1291 = vmatprep.mubr.bf16.mxu0 0
      %1292 = vmatmul.mubr.bf16.gmra.mrb[0].mxu0 %v1102
      %v1293 = vpop.f32.mrb[0].mxu0
      %v1294 = vadd.f32 0.0, %v1293
      %v1295 = vpop.f32.mrb[0].mxu0
      %v1296 = vpop.f32.mrb[0].mxu0
      %v1297 = vadd.f32 0.0, %v1296
      %v1298 = vpop.f32.mrb[0].mxu0
      %1299 = vmatprep.mubr.bf16.mxu0 0
      %1300 = vmatmul.mubr.bf16.gmra.mrb[0].mxu0 %v1103
      %v1301 = vpop.f32.mrb[0].mxu0
      %v1302 = vadd.f32 0.0, %v1301
      %v1303 = vpop.f32.mrb[0].mxu0
      %v1304 = vpop.f32.mrb[0].mxu0
      %v1305 = vadd.f32 0.0, %v1304
      %v1306 = vpop.f32.mrb[0].mxu0
      %1307 = vmatprep.mubr.bf16.mxu0 0
      %1308 = vmatmul.mubr.bf16.gmra.mrb[0].mxu0 %v1104
      %v1309 = vpop.f32.mrb[0].mxu0
      %v1310 = vadd.f32 0.0, %v1309
      %v1311 = vpop.f32.mrb[0].mxu0
      %v1312 = vpop.f32.mrb[0].mxu0
      %v1313 = vadd.f32 0.0, %v1312
      %v1314 = vpop.f32.mrb[0].mxu0
      %1315 = vmatprep.mubr.bf16.mxu0 0
      %1316 = vmatmul.mubr.bf16.gmra.mrb[0].mxu0 %v1105
      %v1317 = vpop.f32.mrb[0].mxu0
      %v1318 = vadd.f32 0.0, %v1317
      %v1319 = vpop.f32.mrb[0].mxu0
      %v1320 = vpop.f32.mrb[0].mxu0
      %v1321 = vadd.f32 0.0, %v1320
      %v1322 = vpop.f32.mrb[0].mxu0
      %1323 = vmatprep.mubr.bf16.mxu0 0
      %1324 = vmatmul.mubr.bf16.gmra.mrb[0].mxu0 %v1106
      %v1325 = vpop.f32.mrb[0].mxu0
      %v1326 = vadd.f32 0.0, %v1325
      %v1327 = vpop.f32.mrb[0].mxu0
      %v1328 = vpop.f32.mrb[0].mxu0
      %v1329 = vadd.f32 0.0, %v1328
      %v1330 = vpop.f32.mrb[0].mxu0
      %1331 = vdwg.mxu0
      %v1332 = vadd.f32 %v481, %v1206
      %v1333 = vadd.f32 %v484, %v1209
      %v1334 = vadd.f32 %v489, %v1214
      %v1335 = vadd.f32 %v492, %v1217
      %v1336 = vadd.f32 %v497, %v1222
      %v1337 = vadd.f32 %v500, %v1225
      %v1338 = vadd.f32 %v505, %v1230
      %v1339 = vadd.f32 %v508, %v1233
      %v1340 = vadd.f32 %v513, %v1238
      %v1341 = vadd.f32 %v516, %v1241
      %v1342 = vadd.f32 %v521, %v1246
      %v1343 = vadd.f32 %v524, %v1249
      %v1344 = vadd.f32 %v529, %v1254
      %v1345 = vadd.f32 %v532, %v1257
      %v1346 = vadd.f32 %v537, %v1262
      %v1347 = vadd.f32 %v540, %v1265
      %v1348 = vadd.f32 %v545, %v1270
      %v1349 = vadd.f32 %v548, %v1273
      %v1350 = vadd.f32 %v553, %v1278
      %v1351 = vadd.f32 %v556, %v1281
      %v1352 = vadd.f32 %v561, %v1286
      %v1353 = vadd.f32 %v564, %v1289
      %v1354 = vadd.f32 %v569, %v1294
      %v1355 = vadd.f32 %v572, %v1297
      %v1356 = vadd.f32 %v577, %v1302
      %v1357 = vadd.f32 %v580, %v1305
      %v1358 = vadd.f32 %v585, %v1310
      %v1359 = vadd.f32 %v588, %v1313
      %v1360 = vadd.f32 %v593, %v1318
      %v1361 = vadd.f32 %v596, %v1321
      %v1362 = vadd.f32 %v601, %v1326
      %v1363 = vadd.f32 %v604, %v1329
      %v1364 = vld [vmem:[%s246] sm:$0xe]
      %v1365 = vld [vmem:[%s246 + $0xc] sm:$0xe]
      %v1366 = vld [vmem:[%s246 + $0x18] sm:$0xe]
      %v1367 = vld [vmem:[%s246 + $0x24] sm:$0xe]
      %v1368 = vld [vmem:[%s246 + $0x30] sm:$0xe]
      %v1369 = vld [vmem:[%s246 + $0x3c] sm:$0xe]
      %v1370 = vld [vmem:[%s246 + $0x48] sm:$0xe]
      %v1371 = vld [vmem:[%s246 + $0x54] sm:$0xe]
      %v1372 = vld [vmem:[%s246 + $0x60] sm:$0xe]
      %v1373 = vld [vmem:[%s246 + $0x6c] sm:$0xe]
      %v1374 = vld [vmem:[%s246 + $0x78] sm:$0xe]
      %v1375 = vld [vmem:[%s246 + $0x84] sm:$0xe]
      %v1376 = vld [vmem:[%s246 + $0x90] sm:$0xe]
      %v1377 = vld [vmem:[%s246 + $0x9c] sm:$0xe]
      %v1378 = vld [vmem:[%s246 + $0xa8] sm:$0xe]
      %v1379 = vld [vmem:[%s246 + $0xb4] sm:$0xe]
      %vm1428 = vcmask 1042432
      %vm1429 = vcmask 1046532
      %vm1430 = vmor %vm1428, %vm1429
      %v1431 = vrot.slane %v1364, 5
      %v1432 = vrot.slane %v1431, 4
      %v1433 = vrot.slane %v608, 5
      %v1434 = vsel %vm1430, %v1432, %v1433
      %v1435 = vrot.slane %v1433, 4
      %v1436 = vrot.slane %v609, 5
      %v1437 = vsel %vm1430, %v1435, %v1436
      %v1438 = vrot.slane %v1365, 5
      %v1439 = vrot.slane %v1438, 4
      %v1440 = vrot.slane %v611, 5
      %v1441 = vsel %vm1430, %v1439, %v1440
      %v1442 = vrot.slane %v1440, 4
      %v1443 = vrot.slane %v612, 5
      %v1444 = vsel %vm1430, %v1442, %v1443
      %v1445 = vrot.slane %v1366, 5
      %v1446 = vrot.slane %v1445, 4
      %v1447 = vrot.slane %v614, 5
      %v1448 = vsel %vm1430, %v1446, %v1447
      %v1449 = vrot.slane %v1447, 4
      %v1450 = vrot.slane %v615, 5
      %v1451 = vsel %vm1430, %v1449, %v1450
      %v1452 = vrot.slane %v1367, 5
      %v1453 = vrot.slane %v1452, 4
      %v1454 = vrot.slane %v617, 5
      %v1455 = vsel %vm1430, %v1453, %v1454
      %v1456 = vrot.slane %v1454, 4
      %v1457 = vrot.slane %v618, 5
      %v1458 = vsel %vm1430, %v1456, %v1457
      %v1459 = vrot.slane %v1368, 5
      %v1460 = vrot.slane %v1459, 4
      %v1461 = vrot.slane %v620, 5
      %v1462 = vsel %vm1430, %v1460, %v1461
      %v1463 = vrot.slane %v1461, 4
      %v1464 = vrot.slane %v621, 5
      %v1465 = vsel %vm1430, %v1463, %v1464
      %v1466 = vrot.slane %v1369, 5
      %v1467 = vrot.slane %v1466, 4
      %v1468 = vrot.slane %v623, 5
      %v1469 = vsel %vm1430, %v1467, %v1468
      %v1470 = vrot.slane %v1468, 4
      %v1471 = vrot.slane %v624, 5
      %v1472 = vsel %vm1430, %v1470, %v1471
      %v1473 = vrot.slane %v1370, 5
      %v1474 = vrot.slane %v1473, 4
      %v1475 = vrot.slane %v626, 5
      %v1476 = vsel %vm1430, %v1474, %v1475
      %v1477 = vrot.slane %v1475, 4
      %v1478 = vrot.slane %v627, 5
      %v1479 = vsel %vm1430, %v1477, %v1478
      %v1480 = vrot.slane %v1371, 5
      %v1481 = vrot.slane %v1480, 4
      %v1482 = vrot.slane %v629, 5
      %v1483 = vsel %vm1430, %v1481, %v1482
      %v1484 = vrot.slane %v1482, 4
      %v1485 = vrot.slane %v630, 5
      %v1486 = vsel %vm1430, %v1484, %v1485
      %v1487 = vrot.slane %v1372, 5
      %v1488 = vrot.slane %v1487, 4
      %v1489 = vrot.slane %v632, 5
      %v1490 = vsel %vm1430, %v1488, %v1489
      %v1491 = vrot.slane %v1489, 4
      %v1492 = vrot.slane %v633, 5
      %v1493 = vsel %vm1430, %v1491, %v1492
      %v1494 = vrot.slane %v1373, 5
      %v1495 = vrot.slane %v1494, 4
      %v1496 = vrot.slane %v635, 5
      %v1497 = vsel %vm1430, %v1495, %v1496
      %v1498 = vrot.slane %v1496, 4
      %v1499 = vrot.slane %v636, 5
      %v1500 = vsel %vm1430, %v1498, %v1499
      %v1501 = vrot.slane %v1374, 5
      %v1502 = vrot.slane %v1501, 4
      %v1503 = vrot.slane %v638, 5
      %v1504 = vsel %vm1430, %v1502, %v1503
      %v1505 = vrot.slane %v1503, 4
      %v1506 = vrot.slane %v639, 5
      %v1507 = vsel %vm1430, %v1505, %v1506
      %v1508 = vrot.slane %v1375, 5
      %v1509 = vrot.slane %v1508, 4
      %v1510 = vrot.slane %v641, 5
      %v1511 = vsel %vm1430, %v1509, %v1510
      %v1512 = vrot.slane %v1510, 4
      %v1513 = vrot.slane %v642, 5
      %v1514 = vsel %vm1430, %v1512, %v1513
      %v1515 = vrot.slane %v1376, 5
      %v1516 = vrot.slane %v1515, 4
      %v1517 = vrot.slane %v644, 5
      %v1518 = vsel %vm1430, %v1516, %v1517
      %v1519 = vrot.slane %v1517, 4
      %v1520 = vrot.slane %v645, 5
      %v1521 = vsel %vm1430, %v1519, %v1520
      %v1522 = vrot.slane %v1377, 5
      %v1523 = vrot.slane %v1522, 4
      %v1524 = vrot.slane %v647, 5
      %v1525 = vsel %vm1430, %v1523, %v1524
      %v1526 = vrot.slane %v1524, 4
      %v1527 = vrot.slane %v648, 5
      %v1528 = vsel %vm1430, %v1526, %v1527
      %v1529 = vrot.slane %v1378, 5
      %v1530 = vrot.slane %v1529, 4
      %v1531 = vrot.slane %v650, 5
      %v1532 = vsel %vm1430, %v1530, %v1531
      %v1533 = vrot.slane %v1531, 4
      %v1534 = vrot.slane %v651, 5
      %v1535 = vsel %vm1430, %v1533, %v1534
      %v1536 = vrot.slane %v1379, 5
      %v1537 = vrot.slane %v1536, 4
      %v1538 = vrot.slane %v653, 5
      %v1539 = vsel %vm1430, %v1537, %v1538
      %v1540 = vrot.slane %v1538, 4
      %v1541 = vrot.slane %v654, 5
      %v1542 = vsel %vm1430, %v1540, %v1541
      %s1543 = scalar_lea.vmem %s224, 128
      %v1544 = vld [vmem:[%s1543] sm:$0xf]
      %v1545 = vld [vmem:[%s1543 + $0x4] sm:$0xf]
      %v1546 = vld [vmem:[%s1543 + $0x8] sm:$0xf]
      %v1547 = vld [vmem:[%s1543 + $0xc] sm:$0xf]
      %v1548 = vld [vmem:[%s1543 + $0x10] sm:$0xf]
      %v1549 = vld [vmem:[%s1543 + $0x14] sm:$0xf]
      %v1550 = vld [vmem:[%s1543 + $0x18] sm:$0xf]
      %v1551 = vld [vmem:[%s1543 + $0x1c] sm:$0xf]
      %v1552 = vld [vmem:[%s1543 + $0x20] sm:$0xf]
      %v1553 = vld [vmem:[%s1543 + $0x24] sm:$0xf]
      %v1554 = vld [vmem:[%s1543 + $0x28] sm:$0xf]
      %v1555 = vld [vmem:[%s1543 + $0x2c] sm:$0xf]
      %v1556 = vld [vmem:[%s1543 + $0x30] sm:$0xf]
      %v1557 = vld [vmem:[%s1543 + $0x34] sm:$0xf]
      %v1558 = vld [vmem:[%s1543 + $0x38] sm:$0xf]
      %v1559 = vld [vmem:[%s1543 + $0x3c] sm:$0xf]
      %v1560 = vunpack.c.l.b16 %v1434
      %v1561 = vunpack.c.l.b16 %v1437
      %v1562 = vunpack.c.l.b16 %v1441
      %v1563 = vunpack.c.l.b16 %v1444
      %v1564 = vunpack.c.l.b16 %v1448
      %v1565 = vunpack.c.l.b16 %v1451
      %v1566 = vunpack.c.l.b16 %v1455
      %v1567 = vunpack.c.l.b16 %v1458
      %v1568 = vunpack.c.l.b16 %v1462
      %v1569 = vunpack.c.l.b16 %v1465
      %v1570 = vunpack.c.l.b16 %v1469
      %v1571 = vunpack.c.l.b16 %v1472
      %v1572 = vunpack.c.l.b16 %v1476
      %v1573 = vunpack.c.l.b16 %v1479
      %v1574 = vunpack.c.l.b16 %v1483
      %v1575 = vunpack.c.l.b16 %v1486
      %v1576 = vunpack.c.l.b16 %v1490
      %v1577 = vunpack.c.l.b16 %v1493
      %v1578 = vunpack.c.l.b16 %v1497
      %v1579 = vunpack.c.l.b16 %v1500
      %v1580 = vunpack.c.l.b16 %v1504
      %v1581 = vunpack.c.l.b16 %v1507
      %v1582 = vunpack.c.l.b16 %v1511
      %v1583 = vunpack.c.l.b16 %v1514
      %v1584 = vunpack.c.l.b16 %v1518
      %v1585 = vunpack.c.l.b16 %v1521
      %v1586 = vunpack.c.l.b16 %v1525
      %v1587 = vunpack.c.l.b16 %v1528
      %v1588 = vunpack.c.l.b16 %v1532
      %v1589 = vunpack.c.l.b16 %v1535
      %v1590 = vunpack.c.l.b16 %v1539
      %v1591 = vunpack.c.l.b16 %v1542
      %v1592 = vpack.c.b16 %v1561, %v1560
      %v1593 = vpack.c.b16 %v1563, %v1562
      %v1594 = vpack.c.b16 %v1565, %v1564
      %v1595 = vpack.c.b16 %v1567, %v1566
      %v1596 = vpack.c.b16 %v1569, %v1568
      %v1597 = vpack.c.b16 %v1571, %v1570
      %v1598 = vpack.c.b16 %v1573, %v1572
      %v1599 = vpack.c.b16 %v1575, %v1574
      %v1600 = vpack.c.b16 %v1577, %v1576
      %v1601 = vpack.c.b16 %v1579, %v1578
      %v1602 = vpack.c.b16 %v1581, %v1580
      %v1603 = vpack.c.b16 %v1583, %v1582
      %v1604 = vpack.c.b16 %v1585, %v1584
      %v1605 = vpack.c.b16 %v1587, %v1586
      %v1606 = vpack.c.b16 %v1589, %v1588
      %v1607 = vpack.c.b16 %v1591, %v1590
      %v1640 = vunpack.c.l.b16 %v1544
      %v1641 = vunpack.c.l.b16 %v1545
      %v1642 = vunpack.c.l.b16 %v1546
      %v1643 = vunpack.c.l.b16 %v1547
      %v1644 = vunpack.c.l.b16 %v1548
      %v1645 = vunpack.c.l.b16 %v1549
      %v1646 = vunpack.c.l.b16 %v1550
      %v1647 = vunpack.c.l.b16 %v1551
      %v1648 = vunpack.c.l.b16 %v1552
      %v1649 = vunpack.c.l.b16 %v1553
      %v1650 = vunpack.c.l.b16 %v1554
      %v1651 = vunpack.c.l.b16 %v1555
      %v1652 = vunpack.c.l.b16 %v1556
      %v1653 = vunpack.c.l.b16 %v1557
      %v1654 = vunpack.c.l.b16 %v1558
      %v1655 = vunpack.c.l.b16 %v1559
      %v1656 = vpack.c.b16 %v1641, %v1640
      %v1657 = vpack.c.b16 %v1643, %v1642
      %v1658 = vpack.c.b16 %v1645, %v1644
      %v1659 = vpack.c.b16 %v1647, %v1646
      %v1660 = vpack.c.b16 %v1649, %v1648
      %v1661 = vpack.c.b16 %v1651, %v1650
      %v1662 = vpack.c.b16 %v1653, %v1652
      %v1663 = vpack.c.b16 %v1655, %v1654
      %1672 = vmatprep.subr.bf16.mxu0 0
      %1673 = vmatpush1.bf16.msra.mxu0 %v1656
      %1674 = vmatprep.subr.bf16.mxu0 0
      %1675 = vmatpush1.bf16.msra.mxu0 %v1657
      %1676 = vmatprep.subr.bf16.mxu0 0
      %1677 = vmatpush1.bf16.msra.mxu0 %v1658
      %1678 = vmatprep.subr.bf16.mxu0 0
      %1679 = vmatpush1.bf16.msra.mxu0 %v1659
      %1680 = vmatprep.subr.bf16.mxu0 0
      %1681 = vmatpush1.bf16.msra.mxu0 %v1660
      %1682 = vmatprep.subr.bf16.mxu0 0
      %1683 = vmatpush1.bf16.msra.mxu0 %v1661
      %1684 = vmatprep.subr.bf16.mxu0 0
      %1685 = vmatpush1.bf16.msra.mxu0 %v1662
      %1686 = vmatprep.subr.bf16.mxu0 0
      %1687 = vmatpush1.bf16.msra.mxu0 %v1663
      %1688 = vmatprep.subr.bf16.mxu0 0
      %1689 = vmatpush1.bf16.msra.mxu0 0
      %1690 = vmatprep.subr.bf16.mxu0 0
      %1691 = vmatpush1.bf16.msra.mxu0 0
      %1692 = vmatprep.subr.bf16.mxu0 0
      %1693 = vmatpush1.bf16.msra.mxu0 0
      %1694 = vmatprep.subr.bf16.mxu0 0
      %1695 = vmatpush1.bf16.msra.mxu0 0
      %1696 = vmatprep.subr.bf16.mxu0 0
      %1697 = vmatpush1.bf16.msra.mxu0 0
      %1698 = vmatprep.subr.bf16.mxu0 0
      %1699 = vmatpush1.bf16.msra.mxu0 0
      %1700 = vmatprep.subr.bf16.mxu0 0
      %1701 = vmatpush1.bf16.msra.mxu0 0
      %1702 = vmatprep.subr.bf16.mxu0 0
      %1703 = vmatpush1.bf16.msra.mxu0 0
      %1704 = vmatprep.mubr.bf16.mxu0 0
      %1705 = vmatmul.mubr.bf16.gmra.mrb[0].mxu0 %v1592
      %v1706 = vpop.f32.mrb[0].mxu0
      %v1707 = vadd.f32 0.0, %v1706
      %v1708 = vpop.f32.mrb[0].mxu0
      %v1709 = vpop.f32.mrb[0].mxu0
      %v1710 = vadd.f32 0.0, %v1709
      %v1711 = vpop.f32.mrb[0].mxu0
      %1712 = vmatprep.mubr.bf16.mxu0 0
      %1713 = vmatmul.mubr.bf16.gmra.mrb[0].mxu0 %v1593
      %v1714 = vpop.f32.mrb[0].mxu0
      %v1715 = vadd.f32 0.0, %v1714
      %v1716 = vpop.f32.mrb[0].mxu0
      %v1717 = vpop.f32.mrb[0].mxu0
      %v1718 = vadd.f32 0.0, %v1717
      %v1719 = vpop.f32.mrb[0].mxu0
      %1720 = vmatprep.mubr.bf16.mxu0 0
      %1721 = vmatmul.mubr.bf16.gmra.mrb[0].mxu0 %v1594
      %v1722 = vpop.f32.mrb[0].mxu0
      %v1723 = vadd.f32 0.0, %v1722
      %v1724 = vpop.f32.mrb[0].mxu0
      %v1725 = vpop.f32.mrb[0].mxu0
      %v1726 = vadd.f32 0.0, %v1725
      %v1727 = vpop.f32.mrb[0].mxu0
      %1728 = vmatprep.mubr.bf16.mxu0 0
      %1729 = vmatmul.mubr.bf16.gmra.mrb[0].mxu0 %v1595
      %v1730 = vpop.f32.mrb[0].mxu0
      %v1731 = vadd.f32 0.0, %v1730
      %v1732 = vpop.f32.mrb[0].mxu0
      %v1733 = vpop.f32.mrb[0].mxu0
      %v1734 = vadd.f32 0.0, %v1733
      %v1735 = vpop.f32.mrb[0].mxu0
      %1736 = vmatprep.mubr.bf16.mxu0 0
      %1737 = vmatmul.mubr.bf16.gmra.mrb[0].mxu0 %v1596
      %v1738 = vpop.f32.mrb[0].mxu0
      %v1739 = vadd.f32 0.0, %v1738
      %v1740 = vpop.f32.mrb[0].mxu0
      %v1741 = vpop.f32.mrb[0].mxu0
      %v1742 = vadd.f32 0.0, %v1741
      %v1743 = vpop.f32.mrb[0].mxu0
      %1744 = vmatprep.mubr.bf16.mxu0 0
      %1745 = vmatmul.mubr.bf16.gmra.mrb[0].mxu0 %v1597
      %v1746 = vpop.f32.mrb[0].mxu0
      %v1747 = vadd.f32 0.0, %v1746
      %v1748 = vpop.f32.mrb[0].mxu0
      %v1749 = vpop.f32.mrb[0].mxu0
      %v1750 = vadd.f32 0.0, %v1749
      %v1751 = vpop.f32.mrb[0].mxu0
      %1752 = vmatprep.mubr.bf16.mxu0 0
      %1753 = vmatmul.mubr.bf16.gmra.mrb[0].mxu0 %v1598
      %v1754 = vpop.f32.mrb[0].mxu0
      %v1755 = vadd.f32 0.0, %v1754
      %v1756 = vpop.f32.mrb[0].mxu0
      %v1757 = vpop.f32.mrb[0].mxu0
      %v1758 = vadd.f32 0.0, %v1757
      %v1759 = vpop.f32.mrb[0].mxu0
      %1760 = vmatprep.mubr.bf16.mxu0 0
      %1761 = vmatmul.mubr.bf16.gmra.mrb[0].mxu0 %v1599
      %v1762 = vpop.f32.mrb[0].mxu0
      %v1763 = vadd.f32 0.0, %v1762
      %v1764 = vpop.f32.mrb[0].mxu0
      %v1765 = vpop.f32.mrb[0].mxu0
      %v1766 = vadd.f32 0.0, %v1765
      %v1767 = vpop.f32.mrb[0].mxu0
      %1768 = vmatprep.mubr.bf16.mxu0 0
      %1769 = vmatmul.mubr.bf16.gmra.mrb[0].mxu0 %v1600
      %v1770 = vpop.f32.mrb[0].mxu0
      %v1771 = vadd.f32 0.0, %v1770
      %v1772 = vpop.f32.mrb[0].mxu0
      %v1773 = vpop.f32.mrb[0].mxu0
      %v1774 = vadd.f32 0.0, %v1773
      %v1775 = vpop.f32.mrb[0].mxu0
      %1776 = vmatprep.mubr.bf16.mxu0 0
      %1777 = vmatmul.mubr.bf16.gmra.mrb[0].mxu0 %v1601
      %v1778 = vpop.f32.mrb[0].mxu0
      %v1779 = vadd.f32 0.0, %v1778
      %v1780 = vpop.f32.mrb[0].mxu0
      %v1781 = vpop.f32.mrb[0].mxu0
      %v1782 = vadd.f32 0.0, %v1781
      %v1783 = vpop.f32.mrb[0].mxu0
      %1784 = vmatprep.mubr.bf16.mxu0 0
      %1785 = vmatmul.mubr.bf16.gmra.mrb[0].mxu0 %v1602
      %v1786 = vpop.f32.mrb[0].mxu0
      %v1787 = vadd.f32 0.0, %v1786
      %v1788 = vpop.f32.mrb[0].mxu0
      %v1789 = vpop.f32.mrb[0].mxu0
      %v1790 = vadd.f32 0.0, %v1789
      %v1791 = vpop.f32.mrb[0].mxu0
      %1792 = vmatprep.mubr.bf16.mxu0 0
      %1793 = vmatmul.mubr.bf16.gmra.mrb[0].mxu0 %v1603
      %v1794 = vpop.f32.mrb[0].mxu0
      %v1795 = vadd.f32 0.0, %v1794
      %v1796 = vpop.f32.mrb[0].mxu0
      %v1797 = vpop.f32.mrb[0].mxu0
      %v1798 = vadd.f32 0.0, %v1797
      %v1799 = vpop.f32.mrb[0].mxu0
      %1800 = vmatprep.mubr.bf16.mxu0 0
      %1801 = vmatmul.mubr.bf16.gmra.mrb[0].mxu0 %v1604
      %v1802 = vpop.f32.mrb[0].mxu0
      %v1803 = vadd.f32 0.0, %v1802
      %v1804 = vpop.f32.mrb[0].mxu0
      %v1805 = vpop.f32.mrb[0].mxu0
      %v1806 = vadd.f32 0.0, %v1805
      %v1807 = vpop.f32.mrb[0].mxu0
      %1808 = vmatprep.mubr.bf16.mxu0 0
      %1809 = vmatmul.mubr.bf16.gmra.mrb[0].mxu0 %v1605
      %v1810 = vpop.f32.mrb[0].mxu0
      %v1811 = vadd.f32 0.0, %v1810
      %v1812 = vpop.f32.mrb[0].mxu0
      %v1813 = vpop.f32.mrb[0].mxu0
      %v1814 = vadd.f32 0.0, %v1813
      %v1815 = vpop.f32.mrb[0].mxu0
      %1816 = vmatprep.mubr.bf16.mxu0 0
      %1817 = vmatmul.mubr.bf16.gmra.mrb[0].mxu0 %v1606
      %v1818 = vpop.f32.mrb[0].mxu0
      %v1819 = vadd.f32 0.0, %v1818
      %v1820 = vpop.f32.mrb[0].mxu0
      %v1821 = vpop.f32.mrb[0].mxu0
      %v1822 = vadd.f32 0.0, %v1821
      %v1823 = vpop.f32.mrb[0].mxu0
      %1824 = vmatprep.mubr.bf16.mxu0 0
      %1825 = vmatmul.mubr.bf16.gmra.mrb[0].mxu0 %v1607
      %v1826 = vpop.f32.mrb[0].mxu0
      %v1827 = vadd.f32 0.0, %v1826
      %v1828 = vpop.f32.mrb[0].mxu0
      %v1829 = vpop.f32.mrb[0].mxu0
      %v1830 = vadd.f32 0.0, %v1829
      %v1831 = vpop.f32.mrb[0].mxu0
      %1832 = vdwg.mxu0
      %v1833 = vadd.f32 %v1332, %v1707
      %v1834 = vadd.f32 %v1333, %v1710
      %v1835 = vadd.f32 %v1334, %v1715
      %v1836 = vadd.f32 %v1335, %v1718
      %v1837 = vadd.f32 %v1336, %v1723
      %v1838 = vadd.f32 %v1337, %v1726
      %v1839 = vadd.f32 %v1338, %v1731
      %v1840 = vadd.f32 %v1339, %v1734
      %v1841 = vadd.f32 %v1340, %v1739
      %v1842 = vadd.f32 %v1341, %v1742
      %v1843 = vadd.f32 %v1342, %v1747
      %v1844 = vadd.f32 %v1343, %v1750
      %v1845 = vadd.f32 %v1344, %v1755
      %v1846 = vadd.f32 %v1345, %v1758
      %v1847 = vadd.f32 %v1346, %v1763
      %v1848 = vadd.f32 %v1347, %v1766
      %v1849 = vadd.f32 %v1348, %v1771
      %v1850 = vadd.f32 %v1349, %v1774
      %v1851 = vadd.f32 %v1350, %v1779
      %v1852 = vadd.f32 %v1351, %v1782
      %v1853 = vadd.f32 %v1352, %v1787
      %v1854 = vadd.f32 %v1353, %v1790
      %v1855 = vadd.f32 %v1354, %v1795
      %v1856 = vadd.f32 %v1355, %v1798
      %v1857 = vadd.f32 %v1356, %v1803
      %v1858 = vadd.f32 %v1357, %v1806
      %v1859 = vadd.f32 %v1358, %v1811
      %v1860 = vadd.f32 %v1359, %v1814
      %v1861 = vadd.f32 %v1360, %v1819
      %v1862 = vadd.f32 %v1361, %v1822
      %v1863 = vadd.f32 %v1362, %v1827
      %v1864 = vadd.f32 %v1363, %v1830
      %s1865 = sadd.s32 %s243, 1
      %s1866 = smul.u32 %s1865, 3
      %s1867 = smul.addr %s1866, 4
      %s1868 = scalar_lea.vmem %s220, %s1867
      %v1869 = vld [vmem:[%s1868] sm:$0xf]
      %v1870 = vld [vmem:[%s1868 + $0x4] sm:$0xf]
      %v1871 = vld [vmem:[%s1868 + $0xc] sm:$0xf]
      %v1872 = vld [vmem:[%s1868 + $0x10] sm:$0xf]
      %v1873 = vld [vmem:[%s1868 + $0x18] sm:$0xf]
      %v1874 = vld [vmem:[%s1868 + $0x1c] sm:$0xf]
      %v1875 = vld [vmem:[%s1868 + $0x24] sm:$0xf]
      %v1876 = vld [vmem:[%s1868 + $0x28] sm:$0xf]
      %v1877 = vld [vmem:[%s1868 + $0x30] sm:$0xf]
      %v1878 = vld [vmem:[%s1868 + $0x34] sm:$0xf]
      %v1879 = vld [vmem:[%s1868 + $0x3c] sm:$0xf]
      %v1880 = vld [vmem:[%s1868 + $0x40] sm:$0xf]
      %v1881 = vld [vmem:[%s1868 + $0x48] sm:$0xf]
      %v1882 = vld [vmem:[%s1868 + $0x4c] sm:$0xf]
      %v1883 = vld [vmem:[%s1868 + $0x54] sm:$0xf]
      %v1884 = vld [vmem:[%s1868 + $0x58] sm:$0xf]
      %v1885 = vld [vmem:[%s1868 + $0x60] sm:$0xf]
      %v1886 = vld [vmem:[%s1868 + $0x64] sm:$0xf]
      %v1887 = vld [vmem:[%s1868 + $0x6c] sm:$0xf]
      %v1888 = vld [vmem:[%s1868 + $0x70] sm:$0xf]
      %v1889 = vld [vmem:[%s1868 + $0x78] sm:$0xf]
      %v1890 = vld [vmem:[%s1868 + $0x7c] sm:$0xf]
      %v1891 = vld [vmem:[%s1868 + $0x84] sm:$0xf]
      %v1892 = vld [vmem:[%s1868 + $0x88] sm:$0xf]
      %v1893 = vld [vmem:[%s1868 + $0x90] sm:$0xf]
      %v1894 = vld [vmem:[%s1868 + $0x94] sm:$0xf]
      %v1895 = vld [vmem:[%s1868 + $0x9c] sm:$0xf]
      %v1896 = vld [vmem:[%s1868 + $0xa0] sm:$0xf]
      %v1897 = vld [vmem:[%s1868 + $0xa8] sm:$0xf]
      %v1898 = vld [vmem:[%s1868 + $0xac] sm:$0xf]
      %v1899 = vld [vmem:[%s1868 + $0xb4] sm:$0xf]
      %v1900 = vld [vmem:[%s1868 + $0xb8] sm:$0xf]
      %s1901 = scalar_lea.vmem %s224, 192
      %v1902 = vld [vmem:[%s1901] sm:$0xf]
      %v1903 = vld [vmem:[%s1901 + $0x4] sm:$0xf]
      %v1904 = vld [vmem:[%s1901 + $0x8] sm:$0xf]
      %v1905 = vld [vmem:[%s1901 + $0xc] sm:$0xf]
      %v1906 = vld [vmem:[%s1901 + $0x10] sm:$0xf]
      %v1907 = vld [vmem:[%s1901 + $0x14] sm:$0xf]
      %v1908 = vld [vmem:[%s1901 + $0x18] sm:$0xf]
      %v1909 = vld [vmem:[%s1901 + $0x1c] sm:$0xf]
      %v1910 = vld [vmem:[%s1901 + $0x20] sm:$0xf]
      %v1911 = vld [vmem:[%s1901 + $0x24] sm:$0xf]
      %v1912 = vld [vmem:[%s1901 + $0x28] sm:$0xf]
      %v1913 = vld [vmem:[%s1901 + $0x2c] sm:$0xf]
      %v1914 = vld [vmem:[%s1901 + $0x30] sm:$0xf]
      %v1915 = vld [vmem:[%s1901 + $0x34] sm:$0xf]
      %v1916 = vld [vmem:[%s1901 + $0x38] sm:$0xf]
      %v1917 = vld [vmem:[%s1901 + $0x3c] sm:$0xf]
      %v1950 = vunpack.c.l.b16 %v1869
      %v1951 = vunpack.c.l.b16 %v1870
      %v1952 = vunpack.c.l.b16 %v1871
      %v1953 = vunpack.c.l.b16 %v1872
      %v1954 = vunpack.c.l.b16 %v1873
      %v1955 = vunpack.c.l.b16 %v1874
      %v1956 = vunpack.c.l.b16 %v1875
      %v1957 = vunpack.c.l.b16 %v1876
      %v1958 = vunpack.c.l.b16 %v1877
      %v1959 = vunpack.c.l.b16 %v1878
      %v1960 = vunpack.c.l.b16 %v1879
      %v1961 = vunpack.c.l.b16 %v1880
      %v1962 = vunpack.c.l.b16 %v1881
      %v1963 = vunpack.c.l.b16 %v1882
      %v1964 = vunpack.c.l.b16 %v1883
      %v1965 = vunpack.c.l.b16 %v1884
      %v1966 = vunpack.c.l.b16 %v1885
      %v1967 = vunpack.c.l.b16 %v1886
      %v1968 = vunpack.c.l.b16 %v1887
      %v1969 = vunpack.c.l.b16 %v1888
      %v1970 = vunpack.c.l.b16 %v1889
      %v1971 = vunpack.c.l.b16 %v1890
      %v1972 = vunpack.c.l.b16 %v1891
      %v1973 = vunpack.c.l.b16 %v1892
      %v1974 = vunpack.c.l.b16 %v1893
      %v1975 = vunpack.c.l.b16 %v1894
      %v1976 = vunpack.c.l.b16 %v1895
      %v1977 = vunpack.c.l.b16 %v1896
      %v1978 = vunpack.c.l.b16 %v1897
      %v1979 = vunpack.c.l.b16 %v1898
      %v1980 = vunpack.c.l.b16 %v1899
      %v1981 = vunpack.c.l.b16 %v1900
      %v1982 = vpack.c.b16 %v1951, %v1950
      %v1983 = vpack.c.b16 %v1953, %v1952
      %v1984 = vpack.c.b16 %v1955, %v1954
      %v1985 = vpack.c.b16 %v1957, %v1956
      %v1986 = vpack.c.b16 %v1959, %v1958
      %v1987 = vpack.c.b16 %v1961, %v1960
      %v1988 = vpack.c.b16 %v1963, %v1962
      %v1989 = vpack.c.b16 %v1965, %v1964
      %v1990 = vpack.c.b16 %v1967, %v1966
      %v1991 = vpack.c.b16 %v1969, %v1968
      %v1992 = vpack.c.b16 %v1971, %v1970
      %v1993 = vpack.c.b16 %v1973, %v1972
      %v1994 = vpack.c.b16 %v1975, %v1974
      %v1995 = vpack.c.b16 %v1977, %v1976
      %v1996 = vpack.c.b16 %v1979, %v1978
      %v1997 = vpack.c.b16 %v1981, %v1980
      %v2030 = vunpack.c.l.b16 %v1902
      %v2031 = vunpack.c.l.b16 %v1903
      %v2032 = vunpack.c.l.b16 %v1904
      %v2033 = vunpack.c.l.b16 %v1905
      %v2034 = vunpack.c.l.b16 %v1906
      %v2035 = vunpack.c.l.b16 %v1907
      %v2036 = vunpack.c.l.b16 %v1908
      %v2037 = vunpack.c.l.b16 %v1909
      %v2038 = vunpack.c.l.b16 %v1910
      %v2039 = vunpack.c.l.b16 %v1911
      %v2040 = vunpack.c.l.b16 %v1912
      %v2041 = vunpack.c.l.b16 %v1913
      %v2042 = vunpack.c.l.b16 %v1914
      %v2043 = vunpack.c.l.b16 %v1915
      %v2044 = vunpack.c.l.b16 %v1916
      %v2045 = vunpack.c.l.b16 %v1917
      %v2046 = vpack.c.b16 %v2031, %v2030
      %v2047 = vpack.c.b16 %v2033, %v2032
      %v2048 = vpack.c.b16 %v2035, %v2034
      %v2049 = vpack.c.b16 %v2037, %v2036
      %v2050 = vpack.c.b16 %v2039, %v2038
      %v2051 = vpack.c.b16 %v2041, %v2040
      %v2052 = vpack.c.b16 %v2043, %v2042
      %v2053 = vpack.c.b16 %v2045, %v2044
      %2062 = vmatprep.subr.bf16.mxu0 0
      %2063 = vmatpush1.bf16.msra.mxu0 %v2046
      %2064 = vmatprep.subr.bf16.mxu0 0
      %2065 = vmatpush1.bf16.msra.mxu0 %v2047
      %2066 = vmatprep.subr.bf16.mxu0 0
      %2067 = vmatpush1.bf16.msra.mxu0 %v2048
      %2068 = vmatprep.subr.bf16.mxu0 0
      %2069 = vmatpush1.bf16.msra.mxu0 %v2049
      %2070 = vmatprep.subr.bf16.mxu0 0
      %2071 = vmatpush1.bf16.msra.mxu0 %v2050
      %2072 = vmatprep.subr.bf16.mxu0 0
      %2073 = vmatpush1.bf16.msra.mxu0 %v2051
      %2074 = vmatprep.subr.bf16.mxu0 0
      %2075 = vmatpush1.bf16.msra.mxu0 %v2052
      %2076 = vmatprep.subr.bf16.mxu0 0
      %2077 = vmatpush1.bf16.msra.mxu0 %v2053
      %2078 = vmatprep.subr.bf16.mxu0 0
      %2079 = vmatpush1.bf16.msra.mxu0 0
      %2080 = vmatprep.subr.bf16.mxu0 0
      %2081 = vmatpush1.bf16.msra.mxu0 0
      %2082 = vmatprep.subr.bf16.mxu0 0
      %2083 = vmatpush1.bf16.msra.mxu0 0
      %2084 = vmatprep.subr.bf16.mxu0 0
      %2085 = vmatpush1.bf16.msra.mxu0 0
      %2086 = vmatprep.subr.bf16.mxu0 0
      %2087 = vmatpush1.bf16.msra.mxu0 0
      %2088 = vmatprep.subr.bf16.mxu0 0
      %2089 = vmatpush1.bf16.msra.mxu0 0
      %2090 = vmatprep.subr.bf16.mxu0 0
      %2091 = vmatpush1.bf16.msra.mxu0 0
      %2092 = vmatprep.subr.bf16.mxu0 0
      %2093 = vmatpush1.bf16.msra.mxu0 0
      %2094 = vmatprep.mubr.bf16.mxu0 0
      %2095 = vmatmul.mubr.bf16.gmra.mrb[0].mxu0 %v1982
      %v2096 = vpop.f32.mrb[0].mxu0
      %v2097 = vadd.f32 0.0, %v2096
      %v2098 = vpop.f32.mrb[0].mxu0
      %v2099 = vpop.f32.mrb[0].mxu0
      %v2100 = vadd.f32 0.0, %v2099
      %v2101 = vpop.f32.mrb[0].mxu0
      %2102 = vmatprep.mubr.bf16.mxu0 0
      %2103 = vmatmul.mubr.bf16.gmra.mrb[0].mxu0 %v1983
      %v2104 = vpop.f32.mrb[0].mxu0
      %v2105 = vadd.f32 0.0, %v2104
      %v2106 = vpop.f32.mrb[0].mxu0
      %v2107 = vpop.f32.mrb[0].mxu0
      %v2108 = vadd.f32 0.0, %v2107
      %v2109 = vpop.f32.mrb[0].mxu0
      %2110 = vmatprep.mubr.bf16.mxu0 0
      %2111 = vmatmul.mubr.bf16.gmra.mrb[0].mxu0 %v1984
      %v2112 = vpop.f32.mrb[0].mxu0
      %v2113 = vadd.f32 0.0, %v2112
      %v2114 = vpop.f32.mrb[0].mxu0
      %v2115 = vpop.f32.mrb[0].mxu0
      %v2116 = vadd.f32 0.0, %v2115
      %v2117 = vpop.f32.mrb[0].mxu0
      %2118 = vmatprep.mubr.bf16.mxu0 0
      %2119 = vmatmul.mubr.bf16.gmra.mrb[0].mxu0 %v1985
      %v2120 = vpop.f32.mrb[0].mxu0
      %v2121 = vadd.f32 0.0, %v2120
      %v2122 = vpop.f32.mrb[0].mxu0
      %v2123 = vpop.f32.mrb[0].mxu0
      %v2124 = vadd.f32 0.0, %v2123
      %v2125 = vpop.f32.mrb[0].mxu0
      %2126 = vmatprep.mubr.bf16.mxu0 0
      %2127 = vmatmul.mubr.bf16.gmra.mrb[0].mxu0 %v1986
      %v2128 = vpop.f32.mrb[0].mxu0
      %v2129 = vadd.f32 0.0, %v2128
      %v2130 = vpop.f32.mrb[0].mxu0
      %v2131 = vpop.f32.mrb[0].mxu0
      %v2132 = vadd.f32 0.0, %v2131
      %v2133 = vpop.f32.mrb[0].mxu0
      %2134 = vmatprep.mubr.bf16.mxu0 0
      %2135 = vmatmul.mubr.bf16.gmra.mrb[0].mxu0 %v1987
      %v2136 = vpop.f32.mrb[0].mxu0
      %v2137 = vadd.f32 0.0, %v2136
      %v2138 = vpop.f32.mrb[0].mxu0
      %v2139 = vpop.f32.mrb[0].mxu0
      %v2140 = vadd.f32 0.0, %v2139
      %v2141 = vpop.f32.mrb[0].mxu0
      %2142 = vmatprep.mubr.bf16.mxu0 0
      %2143 = vmatmul.mubr.bf16.gmra.mrb[0].mxu0 %v1988
      %v2144 = vpop.f32.mrb[0].mxu0
      %v2145 = vadd.f32 0.0, %v2144
      %v2146 = vpop.f32.mrb[0].mxu0
      %v2147 = vpop.f32.mrb[0].mxu0
      %v2148 = vadd.f32 0.0, %v2147
      %v2149 = vpop.f32.mrb[0].mxu0
      %2150 = vmatprep.mubr.bf16.mxu0 0
      %2151 = vmatmul.mubr.bf16.gmra.mrb[0].mxu0 %v1989
      %v2152 = vpop.f32.mrb[0].mxu0
      %v2153 = vadd.f32 0.0, %v2152
      %v2154 = vpop.f32.mrb[0].mxu0
      %v2155 = vpop.f32.mrb[0].mxu0
      %v2156 = vadd.f32 0.0, %v2155
      %v2157 = vpop.f32.mrb[0].mxu0
      %2158 = vmatprep.mubr.bf16.mxu0 0
      %2159 = vmatmul.mubr.bf16.gmra.mrb[0].mxu0 %v1990
      %v2160 = vpop.f32.mrb[0].mxu0
      %v2161 = vadd.f32 0.0, %v2160
      %v2162 = vpop.f32.mrb[0].mxu0
      %v2163 = vpop.f32.mrb[0].mxu0
      %v2164 = vadd.f32 0.0, %v2163
      %v2165 = vpop.f32.mrb[0].mxu0
      %2166 = vmatprep.mubr.bf16.mxu0 0
      %2167 = vmatmul.mubr.bf16.gmra.mrb[0].mxu0 %v1991
      %v2168 = vpop.f32.mrb[0].mxu0
      %v2169 = vadd.f32 0.0, %v2168
      %v2170 = vpop.f32.mrb[0].mxu0
      %v2171 = vpop.f32.mrb[0].mxu0
      %v2172 = vadd.f32 0.0, %v2171
      %v2173 = vpop.f32.mrb[0].mxu0
      %2174 = vmatprep.mubr.bf16.mxu0 0
      %2175 = vmatmul.mubr.bf16.gmra.mrb[0].mxu0 %v1992
      %v2176 = vpop.f32.mrb[0].mxu0
      %v2177 = vadd.f32 0.0, %v2176
      %v2178 = vpop.f32.mrb[0].mxu0
      %v2179 = vpop.f32.mrb[0].mxu0
      %v2180 = vadd.f32 0.0, %v2179
      %v2181 = vpop.f32.mrb[0].mxu0
      %2182 = vmatprep.mubr.bf16.mxu0 0
      %2183 = vmatmul.mubr.bf16.gmra.mrb[0].mxu0 %v1993
      %v2184 = vpop.f32.mrb[0].mxu0
      %v2185 = vadd.f32 0.0, %v2184
      %v2186 = vpop.f32.mrb[0].mxu0
      %v2187 = vpop.f32.mrb[0].mxu0
      %v2188 = vadd.f32 0.0, %v2187
      %v2189 = vpop.f32.mrb[0].mxu0
      %2190 = vmatprep.mubr.bf16.mxu0 0
      %2191 = vmatmul.mubr.bf16.gmra.mrb[0].mxu0 %v1994
      %v2192 = vpop.f32.mrb[0].mxu0
      %v2193 = vadd.f32 0.0, %v2192
      %v2194 = vpop.f32.mrb[0].mxu0
      %v2195 = vpop.f32.mrb[0].mxu0
      %v2196 = vadd.f32 0.0, %v2195
      %v2197 = vpop.f32.mrb[0].mxu0
      %2198 = vmatprep.mubr.bf16.mxu0 0
      %2199 = vmatmul.mubr.bf16.gmra.mrb[0].mxu0 %v1995
      %v2200 = vpop.f32.mrb[0].mxu0
      %v2201 = vadd.f32 0.0, %v2200
      %v2202 = vpop.f32.mrb[0].mxu0
      %v2203 = vpop.f32.mrb[0].mxu0
      %v2204 = vadd.f32 0.0, %v2203
      %v2205 = vpop.f32.mrb[0].mxu0
      %2206 = vmatprep.mubr.bf16.mxu0 0
      %2207 = vmatmul.mubr.bf16.gmra.mrb[0].mxu0 %v1996
      %v2208 = vpop.f32.mrb[0].mxu0
      %v2209 = vadd.f32 0.0, %v2208
      %v2210 = vpop.f32.mrb[0].mxu0
      %v2211 = vpop.f32.mrb[0].mxu0
      %v2212 = vadd.f32 0.0, %v2211
      %v2213 = vpop.f32.mrb[0].mxu0
      %2214 = vmatprep.mubr.bf16.mxu0 0
      %2215 = vmatmul.mubr.bf16.gmra.mrb[0].mxu0 %v1997
      %v2216 = vpop.f32.mrb[0].mxu0
      %v2217 = vadd.f32 0.0, %v2216
      %v2218 = vpop.f32.mrb[0].mxu0
      %v2219 = vpop.f32.mrb[0].mxu0
      %v2220 = vadd.f32 0.0, %v2219
      %v2221 = vpop.f32.mrb[0].mxu0
      %2222 = vdwg.mxu0
      %v2223 = vadd.f32 %v1833, %v2097
      %v2224 = vadd.f32 %v1834, %v2100
      %v2225 = vadd.f32 %v1835, %v2105
      %v2226 = vadd.f32 %v1836, %v2108
      %v2227 = vadd.f32 %v1837, %v2113
      %v2228 = vadd.f32 %v1838, %v2116
      %v2229 = vadd.f32 %v1839, %v2121
      %v2230 = vadd.f32 %v1840, %v2124
      %v2231 = vadd.f32 %v1841, %v2129
      %v2232 = vadd.f32 %v1842, %v2132
      %v2233 = vadd.f32 %v1843, %v2137
      %v2234 = vadd.f32 %v1844, %v2140
      %v2235 = vadd.f32 %v1845, %v2145
      %v2236 = vadd.f32 %v1846, %v2148
      %v2237 = vadd.f32 %v1847, %v2153
      %v2238 = vadd.f32 %v1848, %v2156
      %v2239 = vadd.f32 %v1849, %v2161
      %v2240 = vadd.f32 %v1850, %v2164
      %v2241 = vadd.f32 %v1851, %v2169
      %v2242 = vadd.f32 %v1852, %v2172
      %v2243 = vadd.f32 %v1853, %v2177
      %v2244 = vadd.f32 %v1854, %v2180
      %v2245 = vadd.f32 %v1855, %v2185
      %v2246 = vadd.f32 %v1856, %v2188
      %v2247 = vadd.f32 %v1857, %v2193
      %v2248 = vadd.f32 %v1858, %v2196
      %v2249 = vadd.f32 %v1859, %v2201
      %v2250 = vadd.f32 %v1860, %v2204
      %v2251 = vadd.f32 %v1861, %v2209
      %v2252 = vadd.f32 %v1862, %v2212
      %v2253 = vadd.f32 %v1863, %v2217
      %v2254 = vadd.f32 %v1864, %v2220
      %v2255 = vld [vmem:[%s1868] sm:$0xf]
      %v2256 = vld [vmem:[%s1868 + $0x4] sm:$0xf]
      %v2257 = vld [vmem:[%s1868 + $0x8] sm:$0x1]
      %v2258 = vld [vmem:[%s1868 + $0xc] sm:$0xf]
      %v2259 = vld [vmem:[%s1868 + $0x10] sm:$0xf]
      %v2260 = vld [vmem:[%s1868 + $0x14] sm:$0x1]
      %v2261 = vld [vmem:[%s1868 + $0x18] sm:$0xf]
      %v2262 = vld [vmem:[%s1868 + $0x1c] sm:$0xf]
      %v2263 = vld [vmem:[%s1868 + $0x20] sm:$0x1]
      %v2264 = vld [vmem:[%s1868 + $0x24] sm:$0xf]
      %v2265 = vld [vmem:[%s1868 + $0x28] sm:$0xf]
      %v2266 = vld [vmem:[%s1868 + $0x2c] sm:$0x1]
      %v2267 = vld [vmem:[%s1868 + $0x30] sm:$0xf]
      %v2268 = vld [vmem:[%s1868 + $0x34] sm:$0xf]
      %v2269 = vld [vmem:[%s1868 + $0x38] sm:$0x1]
      %v2270 = vld [vmem:[%s1868 + $0x3c] sm:$0xf]
      %v2271 = vld [vmem:[%s1868 + $0x40] sm:$0xf]
      %v2272 = vld [vmem:[%s1868 + $0x44] sm:$0x1]
      %v2273 = vld [vmem:[%s1868 + $0x48] sm:$0xf]
      %v2274 = vld [vmem:[%s1868 + $0x4c] sm:$0xf]
      %v2275 = vld [vmem:[%s1868 + $0x50] sm:$0x1]
      %v2276 = vld [vmem:[%s1868 + $0x54] sm:$0xf]
      %v2277 = vld [vmem:[%s1868 + $0x58] sm:$0xf]
      %v2278 = vld [vmem:[%s1868 + $0x5c] sm:$0x1]
      %v2279 = vld [vmem:[%s1868 + $0x60] sm:$0xf]
      %v2280 = vld [vmem:[%s1868 + $0x64] sm:$0xf]
      %v2281 = vld [vmem:[%s1868 + $0x68] sm:$0x1]
      %v2282 = vld [vmem:[%s1868 + $0x6c] sm:$0xf]
      %v2283 = vld [vmem:[%s1868 + $0x70] sm:$0xf]
      %v2284 = vld [vmem:[%s1868 + $0x74] sm:$0x1]
      %v2285 = vld [vmem:[%s1868 + $0x78] sm:$0xf]
      %v2286 = vld [vmem:[%s1868 + $0x7c] sm:$0xf]
      %v2287 = vld [vmem:[%s1868 + $0x80] sm:$0x1]
      %v2288 = vld [vmem:[%s1868 + $0x84] sm:$0xf]
      %v2289 = vld [vmem:[%s1868 + $0x88] sm:$0xf]
      %v2290 = vld [vmem:[%s1868 + $0x8c] sm:$0x1]
      %v2291 = vld [vmem:[%s1868 + $0x90] sm:$0xf]
      %v2292 = vld [vmem:[%s1868 + $0x94] sm:$0xf]
      %v2293 = vld [vmem:[%s1868 + $0x98] sm:$0x1]
      %v2294 = vld [vmem:[%s1868 + $0x9c] sm:$0xf]
      %v2295 = vld [vmem:[%s1868 + $0xa0] sm:$0xf]
      %v2296 = vld [vmem:[%s1868 + $0xa4] sm:$0x1]
      %v2297 = vld [vmem:[%s1868 + $0xa8] sm:$0xf]
      %v2298 = vld [vmem:[%s1868 + $0xac] sm:$0xf]
      %v2299 = vld [vmem:[%s1868 + $0xb0] sm:$0x1]
      %v2300 = vld [vmem:[%s1868 + $0xb4] sm:$0xf]
      %v2301 = vld [vmem:[%s1868 + $0xb8] sm:$0xf]
      %v2302 = vld [vmem:[%s1868 + $0xbc] sm:$0x1]
      %v2304 = vshrl.u32 %v2255, 16
      %v2306 = vrot.slane %v2304, 4
      %v2307 = vshll.u32 %v2255, 16
      %v2309 = vrot.slane %v2307, 5
      %v2310 = vor.u32 %v2306, %v2309
      %v2311 = vrot.slane %v2310, 4
      %v2313 = vshll.u32 %v2256, 16
      %v2315 = vrot.slane %v2313, 5
      %v2316 = vsel %vm657, %v2311, %v2315
      %v2317 = vshrl.u32 %v2256, 16
      %v2319 = vrot.slane %v2317, 4
      %v2320 = vor.u32 %v2319, %v2315
      %v2321 = vrot.slane %v2320, 4
      %v2323 = vshll.u32 %v2257, 16
      %v2325 = vrot.slane %v2323, 5
      %v2326 = vsel %vm657, %v2321, %v2325
      %v2328 = vshrl.u32 %v2258, 16
      %v2330 = vrot.slane %v2328, 4
      %v2331 = vshll.u32 %v2258, 16
      %v2333 = vrot.slane %v2331, 5
      %v2334 = vor.u32 %v2330, %v2333
      %v2335 = vrot.slane %v2334, 4
      %v2337 = vshll.u32 %v2259, 16
      %v2339 = vrot.slane %v2337, 5
      %v2340 = vsel %vm657, %v2335, %v2339
      %v2341 = vshrl.u32 %v2259, 16
      %v2343 = vrot.slane %v2341, 4
      %v2344 = vor.u32 %v2343, %v2339
      %v2345 = vrot.slane %v2344, 4
      %v2347 = vshll.u32 %v2260, 16
      %v2349 = vrot.slane %v2347, 5
      %v2350 = vsel %vm657, %v2345, %v2349
      %v2352 = vshrl.u32 %v2261, 16
      %v2354 = vrot.slane %v2352, 4
      %v2355 = vshll.u32 %v2261, 16
      %v2357 = vrot.slane %v2355, 5
      %v2358 = vor.u32 %v2354, %v2357
      %v2359 = vrot.slane %v2358, 4
      %v2361 = vshll.u32 %v2262, 16
      %v2363 = vrot.slane %v2361, 5
      %v2364 = vsel %vm657, %v2359, %v2363
      %v2365 = vshrl.u32 %v2262, 16
      %v2367 = vrot.slane %v2365, 4
      %v2368 = vor.u32 %v2367, %v2363
      %v2369 = vrot.slane %v2368, 4
      %v2371 = vshll.u32 %v2263, 16
      %v2373 = vrot.slane %v2371, 5
      %v2374 = vsel %vm657, %v2369, %v2373
      %v2376 = vshrl.u32 %v2264, 16
      %v2378 = vrot.slane %v2376, 4
      %v2379 = vshll.u32 %v2264, 16
      %v2381 = vrot.slane %v2379, 5
      %v2382 = vor.u32 %v2378, %v2381
      %v2383 = vrot.slane %v2382, 4
      %v2385 = vshll.u32 %v2265, 16
      %v2387 = vrot.slane %v2385, 5
      %v2388 = vsel %vm657, %v2383, %v2387
      %v2389 = vshrl.u32 %v2265, 16
      %v2391 = vrot.slane %v2389, 4
      %v2392 = vor.u32 %v2391, %v2387
      %v2393 = vrot.slane %v2392, 4
      %v2395 = vshll.u32 %v2266, 16
      %v2397 = vrot.slane %v2395, 5
      %v2398 = vsel %vm657, %v2393, %v2397
      %v2400 = vshrl.u32 %v2267, 16
      %v2402 = vrot.slane %v2400, 4
      %v2403 = vshll.u32 %v2267, 16
      %v2405 = vrot.slane %v2403, 5
      %v2406 = vor.u32 %v2402, %v2405
      %v2407 = vrot.slane %v2406, 4
      %v2409 = vshll.u32 %v2268, 16
      %v2411 = vrot.slane %v2409, 5
      %v2412 = vsel %vm657, %v2407, %v2411
      %v2413 = vshrl.u32 %v2268, 16
      %v2415 = vrot.slane %v2413, 4
      %v2416 = vor.u32 %v2415, %v2411
      %v2417 = vrot.slane %v2416, 4
      %v2419 = vshll.u32 %v2269, 16
      %v2421 = vrot.slane %v2419, 5
      %v2422 = vsel %vm657, %v2417, %v2421
      %v2424 = vshrl.u32 %v2270, 16
      %v2426 = vrot.slane %v2424, 4
      %v2427 = vshll.u32 %v2270, 16
      %v2429 = vrot.slane %v2427, 5
      %v2430 = vor.u32 %v2426, %v2429
      %v2431 = vrot.slane %v2430, 4
      %v2433 = vshll.u32 %v2271, 16
      %v2435 = vrot.slane %v2433, 5
      %v2436 = vsel %vm657, %v2431, %v2435
      %v2437 = vshrl.u32 %v2271, 16
      %v2439 = vrot.slane %v2437, 4
      %v2440 = vor.u32 %v2439, %v2435
      %v2441 = vrot.slane %v2440, 4
      %v2443 = vshll.u32 %v2272, 16
      %v2445 = vrot.slane %v2443, 5
      %v2446 = vsel %vm657, %v2441, %v2445
      %v2448 = vshrl.u32 %v2273, 16
      %v2450 = vrot.slane %v2448, 4
      %v2451 = vshll.u32 %v2273, 16
      %v2453 = vrot.slane %v2451, 5
      %v2454 = vor.u32 %v2450, %v2453
      %v2455 = vrot.slane %v2454, 4
      %v2457 = vshll.u32 %v2274, 16
      %v2459 = vrot.slane %v2457, 5
      %v2460 = vsel %vm657, %v2455, %v2459
      %v2461 = vshrl.u32 %v2274, 16
      %v2463 = vrot.slane %v2461, 4
      %v2464 = vor.u32 %v2463, %v2459
      %v2465 = vrot.slane %v2464, 4
      %v2467 = vshll.u32 %v2275, 16
      %v2469 = vrot.slane %v2467, 5
      %v2470 = vsel %vm657, %v2465, %v2469
      %v2472 = vshrl.u32 %v2276, 16
      %v2474 = vrot.slane %v2472, 4
      %v2475 = vshll.u32 %v2276, 16
      %v2477 = vrot.slane %v2475, 5
      %v2478 = vor.u32 %v2474, %v2477
      %v2479 = vrot.slane %v2478, 4
      %v2481 = vshll.u32 %v2277, 16
      %v2483 = vrot.slane %v2481, 5
      %v2484 = vsel %vm657, %v2479, %v2483
      %v2485 = vshrl.u32 %v2277, 16
      %v2487 = vrot.slane %v2485, 4
      %v2488 = vor.u32 %v2487, %v2483
      %v2489 = vrot.slane %v2488, 4
      %v2491 = vshll.u32 %v2278, 16
      %v2493 = vrot.slane %v2491, 5
      %v2494 = vsel %vm657, %v2489, %v2493
      %v2496 = vshrl.u32 %v2279, 16
      %v2498 = vrot.slane %v2496, 4
      %v2499 = vshll.u32 %v2279, 16
      %v2501 = vrot.slane %v2499, 5
      %v2502 = vor.u32 %v2498, %v2501
      %v2503 = vrot.slane %v2502, 4
      %v2505 = vshll.u32 %v2280, 16
      %v2507 = vrot.slane %v2505, 5
      %v2508 = vsel %vm657, %v2503, %v2507
      %v2509 = vshrl.u32 %v2280, 16
      %v2511 = vrot.slane %v2509, 4
      %v2512 = vor.u32 %v2511, %v2507
      %v2513 = vrot.slane %v2512, 4
      %v2515 = vshll.u32 %v2281, 16
      %v2517 = vrot.slane %v2515, 5
      %v2518 = vsel %vm657, %v2513, %v2517
      %v2520 = vshrl.u32 %v2282, 16
      %v2522 = vrot.slane %v2520, 4
      %v2523 = vshll.u32 %v2282, 16
      %v2525 = vrot.slane %v2523, 5
      %v2526 = vor.u32 %v2522, %v2525
      %v2527 = vrot.slane %v2526, 4
      %v2529 = vshll.u32 %v2283, 16
      %v2531 = vrot.slane %v2529, 5
      %v2532 = vsel %vm657, %v2527, %v2531
      %v2533 = vshrl.u32 %v2283, 16
      %v2535 = vrot.slane %v2533, 4
      %v2536 = vor.u32 %v2535, %v2531
      %v2537 = vrot.slane %v2536, 4
      %v2539 = vshll.u32 %v2284, 16
      %v2541 = vrot.slane %v2539, 5
      %v2542 = vsel %vm657, %v2537, %v2541
      %v2544 = vshrl.u32 %v2285, 16
      %v2546 = vrot.slane %v2544, 4
      %v2547 = vshll.u32 %v2285, 16
      %v2549 = vrot.slane %v2547, 5
      %v2550 = vor.u32 %v2546, %v2549
      %v2551 = vrot.slane %v2550, 4
      %v2553 = vshll.u32 %v2286, 16
      %v2555 = vrot.slane %v2553, 5
      %v2556 = vsel %vm657, %v2551, %v2555
      %v2557 = vshrl.u32 %v2286, 16
      %v2559 = vrot.slane %v2557, 4
      %v2560 = vor.u32 %v2559, %v2555
      %v2561 = vrot.slane %v2560, 4
      %v2563 = vshll.u32 %v2287, 16
      %v2565 = vrot.slane %v2563, 5
      %v2566 = vsel %vm657, %v2561, %v2565
      %v2568 = vshrl.u32 %v2288, 16
      %v2570 = vrot.slane %v2568, 4
      %v2571 = vshll.u32 %v2288, 16
      %v2573 = vrot.slane %v2571, 5
      %v2574 = vor.u32 %v2570, %v2573
      %v2575 = vrot.slane %v2574, 4
      %v2577 = vshll.u32 %v2289, 16
      %v2579 = vrot.slane %v2577, 5
      %v2580 = vsel %vm657, %v2575, %v2579
      %v2581 = vshrl.u32 %v2289, 16
      %v2583 = vrot.slane %v2581, 4
      %v2584 = vor.u32 %v2583, %v2579
      %v2585 = vrot.slane %v2584, 4
      %v2587 = vshll.u32 %v2290, 16
      %v2589 = vrot.slane %v2587, 5
      %v2590 = vsel %vm657, %v2585, %v2589
      %v2592 = vshrl.u32 %v2291, 16
      %v2594 = vrot.slane %v2592, 4
      %v2595 = vshll.u32 %v2291, 16
      %v2597 = vrot.slane %v2595, 5
      %v2598 = vor.u32 %v2594, %v2597
      %v2599 = vrot.slane %v2598, 4
      %v2601 = vshll.u32 %v2292, 16
      %v2603 = vrot.slane %v2601, 5
      %v2604 = vsel %vm657, %v2599, %v2603
      %v2605 = vshrl.u32 %v2292, 16
      %v2607 = vrot.slane %v2605, 4
      %v2608 = vor.u32 %v2607, %v2603
      %v2609 = vrot.slane %v2608, 4
      %v2611 = vshll.u32 %v2293, 16
      %v2613 = vrot.slane %v2611, 5
      %v2614 = vsel %vm657, %v2609, %v2613
      %v2616 = vshrl.u32 %v2294, 16
      %v2618 = vrot.slane %v2616, 4
      %v2619 = vshll.u32 %v2294, 16
      %v2621 = vrot.slane %v2619, 5
      %v2622 = vor.u32 %v2618, %v2621
      %v2623 = vrot.slane %v2622, 4
      %v2625 = vshll.u32 %v2295, 16
      %v2627 = vrot.slane %v2625, 5
      %v2628 = vsel %vm657, %v2623, %v2627
      %v2629 = vshrl.u32 %v2295, 16
      %v2631 = vrot.slane %v2629, 4
      %v2632 = vor.u32 %v2631, %v2627
      %v2633 = vrot.slane %v2632, 4
      %v2635 = vshll.u32 %v2296, 16
      %v2637 = vrot.slane %v2635, 5
      %v2638 = vsel %vm657, %v2633, %v2637
      %v2640 = vshrl.u32 %v2297, 16
      %v2642 = vrot.slane %v2640, 4
      %v2643 = vshll.u32 %v2297, 16
      %v2645 = vrot.slane %v2643, 5
      %v2646 = vor.u32 %v2642, %v2645
      %v2647 = vrot.slane %v2646, 4
      %v2649 = vshll.u32 %v2298, 16
      %v2651 = vrot.slane %v2649, 5
      %v2652 = vsel %vm657, %v2647, %v2651
      %v2653 = vshrl.u32 %v2298, 16
      %v2655 = vrot.slane %v2653, 4
      %v2656 = vor.u32 %v2655, %v2651
      %v2657 = vrot.slane %v2656, 4
      %v2659 = vshll.u32 %v2299, 16
      %v2661 = vrot.slane %v2659, 5
      %v2662 = vsel %vm657, %v2657, %v2661
      %v2664 = vshrl.u32 %v2300, 16
      %v2666 = vrot.slane %v2664, 4
      %v2667 = vshll.u32 %v2300, 16
      %v2669 = vrot.slane %v2667, 5
      %v2670 = vor.u32 %v2666, %v2669
      %v2671 = vrot.slane %v2670, 4
      %v2673 = vshll.u32 %v2301, 16
      %v2675 = vrot.slane %v2673, 5
      %v2676 = vsel %vm657, %v2671, %v2675
      %v2677 = vshrl.u32 %v2301, 16
      %v2679 = vrot.slane %v2677, 4
      %v2680 = vor.u32 %v2679, %v2675
      %v2681 = vrot.slane %v2680, 4
      %v2683 = vshll.u32 %v2302, 16
      %v2685 = vrot.slane %v2683, 5
      %v2686 = vsel %vm657, %v2681, %v2685
      %s2687 = scalar_lea.vmem %s224, 256
      %v2688 = vld [vmem:[%s2687] sm:$0xf]
      %v2689 = vld [vmem:[%s2687 + $0x4] sm:$0xf]
      %v2690 = vld [vmem:[%s2687 + $0x8] sm:$0xf]
      %v2691 = vld [vmem:[%s2687 + $0xc] sm:$0xf]
      %v2692 = vld [vmem:[%s2687 + $0x10] sm:$0xf]
      %v2693 = vld [vmem:[%s2687 + $0x14] sm:$0xf]
      %v2694 = vld [vmem:[%s2687 + $0x18] sm:$0xf]
      %v2695 = vld [vmem:[%s2687 + $0x1c] sm:$0xf]
      %v2696 = vld [vmem:[%s2687 + $0x20] sm:$0xf]
      %v2697 = vld [vmem:[%s2687 + $0x24] sm:$0xf]
      %v2698 = vld [vmem:[%s2687 + $0x28] sm:$0xf]
      %v2699 = vld [vmem:[%s2687 + $0x2c] sm:$0xf]
      %v2700 = vld [vmem:[%s2687 + $0x30] sm:$0xf]
      %v2701 = vld [vmem:[%s2687 + $0x34] sm:$0xf]
      %v2702 = vld [vmem:[%s2687 + $0x38] sm:$0xf]
      %v2703 = vld [vmem:[%s2687 + $0x3c] sm:$0xf]
      %v2704 = vunpack.c.l.b16 %v2316
      %v2705 = vunpack.c.l.b16 %v2326
      %v2706 = vunpack.c.l.b16 %v2340
      %v2707 = vunpack.c.l.b16 %v2350
      %v2708 = vunpack.c.l.b16 %v2364
      %v2709 = vunpack.c.l.b16 %v2374
      %v2710 = vunpack.c.l.b16 %v2388
      %v2711 = vunpack.c.l.b16 %v2398
      %v2712 = vunpack.c.l.b16 %v2412
      %v2713 = vunpack.c.l.b16 %v2422
      %v2714 = vunpack.c.l.b16 %v2436
      %v2715 = vunpack.c.l.b16 %v2446
      %v2716 = vunpack.c.l.b16 %v2460
      %v2717 = vunpack.c.l.b16 %v2470
      %v2718 = vunpack.c.l.b16 %v2484
      %v2719 = vunpack.c.l.b16 %v2494
      %v2720 = vunpack.c.l.b16 %v2508
      %v2721 = vunpack.c.l.b16 %v2518
      %v2722 = vunpack.c.l.b16 %v2532
      %v2723 = vunpack.c.l.b16 %v2542
      %v2724 = vunpack.c.l.b16 %v2556
      %v2725 = vunpack.c.l.b16 %v2566
      %v2726 = vunpack.c.l.b16 %v2580
      %v2727 = vunpack.c.l.b16 %v2590
      %v2728 = vunpack.c.l.b16 %v2604
      %v2729 = vunpack.c.l.b16 %v2614
      %v2730 = vunpack.c.l.b16 %v2628
      %v2731 = vunpack.c.l.b16 %v2638
      %v2732 = vunpack.c.l.b16 %v2652
      %v2733 = vunpack.c.l.b16 %v2662
      %v2734 = vunpack.c.l.b16 %v2676
      %v2735 = vunpack.c.l.b16 %v2686
      %v2736 = vpack.c.b16 %v2705, %v2704
      %v2737 = vpack.c.b16 %v2707, %v2706
      %v2738 = vpack.c.b16 %v2709, %v2708
      %v2739 = vpack.c.b16 %v2711, %v2710
      %v2740 = vpack.c.b16 %v2713, %v2712
      %v2741 = vpack.c.b16 %v2715, %v2714
      %v2742 = vpack.c.b16 %v2717, %v2716
      %v2743 = vpack.c.b16 %v2719, %v2718
      %v2744 = vpack.c.b16 %v2721, %v2720
      %v2745 = vpack.c.b16 %v2723, %v2722
      %v2746 = vpack.c.b16 %v2725, %v2724
      %v2747 = vpack.c.b16 %v2727, %v2726
      %v2748 = vpack.c.b16 %v2729, %v2728
      %v2749 = vpack.c.b16 %v2731, %v2730
      %v2750 = vpack.c.b16 %v2733, %v2732
      %v2751 = vpack.c.b16 %v2735, %v2734
      %v2784 = vunpack.c.l.b16 %v2688
      %v2785 = vunpack.c.l.b16 %v2689
      %v2786 = vunpack.c.l.b16 %v2690
      %v2787 = vunpack.c.l.b16 %v2691
      %v2788 = vunpack.c.l.b16 %v2692
      %v2789 = vunpack.c.l.b16 %v2693
      %v2790 = vunpack.c.l.b16 %v2694
      %v2791 = vunpack.c.l.b16 %v2695
      %v2792 = vunpack.c.l.b16 %v2696
      %v2793 = vunpack.c.l.b16 %v2697
      %v2794 = vunpack.c.l.b16 %v2698
      %v2795 = vunpack.c.l.b16 %v2699
      %v2796 = vunpack.c.l.b16 %v2700
      %v2797 = vunpack.c.l.b16 %v2701
      %v2798 = vunpack.c.l.b16 %v2702
      %v2799 = vunpack.c.l.b16 %v2703
      %v2800 = vpack.c.b16 %v2785, %v2784
      %v2801 = vpack.c.b16 %v2787, %v2786
      %v2802 = vpack.c.b16 %v2789, %v2788
      %v2803 = vpack.c.b16 %v2791, %v2790
      %v2804 = vpack.c.b16 %v2793, %v2792
      %v2805 = vpack.c.b16 %v2795, %v2794
      %v2806 = vpack.c.b16 %v2797, %v2796
      %v2807 = vpack.c.b16 %v2799, %v2798
      %2816 = vmatprep.subr.bf16.mxu0 0
      %2817 = vmatpush1.bf16.msra.mxu0 %v2800
      %2818 = vmatprep.subr.bf16.mxu0 0
      %2819 = vmatpush1.bf16.msra.mxu0 %v2801
      %2820 = vmatprep.subr.bf16.mxu0 0
      %2821 = vmatpush1.bf16.msra.mxu0 %v2802
      %2822 = vmatprep.subr.bf16.mxu0 0
      %2823 = vmatpush1.bf16.msra.mxu0 %v2803
      %2824 = vmatprep.subr.bf16.mxu0 0
      %2825 = vmatpush1.bf16.msra.mxu0 %v2804
      %2826 = vmatprep.subr.bf16.mxu0 0
      %2827 = vmatpush1.bf16.msra.mxu0 %v2805
      %2828 = vmatprep.subr.bf16.mxu0 0
      %2829 = vmatpush1.bf16.msra.mxu0 %v2806
      %2830 = vmatprep.subr.bf16.mxu0 0
      %2831 = vmatpush1.bf16.msra.mxu0 %v2807
      %2832 = vmatprep.subr.bf16.mxu0 0
      %2833 = vmatpush1.bf16.msra.mxu0 0
      %2834 = vmatprep.subr.bf16.mxu0 0
      %2835 = vmatpush1.bf16.msra.mxu0 0
      %2836 = vmatprep.subr.bf16.mxu0 0
      %2837 = vmatpush1.bf16.msra.mxu0 0
      %2838 = vmatprep.subr.bf16.mxu0 0
      %2839 = vmatpush1.bf16.msra.mxu0 0
      %2840 = vmatprep.subr.bf16.mxu0 0
      %2841 = vmatpush1.bf16.msra.mxu0 0
      %2842 = vmatprep.subr.bf16.mxu0 0
      %2843 = vmatpush1.bf16.msra.mxu0 0
      %2844 = vmatprep.subr.bf16.mxu0 0
      %2845 = vmatpush1.bf16.msra.mxu0 0
      %2846 = vmatprep.subr.bf16.mxu0 0
      %2847 = vmatpush1.bf16.msra.mxu0 0
      %2848 = vmatprep.mubr.bf16.mxu0 0
      %2849 = vmatmul.mubr.bf16.gmra.mrb[0].mxu0 %v2736
      %v2850 = vpop.f32.mrb[0].mxu0
      %v2851 = vadd.f32 0.0, %v2850
      %v2852 = vpop.f32.mrb[0].mxu0
      %v2853 = vpop.f32.mrb[0].mxu0
      %v2854 = vadd.f32 0.0, %v2853
      %v2855 = vpop.f32.mrb[0].mxu0
      %2856 = vmatprep.mubr.bf16.mxu0 0
      %2857 = vmatmul.mubr.bf16.gmra.mrb[0].mxu0 %v2737
      %v2858 = vpop.f32.mrb[0].mxu0
      %v2859 = vadd.f32 0.0, %v2858
      %v2860 = vpop.f32.mrb[0].mxu0
      %v2861 = vpop.f32.mrb[0].mxu0
      %v2862 = vadd.f32 0.0, %v2861
      %v2863 = vpop.f32.mrb[0].mxu0
      %2864 = vmatprep.mubr.bf16.mxu0 0
      %2865 = vmatmul.mubr.bf16.gmra.mrb[0].mxu0 %v2738
      %v2866 = vpop.f32.mrb[0].mxu0
      %v2867 = vadd.f32 0.0, %v2866
      %v2868 = vpop.f32.mrb[0].mxu0
      %v2869 = vpop.f32.mrb[0].mxu0
      %v2870 = vadd.f32 0.0, %v2869
      %v2871 = vpop.f32.mrb[0].mxu0
      %2872 = vmatprep.mubr.bf16.mxu0 0
      %2873 = vmatmul.mubr.bf16.gmra.mrb[0].mxu0 %v2739
      %v2874 = vpop.f32.mrb[0].mxu0
      %v2875 = vadd.f32 0.0, %v2874
      %v2876 = vpop.f32.mrb[0].mxu0
      %v2877 = vpop.f32.mrb[0].mxu0
      %v2878 = vadd.f32 0.0, %v2877
      %v2879 = vpop.f32.mrb[0].mxu0
      %2880 = vmatprep.mubr.bf16.mxu0 0
      %2881 = vmatmul.mubr.bf16.gmra.mrb[0].mxu0 %v2740
      %v2882 = vpop.f32.mrb[0].mxu0
      %v2883 = vadd.f32 0.0, %v2882
      %v2884 = vpop.f32.mrb[0].mxu0
      %v2885 = vpop.f32.mrb[0].mxu0
      %v2886 = vadd.f32 0.0, %v2885
      %v2887 = vpop.f32.mrb[0].mxu0
      %2888 = vmatprep.mubr.bf16.mxu0 0
      %2889 = vmatmul.mubr.bf16.gmra.mrb[0].mxu0 %v2741
      %v2890 = vpop.f32.mrb[0].mxu0
      %v2891 = vadd.f32 0.0, %v2890
      %v2892 = vpop.f32.mrb[0].mxu0
      %v2893 = vpop.f32.mrb[0].mxu0
      %v2894 = vadd.f32 0.0, %v2893
      %v2895 = vpop.f32.mrb[0].mxu0
      %2896 = vmatprep.mubr.bf16.mxu0 0
      %2897 = vmatmul.mubr.bf16.gmra.mrb[0].mxu0 %v2742
      %v2898 = vpop.f32.mrb[0].mxu0
      %v2899 = vadd.f32 0.0, %v2898
      %v2900 = vpop.f32.mrb[0].mxu0
      %v2901 = vpop.f32.mrb[0].mxu0
      %v2902 = vadd.f32 0.0, %v2901
      %v2903 = vpop.f32.mrb[0].mxu0
      %2904 = vmatprep.mubr.bf16.mxu0 0
      %2905 = vmatmul.mubr.bf16.gmra.mrb[0].mxu0 %v2743
      %v2906 = vpop.f32.mrb[0].mxu0
      %v2907 = vadd.f32 0.0, %v2906
      %v2908 = vpop.f32.mrb[0].mxu0
      %v2909 = vpop.f32.mrb[0].mxu0
      %v2910 = vadd.f32 0.0, %v2909
      %v2911 = vpop.f32.mrb[0].mxu0
      %2912 = vmatprep.mubr.bf16.mxu0 0
      %2913 = vmatmul.mubr.bf16.gmra.mrb[0].mxu0 %v2744
      %v2914 = vpop.f32.mrb[0].mxu0
      %v2915 = vadd.f32 0.0, %v2914
      %v2916 = vpop.f32.mrb[0].mxu0
      %v2917 = vpop.f32.mrb[0].mxu0
      %v2918 = vadd.f32 0.0, %v2917
      %v2919 = vpop.f32.mrb[0].mxu0
      %2920 = vmatprep.mubr.bf16.mxu0 0
      %2921 = vmatmul.mubr.bf16.gmra.mrb[0].mxu0 %v2745
      %v2922 = vpop.f32.mrb[0].mxu0
      %v2923 = vadd.f32 0.0, %v2922
      %v2924 = vpop.f32.mrb[0].mxu0
      %v2925 = vpop.f32.mrb[0].mxu0
      %v2926 = vadd.f32 0.0, %v2925
      %v2927 = vpop.f32.mrb[0].mxu0
      %2928 = vmatprep.mubr.bf16.mxu0 0
      %2929 = vmatmul.mubr.bf16.gmra.mrb[0].mxu0 %v2746
      %v2930 = vpop.f32.mrb[0].mxu0
      %v2931 = vadd.f32 0.0, %v2930
      %v2932 = vpop.f32.mrb[0].mxu0
      %v2933 = vpop.f32.mrb[0].mxu0
      %v2934 = vadd.f32 0.0, %v2933
      %v2935 = vpop.f32.mrb[0].mxu0
      %2936 = vmatprep.mubr.bf16.mxu0 0
      %2937 = vmatmul.mubr.bf16.gmra.mrb[0].mxu0 %v2747
      %v2938 = vpop.f32.mrb[0].mxu0
      %v2939 = vadd.f32 0.0, %v2938
      %v2940 = vpop.f32.mrb[0].mxu0
      %v2941 = vpop.f32.mrb[0].mxu0
      %v2942 = vadd.f32 0.0, %v2941
      %v2943 = vpop.f32.mrb[0].mxu0
      %2944 = vmatprep.mubr.bf16.mxu0 0
      %2945 = vmatmul.mubr.bf16.gmra.mrb[0].mxu0 %v2748
      %v2946 = vpop.f32.mrb[0].mxu0
      %v2947 = vadd.f32 0.0, %v2946
      %v2948 = vpop.f32.mrb[0].mxu0
      %v2949 = vpop.f32.mrb[0].mxu0
      %v2950 = vadd.f32 0.0, %v2949
      %v2951 = vpop.f32.mrb[0].mxu0
      %2952 = vmatprep.mubr.bf16.mxu0 0
      %2953 = vmatmul.mubr.bf16.gmra.mrb[0].mxu0 %v2749
      %v2954 = vpop.f32.mrb[0].mxu0
      %v2955 = vadd.f32 0.0, %v2954
      %v2956 = vpop.f32.mrb[0].mxu0
      %v2957 = vpop.f32.mrb[0].mxu0
      %v2958 = vadd.f32 0.0, %v2957
      %v2959 = vpop.f32.mrb[0].mxu0
      %2960 = vmatprep.mubr.bf16.mxu0 0
      %2961 = vmatmul.mubr.bf16.gmra.mrb[0].mxu0 %v2750
      %v2962 = vpop.f32.mrb[0].mxu0
      %v2963 = vadd.f32 0.0, %v2962
      %v2964 = vpop.f32.mrb[0].mxu0
      %v2965 = vpop.f32.mrb[0].mxu0
      %v2966 = vadd.f32 0.0, %v2965
      %v2967 = vpop.f32.mrb[0].mxu0
      %2968 = vmatprep.mubr.bf16.mxu0 0
      %2969 = vmatmul.mubr.bf16.gmra.mrb[0].mxu0 %v2751
      %v2970 = vpop.f32.mrb[0].mxu0
      %v2971 = vadd.f32 0.0, %v2970
      %v2972 = vpop.f32.mrb[0].mxu0
      %v2973 = vpop.f32.mrb[0].mxu0
      %v2974 = vadd.f32 0.0, %v2973
      %v2975 = vpop.f32.mrb[0].mxu0
      %2976 = vdwg.mxu0
      %v2977 = vadd.f32 %v2223, %v2851
      %v2978 = vadd.f32 %v2224, %v2854
      %v2979 = vadd.f32 %v2225, %v2859
      %v2980 = vadd.f32 %v2226, %v2862
      %v2981 = vadd.f32 %v2227, %v2867
      %v2982 = vadd.f32 %v2228, %v2870
      %v2983 = vadd.f32 %v2229, %v2875
      %v2984 = vadd.f32 %v2230, %v2878
      %v2985 = vadd.f32 %v2231, %v2883
      %v2986 = vadd.f32 %v2232, %v2886
      %v2987 = vadd.f32 %v2233, %v2891
      %v2988 = vadd.f32 %v2234, %v2894
      %v2989 = vadd.f32 %v2235, %v2899
      %v2990 = vadd.f32 %v2236, %v2902
      %v2991 = vadd.f32 %v2237, %v2907
      %v2992 = vadd.f32 %v2238, %v2910
      %v2993 = vadd.f32 %v2239, %v2915
      %v2994 = vadd.f32 %v2240, %v2918
      %v2995 = vadd.f32 %v2241, %v2923
      %v2996 = vadd.f32 %v2242, %v2926
      %v2997 = vadd.f32 %v2243, %v2931
      %v2998 = vadd.f32 %v2244, %v2934
      %v2999 = vadd.f32 %v2245, %v2939
      %v3000 = vadd.f32 %v2246, %v2942
      %v3001 = vadd.f32 %v2247, %v2947
      %v3002 = vadd.f32 %v2248, %v2950
      %v3003 = vadd.f32 %v2249, %v2955
      %v3004 = vadd.f32 %v2250, %v2958
      %v3005 = vadd.f32 %v2251, %v2963
      %v3006 = vadd.f32 %v2252, %v2966
      %v3007 = vadd.f32 %v2253, %v2971
      %v3008 = vadd.f32 %v2254, %v2974
      %v3009 = vld [vmem:[%s1868] sm:$0xe]
      %v3010 = vld [vmem:[%s1868 + $0xc] sm:$0xe]
      %v3011 = vld [vmem:[%s1868 + $0x18] sm:$0xe]
      %v3012 = vld [vmem:[%s1868 + $0x24] sm:$0xe]
      %v3013 = vld [vmem:[%s1868 + $0x30] sm:$0xe]
      %v3014 = vld [vmem:[%s1868 + $0x3c] sm:$0xe]
      %v3015 = vld [vmem:[%s1868 + $0x48] sm:$0xe]
      %v3016 = vld [vmem:[%s1868 + $0x54] sm:$0xe]
      %v3017 = vld [vmem:[%s1868 + $0x60] sm:$0xe]
      %v3018 = vld [vmem:[%s1868 + $0x6c] sm:$0xe]
      %v3019 = vld [vmem:[%s1868 + $0x78] sm:$0xe]
      %v3020 = vld [vmem:[%s1868 + $0x84] sm:$0xe]
      %v3021 = vld [vmem:[%s1868 + $0x90] sm:$0xe]
      %v3022 = vld [vmem:[%s1868 + $0x9c] sm:$0xe]
      %v3023 = vld [vmem:[%s1868 + $0xa8] sm:$0xe]
      %v3024 = vld [vmem:[%s1868 + $0xb4] sm:$0xe]
      %v3073 = vrot.slane %v3009, 5
      %v3074 = vrot.slane %v3073, 4
      %v3075 = vrot.slane %v2256, 5
      %v3076 = vsel %vm1430, %v3074, %v3075
      %v3077 = vrot.slane %v3075, 4
      %v3078 = vrot.slane %v2257, 5
      %v3079 = vsel %vm1430, %v3077, %v3078
      %v3080 = vrot.slane %v3010, 5
      %v3081 = vrot.slane %v3080, 4
      %v3082 = vrot.slane %v2259, 5
      %v3083 = vsel %vm1430, %v3081, %v3082
      %v3084 = vrot.slane %v3082, 4
      %v3085 = vrot.slane %v2260, 5
      %v3086 = vsel %vm1430, %v3084, %v3085
      %v3087 = vrot.slane %v3011, 5
      %v3088 = vrot.slane %v3087, 4
      %v3089 = vrot.slane %v2262, 5
      %v3090 = vsel %vm1430, %v3088, %v3089
      %v3091 = vrot.slane %v3089, 4
      %v3092 = vrot.slane %v2263, 5
      %v3093 = vsel %vm1430, %v3091, %v3092
      %v3094 = vrot.slane %v3012, 5
      %v3095 = vrot.slane %v3094, 4
      %v3096 = vrot.slane %v2265, 5
      %v3097 = vsel %vm1430, %v3095, %v3096
      %v3098 = vrot.slane %v3096, 4
      %v3099 = vrot.slane %v2266, 5
      %v3100 = vsel %vm1430, %v3098, %v3099
      %v3101 = vrot.slane %v3013, 5
      %v3102 = vrot.slane %v3101, 4
      %v3103 = vrot.slane %v2268, 5
      %v3104 = vsel %vm1430, %v3102, %v3103
      %v3105 = vrot.slane %v3103, 4
      %v3106 = vrot.slane %v2269, 5
      %v3107 = vsel %vm1430, %v3105, %v3106
      %v3108 = vrot.slane %v3014, 5
      %v3109 = vrot.slane %v3108, 4
      %v3110 = vrot.slane %v2271, 5
      %v3111 = vsel %vm1430, %v3109, %v3110
      %v3112 = vrot.slane %v3110, 4
      %v3113 = vrot.slane %v2272, 5
      %v3114 = vsel %vm1430, %v3112, %v3113
      %v3115 = vrot.slane %v3015, 5
      %v3116 = vrot.slane %v3115, 4
      %v3117 = vrot.slane %v2274, 5
      %v3118 = vsel %vm1430, %v3116, %v3117
      %v3119 = vrot.slane %v3117, 4
      %v3120 = vrot.slane %v2275, 5
      %v3121 = vsel %vm1430, %v3119, %v3120
      %v3122 = vrot.slane %v3016, 5
      %v3123 = vrot.slane %v3122, 4
      %v3124 = vrot.slane %v2277, 5
      %v3125 = vsel %vm1430, %v3123, %v3124
      %v3126 = vrot.slane %v3124, 4
      %v3127 = vrot.slane %v2278, 5
      %v3128 = vsel %vm1430, %v3126, %v3127
      %v3129 = vrot.slane %v3017, 5
      %v3130 = vrot.slane %v3129, 4
      %v3131 = vrot.slane %v2280, 5
      %v3132 = vsel %vm1430, %v3130, %v3131
      %v3133 = vrot.slane %v3131, 4
      %v3134 = vrot.slane %v2281, 5
      %v3135 = vsel %vm1430, %v3133, %v3134
      %v3136 = vrot.slane %v3018, 5
      %v3137 = vrot.slane %v3136, 4
      %v3138 = vrot.slane %v2283, 5
      %v3139 = vsel %vm1430, %v3137, %v3138
      %v3140 = vrot.slane %v3138, 4
      %v3141 = vrot.slane %v2284, 5
      %v3142 = vsel %vm1430, %v3140, %v3141
      %v3143 = vrot.slane %v3019, 5
      %v3144 = vrot.slane %v3143, 4
      %v3145 = vrot.slane %v2286, 5
      %v3146 = vsel %vm1430, %v3144, %v3145
      %v3147 = vrot.slane %v3145, 4
      %v3148 = vrot.slane %v2287, 5
      %v3149 = vsel %vm1430, %v3147, %v3148
      %v3150 = vrot.slane %v3020, 5
      %v3151 = vrot.slane %v3150, 4
      %v3152 = vrot.slane %v2289, 5
      %v3153 = vsel %vm1430, %v3151, %v3152
      %v3154 = vrot.slane %v3152, 4
      %v3155 = vrot.slane %v2290, 5
      %v3156 = vsel %vm1430, %v3154, %v3155
      %v3157 = vrot.slane %v3021, 5
      %v3158 = vrot.slane %v3157, 4
      %v3159 = vrot.slane %v2292, 5
      %v3160 = vsel %vm1430, %v3158, %v3159
      %v3161 = vrot.slane %v3159, 4
      %v3162 = vrot.slane %v2293, 5
      %v3163 = vsel %vm1430, %v3161, %v3162
      %v3164 = vrot.slane %v3022, 5
      %v3165 = vrot.slane %v3164, 4
      %v3166 = vrot.slane %v2295, 5
      %v3167 = vsel %vm1430, %v3165, %v3166
      %v3168 = vrot.slane %v3166, 4
      %v3169 = vrot.slane %v2296, 5
      %v3170 = vsel %vm1430, %v3168, %v3169
      %v3171 = vrot.slane %v3023, 5
      %v3172 = vrot.slane %v3171, 4
      %v3173 = vrot.slane %v2298, 5
      %v3174 = vsel %vm1430, %v3172, %v3173
      %v3175 = vrot.slane %v3173, 4
      %v3176 = vrot.slane %v2299, 5
      %v3177 = vsel %vm1430, %v3175, %v3176
      %v3178 = vrot.slane %v3024, 5
      %v3179 = vrot.slane %v3178, 4
      %v3180 = vrot.slane %v2301, 5
      %v3181 = vsel %vm1430, %v3179, %v3180
      %v3182 = vrot.slane %v3180, 4
      %v3183 = vrot.slane %v2302, 5
      %v3184 = vsel %vm1430, %v3182, %v3183
      %s3185 = scalar_lea.vmem %s224, 320
      %v3186 = vld [vmem:[%s3185] sm:$0xf]
      %v3187 = vld [vmem:[%s3185 + $0x4] sm:$0xf]
      %v3188 = vld [vmem:[%s3185 + $0x8] sm:$0xf]
      %v3189 = vld [vmem:[%s3185 + $0xc] sm:$0xf]
      %v3190 = vld [vmem:[%s3185 + $0x10] sm:$0xf]
      %v3191 = vld [vmem:[%s3185 + $0x14] sm:$0xf]
      %v3192 = vld [vmem:[%s3185 + $0x18] sm:$0xf]
      %v3193 = vld [vmem:[%s3185 + $0x1c] sm:$0xf]
      %v3194 = vld [vmem:[%s3185 + $0x20] sm:$0xf]
      %v3195 = vld [vmem:[%s3185 + $0x24] sm:$0xf]
      %v3196 = vld [vmem:[%s3185 + $0x28] sm:$0xf]
      %v3197 = vld [vmem:[%s3185 + $0x2c] sm:$0xf]
      %v3198 = vld [vmem:[%s3185 + $0x30] sm:$0xf]
      %v3199 = vld [vmem:[%s3185 + $0x34] sm:$0xf]
      %v3200 = vld [vmem:[%s3185 + $0x38] sm:$0xf]
      %v3201 = vld [vmem:[%s3185 + $0x3c] sm:$0xf]
      %v3202 = vunpack.c.l.b16 %v3076
      %v3203 = vunpack.c.l.b16 %v3079
      %v3204 = vunpack.c.l.b16 %v3083
      %v3205 = vunpack.c.l.b16 %v3086
      %v3206 = vunpack.c.l.b16 %v3090
      %v3207 = vunpack.c.l.b16 %v3093
      %v3208 = vunpack.c.l.b16 %v3097
      %v3209 = vunpack.c.l.b16 %v3100
      %v3210 = vunpack.c.l.b16 %v3104
      %v3211 = vunpack.c.l.b16 %v3107
      %v3212 = vunpack.c.l.b16 %v3111
      %v3213 = vunpack.c.l.b16 %v3114
      %v3214 = vunpack.c.l.b16 %v3118
      %v3215 = vunpack.c.l.b16 %v3121
      %v3216 = vunpack.c.l.b16 %v3125
      %v3217 = vunpack.c.l.b16 %v3128
      %v3218 = vunpack.c.l.b16 %v3132
      %v3219 = vunpack.c.l.b16 %v3135
      %v3220 = vunpack.c.l.b16 %v3139
      %v3221 = vunpack.c.l.b16 %v3142
      %v3222 = vunpack.c.l.b16 %v3146
      %v3223 = vunpack.c.l.b16 %v3149
      %v3224 = vunpack.c.l.b16 %v3153
      %v3225 = vunpack.c.l.b16 %v3156
      %v3226 = vunpack.c.l.b16 %v3160
      %v3227 = vunpack.c.l.b16 %v3163
      %v3228 = vunpack.c.l.b16 %v3167
      %v3229 = vunpack.c.l.b16 %v3170
      %v3230 = vunpack.c.l.b16 %v3174
      %v3231 = vunpack.c.l.b16 %v3177
      %v3232 = vunpack.c.l.b16 %v3181
      %v3233 = vunpack.c.l.b16 %v3184
      %v3234 = vpack.c.b16 %v3203, %v3202
      %v3235 = vpack.c.b16 %v3205, %v3204
      %v3236 = vpack.c.b16 %v3207, %v3206
      %v3237 = vpack.c.b16 %v3209, %v3208
      %v3238 = vpack.c.b16 %v3211, %v3210
      %v3239 = vpack.c.b16 %v3213, %v3212
      %v3240 = vpack.c.b16 %v3215, %v3214
      %v3241 = vpack.c.b16 %v3217, %v3216
      %v3242 = vpack.c.b16 %v3219, %v3218
      %v3243 = vpack.c.b16 %v3221, %v3220
      %v3244 = vpack.c.b16 %v3223, %v3222
      %v3245 = vpack.c.b16 %v3225, %v3224
      %v3246 = vpack.c.b16 %v3227, %v3226
      %v3247 = vpack.c.b16 %v3229, %v3228
      %v3248 = vpack.c.b16 %v3231, %v3230
      %v3249 = vpack.c.b16 %v3233, %v3232
      %v3282 = vunpack.c.l.b16 %v3186
      %v3283 = vunpack.c.l.b16 %v3187
      %v3284 = vunpack.c.l.b16 %v3188
      %v3285 = vunpack.c.l.b16 %v3189
      %v3286 = vunpack.c.l.b16 %v3190
      %v3287 = vunpack.c.l.b16 %v3191
      %v3288 = vunpack.c.l.b16 %v3192
      %v3289 = vunpack.c.l.b16 %v3193
      %v3290 = vunpack.c.l.b16 %v3194
      %v3291 = vunpack.c.l.b16 %v3195
      %v3292 = vunpack.c.l.b16 %v3196
      %v3293 = vunpack.c.l.b16 %v3197
      %v3294 = vunpack.c.l.b16 %v3198
      %v3295 = vunpack.c.l.b16 %v3199
      %v3296 = vunpack.c.l.b16 %v3200
      %v3297 = vunpack.c.l.b16 %v3201
      %v3298 = vpack.c.b16 %v3283, %v3282
      %v3299 = vpack.c.b16 %v3285, %v3284
      %v3300 = vpack.c.b16 %v3287, %v3286
      %v3301 = vpack.c.b16 %v3289, %v3288
      %v3302 = vpack.c.b16 %v3291, %v3290
      %v3303 = vpack.c.b16 %v3293, %v3292
      %v3304 = vpack.c.b16 %v3295, %v3294
      %v3305 = vpack.c.b16 %v3297, %v3296
      %3314 = vmatprep.subr.bf16.mxu0 0
      %3315 = vmatpush1.bf16.msra.mxu0 %v3298
      %3316 = vmatprep.subr.bf16.mxu0 0
      %3317 = vmatpush1.bf16.msra.mxu0 %v3299
      %3318 = vmatprep.subr.bf16.mxu0 0
      %3319 = vmatpush1.bf16.msra.mxu0 %v3300
      %3320 = vmatprep.subr.bf16.mxu0 0
      %3321 = vmatpush1.bf16.msra.mxu0 %v3301
      %3322 = vmatprep.subr.bf16.mxu0 0
      %3323 = vmatpush1.bf16.msra.mxu0 %v3302
      %3324 = vmatprep.subr.bf16.mxu0 0
      %3325 = vmatpush1.bf16.msra.mxu0 %v3303
      %3326 = vmatprep.subr.bf16.mxu0 0
      %3327 = vmatpush1.bf16.msra.mxu0 %v3304
      %3328 = vmatprep.subr.bf16.mxu0 0
      %3329 = vmatpush1.bf16.msra.mxu0 %v3305
      %3330 = vmatprep.subr.bf16.mxu0 0
      %3331 = vmatpush1.bf16.msra.mxu0 0
      %3332 = vmatprep.subr.bf16.mxu0 0
      %3333 = vmatpush1.bf16.msra.mxu0 0
      %3334 = vmatprep.subr.bf16.mxu0 0
      %3335 = vmatpush1.bf16.msra.mxu0 0
      %3336 = vmatprep.subr.bf16.mxu0 0
      %3337 = vmatpush1.bf16.msra.mxu0 0
      %3338 = vmatprep.subr.bf16.mxu0 0
      %3339 = vmatpush1.bf16.msra.mxu0 0
      %3340 = vmatprep.subr.bf16.mxu0 0
      %3341 = vmatpush1.bf16.msra.mxu0 0
      %3342 = vmatprep.subr.bf16.mxu0 0
      %3343 = vmatpush1.bf16.msra.mxu0 0
      %3344 = vmatprep.subr.bf16.mxu0 0
      %3345 = vmatpush1.bf16.msra.mxu0 0
      %3346 = vmatprep.mubr.bf16.mxu0 0
      %3347 = vmatmul.mubr.bf16.gmra.mrb[0].mxu0 %v3234
      %v3348 = vpop.f32.mrb[0].mxu0
      %v3349 = vadd.f32 0.0, %v3348
      %v3350 = vpop.f32.mrb[0].mxu0
      %v3351 = vpop.f32.mrb[0].mxu0
      %v3352 = vadd.f32 0.0, %v3351
      %v3353 = vpop.f32.mrb[0].mxu0
      %3354 = vmatprep.mubr.bf16.mxu0 0
      %3355 = vmatmul.mubr.bf16.gmra.mrb[0].mxu0 %v3235
      %v3356 = vpop.f32.mrb[0].mxu0
      %v3357 = vadd.f32 0.0, %v3356
      %v3358 = vpop.f32.mrb[0].mxu0
      %v3359 = vpop.f32.mrb[0].mxu0
      %v3360 = vadd.f32 0.0, %v3359
      %v3361 = vpop.f32.mrb[0].mxu0
      %3362 = vmatprep.mubr.bf16.mxu0 0
      %3363 = vmatmul.mubr.bf16.gmra.mrb[0].mxu0 %v3236
      %v3364 = vpop.f32.mrb[0].mxu0
      %v3365 = vadd.f32 0.0, %v3364
      %v3366 = vpop.f32.mrb[0].mxu0
      %v3367 = vpop.f32.mrb[0].mxu0
      %v3368 = vadd.f32 0.0, %v3367
      %v3369 = vpop.f32.mrb[0].mxu0
      %3370 = vmatprep.mubr.bf16.mxu0 0
      %3371 = vmatmul.mubr.bf16.gmra.mrb[0].mxu0 %v3237
      %v3372 = vpop.f32.mrb[0].mxu0
      %v3373 = vadd.f32 0.0, %v3372
      %v3374 = vpop.f32.mrb[0].mxu0
      %v3375 = vpop.f32.mrb[0].mxu0
      %v3376 = vadd.f32 0.0, %v3375
      %v3377 = vpop.f32.mrb[0].mxu0
      %3378 = vmatprep.mubr.bf16.mxu0 0
      %3379 = vmatmul.mubr.bf16.gmra.mrb[0].mxu0 %v3238
      %v3380 = vpop.f32.mrb[0].mxu0
      %v3381 = vadd.f32 0.0, %v3380
      %v3382 = vpop.f32.mrb[0].mxu0
      %v3383 = vpop.f32.mrb[0].mxu0
      %v3384 = vadd.f32 0.0, %v3383
      %v3385 = vpop.f32.mrb[0].mxu0
      %3386 = vmatprep.mubr.bf16.mxu0 0
      %3387 = vmatmul.mubr.bf16.gmra.mrb[0].mxu0 %v3239
      %v3388 = vpop.f32.mrb[0].mxu0
      %v3389 = vadd.f32 0.0, %v3388
      %v3390 = vpop.f32.mrb[0].mxu0
      %v3391 = vpop.f32.mrb[0].mxu0
      %v3392 = vadd.f32 0.0, %v3391
      %v3393 = vpop.f32.mrb[0].mxu0
      %3394 = vmatprep.mubr.bf16.mxu0 0
      %3395 = vmatmul.mubr.bf16.gmra.mrb[0].mxu0 %v3240
      %v3396 = vpop.f32.mrb[0].mxu0
      %v3397 = vadd.f32 0.0, %v3396
      %v3398 = vpop.f32.mrb[0].mxu0
      %v3399 = vpop.f32.mrb[0].mxu0
      %v3400 = vadd.f32 0.0, %v3399
      %v3401 = vpop.f32.mrb[0].mxu0
      %3402 = vmatprep.mubr.bf16.mxu0 0
      %3403 = vmatmul.mubr.bf16.gmra.mrb[0].mxu0 %v3241
      %v3404 = vpop.f32.mrb[0].mxu0
      %v3405 = vadd.f32 0.0, %v3404
      %v3406 = vpop.f32.mrb[0].mxu0
      %v3407 = vpop.f32.mrb[0].mxu0
      %v3408 = vadd.f32 0.0, %v3407
      %v3409 = vpop.f32.mrb[0].mxu0
      %3410 = vmatprep.mubr.bf16.mxu0 0
      %3411 = vmatmul.mubr.bf16.gmra.mrb[0].mxu0 %v3242
      %v3412 = vpop.f32.mrb[0].mxu0
      %v3413 = vadd.f32 0.0, %v3412
      %v3414 = vpop.f32.mrb[0].mxu0
      %v3415 = vpop.f32.mrb[0].mxu0
      %v3416 = vadd.f32 0.0, %v3415
      %v3417 = vpop.f32.mrb[0].mxu0
      %3418 = vmatprep.mubr.bf16.mxu0 0
      %3419 = vmatmul.mubr.bf16.gmra.mrb[0].mxu0 %v3243
      %v3420 = vpop.f32.mrb[0].mxu0
      %v3421 = vadd.f32 0.0, %v3420
      %v3422 = vpop.f32.mrb[0].mxu0
      %v3423 = vpop.f32.mrb[0].mxu0
      %v3424 = vadd.f32 0.0, %v3423
      %v3425 = vpop.f32.mrb[0].mxu0
      %3426 = vmatprep.mubr.bf16.mxu0 0
      %3427 = vmatmul.mubr.bf16.gmra.mrb[0].mxu0 %v3244
      %v3428 = vpop.f32.mrb[0].mxu0
      %v3429 = vadd.f32 0.0, %v3428
      %v3430 = vpop.f32.mrb[0].mxu0
      %v3431 = vpop.f32.mrb[0].mxu0
      %v3432 = vadd.f32 0.0, %v3431
      %v3433 = vpop.f32.mrb[0].mxu0
      %3434 = vmatprep.mubr.bf16.mxu0 0
      %3435 = vmatmul.mubr.bf16.gmra.mrb[0].mxu0 %v3245
      %v3436 = vpop.f32.mrb[0].mxu0
      %v3437 = vadd.f32 0.0, %v3436
      %v3438 = vpop.f32.mrb[0].mxu0
      %v3439 = vpop.f32.mrb[0].mxu0
      %v3440 = vadd.f32 0.0, %v3439
      %v3441 = vpop.f32.mrb[0].mxu0
      %3442 = vmatprep.mubr.bf16.mxu0 0
      %3443 = vmatmul.mubr.bf16.gmra.mrb[0].mxu0 %v3246
      %v3444 = vpop.f32.mrb[0].mxu0
      %v3445 = vadd.f32 0.0, %v3444
      %v3446 = vpop.f32.mrb[0].mxu0
      %v3447 = vpop.f32.mrb[0].mxu0
      %v3448 = vadd.f32 0.0, %v3447
      %v3449 = vpop.f32.mrb[0].mxu0
      %3450 = vmatprep.mubr.bf16.mxu0 0
      %3451 = vmatmul.mubr.bf16.gmra.mrb[0].mxu0 %v3247
      %v3452 = vpop.f32.mrb[0].mxu0
      %v3453 = vadd.f32 0.0, %v3452
      %v3454 = vpop.f32.mrb[0].mxu0
      %v3455 = vpop.f32.mrb[0].mxu0
      %v3456 = vadd.f32 0.0, %v3455
      %v3457 = vpop.f32.mrb[0].mxu0
      %3458 = vmatprep.mubr.bf16.mxu0 0
      %3459 = vmatmul.mubr.bf16.gmra.mrb[0].mxu0 %v3248
      %v3460 = vpop.f32.mrb[0].mxu0
      %v3461 = vadd.f32 0.0, %v3460
      %v3462 = vpop.f32.mrb[0].mxu0
      %v3463 = vpop.f32.mrb[0].mxu0
      %v3464 = vadd.f32 0.0, %v3463
      %v3465 = vpop.f32.mrb[0].mxu0
      %3466 = vmatprep.mubr.bf16.mxu0 0
      %3467 = vmatmul.mubr.bf16.gmra.mrb[0].mxu0 %v3249
      %v3468 = vpop.f32.mrb[0].mxu0
      %v3469 = vadd.f32 0.0, %v3468
      %v3470 = vpop.f32.mrb[0].mxu0
      %v3471 = vpop.f32.mrb[0].mxu0
      %v3472 = vadd.f32 0.0, %v3471
      %v3473 = vpop.f32.mrb[0].mxu0
      %3474 = vdwg.mxu0
      %v3475 = vadd.f32 %v2977, %v3349
      %v3476 = vadd.f32 %v2978, %v3352
      %v3477 = vadd.f32 %v2979, %v3357
      %v3478 = vadd.f32 %v2980, %v3360
      %v3479 = vadd.f32 %v2981, %v3365
      %v3480 = vadd.f32 %v2982, %v3368
      %v3481 = vadd.f32 %v2983, %v3373
      %v3482 = vadd.f32 %v2984, %v3376
      %v3483 = vadd.f32 %v2985, %v3381
      %v3484 = vadd.f32 %v2986, %v3384
      %v3485 = vadd.f32 %v2987, %v3389
      %v3486 = vadd.f32 %v2988, %v3392
      %v3487 = vadd.f32 %v2989, %v3397
      %v3488 = vadd.f32 %v2990, %v3400
      %v3489 = vadd.f32 %v2991, %v3405
      %v3490 = vadd.f32 %v2992, %v3408
      %v3491 = vadd.f32 %v2993, %v3413
      %v3492 = vadd.f32 %v2994, %v3416
      %v3493 = vadd.f32 %v2995, %v3421
      %v3494 = vadd.f32 %v2996, %v3424
      %v3495 = vadd.f32 %v2997, %v3429
      %v3496 = vadd.f32 %v2998, %v3432
      %v3497 = vadd.f32 %v2999, %v3437
      %v3498 = vadd.f32 %v3000, %v3440
      %v3499 = vadd.f32 %v3001, %v3445
      %v3500 = vadd.f32 %v3002, %v3448
      %v3501 = vadd.f32 %v3003, %v3453
      %v3502 = vadd.f32 %v3004, %v3456
      %v3503 = vadd.f32 %v3005, %v3461
      %v3504 = vadd.f32 %v3006, %v3464
      %v3505 = vadd.f32 %v3007, %v3469
      %v3506 = vadd.f32 %v3008, %v3472
      %s3507 = sadd.s32 %s243, 2
      %s3508 = smul.u32 %s3507, 3
      %s3509 = smul.addr %s3508, 4
      %s3510 = scalar_lea.vmem %s220, %s3509
      %v3511 = vld [vmem:[%s3510] sm:$0xf]
      %v3512 = vld [vmem:[%s3510 + $0x4] sm:$0xf]
      %v3513 = vld [vmem:[%s3510 + $0xc] sm:$0xf]
      %v3514 = vld [vmem:[%s3510 + $0x10] sm:$0xf]
      %v3515 = vld [vmem:[%s3510 + $0x18] sm:$0xf]
      %v3516 = vld [vmem:[%s3510 + $0x1c] sm:$0xf]
      %v3517 = vld [vmem:[%s3510 + $0x24] sm:$0xf]
      %v3518 = vld [vmem:[%s3510 + $0x28] sm:$0xf]
      %v3519 = vld [vmem:[%s3510 + $0x30] sm:$0xf]
      %v3520 = vld [vmem:[%s3510 + $0x34] sm:$0xf]
      %v3521 = vld [vmem:[%s3510 + $0x3c] sm:$0xf]
      %v3522 = vld [vmem:[%s3510 + $0x40] sm:$0xf]
      %v3523 = vld [vmem:[%s3510 + $0x48] sm:$0xf]
      %v3524 = vld [vmem:[%s3510 + $0x4c] sm:$0xf]
      %v3525 = vld [vmem:[%s3510 + $0x54] sm:$0xf]
      %v3526 = vld [vmem:[%s3510 + $0x58] sm:$0xf]
      %v3527 = vld [vmem:[%s3510 + $0x60] sm:$0xf]
      %v3528 = vld [vmem:[%s3510 + $0x64] sm:$0xf]
      %v3529 = vld [vmem:[%s3510 + $0x6c] sm:$0xf]
      %v3530 = vld [vmem:[%s3510 + $0x70] sm:$0xf]
      %v3531 = vld [vmem:[%s3510 + $0x78] sm:$0xf]
      %v3532 = vld [vmem:[%s3510 + $0x7c] sm:$0xf]
      %v3533 = vld [vmem:[%s3510 + $0x84] sm:$0xf]
      %v3534 = vld [vmem:[%s3510 + $0x88] sm:$0xf]
      %v3535 = vld [vmem:[%s3510 + $0x90] sm:$0xf]
      %v3536 = vld [vmem:[%s3510 + $0x94] sm:$0xf]
      %v3537 = vld [vmem:[%s3510 + $0x9c] sm:$0xf]
      %v3538 = vld [vmem:[%s3510 + $0xa0] sm:$0xf]
      %v3539 = vld [vmem:[%s3510 + $0xa8] sm:$0xf]
      %v3540 = vld [vmem:[%s3510 + $0xac] sm:$0xf]
      %v3541 = vld [vmem:[%s3510 + $0xb4] sm:$0xf]
      %v3542 = vld [vmem:[%s3510 + $0xb8] sm:$0xf]
      %s3543 = scalar_lea.vmem %s224, 384
      %v3544 = vld [vmem:[%s3543] sm:$0xf]
      %v3545 = vld [vmem:[%s3543 + $0x4] sm:$0xf]
      %v3546 = vld [vmem:[%s3543 + $0x8] sm:$0xf]
      %v3547 = vld [vmem:[%s3543 + $0xc] sm:$0xf]
      %v3548 = vld [vmem:[%s3543 + $0x10] sm:$0xf]
      %v3549 = vld [vmem:[%s3543 + $0x14] sm:$0xf]
      %v3550 = vld [vmem:[%s3543 + $0x18] sm:$0xf]
      %v3551 = vld [vmem:[%s3543 + $0x1c] sm:$0xf]
      %v3552 = vld [vmem:[%s3543 + $0x20] sm:$0xf]
      %v3553 = vld [vmem:[%s3543 + $0x24] sm:$0xf]
      %v3554 = vld [vmem:[%s3543 + $0x28] sm:$0xf]
      %v3555 = vld [vmem:[%s3543 + $0x2c] sm:$0xf]
      %v3556 = vld [vmem:[%s3543 + $0x30] sm:$0xf]
      %v3557 = vld [vmem:[%s3543 + $0x34] sm:$0xf]
      %v3558 = vld [vmem:[%s3543 + $0x38] sm:$0xf]
      %v3559 = vld [vmem:[%s3543 + $0x3c] sm:$0xf]
      %v3592 = vunpack.c.l.b16 %v3511
      %v3593 = vunpack.c.l.b16 %v3512
      %v3594 = vunpack.c.l.b16 %v3513
      %v3595 = vunpack.c.l.b16 %v3514
      %v3596 = vunpack.c.l.b16 %v3515
      %v3597 = vunpack.c.l.b16 %v3516
      %v3598 = vunpack.c.l.b16 %v3517
      %v3599 = vunpack.c.l.b16 %v3518
      %v3600 = vunpack.c.l.b16 %v3519
      %v3601 = vunpack.c.l.b16 %v3520
      %v3602 = vunpack.c.l.b16 %v3521
      %v3603 = vunpack.c.l.b16 %v3522
      %v3604 = vunpack.c.l.b16 %v3523
      %v3605 = vunpack.c.l.b16 %v3524
      %v3606 = vunpack.c.l.b16 %v3525
      %v3607 = vunpack.c.l.b16 %v3526
      %v3608 = vunpack.c.l.b16 %v3527
      %v3609 = vunpack.c.l.b16 %v3528
      %v3610 = vunpack.c.l.b16 %v3529
      %v3611 = vunpack.c.l.b16 %v3530
      %v3612 = vunpack.c.l.b16 %v3531
      %v3613 = vunpack.c.l.b16 %v3532
      %v3614 = vunpack.c.l.b16 %v3533
      %v3615 = vunpack.c.l.b16 %v3534
      %v3616 = vunpack.c.l.b16 %v3535
      %v3617 = vunpack.c.l.b16 %v3536
      %v3618 = vunpack.c.l.b16 %v3537
      %v3619 = vunpack.c.l.b16 %v3538
      %v3620 = vunpack.c.l.b16 %v3539
      %v3621 = vunpack.c.l.b16 %v3540
      %v3622 = vunpack.c.l.b16 %v3541
      %v3623 = vunpack.c.l.b16 %v3542
      %v3624 = vpack.c.b16 %v3593, %v3592
      %v3625 = vpack.c.b16 %v3595, %v3594
      %v3626 = vpack.c.b16 %v3597, %v3596
      %v3627 = vpack.c.b16 %v3599, %v3598
      %v3628 = vpack.c.b16 %v3601, %v3600
      %v3629 = vpack.c.b16 %v3603, %v3602
      %v3630 = vpack.c.b16 %v3605, %v3604
      %v3631 = vpack.c.b16 %v3607, %v3606
      %v3632 = vpack.c.b16 %v3609, %v3608
      %v3633 = vpack.c.b16 %v3611, %v3610
      %v3634 = vpack.c.b16 %v3613, %v3612
      %v3635 = vpack.c.b16 %v3615, %v3614
      %v3636 = vpack.c.b16 %v3617, %v3616
      %v3637 = vpack.c.b16 %v3619, %v3618
      %v3638 = vpack.c.b16 %v3621, %v3620
      %v3639 = vpack.c.b16 %v3623, %v3622
      %v3672 = vunpack.c.l.b16 %v3544
      %v3673 = vunpack.c.l.b16 %v3545
      %v3674 = vunpack.c.l.b16 %v3546
      %v3675 = vunpack.c.l.b16 %v3547
      %v3676 = vunpack.c.l.b16 %v3548
      %v3677 = vunpack.c.l.b16 %v3549
      %v3678 = vunpack.c.l.b16 %v3550
      %v3679 = vunpack.c.l.b16 %v3551
      %v3680 = vunpack.c.l.b16 %v3552
      %v3681 = vunpack.c.l.b16 %v3553
      %v3682 = vunpack.c.l.b16 %v3554
      %v3683 = vunpack.c.l.b16 %v3555
      %v3684 = vunpack.c.l.b16 %v3556
      %v3685 = vunpack.c.l.b16 %v3557
      %v3686 = vunpack.c.l.b16 %v3558
      %v3687 = vunpack.c.l.b16 %v3559
      %v3688 = vpack.c.b16 %v3673, %v3672
      %v3689 = vpack.c.b16 %v3675, %v3674
      %v3690 = vpack.c.b16 %v3677, %v3676
      %v3691 = vpack.c.b16 %v3679, %v3678
      %v3692 = vpack.c.b16 %v3681, %v3680
      %v3693 = vpack.c.b16 %v3683, %v3682
      %v3694 = vpack.c.b16 %v3685, %v3684
      %v3695 = vpack.c.b16 %v3687, %v3686
      %3704 = vmatprep.subr.bf16.mxu0 0
      %3705 = vmatpush1.bf16.msra.mxu0 %v3688
      %3706 = vmatprep.subr.bf16.mxu0 0
      %3707 = vmatpush1.bf16.msra.mxu0 %v3689
      %3708 = vmatprep.subr.bf16.mxu0 0
      %3709 = vmatpush1.bf16.msra.mxu0 %v3690
      %3710 = vmatprep.subr.bf16.mxu0 0
      %3711 = vmatpush1.bf16.msra.mxu0 %v3691
      %3712 = vmatprep.subr.bf16.mxu0 0
      %3713 = vmatpush1.bf16.msra.mxu0 %v3692
      %3714 = vmatprep.subr.bf16.mxu0 0
      %3715 = vmatpush1.bf16.msra.mxu0 %v3693
      %3716 = vmatprep.subr.bf16.mxu0 0
      %3717 = vmatpush1.bf16.msra.mxu0 %v3694
      %3718 = vmatprep.subr.bf16.mxu0 0
      %3719 = vmatpush1.bf16.msra.mxu0 %v3695
      %3720 = vmatprep.subr.bf16.mxu0 0
      %3721 = vmatpush1.bf16.msra.mxu0 0
      %3722 = vmatprep.subr.bf16.mxu0 0
      %3723 = vmatpush1.bf16.msra.mxu0 0
      %3724 = vmatprep.subr.bf16.mxu0 0
      %3725 = vmatpush1.bf16.msra.mxu0 0
      %3726 = vmatprep.subr.bf16.mxu0 0
      %3727 = vmatpush1.bf16.msra.mxu0 0
      %3728 = vmatprep.subr.bf16.mxu0 0
      %3729 = vmatpush1.bf16.msra.mxu0 0
      %3730 = vmatprep.subr.bf16.mxu0 0
      %3731 = vmatpush1.bf16.msra.mxu0 0
      %3732 = vmatprep.subr.bf16.mxu0 0
      %3733 = vmatpush1.bf16.msra.mxu0 0
      %3734 = vmatprep.subr.bf16.mxu0 0
      %3735 = vmatpush1.bf16.msra.mxu0 0
      %3736 = vmatprep.mubr.bf16.mxu0 0
      %3737 = vmatmul.mubr.bf16.gmra.mrb[0].mxu0 %v3624
      %v3738 = vpop.f32.mrb[0].mxu0
      %v3739 = vadd.f32 0.0, %v3738
      %v3740 = vpop.f32.mrb[0].mxu0
      %v3741 = vpop.f32.mrb[0].mxu0
      %v3742 = vadd.f32 0.0, %v3741
      %v3743 = vpop.f32.mrb[0].mxu0
      %3744 = vmatprep.mubr.bf16.mxu0 0
      %3745 = vmatmul.mubr.bf16.gmra.mrb[0].mxu0 %v3625
      %v3746 = vpop.f32.mrb[0].mxu0
      %v3747 = vadd.f32 0.0, %v3746
      %v3748 = vpop.f32.mrb[0].mxu0
      %v3749 = vpop.f32.mrb[0].mxu0
      %v3750 = vadd.f32 0.0, %v3749
      %v3751 = vpop.f32.mrb[0].mxu0
      %3752 = vmatprep.mubr.bf16.mxu0 0
      %3753 = vmatmul.mubr.bf16.gmra.mrb[0].mxu0 %v3626
      %v3754 = vpop.f32.mrb[0].mxu0
      %v3755 = vadd.f32 0.0, %v3754
      %v3756 = vpop.f32.mrb[0].mxu0
      %v3757 = vpop.f32.mrb[0].mxu0
      %v3758 = vadd.f32 0.0, %v3757
      %v3759 = vpop.f32.mrb[0].mxu0
      %3760 = vmatprep.mubr.bf16.mxu0 0
      %3761 = vmatmul.mubr.bf16.gmra.mrb[0].mxu0 %v3627
      %v3762 = vpop.f32.mrb[0].mxu0
      %v3763 = vadd.f32 0.0, %v3762
      %v3764 = vpop.f32.mrb[0].mxu0
      %v3765 = vpop.f32.mrb[0].mxu0
      %v3766 = vadd.f32 0.0, %v3765
      %v3767 = vpop.f32.mrb[0].mxu0
      %3768 = vmatprep.mubr.bf16.mxu0 0
      %3769 = vmatmul.mubr.bf16.gmra.mrb[0].mxu0 %v3628
      %v3770 = vpop.f32.mrb[0].mxu0
      %v3771 = vadd.f32 0.0, %v3770
      %v3772 = vpop.f32.mrb[0].mxu0
      %v3773 = vpop.f32.mrb[0].mxu0
      %v3774 = vadd.f32 0.0, %v3773
      %v3775 = vpop.f32.mrb[0].mxu0
      %3776 = vmatprep.mubr.bf16.mxu0 0
      %3777 = vmatmul.mubr.bf16.gmra.mrb[0].mxu0 %v3629
      %v3778 = vpop.f32.mrb[0].mxu0
      %v3779 = vadd.f32 0.0, %v3778
      %v3780 = vpop.f32.mrb[0].mxu0
      %v3781 = vpop.f32.mrb[0].mxu0
      %v3782 = vadd.f32 0.0, %v3781
      %v3783 = vpop.f32.mrb[0].mxu0
      %3784 = vmatprep.mubr.bf16.mxu0 0
      %3785 = vmatmul.mubr.bf16.gmra.mrb[0].mxu0 %v3630
      %v3786 = vpop.f32.mrb[0].mxu0
      %v3787 = vadd.f32 0.0, %v3786
      %v3788 = vpop.f32.mrb[0].mxu0
      %v3789 = vpop.f32.mrb[0].mxu0
      %v3790 = vadd.f32 0.0, %v3789
      %v3791 = vpop.f32.mrb[0].mxu0
      %3792 = vmatprep.mubr.bf16.mxu0 0
      %3793 = vmatmul.mubr.bf16.gmra.mrb[0].mxu0 %v3631
      %v3794 = vpop.f32.mrb[0].mxu0
      %v3795 = vadd.f32 0.0, %v3794
      %v3796 = vpop.f32.mrb[0].mxu0
      %v3797 = vpop.f32.mrb[0].mxu0
      %v3798 = vadd.f32 0.0, %v3797
      %v3799 = vpop.f32.mrb[0].mxu0
      %3800 = vmatprep.mubr.bf16.mxu0 0
      %3801 = vmatmul.mubr.bf16.gmra.mrb[0].mxu0 %v3632
      %v3802 = vpop.f32.mrb[0].mxu0
      %v3803 = vadd.f32 0.0, %v3802
      %v3804 = vpop.f32.mrb[0].mxu0
      %v3805 = vpop.f32.mrb[0].mxu0
      %v3806 = vadd.f32 0.0, %v3805
      %v3807 = vpop.f32.mrb[0].mxu0
      %3808 = vmatprep.mubr.bf16.mxu0 0
      %3809 = vmatmul.mubr.bf16.gmra.mrb[0].mxu0 %v3633
      %v3810 = vpop.f32.mrb[0].mxu0
      %v3811 = vadd.f32 0.0, %v3810
      %v3812 = vpop.f32.mrb[0].mxu0
      %v3813 = vpop.f32.mrb[0].mxu0
      %v3814 = vadd.f32 0.0, %v3813
      %v3815 = vpop.f32.mrb[0].mxu0
      %3816 = vmatprep.mubr.bf16.mxu0 0
      %3817 = vmatmul.mubr.bf16.gmra.mrb[0].mxu0 %v3634
      %v3818 = vpop.f32.mrb[0].mxu0
      %v3819 = vadd.f32 0.0, %v3818
      %v3820 = vpop.f32.mrb[0].mxu0
      %v3821 = vpop.f32.mrb[0].mxu0
      %v3822 = vadd.f32 0.0, %v3821
      %v3823 = vpop.f32.mrb[0].mxu0
      %3824 = vmatprep.mubr.bf16.mxu0 0
      %3825 = vmatmul.mubr.bf16.gmra.mrb[0].mxu0 %v3635
      %v3826 = vpop.f32.mrb[0].mxu0
      %v3827 = vadd.f32 0.0, %v3826
      %v3828 = vpop.f32.mrb[0].mxu0
      %v3829 = vpop.f32.mrb[0].mxu0
      %v3830 = vadd.f32 0.0, %v3829
      %v3831 = vpop.f32.mrb[0].mxu0
      %3832 = vmatprep.mubr.bf16.mxu0 0
      %3833 = vmatmul.mubr.bf16.gmra.mrb[0].mxu0 %v3636
      %v3834 = vpop.f32.mrb[0].mxu0
      %v3835 = vadd.f32 0.0, %v3834
      %v3836 = vpop.f32.mrb[0].mxu0
      %v3837 = vpop.f32.mrb[0].mxu0
      %v3838 = vadd.f32 0.0, %v3837
      %v3839 = vpop.f32.mrb[0].mxu0
      %3840 = vmatprep.mubr.bf16.mxu0 0
      %3841 = vmatmul.mubr.bf16.gmra.mrb[0].mxu0 %v3637
      %v3842 = vpop.f32.mrb[0].mxu0
      %v3843 = vadd.f32 0.0, %v3842
      %v3844 = vpop.f32.mrb[0].mxu0
      %v3845 = vpop.f32.mrb[0].mxu0
      %v3846 = vadd.f32 0.0, %v3845
      %v3847 = vpop.f32.mrb[0].mxu0
      %3848 = vmatprep.mubr.bf16.mxu0 0
      %3849 = vmatmul.mubr.bf16.gmra.mrb[0].mxu0 %v3638
      %v3850 = vpop.f32.mrb[0].mxu0
      %v3851 = vadd.f32 0.0, %v3850
      %v3852 = vpop.f32.mrb[0].mxu0
      %v3853 = vpop.f32.mrb[0].mxu0
      %v3854 = vadd.f32 0.0, %v3853
      %v3855 = vpop.f32.mrb[0].mxu0
      %3856 = vmatprep.mubr.bf16.mxu0 0
      %3857 = vmatmul.mubr.bf16.gmra.mrb[0].mxu0 %v3639
      %v3858 = vpop.f32.mrb[0].mxu0
      %v3859 = vadd.f32 0.0, %v3858
      %v3860 = vpop.f32.mrb[0].mxu0
      %v3861 = vpop.f32.mrb[0].mxu0
      %v3862 = vadd.f32 0.0, %v3861
      %v3863 = vpop.f32.mrb[0].mxu0
      %3864 = vdwg.mxu0
      %v3865 = vadd.f32 %v3475, %v3739
      %v3866 = vadd.f32 %v3476, %v3742
      %v3867 = vadd.f32 %v3477, %v3747
      %v3868 = vadd.f32 %v3478, %v3750
      %v3869 = vadd.f32 %v3479, %v3755
      %v3870 = vadd.f32 %v3480, %v3758
      %v3871 = vadd.f32 %v3481, %v3763
      %v3872 = vadd.f32 %v3482, %v3766
      %v3873 = vadd.f32 %v3483, %v3771
      %v3874 = vadd.f32 %v3484, %v3774
      %v3875 = vadd.f32 %v3485, %v3779
      %v3876 = vadd.f32 %v3486, %v3782
      %v3877 = vadd.f32 %v3487, %v3787
      %v3878 = vadd.f32 %v3488, %v3790
      %v3879 = vadd.f32 %v3489, %v3795
      %v3880 = vadd.f32 %v3490, %v3798
      %v3881 = vadd.f32 %v3491, %v3803
      %v3882 = vadd.f32 %v3492, %v3806
      %v3883 = vadd.f32 %v3493, %v3811
      %v3884 = vadd.f32 %v3494, %v3814
      %v3885 = vadd.f32 %v3495, %v3819
      %v3886 = vadd.f32 %v3496, %v3822
      %v3887 = vadd.f32 %v3497, %v3827
      %v3888 = vadd.f32 %v3498, %v3830
      %v3889 = vadd.f32 %v3499, %v3835
      %v3890 = vadd.f32 %v3500, %v3838
      %v3891 = vadd.f32 %v3501, %v3843
      %v3892 = vadd.f32 %v3502, %v3846
      %v3893 = vadd.f32 %v3503, %v3851
      %v3894 = vadd.f32 %v3504, %v3854
      %v3895 = vadd.f32 %v3505, %v3859
      %v3896 = vadd.f32 %v3506, %v3862
      %v3897 = vld [vmem:[%s3510] sm:$0xf]
      %v3898 = vld [vmem:[%s3510 + $0x4] sm:$0xf]
      %v3899 = vld [vmem:[%s3510 + $0x8] sm:$0x1]
      %v3900 = vld [vmem:[%s3510 + $0xc] sm:$0xf]
      %v3901 = vld [vmem:[%s3510 + $0x10] sm:$0xf]
      %v3902 = vld [vmem:[%s3510 + $0x14] sm:$0x1]
      %v3903 = vld [vmem:[%s3510 + $0x18] sm:$0xf]
      %v3904 = vld [vmem:[%s3510 + $0x1c] sm:$0xf]
      %v3905 = vld [vmem:[%s3510 + $0x20] sm:$0x1]
      %v3906 = vld [vmem:[%s3510 + $0x24] sm:$0xf]
      %v3907 = vld [vmem:[%s3510 + $0x28] sm:$0xf]
      %v3908 = vld [vmem:[%s3510 + $0x2c] sm:$0x1]
      %v3909 = vld [vmem:[%s3510 + $0x30] sm:$0xf]
      %v3910 = vld [vmem:[%s3510 + $0x34] sm:$0xf]
      %v3911 = vld [vmem:[%s3510 + $0x38] sm:$0x1]
      %v3912 = vld [vmem:[%s3510 + $0x3c] sm:$0xf]
      %v3913 = vld [vmem:[%s3510 + $0x40] sm:$0xf]
      %v3914 = vld [vmem:[%s3510 + $0x44] sm:$0x1]
      %v3915 = vld [vmem:[%s3510 + $0x48] sm:$0xf]
      %v3916 = vld [vmem:[%s3510 + $0x4c] sm:$0xf]
      %v3917 = vld [vmem:[%s3510 + $0x50] sm:$0x1]
      %v3918 = vld [vmem:[%s3510 + $0x54] sm:$0xf]
      %v3919 = vld [vmem:[%s3510 + $0x58] sm:$0xf]
      %v3920 = vld [vmem:[%s3510 + $0x5c] sm:$0x1]
      %v3921 = vld [vmem:[%s3510 + $0x60] sm:$0xf]
      %v3922 = vld [vmem:[%s3510 + $0x64] sm:$0xf]
      %v3923 = vld [vmem:[%s3510 + $0x68] sm:$0x1]
      %v3924 = vld [vmem:[%s3510 + $0x6c] sm:$0xf]
      %v3925 = vld [vmem:[%s3510 + $0x70] sm:$0xf]
      %v3926 = vld [vmem:[%s3510 + $0x74] sm:$0x1]
      %v3927 = vld [vmem:[%s3510 + $0x78] sm:$0xf]
      %v3928 = vld [vmem:[%s3510 + $0x7c] sm:$0xf]
      %v3929 = vld [vmem:[%s3510 + $0x80] sm:$0x1]
      %v3930 = vld [vmem:[%s3510 + $0x84] sm:$0xf]
      %v3931 = vld [vmem:[%s3510 + $0x88] sm:$0xf]
      %v3932 = vld [vmem:[%s3510 + $0x8c] sm:$0x1]
      %v3933 = vld [vmem:[%s3510 + $0x90] sm:$0xf]
      %v3934 = vld [vmem:[%s3510 + $0x94] sm:$0xf]
      %v3935 = vld [vmem:[%s3510 + $0x98] sm:$0x1]
      %v3936 = vld [vmem:[%s3510 + $0x9c] sm:$0xf]
      %v3937 = vld [vmem:[%s3510 + $0xa0] sm:$0xf]
      %v3938 = vld [vmem:[%s3510 + $0xa4] sm:$0x1]
      %v3939 = vld [vmem:[%s3510 + $0xa8] sm:$0xf]
      %v3940 = vld [vmem:[%s3510 + $0xac] sm:$0xf]
      %v3941 = vld [vmem:[%s3510 + $0xb0] sm:$0x1]
      %v3942 = vld [vmem:[%s3510 + $0xb4] sm:$0xf]
      %v3943 = vld [vmem:[%s3510 + $0xb8] sm:$0xf]
      %v3944 = vld [vmem:[%s3510 + $0xbc] sm:$0x1]
      %v3946 = vshrl.u32 %v3897, 16
      %v3948 = vrot.slane %v3946, 4
      %v3949 = vshll.u32 %v3897, 16
      %v3951 = vrot.slane %v3949, 5
      %v3952 = vor.u32 %v3948, %v3951
      %v3953 = vrot.slane %v3952, 4
      %v3955 = vshll.u32 %v3898, 16
      %v3957 = vrot.slane %v3955, 5
      %v3958 = vsel %vm657, %v3953, %v3957
      %v3959 = vshrl.u32 %v3898, 16
      %v3961 = vrot.slane %v3959, 4
      %v3962 = vor.u32 %v3961, %v3957
      %v3963 = vrot.slane %v3962, 4
      %v3965 = vshll.u32 %v3899, 16
      %v3967 = vrot.slane %v3965, 5
      %v3968 = vsel %vm657, %v3963, %v3967
      %v3970 = vshrl.u32 %v3900, 16
      %v3972 = vrot.slane %v3970, 4
      %v3973 = vshll.u32 %v3900, 16
      %v3975 = vrot.slane %v3973, 5
      %v3976 = vor.u32 %v3972, %v3975
      %v3977 = vrot.slane %v3976, 4
      %v3979 = vshll.u32 %v3901, 16
      %v3981 = vrot.slane %v3979, 5
      %v3982 = vsel %vm657, %v3977, %v3981
      %v3983 = vshrl.u32 %v3901, 16
      %v3985 = vrot.slane %v3983, 4
      %v3986 = vor.u32 %v3985, %v3981
      %v3987 = vrot.slane %v3986, 4
      %v3989 = vshll.u32 %v3902, 16
      %v3991 = vrot.slane %v3989, 5
      %v3992 = vsel %vm657, %v3987, %v3991
      %v3994 = vshrl.u32 %v3903, 16
      %v3996 = vrot.slane %v3994, 4
      %v3997 = vshll.u32 %v3903, 16
      %v3999 = vrot.slane %v3997, 5
      %v4000 = vor.u32 %v3996, %v3999
      %v4001 = vrot.slane %v4000, 4
      %v4003 = vshll.u32 %v3904, 16
      %v4005 = vrot.slane %v4003, 5
      %v4006 = vsel %vm657, %v4001, %v4005
      %v4007 = vshrl.u32 %v3904, 16
      %v4009 = vrot.slane %v4007, 4
      %v4010 = vor.u32 %v4009, %v4005
      %v4011 = vrot.slane %v4010, 4
      %v4013 = vshll.u32 %v3905, 16
      %v4015 = vrot.slane %v4013, 5
      %v4016 = vsel %vm657, %v4011, %v4015
      %v4018 = vshrl.u32 %v3906, 16
      %v4020 = vrot.slane %v4018, 4
      %v4021 = vshll.u32 %v3906, 16
      %v4023 = vrot.slane %v4021, 5
      %v4024 = vor.u32 %v4020, %v4023
      %v4025 = vrot.slane %v4024, 4
      %v4027 = vshll.u32 %v3907, 16
      %v4029 = vrot.slane %v4027, 5
      %v4030 = vsel %vm657, %v4025, %v4029
      %v4031 = vshrl.u32 %v3907, 16
      %v4033 = vrot.slane %v4031, 4
      %v4034 = vor.u32 %v4033, %v4029
      %v4035 = vrot.slane %v4034, 4
      %v4037 = vshll.u32 %v3908, 16
      %v4039 = vrot.slane %v4037, 5
      %v4040 = vsel %vm657, %v4035, %v4039
      %v4042 = vshrl.u32 %v3909, 16
      %v4044 = vrot.slane %v4042, 4
      %v4045 = vshll.u32 %v3909, 16
      %v4047 = vrot.slane %v4045, 5
      %v4048 = vor.u32 %v4044, %v4047
      %v4049 = vrot.slane %v4048, 4
      %v4051 = vshll.u32 %v3910, 16
      %v4053 = vrot.slane %v4051, 5
      %v4054 = vsel %vm657, %v4049, %v4053
      %v4055 = vshrl.u32 %v3910, 16
      %v4057 = vrot.slane %v4055, 4
      %v4058 = vor.u32 %v4057, %v4053
      %v4059 = vrot.slane %v4058, 4
      %v4061 = vshll.u32 %v3911, 16
      %v4063 = vrot.slane %v4061, 5
      %v4064 = vsel %vm657, %v4059, %v4063
      %v4066 = vshrl.u32 %v3912, 16
      %v4068 = vrot.slane %v4066, 4
      %v4069 = vshll.u32 %v3912, 16
      %v4071 = vrot.slane %v4069, 5
      %v4072 = vor.u32 %v4068, %v4071
      %v4073 = vrot.slane %v4072, 4
      %v4075 = vshll.u32 %v3913, 16
      %v4077 = vrot.slane %v4075, 5
      %v4078 = vsel %vm657, %v4073, %v4077
      %v4079 = vshrl.u32 %v3913, 16
      %v4081 = vrot.slane %v4079, 4
      %v4082 = vor.u32 %v4081, %v4077
      %v4083 = vrot.slane %v4082, 4
      %v4085 = vshll.u32 %v3914, 16
      %v4087 = vrot.slane %v4085, 5
      %v4088 = vsel %vm657, %v4083, %v4087
      %v4090 = vshrl.u32 %v3915, 16
      %v4092 = vrot.slane %v4090, 4
      %v4093 = vshll.u32 %v3915, 16
      %v4095 = vrot.slane %v4093, 5
      %v4096 = vor.u32 %v4092, %v4095
      %v4097 = vrot.slane %v4096, 4
      %v4099 = vshll.u32 %v3916, 16
      %v4101 = vrot.slane %v4099, 5
      %v4102 = vsel %vm657, %v4097, %v4101
      %v4103 = vshrl.u32 %v3916, 16
      %v4105 = vrot.slane %v4103, 4
      %v4106 = vor.u32 %v4105, %v4101
      %v4107 = vrot.slane %v4106, 4
      %v4109 = vshll.u32 %v3917, 16
      %v4111 = vrot.slane %v4109, 5
      %v4112 = vsel %vm657, %v4107, %v4111
      %v4114 = vshrl.u32 %v3918, 16
      %v4116 = vrot.slane %v4114, 4
      %v4117 = vshll.u32 %v3918, 16
      %v4119 = vrot.slane %v4117, 5
      %v4120 = vor.u32 %v4116, %v4119
      %v4121 = vrot.slane %v4120, 4
      %v4123 = vshll.u32 %v3919, 16
      %v4125 = vrot.slane %v4123, 5
      %v4126 = vsel %vm657, %v4121, %v4125
      %v4127 = vshrl.u32 %v3919, 16
      %v4129 = vrot.slane %v4127, 4
      %v4130 = vor.u32 %v4129, %v4125
      %v4131 = vrot.slane %v4130, 4
      %v4133 = vshll.u32 %v3920, 16
      %v4135 = vrot.slane %v4133, 5
      %v4136 = vsel %vm657, %v4131, %v4135
      %v4138 = vshrl.u32 %v3921, 16
      %v4140 = vrot.slane %v4138, 4
      %v4141 = vshll.u32 %v3921, 16
      %v4143 = vrot.slane %v4141, 5
      %v4144 = vor.u32 %v4140, %v4143
      %v4145 = vrot.slane %v4144, 4
      %v4147 = vshll.u32 %v3922, 16
      %v4149 = vrot.slane %v4147, 5
      %v4150 = vsel %vm657, %v4145, %v4149
      %v4151 = vshrl.u32 %v3922, 16
      %v4153 = vrot.slane %v4151, 4
      %v4154 = vor.u32 %v4153, %v4149
      %v4155 = vrot.slane %v4154, 4
      %v4157 = vshll.u32 %v3923, 16
      %v4159 = vrot.slane %v4157, 5
      %v4160 = vsel %vm657, %v4155, %v4159
      %v4162 = vshrl.u32 %v3924, 16
      %v4164 = vrot.slane %v4162, 4
      %v4165 = vshll.u32 %v3924, 16
      %v4167 = vrot.slane %v4165, 5
      %v4168 = vor.u32 %v4164, %v4167
      %v4169 = vrot.slane %v4168, 4
      %v4171 = vshll.u32 %v3925, 16
      %v4173 = vrot.slane %v4171, 5
      %v4174 = vsel %vm657, %v4169, %v4173
      %v4175 = vshrl.u32 %v3925, 16
      %v4177 = vrot.slane %v4175, 4
      %v4178 = vor.u32 %v4177, %v4173
      %v4179 = vrot.slane %v4178, 4
      %v4181 = vshll.u32 %v3926, 16
      %v4183 = vrot.slane %v4181, 5
      %v4184 = vsel %vm657, %v4179, %v4183
      %v4186 = vshrl.u32 %v3927, 16
      %v4188 = vrot.slane %v4186, 4
      %v4189 = vshll.u32 %v3927, 16
      %v4191 = vrot.slane %v4189, 5
      %v4192 = vor.u32 %v4188, %v4191
      %v4193 = vrot.slane %v4192, 4
      %v4195 = vshll.u32 %v3928, 16
      %v4197 = vrot.slane %v4195, 5
      %v4198 = vsel %vm657, %v4193, %v4197
      %v4199 = vshrl.u32 %v3928, 16
      %v4201 = vrot.slane %v4199, 4
      %v4202 = vor.u32 %v4201, %v4197
      %v4203 = vrot.slane %v4202, 4
      %v4205 = vshll.u32 %v3929, 16
      %v4207 = vrot.slane %v4205, 5
      %v4208 = vsel %vm657, %v4203, %v4207
      %v4210 = vshrl.u32 %v3930, 16
      %v4212 = vrot.slane %v4210, 4
      %v4213 = vshll.u32 %v3930, 16
      %v4215 = vrot.slane %v4213, 5
      %v4216 = vor.u32 %v4212, %v4215
      %v4217 = vrot.slane %v4216, 4
      %v4219 = vshll.u32 %v3931, 16
      %v4221 = vrot.slane %v4219, 5
      %v4222 = vsel %vm657, %v4217, %v4221
      %v4223 = vshrl.u32 %v3931, 16
      %v4225 = vrot.slane %v4223, 4
      %v4226 = vor.u32 %v4225, %v4221
      %v4227 = vrot.slane %v4226, 4
      %v4229 = vshll.u32 %v3932, 16
      %v4231 = vrot.slane %v4229, 5
      %v4232 = vsel %vm657, %v4227, %v4231
      %v4234 = vshrl.u32 %v3933, 16
      %v4236 = vrot.slane %v4234, 4
      %v4237 = vshll.u32 %v3933, 16
      %v4239 = vrot.slane %v4237, 5
      %v4240 = vor.u32 %v4236, %v4239
      %v4241 = vrot.slane %v4240, 4
      %v4243 = vshll.u32 %v3934, 16
      %v4245 = vrot.slane %v4243, 5
      %v4246 = vsel %vm657, %v4241, %v4245
      %v4247 = vshrl.u32 %v3934, 16
      %v4249 = vrot.slane %v4247, 4
      %v4250 = vor.u32 %v4249, %v4245
      %v4251 = vrot.slane %v4250, 4
      %v4253 = vshll.u32 %v3935, 16
      %v4255 = vrot.slane %v4253, 5
      %v4256 = vsel %vm657, %v4251, %v4255
      %v4258 = vshrl.u32 %v3936, 16
      %v4260 = vrot.slane %v4258, 4
      %v4261 = vshll.u32 %v3936, 16
      %v4263 = vrot.slane %v4261, 5
      %v4264 = vor.u32 %v4260, %v4263
      %v4265 = vrot.slane %v4264, 4
      %v4267 = vshll.u32 %v3937, 16
      %v4269 = vrot.slane %v4267, 5
      %v4270 = vsel %vm657, %v4265, %v4269
      %v4271 = vshrl.u32 %v3937, 16
      %v4273 = vrot.slane %v4271, 4
      %v4274 = vor.u32 %v4273, %v4269
      %v4275 = vrot.slane %v4274, 4
      %v4277 = vshll.u32 %v3938, 16
      %v4279 = vrot.slane %v4277, 5
      %v4280 = vsel %vm657, %v4275, %v4279
      %v4282 = vshrl.u32 %v3939, 16
      %v4284 = vrot.slane %v4282, 4
      %v4285 = vshll.u32 %v3939, 16
      %v4287 = vrot.slane %v4285, 5
      %v4288 = vor.u32 %v4284, %v4287
      %v4289 = vrot.slane %v4288, 4
      %v4291 = vshll.u32 %v3940, 16
      %v4293 = vrot.slane %v4291, 5
      %v4294 = vsel %vm657, %v4289, %v4293
      %v4295 = vshrl.u32 %v3940, 16
      %v4297 = vrot.slane %v4295, 4
      %v4298 = vor.u32 %v4297, %v4293
      %v4299 = vrot.slane %v4298, 4
      %v4301 = vshll.u32 %v3941, 16
      %v4303 = vrot.slane %v4301, 5
      %v4304 = vsel %vm657, %v4299, %v4303
      %v4306 = vshrl.u32 %v3942, 16
      %v4308 = vrot.slane %v4306, 4
      %v4309 = vshll.u32 %v3942, 16
      %v4311 = vrot.slane %v4309, 5
      %v4312 = vor.u32 %v4308, %v4311
      %v4313 = vrot.slane %v4312, 4
      %v4315 = vshll.u32 %v3943, 16
      %v4317 = vrot.slane %v4315, 5
      %v4318 = vsel %vm657, %v4313, %v4317
      %v4319 = vshrl.u32 %v3943, 16
      %v4321 = vrot.slane %v4319, 4
      %v4322 = vor.u32 %v4321, %v4317
      %v4323 = vrot.slane %v4322, 4
      %v4325 = vshll.u32 %v3944, 16
      %v4327 = vrot.slane %v4325, 5
      %v4328 = vsel %vm657, %v4323, %v4327
      %s4329 = scalar_lea.vmem %s224, 448
      %v4330 = vld [vmem:[%s4329] sm:$0xf]
      %v4331 = vld [vmem:[%s4329 + $0x4] sm:$0xf]
      %v4332 = vld [vmem:[%s4329 + $0x8] sm:$0xf]
      %v4333 = vld [vmem:[%s4329 + $0xc] sm:$0xf]
      %v4334 = vld [vmem:[%s4329 + $0x10] sm:$0xf]
      %v4335 = vld [vmem:[%s4329 + $0x14] sm:$0xf]
      %v4336 = vld [vmem:[%s4329 + $0x18] sm:$0xf]
      %v4337 = vld [vmem:[%s4329 + $0x1c] sm:$0xf]
      %v4338 = vld [vmem:[%s4329 + $0x20] sm:$0xf]
      %v4339 = vld [vmem:[%s4329 + $0x24] sm:$0xf]
      %v4340 = vld [vmem:[%s4329 + $0x28] sm:$0xf]
      %v4341 = vld [vmem:[%s4329 + $0x2c] sm:$0xf]
      %v4342 = vld [vmem:[%s4329 + $0x30] sm:$0xf]
      %v4343 = vld [vmem:[%s4329 + $0x34] sm:$0xf]
      %v4344 = vld [vmem:[%s4329 + $0x38] sm:$0xf]
      %v4345 = vld [vmem:[%s4329 + $0x3c] sm:$0xf]
      %v4346 = vunpack.c.l.b16 %v3958
      %v4347 = vunpack.c.l.b16 %v3968
      %v4348 = vunpack.c.l.b16 %v3982
      %v4349 = vunpack.c.l.b16 %v3992
      %v4350 = vunpack.c.l.b16 %v4006
      %v4351 = vunpack.c.l.b16 %v4016
      %v4352 = vunpack.c.l.b16 %v4030
      %v4353 = vunpack.c.l.b16 %v4040
      %v4354 = vunpack.c.l.b16 %v4054
      %v4355 = vunpack.c.l.b16 %v4064
      %v4356 = vunpack.c.l.b16 %v4078
      %v4357 = vunpack.c.l.b16 %v4088
      %v4358 = vunpack.c.l.b16 %v4102
      %v4359 = vunpack.c.l.b16 %v4112
      %v4360 = vunpack.c.l.b16 %v4126
      %v4361 = vunpack.c.l.b16 %v4136
      %v4362 = vunpack.c.l.b16 %v4150
      %v4363 = vunpack.c.l.b16 %v4160
      %v4364 = vunpack.c.l.b16 %v4174
      %v4365 = vunpack.c.l.b16 %v4184
      %v4366 = vunpack.c.l.b16 %v4198
      %v4367 = vunpack.c.l.b16 %v4208
      %v4368 = vunpack.c.l.b16 %v4222
      %v4369 = vunpack.c.l.b16 %v4232
      %v4370 = vunpack.c.l.b16 %v4246
      %v4371 = vunpack.c.l.b16 %v4256
      %v4372 = vunpack.c.l.b16 %v4270
      %v4373 = vunpack.c.l.b16 %v4280
      %v4374 = vunpack.c.l.b16 %v4294
      %v4375 = vunpack.c.l.b16 %v4304
      %v4376 = vunpack.c.l.b16 %v4318
      %v4377 = vunpack.c.l.b16 %v4328
      %v4378 = vpack.c.b16 %v4347, %v4346
      %v4379 = vpack.c.b16 %v4349, %v4348
      %v4380 = vpack.c.b16 %v4351, %v4350
      %v4381 = vpack.c.b16 %v4353, %v4352
      %v4382 = vpack.c.b16 %v4355, %v4354
      %v4383 = vpack.c.b16 %v4357, %v4356
      %v4384 = vpack.c.b16 %v4359, %v4358
      %v4385 = vpack.c.b16 %v4361, %v4360
      %v4386 = vpack.c.b16 %v4363, %v4362
      %v4387 = vpack.c.b16 %v4365, %v4364
      %v4388 = vpack.c.b16 %v4367, %v4366
      %v4389 = vpack.c.b16 %v4369, %v4368
      %v4390 = vpack.c.b16 %v4371, %v4370
      %v4391 = vpack.c.b16 %v4373, %v4372
      %v4392 = vpack.c.b16 %v4375, %v4374
      %v4393 = vpack.c.b16 %v4377, %v4376
      %v4426 = vunpack.c.l.b16 %v4330
      %v4427 = vunpack.c.l.b16 %v4331
      %v4428 = vunpack.c.l.b16 %v4332
      %v4429 = vunpack.c.l.b16 %v4333
      %v4430 = vunpack.c.l.b16 %v4334
      %v4431 = vunpack.c.l.b16 %v4335
      %v4432 = vunpack.c.l.b16 %v4336
      %v4433 = vunpack.c.l.b16 %v4337
      %v4434 = vunpack.c.l.b16 %v4338
      %v4435 = vunpack.c.l.b16 %v4339
      %v4436 = vunpack.c.l.b16 %v4340
      %v4437 = vunpack.c.l.b16 %v4341
      %v4438 = vunpack.c.l.b16 %v4342
      %v4439 = vunpack.c.l.b16 %v4343
      %v4440 = vunpack.c.l.b16 %v4344
      %v4441 = vunpack.c.l.b16 %v4345
      %v4442 = vpack.c.b16 %v4427, %v4426
      %v4443 = vpack.c.b16 %v4429, %v4428
      %v4444 = vpack.c.b16 %v4431, %v4430
      %v4445 = vpack.c.b16 %v4433, %v4432
      %v4446 = vpack.c.b16 %v4435, %v4434
      %v4447 = vpack.c.b16 %v4437, %v4436
      %v4448 = vpack.c.b16 %v4439, %v4438
      %v4449 = vpack.c.b16 %v4441, %v4440
      %4458 = vmatprep.subr.bf16.mxu0 0
      %4459 = vmatpush1.bf16.msra.mxu0 %v4442
      %4460 = vmatprep.subr.bf16.mxu0 0
      %4461 = vmatpush1.bf16.msra.mxu0 %v4443
      %4462 = vmatprep.subr.bf16.mxu0 0
      %4463 = vmatpush1.bf16.msra.mxu0 %v4444
      %4464 = vmatprep.subr.bf16.mxu0 0
      %4465 = vmatpush1.bf16.msra.mxu0 %v4445
      %4466 = vmatprep.subr.bf16.mxu0 0
      %4467 = vmatpush1.bf16.msra.mxu0 %v4446
      %4468 = vmatprep.subr.bf16.mxu0 0
      %4469 = vmatpush1.bf16.msra.mxu0 %v4447
      %4470 = vmatprep.subr.bf16.mxu0 0
      %4471 = vmatpush1.bf16.msra.mxu0 %v4448
      %4472 = vmatprep.subr.bf16.mxu0 0
      %4473 = vmatpush1.bf16.msra.mxu0 %v4449
      %4474 = vmatprep.subr.bf16.mxu0 0
      %4475 = vmatpush1.bf16.msra.mxu0 0
      %4476 = vmatprep.subr.bf16.mxu0 0
      %4477 = vmatpush1.bf16.msra.mxu0 0
      %4478 = vmatprep.subr.bf16.mxu0 0
      %4479 = vmatpush1.bf16.msra.mxu0 0
      %4480 = vmatprep.subr.bf16.mxu0 0
      %4481 = vmatpush1.bf16.msra.mxu0 0
      %4482 = vmatprep.subr.bf16.mxu0 0
      %4483 = vmatpush1.bf16.msra.mxu0 0
      %4484 = vmatprep.subr.bf16.mxu0 0
      %4485 = vmatpush1.bf16.msra.mxu0 0
      %4486 = vmatprep.subr.bf16.mxu0 0
      %4487 = vmatpush1.bf16.msra.mxu0 0
      %4488 = vmatprep.subr.bf16.mxu0 0
      %4489 = vmatpush1.bf16.msra.mxu0 0
      %4490 = vmatprep.mubr.bf16.mxu0 0
      %4491 = vmatmul.mubr.bf16.gmra.mrb[0].mxu0 %v4378
      %v4492 = vpop.f32.mrb[0].mxu0
      %v4493 = vadd.f32 0.0, %v4492
      %v4494 = vpop.f32.mrb[0].mxu0
      %v4495 = vpop.f32.mrb[0].mxu0
      %v4496 = vadd.f32 0.0, %v4495
      %v4497 = vpop.f32.mrb[0].mxu0
      %4498 = vmatprep.mubr.bf16.mxu0 0
      %4499 = vmatmul.mubr.bf16.gmra.mrb[0].mxu0 %v4379
      %v4500 = vpop.f32.mrb[0].mxu0
      %v4501 = vadd.f32 0.0, %v4500
      %v4502 = vpop.f32.mrb[0].mxu0
      %v4503 = vpop.f32.mrb[0].mxu0
      %v4504 = vadd.f32 0.0, %v4503
      %v4505 = vpop.f32.mrb[0].mxu0
      %4506 = vmatprep.mubr.bf16.mxu0 0
      %4507 = vmatmul.mubr.bf16.gmra.mrb[0].mxu0 %v4380
      %v4508 = vpop.f32.mrb[0].mxu0
      %v4509 = vadd.f32 0.0, %v4508
      %v4510 = vpop.f32.mrb[0].mxu0
      %v4511 = vpop.f32.mrb[0].mxu0
      %v4512 = vadd.f32 0.0, %v4511
      %v4513 = vpop.f32.mrb[0].mxu0
      %4514 = vmatprep.mubr.bf16.mxu0 0
      %4515 = vmatmul.mubr.bf16.gmra.mrb[0].mxu0 %v4381
      %v4516 = vpop.f32.mrb[0].mxu0
      %v4517 = vadd.f32 0.0, %v4516
      %v4518 = vpop.f32.mrb[0].mxu0
      %v4519 = vpop.f32.mrb[0].mxu0
      %v4520 = vadd.f32 0.0, %v4519
      %v4521 = vpop.f32.mrb[0].mxu0
      %4522 = vmatprep.mubr.bf16.mxu0 0
      %4523 = vmatmul.mubr.bf16.gmra.mrb[0].mxu0 %v4382
      %v4524 = vpop.f32.mrb[0].mxu0
      %v4525 = vadd.f32 0.0, %v4524
      %v4526 = vpop.f32.mrb[0].mxu0
      %v4527 = vpop.f32.mrb[0].mxu0
      %v4528 = vadd.f32 0.0, %v4527
      %v4529 = vpop.f32.mrb[0].mxu0
      %4530 = vmatprep.mubr.bf16.mxu0 0
      %4531 = vmatmul.mubr.bf16.gmra.mrb[0].mxu0 %v4383
      %v4532 = vpop.f32.mrb[0].mxu0
      %v4533 = vadd.f32 0.0, %v4532
      %v4534 = vpop.f32.mrb[0].mxu0
      %v4535 = vpop.f32.mrb[0].mxu0
      %v4536 = vadd.f32 0.0, %v4535
      %v4537 = vpop.f32.mrb[0].mxu0
      %4538 = vmatprep.mubr.bf16.mxu0 0
      %4539 = vmatmul.mubr.bf16.gmra.mrb[0].mxu0 %v4384
      %v4540 = vpop.f32.mrb[0].mxu0
      %v4541 = vadd.f32 0.0, %v4540
      %v4542 = vpop.f32.mrb[0].mxu0
      %v4543 = vpop.f32.mrb[0].mxu0
      %v4544 = vadd.f32 0.0, %v4543
      %v4545 = vpop.f32.mrb[0].mxu0
      %4546 = vmatprep.mubr.bf16.mxu0 0
      %4547 = vmatmul.mubr.bf16.gmra.mrb[0].mxu0 %v4385
      %v4548 = vpop.f32.mrb[0].mxu0
      %v4549 = vadd.f32 0.0, %v4548
      %v4550 = vpop.f32.mrb[0].mxu0
      %v4551 = vpop.f32.mrb[0].mxu0
      %v4552 = vadd.f32 0.0, %v4551
      %v4553 = vpop.f32.mrb[0].mxu0
      %4554 = vmatprep.mubr.bf16.mxu0 0
      %4555 = vmatmul.mubr.bf16.gmra.mrb[0].mxu0 %v4386
      %v4556 = vpop.f32.mrb[0].mxu0
      %v4557 = vadd.f32 0.0, %v4556
      %v4558 = vpop.f32.mrb[0].mxu0
      %v4559 = vpop.f32.mrb[0].mxu0
      %v4560 = vadd.f32 0.0, %v4559
      %v4561 = vpop.f32.mrb[0].mxu0
      %4562 = vmatprep.mubr.bf16.mxu0 0
      %4563 = vmatmul.mubr.bf16.gmra.mrb[0].mxu0 %v4387
      %v4564 = vpop.f32.mrb[0].mxu0
      %v4565 = vadd.f32 0.0, %v4564
      %v4566 = vpop.f32.mrb[0].mxu0
      %v4567 = vpop.f32.mrb[0].mxu0
      %v4568 = vadd.f32 0.0, %v4567
      %v4569 = vpop.f32.mrb[0].mxu0
      %4570 = vmatprep.mubr.bf16.mxu0 0
      %4571 = vmatmul.mubr.bf16.gmra.mrb[0].mxu0 %v4388
      %v4572 = vpop.f32.mrb[0].mxu0
      %v4573 = vadd.f32 0.0, %v4572
      %v4574 = vpop.f32.mrb[0].mxu0
      %v4575 = vpop.f32.mrb[0].mxu0
      %v4576 = vadd.f32 0.0, %v4575
      %v4577 = vpop.f32.mrb[0].mxu0
      %4578 = vmatprep.mubr.bf16.mxu0 0
      %4579 = vmatmul.mubr.bf16.gmra.mrb[0].mxu0 %v4389
      %v4580 = vpop.f32.mrb[0].mxu0
      %v4581 = vadd.f32 0.0, %v4580
      %v4582 = vpop.f32.mrb[0].mxu0
      %v4583 = vpop.f32.mrb[0].mxu0
      %v4584 = vadd.f32 0.0, %v4583
      %v4585 = vpop.f32.mrb[0].mxu0
      %4586 = vmatprep.mubr.bf16.mxu0 0
      %4587 = vmatmul.mubr.bf16.gmra.mrb[0].mxu0 %v4390
      %v4588 = vpop.f32.mrb[0].mxu0
      %v4589 = vadd.f32 0.0, %v4588
      %v4590 = vpop.f32.mrb[0].mxu0
      %v4591 = vpop.f32.mrb[0].mxu0
      %v4592 = vadd.f32 0.0, %v4591
      %v4593 = vpop.f32.mrb[0].mxu0
      %4594 = vmatprep.mubr.bf16.mxu0 0
      %4595 = vmatmul.mubr.bf16.gmra.mrb[0].mxu0 %v4391
      %v4596 = vpop.f32.mrb[0].mxu0
      %v4597 = vadd.f32 0.0, %v4596
      %v4598 = vpop.f32.mrb[0].mxu0
      %v4599 = vpop.f32.mrb[0].mxu0
      %v4600 = vadd.f32 0.0, %v4599
      %v4601 = vpop.f32.mrb[0].mxu0
      %4602 = vmatprep.mubr.bf16.mxu0 0
      %4603 = vmatmul.mubr.bf16.gmra.mrb[0].mxu0 %v4392
      %v4604 = vpop.f32.mrb[0].mxu0
      %v4605 = vadd.f32 0.0, %v4604
      %v4606 = vpop.f32.mrb[0].mxu0
      %v4607 = vpop.f32.mrb[0].mxu0
      %v4608 = vadd.f32 0.0, %v4607
      %v4609 = vpop.f32.mrb[0].mxu0
      %4610 = vmatprep.mubr.bf16.mxu0 0
      %4611 = vmatmul.mubr.bf16.gmra.mrb[0].mxu0 %v4393
      %v4612 = vpop.f32.mrb[0].mxu0
      %v4613 = vadd.f32 0.0, %v4612
      %v4614 = vpop.f32.mrb[0].mxu0
      %v4615 = vpop.f32.mrb[0].mxu0
      %v4616 = vadd.f32 0.0, %v4615
      %v4617 = vpop.f32.mrb[0].mxu0
      %4618 = vdwg.mxu0
      %v4619 = vadd.f32 %v3865, %v4493
      %v4620 = vadd.f32 %v3866, %v4496
      %v4621 = vadd.f32 %v3867, %v4501
      %v4622 = vadd.f32 %v3868, %v4504
      %v4623 = vadd.f32 %v3869, %v4509
      %v4624 = vadd.f32 %v3870, %v4512
      %v4625 = vadd.f32 %v3871, %v4517
      %v4626 = vadd.f32 %v3872, %v4520
      %v4627 = vadd.f32 %v3873, %v4525
      %v4628 = vadd.f32 %v3874, %v4528
      %v4629 = vadd.f32 %v3875, %v4533
      %v4630 = vadd.f32 %v3876, %v4536
      %v4631 = vadd.f32 %v3877, %v4541
      %v4632 = vadd.f32 %v3878, %v4544
      %v4633 = vadd.f32 %v3879, %v4549
      %v4634 = vadd.f32 %v3880, %v4552
      %v4635 = vadd.f32 %v3881, %v4557
      %v4636 = vadd.f32 %v3882, %v4560
      %v4637 = vadd.f32 %v3883, %v4565
      %v4638 = vadd.f32 %v3884, %v4568
      %v4639 = vadd.f32 %v3885, %v4573
      %v4640 = vadd.f32 %v3886, %v4576
      %v4641 = vadd.f32 %v3887, %v4581
      %v4642 = vadd.f32 %v3888, %v4584
      %v4643 = vadd.f32 %v3889, %v4589
      %v4644 = vadd.f32 %v3890, %v4592
      %v4645 = vadd.f32 %v3891, %v4597
      %v4646 = vadd.f32 %v3892, %v4600
      %v4647 = vadd.f32 %v3893, %v4605
      %v4648 = vadd.f32 %v3894, %v4608
      %v4649 = vadd.f32 %v3895, %v4613
      %v4650 = vadd.f32 %v3896, %v4616
      %v4651 = vld [vmem:[%s3510] sm:$0xe]
      %v4652 = vld [vmem:[%s3510 + $0xc] sm:$0xe]
      %v4653 = vld [vmem:[%s3510 + $0x18] sm:$0xe]
      %v4654 = vld [vmem:[%s3510 + $0x24] sm:$0xe]
      %v4655 = vld [vmem:[%s3510 + $0x30] sm:$0xe]
      %v4656 = vld [vmem:[%s3510 + $0x3c] sm:$0xe]
      %v4657 = vld [vmem:[%s3510 + $0x48] sm:$0xe]
      %v4658 = vld [vmem:[%s3510 + $0x54] sm:$0xe]
      %v4659 = vld [vmem:[%s3510 + $0x60] sm:$0xe]
      %v4660 = vld [vmem:[%s3510 + $0x6c] sm:$0xe]
      %v4661 = vld [vmem:[%s3510 + $0x78] sm:$0xe]
      %v4662 = vld [vmem:[%s3510 + $0x84] sm:$0xe]
      %v4663 = vld [vmem:[%s3510 + $0x90] sm:$0xe]
      %v4664 = vld [vmem:[%s3510 + $0x9c] sm:$0xe]
      %v4665 = vld [vmem:[%s3510 + $0xa8] sm:$0xe]
      %v4666 = vld [vmem:[%s3510 + $0xb4] sm:$0xe]
      %v4715 = vrot.slane %v4651, 5
      %v4716 = vrot.slane %v4715, 4
      %v4717 = vrot.slane %v3898, 5
      %v4718 = vsel %vm1430, %v4716, %v4717
      %v4719 = vrot.slane %v4717, 4
      %v4720 = vrot.slane %v3899, 5
      %v4721 = vsel %vm1430, %v4719, %v4720
      %v4722 = vrot.slane %v4652, 5
      %v4723 = vrot.slane %v4722, 4
      %v4724 = vrot.slane %v3901, 5
      %v4725 = vsel %vm1430, %v4723, %v4724
      %v4726 = vrot.slane %v4724, 4
      %v4727 = vrot.slane %v3902, 5
      %v4728 = vsel %vm1430, %v4726, %v4727
      %v4729 = vrot.slane %v4653, 5
      %v4730 = vrot.slane %v4729, 4
      %v4731 = vrot.slane %v3904, 5
      %v4732 = vsel %vm1430, %v4730, %v4731
      %v4733 = vrot.slane %v4731, 4
      %v4734 = vrot.slane %v3905, 5
      %v4735 = vsel %vm1430, %v4733, %v4734
      %v4736 = vrot.slane %v4654, 5
      %v4737 = vrot.slane %v4736, 4
      %v4738 = vrot.slane %v3907, 5
      %v4739 = vsel %vm1430, %v4737, %v4738
      %v4740 = vrot.slane %v4738, 4
      %v4741 = vrot.slane %v3908, 5
      %v4742 = vsel %vm1430, %v4740, %v4741
      %v4743 = vrot.slane %v4655, 5
      %v4744 = vrot.slane %v4743, 4
      %v4745 = vrot.slane %v3910, 5
      %v4746 = vsel %vm1430, %v4744, %v4745
      %v4747 = vrot.slane %v4745, 4
      %v4748 = vrot.slane %v3911, 5
      %v4749 = vsel %vm1430, %v4747, %v4748
      %v4750 = vrot.slane %v4656, 5
      %v4751 = vrot.slane %v4750, 4
      %v4752 = vrot.slane %v3913, 5
      %v4753 = vsel %vm1430, %v4751, %v4752
      %v4754 = vrot.slane %v4752, 4
      %v4755 = vrot.slane %v3914, 5
      %v4756 = vsel %vm1430, %v4754, %v4755
      %v4757 = vrot.slane %v4657, 5
      %v4758 = vrot.slane %v4757, 4
      %v4759 = vrot.slane %v3916, 5
      %v4760 = vsel %vm1430, %v4758, %v4759
      %v4761 = vrot.slane %v4759, 4
      %v4762 = vrot.slane %v3917, 5
      %v4763 = vsel %vm1430, %v4761, %v4762
      %v4764 = vrot.slane %v4658, 5
      %v4765 = vrot.slane %v4764, 4
      %v4766 = vrot.slane %v3919, 5
      %v4767 = vsel %vm1430, %v4765, %v4766
      %v4768 = vrot.slane %v4766, 4
      %v4769 = vrot.slane %v3920, 5
      %v4770 = vsel %vm1430, %v4768, %v4769
      %v4771 = vrot.slane %v4659, 5
      %v4772 = vrot.slane %v4771, 4
      %v4773 = vrot.slane %v3922, 5
      %v4774 = vsel %vm1430, %v4772, %v4773
      %v4775 = vrot.slane %v4773, 4
      %v4776 = vrot.slane %v3923, 5
      %v4777 = vsel %vm1430, %v4775, %v4776
      %v4778 = vrot.slane %v4660, 5
      %v4779 = vrot.slane %v4778, 4
      %v4780 = vrot.slane %v3925, 5
      %v4781 = vsel %vm1430, %v4779, %v4780
      %v4782 = vrot.slane %v4780, 4
      %v4783 = vrot.slane %v3926, 5
      %v4784 = vsel %vm1430, %v4782, %v4783
      %v4785 = vrot.slane %v4661, 5
      %v4786 = vrot.slane %v4785, 4
      %v4787 = vrot.slane %v3928, 5
      %v4788 = vsel %vm1430, %v4786, %v4787
      %v4789 = vrot.slane %v4787, 4
      %v4790 = vrot.slane %v3929, 5
      %v4791 = vsel %vm1430, %v4789, %v4790
      %v4792 = vrot.slane %v4662, 5
      %v4793 = vrot.slane %v4792, 4
      %v4794 = vrot.slane %v3931, 5
      %v4795 = vsel %vm1430, %v4793, %v4794
      %v4796 = vrot.slane %v4794, 4
      %v4797 = vrot.slane %v3932, 5
      %v4798 = vsel %vm1430, %v4796, %v4797
      %v4799 = vrot.slane %v4663, 5
      %v4800 = vrot.slane %v4799, 4
      %v4801 = vrot.slane %v3934, 5
      %v4802 = vsel %vm1430, %v4800, %v4801
      %v4803 = vrot.slane %v4801, 4
      %v4804 = vrot.slane %v3935, 5
      %v4805 = vsel %vm1430, %v4803, %v4804
      %v4806 = vrot.slane %v4664, 5
      %v4807 = vrot.slane %v4806, 4
      %v4808 = vrot.slane %v3937, 5
      %v4809 = vsel %vm1430, %v4807, %v4808
      %v4810 = vrot.slane %v4808, 4
      %v4811 = vrot.slane %v3938, 5
      %v4812 = vsel %vm1430, %v4810, %v4811
      %v4813 = vrot.slane %v4665, 5
      %v4814 = vrot.slane %v4813, 4
      %v4815 = vrot.slane %v3940, 5
      %v4816 = vsel %vm1430, %v4814, %v4815
      %v4817 = vrot.slane %v4815, 4
      %v4818 = vrot.slane %v3941, 5
      %v4819 = vsel %vm1430, %v4817, %v4818
      %v4820 = vrot.slane %v4666, 5
      %v4821 = vrot.slane %v4820, 4
      %v4822 = vrot.slane %v3943, 5
      %v4823 = vsel %vm1430, %v4821, %v4822
      %v4824 = vrot.slane %v4822, 4
      %v4825 = vrot.slane %v3944, 5
      %v4826 = vsel %vm1430, %v4824, %v4825
      %s4827 = scalar_lea.vmem %s224, 512
      %v4828 = vld [vmem:[%s4827] sm:$0xf]
      %v4829 = vld [vmem:[%s4827 + $0x4] sm:$0xf]
      %v4830 = vld [vmem:[%s4827 + $0x8] sm:$0xf]
      %v4831 = vld [vmem:[%s4827 + $0xc] sm:$0xf]
      %v4832 = vld [vmem:[%s4827 + $0x10] sm:$0xf]
      %v4833 = vld [vmem:[%s4827 + $0x14] sm:$0xf]
      %v4834 = vld [vmem:[%s4827 + $0x18] sm:$0xf]
      %v4835 = vld [vmem:[%s4827 + $0x1c] sm:$0xf]
      %v4836 = vld [vmem:[%s4827 + $0x20] sm:$0xf]
      %v4837 = vld [vmem:[%s4827 + $0x24] sm:$0xf]
      %v4838 = vld [vmem:[%s4827 + $0x28] sm:$0xf]
      %v4839 = vld [vmem:[%s4827 + $0x2c] sm:$0xf]
      %v4840 = vld [vmem:[%s4827 + $0x30] sm:$0xf]
      %v4841 = vld [vmem:[%s4827 + $0x34] sm:$0xf]
      %v4842 = vld [vmem:[%s4827 + $0x38] sm:$0xf]
      %v4843 = vld [vmem:[%s4827 + $0x3c] sm:$0xf]
      %v4844 = vunpack.c.l.b16 %v4718
      %v4845 = vunpack.c.l.b16 %v4721
      %v4846 = vunpack.c.l.b16 %v4725
      %v4847 = vunpack.c.l.b16 %v4728
      %v4848 = vunpack.c.l.b16 %v4732
      %v4849 = vunpack.c.l.b16 %v4735
      %v4850 = vunpack.c.l.b16 %v4739
      %v4851 = vunpack.c.l.b16 %v4742
      %v4852 = vunpack.c.l.b16 %v4746
      %v4853 = vunpack.c.l.b16 %v4749
      %v4854 = vunpack.c.l.b16 %v4753
      %v4855 = vunpack.c.l.b16 %v4756
      %v4856 = vunpack.c.l.b16 %v4760
      %v4857 = vunpack.c.l.b16 %v4763
      %v4858 = vunpack.c.l.b16 %v4767
      %v4859 = vunpack.c.l.b16 %v4770
      %v4860 = vunpack.c.l.b16 %v4774
      %v4861 = vunpack.c.l.b16 %v4777
      %v4862 = vunpack.c.l.b16 %v4781
      %v4863 = vunpack.c.l.b16 %v4784
      %v4864 = vunpack.c.l.b16 %v4788
      %v4865 = vunpack.c.l.b16 %v4791
      %v4866 = vunpack.c.l.b16 %v4795
      %v4867 = vunpack.c.l.b16 %v4798
      %v4868 = vunpack.c.l.b16 %v4802
      %v4869 = vunpack.c.l.b16 %v4805
      %v4870 = vunpack.c.l.b16 %v4809
      %v4871 = vunpack.c.l.b16 %v4812
      %v4872 = vunpack.c.l.b16 %v4816
      %v4873 = vunpack.c.l.b16 %v4819
      %v4874 = vunpack.c.l.b16 %v4823
      %v4875 = vunpack.c.l.b16 %v4826
      %v4876 = vpack.c.b16 %v4845, %v4844
      %v4877 = vpack.c.b16 %v4847, %v4846
      %v4878 = vpack.c.b16 %v4849, %v4848
      %v4879 = vpack.c.b16 %v4851, %v4850
      %v4880 = vpack.c.b16 %v4853, %v4852
      %v4881 = vpack.c.b16 %v4855, %v4854
      %v4882 = vpack.c.b16 %v4857, %v4856
      %v4883 = vpack.c.b16 %v4859, %v4858
      %v4884 = vpack.c.b16 %v4861, %v4860
      %v4885 = vpack.c.b16 %v4863, %v4862
      %v4886 = vpack.c.b16 %v4865, %v4864
      %v4887 = vpack.c.b16 %v4867, %v4866
      %v4888 = vpack.c.b16 %v4869, %v4868
      %v4889 = vpack.c.b16 %v4871, %v4870
      %v4890 = vpack.c.b16 %v4873, %v4872
      %v4891 = vpack.c.b16 %v4875, %v4874
      %v4924 = vunpack.c.l.b16 %v4828
      %v4925 = vunpack.c.l.b16 %v4829
      %v4926 = vunpack.c.l.b16 %v4830
      %v4927 = vunpack.c.l.b16 %v4831
      %v4928 = vunpack.c.l.b16 %v4832
      %v4929 = vunpack.c.l.b16 %v4833
      %v4930 = vunpack.c.l.b16 %v4834
      %v4931 = vunpack.c.l.b16 %v4835
      %v4932 = vunpack.c.l.b16 %v4836
      %v4933 = vunpack.c.l.b16 %v4837
      %v4934 = vunpack.c.l.b16 %v4838
      %v4935 = vunpack.c.l.b16 %v4839
      %v4936 = vunpack.c.l.b16 %v4840
      %v4937 = vunpack.c.l.b16 %v4841
      %v4938 = vunpack.c.l.b16 %v4842
      %v4939 = vunpack.c.l.b16 %v4843
      %v4940 = vpack.c.b16 %v4925, %v4924
      %v4941 = vpack.c.b16 %v4927, %v4926
      %v4942 = vpack.c.b16 %v4929, %v4928
      %v4943 = vpack.c.b16 %v4931, %v4930
      %v4944 = vpack.c.b16 %v4933, %v4932
      %v4945 = vpack.c.b16 %v4935, %v4934
      %v4946 = vpack.c.b16 %v4937, %v4936
      %v4947 = vpack.c.b16 %v4939, %v4938
      %4956 = vmatprep.subr.bf16.mxu0 0
      %4957 = vmatpush1.bf16.msra.mxu0 %v4940
      %4958 = vmatprep.subr.bf16.mxu0 0
      %4959 = vmatpush1.bf16.msra.mxu0 %v4941
      %4960 = vmatprep.subr.bf16.mxu0 0
      %4961 = vmatpush1.bf16.msra.mxu0 %v4942
      %4962 = vmatprep.subr.bf16.mxu0 0
      %4963 = vmatpush1.bf16.msra.mxu0 %v4943
      %4964 = vmatprep.subr.bf16.mxu0 0
      %4965 = vmatpush1.bf16.msra.mxu0 %v4944
      %4966 = vmatprep.subr.bf16.mxu0 0
      %4967 = vmatpush1.bf16.msra.mxu0 %v4945
      %4968 = vmatprep.subr.bf16.mxu0 0
      %4969 = vmatpush1.bf16.msra.mxu0 %v4946
      %4970 = vmatprep.subr.bf16.mxu0 0
      %4971 = vmatpush1.bf16.msra.mxu0 %v4947
      %4972 = vmatprep.subr.bf16.mxu0 0
      %4973 = vmatpush1.bf16.msra.mxu0 0
      %4974 = vmatprep.subr.bf16.mxu0 0
      %4975 = vmatpush1.bf16.msra.mxu0 0
      %4976 = vmatprep.subr.bf16.mxu0 0
      %4977 = vmatpush1.bf16.msra.mxu0 0
      %4978 = vmatprep.subr.bf16.mxu0 0
      %4979 = vmatpush1.bf16.msra.mxu0 0
      %4980 = vmatprep.subr.bf16.mxu0 0
      %4981 = vmatpush1.bf16.msra.mxu0 0
      %4982 = vmatprep.subr.bf16.mxu0 0
      %4983 = vmatpush1.bf16.msra.mxu0 0
      %4984 = vmatprep.subr.bf16.mxu0 0
      %4985 = vmatpush1.bf16.msra.mxu0 0
      %4986 = vmatprep.subr.bf16.mxu0 0
      %4987 = vmatpush1.bf16.msra.mxu0 0
      %4988 = vmatprep.mubr.bf16.mxu0 0
      %4989 = vmatmul.mubr.bf16.gmra.mrb[0].mxu0 %v4876
      %v4990 = vpop.f32.mrb[0].mxu0
      %v4991 = vadd.f32 0.0, %v4990
      %v4992 = vpop.f32.mrb[0].mxu0
      %v4993 = vpop.f32.mrb[0].mxu0
      %v4994 = vadd.f32 0.0, %v4993
      %v4995 = vpop.f32.mrb[0].mxu0
      %4996 = vmatprep.mubr.bf16.mxu0 0
      %4997 = vmatmul.mubr.bf16.gmra.mrb[0].mxu0 %v4877
      %v4998 = vpop.f32.mrb[0].mxu0
      %v4999 = vadd.f32 0.0, %v4998
      %v5000 = vpop.f32.mrb[0].mxu0
      %v5001 = vpop.f32.mrb[0].mxu0
      %v5002 = vadd.f32 0.0, %v5001
      %v5003 = vpop.f32.mrb[0].mxu0
      %5004 = vmatprep.mubr.bf16.mxu0 0
      %5005 = vmatmul.mubr.bf16.gmra.mrb[0].mxu0 %v4878
      %v5006 = vpop.f32.mrb[0].mxu0
      %v5007 = vadd.f32 0.0, %v5006
      %v5008 = vpop.f32.mrb[0].mxu0
      %v5009 = vpop.f32.mrb[0].mxu0
      %v5010 = vadd.f32 0.0, %v5009
      %v5011 = vpop.f32.mrb[0].mxu0
      %5012 = vmatprep.mubr.bf16.mxu0 0
      %5013 = vmatmul.mubr.bf16.gmra.mrb[0].mxu0 %v4879
      %v5014 = vpop.f32.mrb[0].mxu0
      %v5015 = vadd.f32 0.0, %v5014
      %v5016 = vpop.f32.mrb[0].mxu0
      %v5017 = vpop.f32.mrb[0].mxu0
      %v5018 = vadd.f32 0.0, %v5017
      %v5019 = vpop.f32.mrb[0].mxu0
      %5020 = vmatprep.mubr.bf16.mxu0 0
      %5021 = vmatmul.mubr.bf16.gmra.mrb[0].mxu0 %v4880
      %v5022 = vpop.f32.mrb[0].mxu0
      %v5023 = vadd.f32 0.0, %v5022
      %v5024 = vpop.f32.mrb[0].mxu0
      %v5025 = vpop.f32.mrb[0].mxu0
      %v5026 = vadd.f32 0.0, %v5025
      %v5027 = vpop.f32.mrb[0].mxu0
      %5028 = vmatprep.mubr.bf16.mxu0 0
      %5029 = vmatmul.mubr.bf16.gmra.mrb[0].mxu0 %v4881
      %v5030 = vpop.f32.mrb[0].mxu0
      %v5031 = vadd.f32 0.0, %v5030
      %v5032 = vpop.f32.mrb[0].mxu0
      %v5033 = vpop.f32.mrb[0].mxu0
      %v5034 = vadd.f32 0.0, %v5033
      %v5035 = vpop.f32.mrb[0].mxu0
      %5036 = vmatprep.mubr.bf16.mxu0 0
      %5037 = vmatmul.mubr.bf16.gmra.mrb[0].mxu0 %v4882
      %v5038 = vpop.f32.mrb[0].mxu0
      %v5039 = vadd.f32 0.0, %v5038
      %v5040 = vpop.f32.mrb[0].mxu0
      %v5041 = vpop.f32.mrb[0].mxu0
      %v5042 = vadd.f32 0.0, %v5041
      %v5043 = vpop.f32.mrb[0].mxu0
      %5044 = vmatprep.mubr.bf16.mxu0 0
      %5045 = vmatmul.mubr.bf16.gmra.mrb[0].mxu0 %v4883
      %v5046 = vpop.f32.mrb[0].mxu0
      %v5047 = vadd.f32 0.0, %v5046
      %v5048 = vpop.f32.mrb[0].mxu0
      %v5049 = vpop.f32.mrb[0].mxu0
      %v5050 = vadd.f32 0.0, %v5049
      %v5051 = vpop.f32.mrb[0].mxu0
      %5052 = vmatprep.mubr.bf16.mxu0 0
      %5053 = vmatmul.mubr.bf16.gmra.mrb[0].mxu0 %v4884
      %v5054 = vpop.f32.mrb[0].mxu0
      %v5055 = vadd.f32 0.0, %v5054
      %v5056 = vpop.f32.mrb[0].mxu0
      %v5057 = vpop.f32.mrb[0].mxu0
      %v5058 = vadd.f32 0.0, %v5057
      %v5059 = vpop.f32.mrb[0].mxu0
      %5060 = vmatprep.mubr.bf16.mxu0 0
      %5061 = vmatmul.mubr.bf16.gmra.mrb[0].mxu0 %v4885
      %v5062 = vpop.f32.mrb[0].mxu0
      %v5063 = vadd.f32 0.0, %v5062
      %v5064 = vpop.f32.mrb[0].mxu0
      %v5065 = vpop.f32.mrb[0].mxu0
      %v5066 = vadd.f32 0.0, %v5065
      %v5067 = vpop.f32.mrb[0].mxu0
      %5068 = vmatprep.mubr.bf16.mxu0 0
      %5069 = vmatmul.mubr.bf16.gmra.mrb[0].mxu0 %v4886
      %v5070 = vpop.f32.mrb[0].mxu0
      %v5071 = vadd.f32 0.0, %v5070
      %v5072 = vpop.f32.mrb[0].mxu0
      %v5073 = vpop.f32.mrb[0].mxu0
      %v5074 = vadd.f32 0.0, %v5073
      %v5075 = vpop.f32.mrb[0].mxu0
      %5076 = vmatprep.mubr.bf16.mxu0 0
      %5077 = vmatmul.mubr.bf16.gmra.mrb[0].mxu0 %v4887
      %v5078 = vpop.f32.mrb[0].mxu0
      %v5079 = vadd.f32 0.0, %v5078
      %v5080 = vpop.f32.mrb[0].mxu0
      %v5081 = vpop.f32.mrb[0].mxu0
      %v5082 = vadd.f32 0.0, %v5081
      %v5083 = vpop.f32.mrb[0].mxu0
      %5084 = vmatprep.mubr.bf16.mxu0 0
      %5085 = vmatmul.mubr.bf16.gmra.mrb[0].mxu0 %v4888
      %v5086 = vpop.f32.mrb[0].mxu0
      %v5087 = vadd.f32 0.0, %v5086
      %v5088 = vpop.f32.mrb[0].mxu0
      %v5089 = vpop.f32.mrb[0].mxu0
      %v5090 = vadd.f32 0.0, %v5089
      %v5091 = vpop.f32.mrb[0].mxu0
      %5092 = vmatprep.mubr.bf16.mxu0 0
      %5093 = vmatmul.mubr.bf16.gmra.mrb[0].mxu0 %v4889
      %v5094 = vpop.f32.mrb[0].mxu0
      %v5095 = vadd.f32 0.0, %v5094
      %v5096 = vpop.f32.mrb[0].mxu0
      %v5097 = vpop.f32.mrb[0].mxu0
      %v5098 = vadd.f32 0.0, %v5097
      %v5099 = vpop.f32.mrb[0].mxu0
      %5100 = vmatprep.mubr.bf16.mxu0 0
      %5101 = vmatmul.mubr.bf16.gmra.mrb[0].mxu0 %v4890
      %v5102 = vpop.f32.mrb[0].mxu0
      %v5103 = vadd.f32 0.0, %v5102
      %v5104 = vpop.f32.mrb[0].mxu0
      %v5105 = vpop.f32.mrb[0].mxu0
      %v5106 = vadd.f32 0.0, %v5105
      %v5107 = vpop.f32.mrb[0].mxu0
      %5108 = vmatprep.mubr.bf16.mxu0 0
      %5109 = vmatmul.mubr.bf16.gmra.mrb[0].mxu0 %v4891
      %v5110 = vpop.f32.mrb[0].mxu0
      %v5111 = vadd.f32 0.0, %v5110
      %v5112 = vpop.f32.mrb[0].mxu0
      %v5113 = vpop.f32.mrb[0].mxu0
      %v5114 = vadd.f32 0.0, %v5113
      %v5115 = vpop.f32.mrb[0].mxu0
      %5116 = vdwg.mxu0
      %v5117 = vadd.f32 %v4619, %v4991
      %v5118 = vadd.f32 %v4620, %v4994
      %v5119 = vadd.f32 %v4621, %v4999
      %v5120 = vadd.f32 %v4622, %v5002
      %v5121 = vadd.f32 %v4623, %v5007
      %v5122 = vadd.f32 %v4624, %v5010
      %v5123 = vadd.f32 %v4625, %v5015
      %v5124 = vadd.f32 %v4626, %v5018
      %v5125 = vadd.f32 %v4627, %v5023
      %v5126 = vadd.f32 %v4628, %v5026
      %v5127 = vadd.f32 %v4629, %v5031
      %v5128 = vadd.f32 %v4630, %v5034
      %v5129 = vadd.f32 %v4631, %v5039
      %v5130 = vadd.f32 %v4632, %v5042
      %v5131 = vadd.f32 %v4633, %v5047
      %v5132 = vadd.f32 %v4634, %v5050
      %v5133 = vadd.f32 %v4635, %v5055
      %v5134 = vadd.f32 %v4636, %v5058
      %v5135 = vadd.f32 %v4637, %v5063
      %v5136 = vadd.f32 %v4638, %v5066
      %v5137 = vadd.f32 %v4639, %v5071
      %v5138 = vadd.f32 %v4640, %v5074
      %v5139 = vadd.f32 %v4641, %v5079
      %v5140 = vadd.f32 %v4642, %v5082
      %v5141 = vadd.f32 %v4643, %v5087
      %v5142 = vadd.f32 %v4644, %v5090
      %v5143 = vadd.f32 %v4645, %v5095
      %v5144 = vadd.f32 %v4646, %v5098
      %v5145 = vadd.f32 %v4647, %v5103
      %v5146 = vadd.f32 %v4648, %v5106
      %v5147 = vadd.f32 %v4649, %v5111
      %v5148 = vadd.f32 %v4650, %v5114
      %v5149 = vmax.f32 %v5117, 0.0
      %v5150 = vmax.f32 %v5118, 0.0
      %v5151 = vmax.f32 %v5119, 0.0
      %v5152 = vmax.f32 %v5120, 0.0
      %v5153 = vmax.f32 %v5121, 0.0
      %v5154 = vmax.f32 %v5122, 0.0
      %v5155 = vmax.f32 %v5123, 0.0
      %v5156 = vmax.f32 %v5124, 0.0
      %v5157 = vmax.f32 %v5125, 0.0
      %v5158 = vmax.f32 %v5126, 0.0
      %v5159 = vmax.f32 %v5127, 0.0
      %v5160 = vmax.f32 %v5128, 0.0
      %v5161 = vmax.f32 %v5129, 0.0
      %v5162 = vmax.f32 %v5130, 0.0
      %v5163 = vmax.f32 %v5131, 0.0
      %v5164 = vmax.f32 %v5132, 0.0
      %v5165 = vmax.f32 %v5133, 0.0
      %v5166 = vmax.f32 %v5134, 0.0
      %v5167 = vmax.f32 %v5135, 0.0
      %v5168 = vmax.f32 %v5136, 0.0
      %v5169 = vmax.f32 %v5137, 0.0
      %v5170 = vmax.f32 %v5138, 0.0
      %v5171 = vmax.f32 %v5139, 0.0
      %v5172 = vmax.f32 %v5140, 0.0
      %v5173 = vmax.f32 %v5141, 0.0
      %v5174 = vmax.f32 %v5142, 0.0
      %v5175 = vmax.f32 %v5143, 0.0
      %v5176 = vmax.f32 %v5144, 0.0
      %v5177 = vmax.f32 %v5145, 0.0
      %v5178 = vmax.f32 %v5146, 0.0
      %v5179 = vmax.f32 %v5147, 0.0
      %v5180 = vmax.f32 %v5148, 0.0
      %v5181 = vpack.c.bf16 %v5150, %v5149
      %v5182 = vpack.c.bf16 %v5152, %v5151
      %v5183 = vpack.c.bf16 %v5154, %v5153
      %v5184 = vpack.c.bf16 %v5156, %v5155
      %v5185 = vpack.c.bf16 %v5158, %v5157
      %v5186 = vpack.c.bf16 %v5160, %v5159
      %v5187 = vpack.c.bf16 %v5162, %v5161
      %v5188 = vpack.c.bf16 %v5164, %v5163
      %v5189 = vpack.c.bf16 %v5166, %v5165
      %v5190 = vpack.c.bf16 %v5168, %v5167
      %v5191 = vpack.c.bf16 %v5170, %v5169
      %v5192 = vpack.c.bf16 %v5172, %v5171
      %v5193 = vpack.c.bf16 %v5174, %v5173
      %v5194 = vpack.c.bf16 %v5176, %v5175
      %v5195 = vpack.c.bf16 %v5178, %v5177
      %v5196 = vpack.c.bf16 %v5180, %v5179
      %v5213 = vunpack.c.l.b16 %v5181
      %v5214 = vunpack.c.h.b16 %v5181
      %v5215 = vunpack.c.l.b16 %v5182
      %v5216 = vunpack.c.h.b16 %v5182
      %v5217 = vunpack.c.l.b16 %v5183
      %v5218 = vunpack.c.h.b16 %v5183
      %v5219 = vunpack.c.l.b16 %v5184
      %v5220 = vunpack.c.h.b16 %v5184
      %v5221 = vunpack.c.l.b16 %v5185
      %v5222 = vunpack.c.h.b16 %v5185
      %v5223 = vunpack.c.l.b16 %v5186
      %v5224 = vunpack.c.h.b16 %v5186
      %v5225 = vunpack.c.l.b16 %v5187
      %v5226 = vunpack.c.h.b16 %v5187
      %v5227 = vunpack.c.l.b16 %v5188
      %v5228 = vunpack.c.h.b16 %v5188
      %v5229 = vunpack.c.l.b16 %v5189
      %v5230 = vunpack.c.h.b16 %v5189
      %v5231 = vunpack.c.l.b16 %v5190
      %v5232 = vunpack.c.h.b16 %v5190
      %v5233 = vunpack.c.l.b16 %v5191
      %v5234 = vunpack.c.h.b16 %v5191
      %v5235 = vunpack.c.l.b16 %v5192
      %v5236 = vunpack.c.h.b16 %v5192
      %v5237 = vunpack.c.l.b16 %v5193
      %v5238 = vunpack.c.h.b16 %v5193
      %v5239 = vunpack.c.l.b16 %v5194
      %v5240 = vunpack.c.h.b16 %v5194
      %v5241 = vunpack.c.l.b16 %v5195
      %v5242 = vunpack.c.h.b16 %v5195
      %v5243 = vunpack.c.l.b16 %v5196
      %v5244 = vunpack.c.h.b16 %v5196
      %v5245 = vpack.c.b16 %v5213, %v5213
      %v5246 = vpack.c.b16 %v5214, %v5214
      %v5247 = vpack.c.b16 %v5215, %v5215
      %v5248 = vpack.c.b16 %v5216, %v5216
      %v5249 = vpack.c.b16 %v5217, %v5217
      %v5250 = vpack.c.b16 %v5218, %v5218
      %v5251 = vpack.c.b16 %v5219, %v5219
      %v5252 = vpack.c.b16 %v5220, %v5220
      %v5253 = vpack.c.b16 %v5221, %v5221
      %v5254 = vpack.c.b16 %v5222, %v5222
      %v5255 = vpack.c.b16 %v5223, %v5223
      %v5256 = vpack.c.b16 %v5224, %v5224
      %v5257 = vpack.c.b16 %v5225, %v5225
      %v5258 = vpack.c.b16 %v5226, %v5226
      %v5259 = vpack.c.b16 %v5227, %v5227
      %v5260 = vpack.c.b16 %v5228, %v5228
      %v5261 = vpack.c.b16 %v5229, %v5229
      %v5262 = vpack.c.b16 %v5230, %v5230
      %v5263 = vpack.c.b16 %v5231, %v5231
      %v5264 = vpack.c.b16 %v5232, %v5232
      %v5265 = vpack.c.b16 %v5233, %v5233
      %v5266 = vpack.c.b16 %v5234, %v5234
      %v5267 = vpack.c.b16 %v5235, %v5235
      %v5268 = vpack.c.b16 %v5236, %v5236
      %v5269 = vpack.c.b16 %v5237, %v5237
      %v5270 = vpack.c.b16 %v5238, %v5238
      %v5271 = vpack.c.b16 %v5239, %v5239
      %v5272 = vpack.c.b16 %v5240, %v5240
      %v5273 = vpack.c.b16 %v5241, %v5241
      %v5274 = vpack.c.b16 %v5242, %v5242
      %v5275 = vpack.c.b16 %v5243, %v5243
      %v5276 = vpack.c.b16 %v5244, %v5244
      %5309 = vst [vmem:[%s240] sm:$0xf] %v5245
      %5310 = vst [vmem:[%s240 + $0x4] sm:$0xf] %v5246
      %5311 = vst [vmem:[%s240 + $0x8] sm:$0xf] %v5247
      %5312 = vst [vmem:[%s240 + $0xc] sm:$0xf] %v5248
      %5313 = vst [vmem:[%s240 + $0x10] sm:$0xf] %v5249
      %5314 = vst [vmem:[%s240 + $0x14] sm:$0xf] %v5250
      %5315 = vst [vmem:[%s240 + $0x18] sm:$0xf] %v5251
      %5316 = vst [vmem:[%s240 + $0x1c] sm:$0xf] %v5252
      %5317 = vst [vmem:[%s240 + $0x20] sm:$0xf] %v5253
      %5318 = vst [vmem:[%s240 + $0x24] sm:$0xf] %v5254
      %5319 = vst [vmem:[%s240 + $0x28] sm:$0xf] %v5255
      %5320 = vst [vmem:[%s240 + $0x2c] sm:$0xf] %v5256
      %5321 = vst [vmem:[%s240 + $0x30] sm:$0xf] %v5257
      %5322 = vst [vmem:[%s240 + $0x34] sm:$0xf] %v5258
      %5323 = vst [vmem:[%s240 + $0x38] sm:$0xf] %v5259
      %5324 = vst [vmem:[%s240 + $0x3c] sm:$0xf] %v5260
      %5325 = vst [vmem:[%s240 + $0x40] sm:$0xf] %v5261
      %5326 = vst [vmem:[%s240 + $0x44] sm:$0xf] %v5262
      %5327 = vst [vmem:[%s240 + $0x48] sm:$0xf] %v5263
      %5328 = vst [vmem:[%s240 + $0x4c] sm:$0xf] %v5264
      %5329 = vst [vmem:[%s240 + $0x50] sm:$0xf] %v5265
      %5330 = vst [vmem:[%s240 + $0x54] sm:$0xf] %v5266
      %5331 = vst [vmem:[%s240 + $0x58] sm:$0xf] %v5267
      %5332 = vst [vmem:[%s240 + $0x5c] sm:$0xf] %v5268
      %5333 = vst [vmem:[%s240 + $0x60] sm:$0xf] %v5269
      %5334 = vst [vmem:[%s240 + $0x64] sm:$0xf] %v5270
      %5335 = vst [vmem:[%s240 + $0x68] sm:$0xf] %v5271
      %5336 = vst [vmem:[%s240 + $0x6c] sm:$0xf] %v5272
      %5337 = vst [vmem:[%s240 + $0x70] sm:$0xf] %v5273
      %5338 = vst [vmem:[%s240 + $0x74] sm:$0xf] %v5274
      %5339 = vst [vmem:[%s240 + $0x78] sm:$0xf] %v5275
      %5340 = vst [vmem:[%s240 + $0x7c] sm:$0xf] %v5276
      %s5341 = smul.u32 16, %s21
      %p5342 = scmp.lt.s32.totalorder %s19, 1
      %s5343 = scalar_select %p5342, %s19, 1
      %p5344 = scmp.lt.s32.totalorder %s5341, 15
      %s5345 = scalar_select %p5344, %s5341, 15
      %p5346 = scmp.lt.s32.totalorder %s20, 0
      %s5347 = scalar_select %p5346, %s20, 0
      %s5348 = smul.addr %s5345, 2
      %s5349 = sadd.s32 %s5347, %s5348
      %s5350 = smul.addr %s5343, 32
      %s5351 = sadd.s32 %s5349, %s5350
      %s5352 = smul.addr %s5351, 4
      %s5353 = scalar_lea.vmem %s3, %s5352
      // Predicated region
      $region33: #{residual_block_forward.2} parent=31 // pred_check
        %p5354 = pneg %p133
      $region34: #{residual_block_forward.2} parent=31 // pred_check_branch
        %5356 = sbr.rel (%p5354) target = $region36
      $region35: #{residual_block_forward.2} parent=31 // pred_region
        %s5357 = smul.u32 16, %s21
      $region36: #{residual_block_forward.2} parent=31 // pred_fallthru
        _
    $region32: #{residual_block_forward.2} parent=5 // pred_fallthru
      _
    %p5358 = scmp.le.s32.totalorder 2, %s9
    // Predicated region
    $region37: #{residual_block_forward.2} parent=5 // pred_check
      %p5359 = pneg %p5358
    $region38: #{residual_block_forward.2} parent=5 // pred_check_branch
      %5361 = sbr.rel (%p5359) target = $region40
    $region39: #{residual_block_forward.2} parent=5 // pred_region
      %s5362 = ssub.s32 %s9, 2
      // Predicated region
      $region41: #{residual_block_forward.2} parent=39 // pred_check
        %p5363 = pneg %p139
      $region42: #{residual_block_forward.2} parent=39 // pred_check_branch
        %5365 = sbr.rel (%p5363) target = $region44
      $region43: #{residual_block_forward.2} parent=39 // pred_region
        %s5366 = smul.u32 16, %s24
        %p5367 = scmp.lt.s32.totalorder %s22, 1
        %s5368 = scalar_select %p5367, %s22, 1
        %p5369 = scmp.lt.s32.totalorder %s5366, 15
        %s5370 = scalar_select %p5369, %s5366, 15
        %p5371 = scmp.lt.s32.totalorder %s23, 0
        %s5372 = scalar_select %p5371, %s23, 0
        %s5373 = smul.addr %s5370, 2
        %s5374 = sadd.s32 %s5372, %s5373
        %s5375 = smul.addr %s5368, 32
        %s5376 = sadd.s32 %s5374, %s5375
        %s5377 = smul.addr %s5376, 4
        %s5378 = scalar_lea.vmem %s3, %s5377
      $region44: #{residual_block_forward.2} parent=39 // pred_fallthru
        _
    $region40: #{residual_block_forward.2} parent=5 // pred_fallthru
      _
  $region6: #{residual_block_forward.2} parent=0 // loop_footer
    %s13 = sadd.s32 1, %s9
  $region7: #{residual_block_forward.2} parent=0 // loop_footer_branch
    %8 = sbr.rel target = $region3
  $region8: #{residual_block_forward.2} parent=0 // loop_exit
    _

// kernel: residual_block_forward.3
$region0: #{residual_block_forward.3}
  #allocation0 [shape = 'u32[]', space=smem, size = 0x4, offset = 0x4, fixed_abs, tag = 'smem constant byte address 0x4 - core index']
  #allocation1 [shape = 'u32[144,128]{1,0:T(1,128)}', space=vmem, size = 0x12000, scoped, tag = 'internal scratch']
  %s0 = inlined_call_operand.vmem [shape: bf16[2,18,18,128], index: 0, kind: input, shape index: {}]
  %s1 = inlined_call_operand.vmem [shape: bf16[9,128,128], index: 1, kind: input, shape index: {}]
  %s2 = inlined_call_operand.vmem [shape: f32[1,128], index: 2, kind: input, shape index: {}]
  %s3 = inlined_call_operand.vmem [shape: bf16[2,16,16,128], index: 3, kind: input, shape index: {}]
  %s4 = inlined_call_operand.vmem [shape: bf16[128,128], index: 4, kind: input, shape index: {}]
  %s5 = inlined_call_operand.vmem [shape: f32[1,128], index: 5, kind: input, shape index: {}]
  %s6 = inlined_call_operand.vmem [shape: f32[2,16,16,128], index: 6, kind: output, shape index: {}]
  %s7 = sld [smem:[#allocation0]]
  $region57: #{residual_block_forward.3} parent=0
    _
  %s9 = ssub.s32 1, %s7
  %s10 = scalar_select 0, %s9, %s7
  loop: start=0, step=1, limit=4
  $region2: #{residual_block_forward.3} parent=0 // loop_pre_header
    _
  $region3: #{residual_block_forward.3} parent=0 // loop_header
    %s12 = sphi 0, %s16
    %p13 = scmp.ge.s32.totalorder %s12, 4
    %s19 = sphi 0, %s38
    %s20 = sphi 0, %s34
    %s21 = sphi 0, %s30
    %s22 = sphi 0, %s19
    %s23 = sphi 0, %s20
    %s24 = sphi 0, %s21
    %s25 = sphi 0, %s22
    %s26 = sphi 0, %s23
    %s27 = sphi 0, %s24
    %s41 = sphi 0, %s43
    %s44 = sphi 0, %s41
    %s45 = sphi 0, %s44
    %s61 = sphi 0, %s45
    %s67 = sphi 0, %s69
    %s70 = sphi 0, %s67
    %s71 = sphi 0, %s70
    %s87 = sphi 0, %s71
    %s93 = sphi 0, %s95
    %s96 = sphi 0, %s93
    %s97 = sphi 0, %s96
    %s113 = sphi 0, %s97
    %s121 = sphi 0, %s123
    %s124 = sphi 0, %s121
    %s125 = sphi 0, %s124
    %s141 = sphi 0, %s125
    %s147 = sphi 0, %s149
    %s150 = sphi 0, %s147
    %s151 = sphi 0, %s150
    %s167 = sphi 0, %s151
    %s173 = sphi 0, %s175
    %s176 = sphi 0, %s173
    %s177 = sphi 0, %s176
    %s193 = sphi 0, %s177
    %s203 = sphi 0, %s205
    %s206 = sphi 0, %s203
    %s207 = sphi 0, %s206
    %s223 = sphi 0, %s207
  $region4: #{residual_block_forward.3} parent=0 // loop_header_branch
    %15 = sbr.rel (%p13) target = $region8
  $region5: #{residual_block_forward.3} parent=0 // loop_body
    %s17 = ssub.s32 %s12, 1
    %s18 = ssub.s32 %s12, 2
    %s28 = sadd.s32 1, %s21
    %p29 = scmp.ge.s32.totalorder %s28, 1
    %s30 = scalar_select %p29, 0, %s28
    %s31 = sadd.s32 1, %s20
    %s32 = scalar_select %p29, %s31, %s20
    %p33 = scmp.ge.s32.totalorder %s32, 1
    %s34 = scalar_select %p33, 0, %s32
    %s35 = sadd.s32 1, %s19
    %s36 = scalar_select %p33, %s35, %s19
    %p37 = scmp.ge.s32.totalorder %s36, 2
    %s38 = scalar_select %p37, 0, %s36
    %s39 = ssub.s32 %s19, %s38
    %p40 = scmp.eq.s32.totalorder %s39, 0
    %s42 = sadd.s32 %s41, 1
    %s43 = scalar_select %p40, %s41, %s42
    %p46 = pneg %p40
    %p47 = scmp.eq.s32.totalorder %s12, 1
    %p48 = por %p46, %p47
    %p49 = scmp.ne.s32.totalorder %s41, %s44
    %p50 = scmp.eq.s32.totalorder %s12, 0
    %p51 = por %p49, %p50
    %p52 = scmp.ne.s32.totalorder %s41, %s44
    %p53 = scmp.eq.s32.totalorder %s17, 1
    %p54 = por %p52, %p53
    %p55 = scmp.ne.s32.totalorder %s44, %s45
    %p56 = scmp.eq.s32.totalorder %s17, 0
    %p57 = por %p55, %p56
    %p58 = scmp.ne.s32.totalorder %s44, %s45
    %p59 = scmp.eq.s32.totalorder %s18, 1
    %p60 = por %p58, %p59
    %p62 = scmp.ne.s32.totalorder %s45, %s61
    %p63 = scmp.eq.s32.totalorder %s18, 0
    %p64 = por %p62, %p63
    %s65 = ssub.s32 %s20, %s34
    %p66 = scmp.eq.s32.totalorder %s65, 0
    %s68 = sadd.s32 %s67, 1
    %s69 = scalar_select %p66, %s67, %s68
    %p72 = pneg %p66
    %p73 = scmp.eq.s32.totalorder %s12, 1
    %p74 = por %p72, %p73
    %p75 = scmp.ne.s32.totalorder %s67, %s70
    %p76 = scmp.eq.s32.totalorder %s12, 0
    %p77 = por %p75, %p76
    %p78 = scmp.ne.s32.totalorder %s67, %s70
    %p79 = scmp.eq.s32.totalorder %s17, 1
    %p80 = por %p78, %p79
    %p81 = scmp.ne.s32.totalorder %s70, %s71
    %p82 = scmp.eq.s32.totalorder %s17, 0
    %p83 = por %p81, %p82
    %p84 = scmp.ne.s32.totalorder %s70, %s71
    %p85 = scmp.eq.s32.totalorder %s18, 1
    %p86 = por %p84, %p85
    %p88 = scmp.ne.s32.totalorder %s71, %s87
    %p89 = scmp.eq.s32.totalorder %s18, 0
    %p90 = por %p88, %p89
    %s91 = ssub.s32 %s20, %s34
    %p92 = scmp.eq.s32.totalorder %s91, 0
    %s94 = sadd.s32 %s93, 1
    %s95 = scalar_select %p92, %s93, %s94
    %p98 = pneg %p92
    %p99 = scmp.eq.s32.totalorder %s12, 1
    %p100 = por %p98, %p99
    %p101 = scmp.ne.s32.totalorder %s93, %s96
    %p102 = scmp.eq.s32.totalorder %s12, 0
    %p103 = por %p101, %p102
    %p104 = scmp.ne.s32.totalorder %s93, %s96
    %p105 = scmp.eq.s32.totalorder %s17, 1
    %p106 = por %p104, %p105
    %p107 = scmp.ne.s32.totalorder %s96, %s97
    %p108 = scmp.eq.s32.totalorder %s17, 0
    %p109 = por %p107, %p108
    %p110 = scmp.ne.s32.totalorder %s96, %s97
    %p111 = scmp.eq.s32.totalorder %s18, 1
    %p112 = por %p110, %p111
    %p114 = scmp.ne.s32.totalorder %s97, %s113
    %p115 = scmp.eq.s32.totalorder %s18, 0
    %p116 = por %p114, %p115
    %s117 = ssub.s32 %s19, %s38
    %s118 = ssub.s32 %s21, %s30
    %s119 = sor.u32 %s117, %s118
    %p120 = scmp.eq.s32.totalorder %s119, 0
    %s122 = sadd.s32 %s121, 1
    %s123 = scalar_select %p120, %s121, %s122
    %p126 = pneg %p120
    %p127 = scmp.eq.s32.totalorder %s12, 1
    %p128 = por %p126, %p127
    %p129 = scmp.ne.s32.totalorder %s121, %s124
    %p130 = scmp.eq.s32.totalorder %s12, 0
    %p131 = por %p129, %p130
    %p132 = scmp.ne.s32.totalorder %s121, %s124
    %p133 = scmp.eq.s32.totalorder %s17, 1
    %p134 = por %p132, %p133
    %p135 = scmp.ne.s32.totalorder %s124, %s125
    %p136 = scmp.eq.s32.totalorder %s17, 0
    %p137 = por %p135, %p136
    %p138 = scmp.ne.s32.totalorder %s124, %s125
    %p139 = scmp.eq.s32.totalorder %s18, 1
    %p140 = por %p138, %p139
    %p142 = scmp.ne.s32.totalorder %s125, %s141
    %p143 = scmp.eq.s32.totalorder %s18, 0
    %p144 = por %p142, %p143
    %s145 = ssub.s32 %s20, %s34
    %p146 = scmp.eq.s32.totalorder %s145, 0
    %s148 = sadd.s32 %s147, 1
    %s149 = scalar_select %p146, %s147, %s148
    %p152 = pneg %p146
    %p153 = scmp.eq.s32.totalorder %s12, 1
    %p154 = por %p152, %p153
    %p155 = scmp.ne.s32.totalorder %s147, %s150
    %p156 = scmp.eq.s32.totalorder %s12, 0
    %p157 = por %p155, %p156
    %p158 = scmp.ne.s32.totalorder %s147, %s150
    %p159 = scmp.eq.s32.totalorder %s17, 1
    %p160 = por %p158, %p159
    %p161 = scmp.ne.s32.totalorder %s150, %s151
    %p162 = scmp.eq.s32.totalorder %s17, 0
    %p163 = por %p161, %p162
    %p164 = scmp.ne.s32.totalorder %s150, %s151
    %p165 = scmp.eq.s32.totalorder %s18, 1
    %p166 = por %p164, %p165
    %p168 = scmp.ne.s32.totalorder %s151, %s167
    %p169 = scmp.eq.s32.totalorder %s18, 0
    %p170 = por %p168, %p169
    %s171 = ssub.s32 %s20, %s34
    %p172 = scmp.eq.s32.totalorder %s171, 0
    %s174 = sadd.s32 %s173, 1
    %s175 = scalar_select %p172, %s173, %s174
    %p178 = pneg %p172
    %p179 = scmp.eq.s32.totalorder %s12, 1
    %p180 = por %p178, %p179
    %p181 = scmp.ne.s32.totalorder %s173, %s176
    %p182 = scmp.eq.s32.totalorder %s12, 0
    %p183 = por %p181, %p182
    %p184 = scmp.ne.s32.totalorder %s173, %s176
    %p185 = scmp.eq.s32.totalorder %s17, 1
    %p186 = por %p184, %p185
    %p187 = scmp.ne.s32.totalorder %s176, %s177
    %p188 = scmp.eq.s32.totalorder %s17, 0
    %p189 = por %p187, %p188
    %p190 = scmp.ne.s32.totalorder %s176, %s177
    %p191 = scmp.eq.s32.totalorder %s18, 1
    %p192 = por %p190, %p191
    %p194 = scmp.ne.s32.totalorder %s177, %s193
    %p195 = scmp.eq.s32.totalorder %s18, 0
    %p196 = por %p194, %p195
    %s197 = ssub.s32 %s19, %s38
    %s198 = ssub.s32 %s21, %s30
    %s199 = sor.u32 %s197, %s198
    %s200 = ssub.s32 %s20, %s34
    %s201 = sor.u32 %s199, %s200
    %p202 = scmp.eq.s32.totalorder %s201, 0
    %s204 = sadd.s32 %s203, 1
    %s205 = scalar_select %p202, %s203, %s204
    %p208 = pneg %p202
    %p209 = scmp.eq.s32.totalorder %s12, 1
    %p210 = por %p208, %p209
    %p211 = scmp.ne.s32.totalorder %s203, %s206
    %p212 = scmp.eq.s32.totalorder %s12, 0
    %p213 = por %p211, %p212
    %p214 = scmp.ne.s32.totalorder %s203, %s206
    %p215 = scmp.eq.s32.totalorder %s17, 1
    %p216 = por %p214, %p215
    %p217 = scmp.ne.s32.totalorder %s206, %s207
    %p218 = scmp.eq.s32.totalorder %s17, 0
    %p219 = por %p217, %p218
    %p220 = scmp.ne.s32.totalorder %s206, %s207
    %p221 = scmp.eq.s32.totalorder %s18, 1
    %p222 = por %p220, %p221
    %p224 = scmp.ne.s32.totalorder %s207, %s223
    %p225 = scmp.eq.s32.totalorder %s18, 0
    %p226 = por %p224, %p225
    %p227 = scmp.le.s32.totalorder 1, %s12
    %p228 = scmp.lt.s32.totalorder %s12, 3
    %p229 = pnand %p227, %p228
    %p230 = pneg %p229
    // Predicated region
    $region9: #{residual_block_forward.3} parent=5 // pred_check
      _
    $region10: #{residual_block_forward.3} parent=5 // pred_check_branch
      %232 = sbr.rel (%p229) target = $region12
    $region11: #{residual_block_forward.3} parent=5 // pred_region
      %s233 = ssub.s32 %s12, 1
      // Predicated region
      $region13: #{residual_block_forward.3} parent=11 // pred_check
        %p234 = pneg %p83
      $region14: #{residual_block_forward.3} parent=11 // pred_check_branch
        %236 = sbr.rel (%p234) target = $region16
      $region15: #{residual_block_forward.3} parent=11 // pred_region
        %p237 = scmp.lt.s32.totalorder %s23, 0
        %s238 = scalar_select %p237, %s23, 0
        %s239 = smul.addr %s238, 4
        %s240 = scalar_lea.vmem %s1, %s239
      $region16: #{residual_block_forward.3} parent=11 // pred_fallthru
        _
      // Predicated region
      $region17: #{residual_block_forward.3} parent=11 // pred_check
        %p241 = pneg %p109
      $region18: #{residual_block_forward.3} parent=11 // pred_check_branch
        %243 = sbr.rel (%p241) target = $region20
      $region19: #{residual_block_forward.3} parent=11 // pred_region
        %p244 = scmp.lt.s32.totalorder %s23, 0
        %s245 = scalar_select %p244, %s23, 0
        %s246 = scalar_lea.vmem %s2, %s245
      $region20: #{residual_block_forward.3} parent=11 // pred_fallthru
        _
      // Predicated region
      $region21: #{residual_block_forward.3} parent=11 // pred_check
        %p247 = pneg %p163
      $region22: #{residual_block_forward.3} parent=11 // pred_check_branch
        %249 = sbr.rel (%p247) target = $region24
      $region23: #{residual_block_forward.3} parent=11 // pred_region
        %p250 = scmp.lt.s32.totalorder %s23, 0
        %s251 = scalar_select %p250, %s23, 0
        %s252 = smul.addr %s251, 4
        %s253 = scalar_lea.vmem %s4, %s252
      $region24: #{residual_block_forward.3} parent=11 // pred_fallthru
        _
      // Predicated region
      $region25: #{residual_block_forward.3} parent=11 // pred_check
        %p254 = pneg %p189
      $region26: #{residual_block_forward.3} parent=11 // pred_check_branch
        %256 = sbr.rel (%p254) target = $region28
      $region27: #{residual_block_forward.3} parent=11 // pred_region
        %p257 = scmp.lt.s32.totalorder %s23, 0
        %s258 = scalar_select %p257, %s23, 0
        %s259 = scalar_lea.vmem %s5, %s258
      $region28: #{residual_block_forward.3} parent=11 // pred_fallthru
        _
    $region12: #{residual_block_forward.3} parent=5 // pred_fallthru
      _
    %p260 = scmp.lt.s32.totalorder %s12, 2
    // Predicated region
    $region29: #{residual_block_forward.3} parent=5 // pred_check
      %p261 = pneg %p260
    $region30: #{residual_block_forward.3} parent=5 // pred_check_branch
      %263 = sbr.rel (%p261) target = $region32
    $region31: #{residual_block_forward.3} parent=5 // pred_region
      // Predicated region
      $region33: #{residual_block_forward.3} parent=31 // pred_check
        %p264 = pneg %p51
      $region34: #{residual_block_forward.3} parent=31 // pred_check_branch
        %266 = sbr.rel (%p264) target = $region36
      $region35: #{residual_block_forward.3} parent=31 // pred_region
        %p267 = scmp.lt.s32.totalorder %s19, 1
        %s268 = scalar_select %p267, %s19, 1
        %s269 = smul.addr %s268, 54
        %s270 = smul.addr %s269, 4
        %s271 = scalar_lea.vmem %s0, %s270
      $region36: #{residual_block_forward.3} parent=31 // pred_fallthru
        _
      // Predicated region
      $region37: #{residual_block_forward.3} parent=31 // pred_check
        %p272 = pneg %p131
      $region38: #{residual_block_forward.3} parent=31 // pred_check_branch
        %274 = sbr.rel (%p272) target = $region40
      $region39: #{residual_block_forward.3} parent=31 // pred_region
        %s275 = smul.u32 16, %s21
        %p276 = scmp.lt.s32.totalorder %s19, 1
        %s277 = scalar_select %p276, %s19, 1
        %p278 = scmp.lt.s32.totalorder %s275, 15
        %s279 = scalar_select %p278, %s275, 15
        %s280 = smul.addr %s279, 2
        %s281 = smul.addr %s277, 32
        %s282 = sadd.s32 %s280, %s281
        %s283 = smul.addr %s282, 4
        %s284 = scalar_lea.vmem %s3, %s283
        %s285 = smul.u32 16, %s21
      $region40: #{residual_block_forward.3} parent=31 // pred_fallthru
        _
    $region32: #{residual_block_forward.3} parent=5 // pred_fallthru
      _
    %p286 = scmp.le.s32.totalorder 1, %s12
    %p287 = scmp.lt.s32.totalorder %s12, 3
    %p288 = pnand %p286, %p287
    %p289 = pneg %p288
    // Predicated region
    $region41: #{residual_block_forward.3} parent=5 // pred_check
      _
    $region42: #{residual_block_forward.3} parent=5 // pred_check_branch
      %291 = sbr.rel (%p288) target = $region44
    $region43: #{residual_block_forward.3} parent=5 // pred_region
      %s292 = ssub.s32 %s12, 1
      %p293 = scmp.lt.s32.totalorder %s22, 1
      %s294 = scalar_select %p293, %s22, 1
      %s295 = smul.addr %s294, 54
      %s296 = smul.addr %s295, 4
      %s297 = scalar_lea.vmem %s0, %s296
      %p298 = pneg %p57
      %p299 = pneg %p54
      %p300 = scmp.lt.s32.totalorder %s23, 0
      %s301 = scalar_select %p300, %s23, 0
      %s302 = smul.addr %s301, 4
      %s303 = scalar_lea.vmem %s1, %s302
      %p304 = pneg %p83
      %p305 = pneg %p80
      %p306 = scmp.lt.s32.totalorder %s23, 0
      %s307 = scalar_select %p306, %s23, 0
      %s308 = scalar_lea.vmem %s2, %s307
      %p309 = pneg %p109
      %p310 = pneg %p106
      %s311 = smul.u32 16, %s24
      %p312 = scmp.lt.s32.totalorder %s22, 1
      %s313 = scalar_select %p312, %s22, 1
      %p314 = scmp.lt.s32.totalorder %s311, 15
      %s315 = scalar_select %p314, %s311, 15
      %s316 = smul.addr %s315, 2
      %s317 = smul.addr %s313, 32
      %s318 = sadd.s32 %s316, %s317
      %s319 = smul.addr %s318, 4
      %s320 = scalar_lea.vmem %s3, %s319
      %p321 = pneg %p137
      %p322 = pneg %p134
      %p323 = scmp.lt.s32.totalorder %s23, 0
      %s324 = scalar_select %p323, %s23, 0
      %s325 = smul.addr %s324, 4
      %s326 = scalar_lea.vmem %s4, %s325
      %p327 = pneg %p163
      %p328 = pneg %p160
      %p329 = scmp.lt.s32.totalorder %s23, 0
      %s330 = scalar_select %p329, %s23, 0
      %s331 = scalar_lea.vmem %s5, %s330
      %p332 = pneg %p189
      %p333 = pneg %p186
      %p334 = pneg %p219
      %p335 = pneg %p216
      %s336 = smul.u32 16, %s24
      %p337 = scmp.lt.s32.totalorder %s22, 1
      %s338 = scalar_select %p337, %s22, 1
      %p339 = scmp.lt.s32.totalorder %s336, 15
      %s340 = scalar_select %p339, %s336, 15
      %p341 = scmp.lt.s32.totalorder %s23, 0
      %s342 = scalar_select %p341, %s23, 0
      %s343 = smul.addr %s340, 2
      %s344 = sadd.s32 %s342, %s343
      %s345 = smul.addr %s338, 32
      %s346 = sadd.s32 %s344, %s345
      %s347 = smul.addr %s346, 8
      %s348 = scalar_lea.vmem %s6, %s347
      %p349 = scmp.lt.s32.totalorder %s22, 1
      %s350 = scalar_select %p349, %s22, 1
      %s351 = smul.addr %s350, 54
      %s352 = smul.addr %s351, 4
      %s353 = scalar_lea.vmem %s0, %s352
      %p354 = scmp.lt.s32.totalorder %s23, 0
      %s355 = scalar_select %p354, %s23, 0
      %s356 = smul.addr %s355, 4
      %s357 = scalar_lea.vmem %s1, %s356
      %p358 = scmp.lt.s32.totalorder %s23, 0
      %s359 = scalar_select %p358, %s23, 0
      %s360 = scalar_lea.vmem %s2, %s359
      %s361 = smul.u32 16, %s24
      %p362 = scmp.lt.s32.totalorder %s22, 1
      %s363 = scalar_select %p362, %s22, 1
      %p364 = scmp.lt.s32.totalorder %s361, 15
      %s365 = scalar_select %p364, %s361, 15
      %s366 = smul.addr %s365, 2
      %s367 = smul.addr %s363, 32
      %s368 = sadd.s32 %s366, %s367
      %s369 = smul.addr %s368, 4
      %s370 = scalar_lea.vmem %s3, %s369
      %s371 = smul.u32 16, %s24
      %p372 = scmp.lt.s32.totalorder %s23, 0
      %s373 = scalar_select %p372, %s23, 0
      %s374 = smul.addr %s373, 4
      %s375 = scalar_lea.vmem %s4, %s374
      %p376 = scmp.lt.s32.totalorder %s23, 0
      %s377 = scalar_select %p376, %s23, 0
      %s378 = scalar_lea.vmem %s5, %s377
      %s379 = smul.u32 16, %s24
      %p380 = scmp.lt.s32.totalorder %s22, 1
      %s381 = scalar_select %p380, %s22, 1
      %p382 = scmp.lt.s32.totalorder %s379, 15
      %s383 = scalar_select %p382, %s379, 15
      %p384 = scmp.lt.s32.totalorder %s23, 0
      %s385 = scalar_select %p384, %s23, 0
      %s386 = smul.addr %s383, 2
      %s387 = sadd.s32 %s385, %s386
      %s388 = smul.addr %s381, 32
      %s389 = sadd.s32 %s387, %s388
      %s390 = smul.addr %s389, 8
      %s391 = scalar_lea.vmem %s6, %s390
      %s392 = smul.u32 16, %s24
      %s394 = smul.u32 %s24, 16
      %s395 = smul.u32 %s394, 3
      %s396 = smul.addr %s395, 4
      %s397 = scalar_lea.vmem %s353, %s396
      %v398 = vld [vmem:[%s397] sm:$0xf]
      %v399 = vld [vmem:[%s397 + $0x4] sm:$0xf]
      %v400 = vld [vmem:[%s397 + $0xc] sm:$0xf]
      %v401 = vld [vmem:[%s397 + $0x10] sm:$0xf]
      %v402 = vld [vmem:[%s397 + $0x18] sm:$0xf]
      %v403 = vld [vmem:[%s397 + $0x1c] sm:$0xf]
      %v404 = vld [vmem:[%s397 + $0x24] sm:$0xf]
      %v405 = vld [vmem:[%s397 + $0x28] sm:$0xf]
      %v406 = vld [vmem:[%s397 + $0x30] sm:$0xf]
      %v407 = vld [vmem:[%s397 + $0x34] sm:$0xf]
      %v408 = vld [vmem:[%s397 + $0x3c] sm:$0xf]
      %v409 = vld [vmem:[%s397 + $0x40] sm:$0xf]
      %v410 = vld [vmem:[%s397 + $0x48] sm:$0xf]
      %v411 = vld [vmem:[%s397 + $0x4c] sm:$0xf]
      %v412 = vld [vmem:[%s397 + $0x54] sm:$0xf]
      %v413 = vld [vmem:[%s397 + $0x58] sm:$0xf]
      %v414 = vld [vmem:[%s397 + $0x60] sm:$0xf]
      %v415 = vld [vmem:[%s397 + $0x64] sm:$0xf]
      %v416 = vld [vmem:[%s397 + $0x6c] sm:$0xf]
      %v417 = vld [vmem:[%s397 + $0x70] sm:$0xf]
      %v418 = vld [vmem:[%s397 + $0x78] sm:$0xf]
      %v419 = vld [vmem:[%s397 + $0x7c] sm:$0xf]
      %v420 = vld [vmem:[%s397 + $0x84] sm:$0xf]
      %v421 = vld [vmem:[%s397 + $0x88] sm:$0xf]
      %v422 = vld [vmem:[%s397 + $0x90] sm:$0xf]
      %v423 = vld [vmem:[%s397 + $0x94] sm:$0xf]
      %v424 = vld [vmem:[%s397 + $0x9c] sm:$0xf]
      %v425 = vld [vmem:[%s397 + $0xa0] sm:$0xf]
      %v426 = vld [vmem:[%s397 + $0xa8] sm:$0xf]
      %v427 = vld [vmem:[%s397 + $0xac] sm:$0xf]
      %v428 = vld [vmem:[%s397 + $0xb4] sm:$0xf]
      %v429 = vld [vmem:[%s397 + $0xb8] sm:$0xf]
      %v430 = vld [vmem:[%s357] sm:$0xf]
      %v431 = vld [vmem:[%s357 + $0x4] sm:$0xf]
      %v432 = vld [vmem:[%s357 + $0x8] sm:$0xf]
      %v433 = vld [vmem:[%s357 + $0xc] sm:$0xf]
      %v434 = vld [vmem:[%s357 + $0x10] sm:$0xf]
      %v435 = vld [vmem:[%s357 + $0x14] sm:$0xf]
      %v436 = vld [vmem:[%s357 + $0x18] sm:$0xf]
      %v437 = vld [vmem:[%s357 + $0x1c] sm:$0xf]
      %v438 = vld [vmem:[%s357 + $0x20] sm:$0xf]
      %v439 = vld [vmem:[%s357 + $0x24] sm:$0xf]
      %v440 = vld [vmem:[%s357 + $0x28] sm:$0xf]
      %v441 = vld [vmem:[%s357 + $0x2c] sm:$0xf]
      %v442 = vld [vmem:[%s357 + $0x30] sm:$0xf]
      %v443 = vld [vmem:[%s357 + $0x34] sm:$0xf]
      %v444 = vld [vmem:[%s357 + $0x38] sm:$0xf]
      %v445 = vld [vmem:[%s357 + $0x3c] sm:$0xf]
      %v446 = vld [vmem:[%s360] sm:$0x1]
      %v448 = vlaneseq
      %v449 = vshrl.u32 %v448, 7
      %v450 = vsub.s32 0, %v449
      %v451 = vrot.slane %v446, %v450
      %v485 = vunpack.c.l.b16 %v398
      %v486 = vunpack.c.l.b16 %v399
      %v487 = vunpack.c.l.b16 %v400
      %v488 = vunpack.c.l.b16 %v401
      %v489 = vunpack.c.l.b16 %v402
      %v490 = vunpack.c.l.b16 %v403
      %v491 = vunpack.c.l.b16 %v404
      %v492 = vunpack.c.l.b16 %v405
      %v493 = vunpack.c.l.b16 %v406
      %v494 = vunpack.c.l.b16 %v407
      %v495 = vunpack.c.l.b16 %v408
      %v496 = vunpack.c.l.b16 %v409
      %v497 = vunpack.c.l.b16 %v410
      %v498 = vunpack.c.l.b16 %v411
      %v499 = vunpack.c.l.b16 %v412
      %v500 = vunpack.c.l.b16 %v413
      %v501 = vunpack.c.l.b16 %v414
      %v502 = vunpack.c.l.b16 %v415
      %v503 = vunpack.c.l.b16 %v416
      %v504 = vunpack.c.l.b16 %v417
      %v505 = vunpack.c.l.b16 %v418
      %v506 = vunpack.c.l.b16 %v419
      %v507 = vunpack.c.l.b16 %v420
      %v508 = vunpack.c.l.b16 %v421
      %v509 = vunpack.c.l.b16 %v422
      %v510 = vunpack.c.l.b16 %v423
      %v511 = vunpack.c.l.b16 %v424
      %v512 = vunpack.c.l.b16 %v425
      %v513 = vunpack.c.l.b16 %v426
      %v514 = vunpack.c.l.b16 %v427
      %v515 = vunpack.c.l.b16 %v428
      %v516 = vunpack.c.l.b16 %v429
      %v517 = vpack.c.b16 %v486, %v485
      %v518 = vpack.c.b16 %v488, %v487
      %v519 = vpack.c.b16 %v490, %v489
      %v520 = vpack.c.b16 %v492, %v491
      %v521 = vpack.c.b16 %v494, %v493
      %v522 = vpack.c.b16 %v496, %v495
      %v523 = vpack.c.b16 %v498, %v497
      %v524 = vpack.c.b16 %v500, %v499
      %v525 = vpack.c.b16 %v502, %v501
      %v526 = vpack.c.b16 %v504, %v503
      %v527 = vpack.c.b16 %v506, %v505
      %v528 = vpack.c.b16 %v508, %v507
      %v529 = vpack.c.b16 %v510, %v509
      %v530 = vpack.c.b16 %v512, %v511
      %v531 = vpack.c.b16 %v514, %v513
      %v532 = vpack.c.b16 %v516, %v515
      %v565 = vunpack.c.l.b16 %v430
      %v566 = vunpack.c.l.b16 %v431
      %v567 = vunpack.c.l.b16 %v432
      %v568 = vunpack.c.l.b16 %v433
      %v569 = vunpack.c.l.b16 %v434
      %v570 = vunpack.c.l.b16 %v435
      %v571 = vunpack.c.l.b16 %v436
      %v572 = vunpack.c.l.b16 %v437
      %v573 = vunpack.c.l.b16 %v438
      %v574 = vunpack.c.l.b16 %v439
      %v575 = vunpack.c.l.b16 %v440
      %v576 = vunpack.c.l.b16 %v441
      %v577 = vunpack.c.l.b16 %v442
      %v578 = vunpack.c.l.b16 %v443
      %v579 = vunpack.c.l.b16 %v444
      %v580 = vunpack.c.l.b16 %v445
      %v581 = vpack.c.b16 %v566, %v565
      %v582 = vpack.c.b16 %v568, %v567
      %v583 = vpack.c.b16 %v570, %v569
      %v584 = vpack.c.b16 %v572, %v571
      %v585 = vpack.c.b16 %v574, %v573
      %v586 = vpack.c.b16 %v576, %v575
      %v587 = vpack.c.b16 %v578, %v577
      %v588 = vpack.c.b16 %v580, %v579
      %597 = vmatprep.subr.bf16.mxu0 0
      %598 = vmatpush1.bf16.msra.mxu0 %v581
      %599 = vmatprep.subr.bf16.mxu0 0
      %600 = vmatpush1.bf16.msra.mxu0 %v582
      %601 = vmatprep.subr.bf16.mxu0 0
      %602 = vmatpush1.bf16.msra.mxu0 %v583
      %603 = vmatprep.subr.bf16.mxu0 0
      %604 = vmatpush1.bf16.msra.mxu0 %v584
      %605 = vmatprep.subr.bf16.mxu0 0
      %606 = vmatpush1.bf16.msra.mxu0 %v585
      %607 = vmatprep.subr.bf16.mxu0 0
      %608 = vmatpush1.bf16.msra.mxu0 %v586
      %609 = vmatprep.subr.bf16.mxu0 0
      %610 = vmatpush1.bf16.msra.mxu0 %v587
      %611 = vmatprep.subr.bf16.mxu0 0
      %612 = vmatpush1.bf16.msra.mxu0 %v588
      %613 = vmatprep.subr.bf16.mxu0 0
      %614 = vmatpush1.bf16.msra.mxu0 0
      %615 = vmatprep.subr.bf16.mxu0 0
      %616 = vmatpush1.bf16.msra.mxu0 0
      %617 = vmatprep.subr.bf16.mxu0 0
      %618 = vmatpush1.bf16.msra.mxu0 0
      %619 = vmatprep.subr.bf16.mxu0 0
      %620 = vmatpush1.bf16.msra.mxu0 0
      %621 = vmatprep.subr.bf16.mxu0 0
      %622 = vmatpush1.bf16.msra.mxu0 0
      %623 = vmatprep.subr.bf16.mxu0 0
      %624 = vmatpush1.bf16.msra.mxu0 0
      %625 = vmatprep.subr.bf16.mxu0 0
      %626 = vmatpush1.bf16.msra.mxu0 0
      %627 = vmatprep.subr.bf16.mxu0 0
      %628 = vmatpush1.bf16.msra.mxu0 0
      %629 = vmatprep.mubr.bf16.mxu0 0
      %630 = vmatmul.mubr.bf16.gmra.mrb[0].mxu0 %v517
      %v631 = vpop.f32.mrb[0].mxu0
      %v632 = vadd.f32 %v451, %v631
      %v633 = vpop.f32.mrb[0].mxu0
      %v634 = vpop.f32.mrb[0].mxu0
      %v635 = vadd.f32 %v451, %v634
      %v636 = vpop.f32.mrb[0].mxu0
      %637 = vmatprep.mubr.bf16.mxu0 0
      %638 = vmatmul.mubr.bf16.gmra.mrb[0].mxu0 %v518
      %v639 = vpop.f32.mrb[0].mxu0
      %v640 = vadd.f32 %v451, %v639
      %v641 = vpop.f32.mrb[0].mxu0
      %v642 = vpop.f32.mrb[0].mxu0
      %v643 = vadd.f32 %v451, %v642
      %v644 = vpop.f32.mrb[0].mxu0
      %645 = vmatprep.mubr.bf16.mxu0 0
      %646 = vmatmul.mubr.bf16.gmra.mrb[0].mxu0 %v519
      %v647 = vpop.f32.mrb[0].mxu0
      %v648 = vadd.f32 %v451, %v647
      %v649 = vpop.f32.mrb[0].mxu0
      %v650 = vpop.f32.mrb[0].mxu0
      %v651 = vadd.f32 %v451, %v650
      %v652 = vpop.f32.mrb[0].mxu0
      %653 = vmatprep.mubr.bf16.mxu0 0
      %654 = vmatmul.mubr.bf16.gmra.mrb[0].mxu0 %v520
      %v655 = vpop.f32.mrb[0].mxu0
      %v656 = vadd.f32 %v451, %v655
      %v657 = vpop.f32.mrb[0].mxu0
      %v658 = vpop.f32.mrb[0].mxu0
      %v659 = vadd.f32 %v451, %v658
      %v660 = vpop.f32.mrb[0].mxu0
      %661 = vmatprep.mubr.bf16.mxu0 0
      %662 = vmatmul.mubr.bf16.gmra.mrb[0].mxu0 %v521
      %v663 = vpop.f32.mrb[0].mxu0
      %v664 = vadd.f32 %v451, %v663
      %v665 = vpop.f32.mrb[0].mxu0
      %v666 = vpop.f32.mrb[0].mxu0
      %v667 = vadd.f32 %v451, %v666
      %v668 = vpop.f32.mrb[0].mxu0
      %669 = vmatprep.mubr.bf16.mxu0 0
      %670 = vmatmul.mubr.bf16.gmra.mrb[0].mxu0 %v522
      %v671 = vpop.f32.mrb[0].mxu0
      %v672 = vadd.f32 %v451, %v671
      %v673 = vpop.f32.mrb[0].mxu0
      %v674 = vpop.f32.mrb[0].mxu0
      %v675 = vadd.f32 %v451, %v674
      %v676 = vpop.f32.mrb[0].mxu0
      %677 = vmatprep.mubr.bf16.mxu0 0
      %678 = vmatmul.mubr.bf16.gmra.mrb[0].mxu0 %v523
      %v679 = vpop.f32.mrb[0].mxu0
      %v680 = vadd.f32 %v451, %v679
      %v681 = vpop.f32.mrb[0].mxu0
      %v682 = vpop.f32.mrb[0].mxu0
      %v683 = vadd.f32 %v451, %v682
      %v684 = vpop.f32.mrb[0].mxu0
      %685 = vmatprep.mubr.bf16.mxu0 0
      %686 = vmatmul.mubr.bf16.gmra.mrb[0].mxu0 %v524
      %v687 = vpop.f32.mrb[0].mxu0
      %v688 = vadd.f32 %v451, %v687
      %v689 = vpop.f32.mrb[0].mxu0
      %v690 = vpop.f32.mrb[0].mxu0
      %v691 = vadd.f32 %v451, %v690
      %v692 = vpop.f32.mrb[0].mxu0
      %693 = vmatprep.mubr.bf16.mxu0 0
      %694 = vmatmul.mubr.bf16.gmra.mrb[0].mxu0 %v525
      %v695 = vpop.f32.mrb[0].mxu0
      %v696 = vadd.f32 %v451, %v695
      %v697 = vpop.f32.mrb[0].mxu0
      %v698 = vpop.f32.mrb[0].mxu0
      %v699 = vadd.f32 %v451, %v698
      %v700 = vpop.f32.mrb[0].mxu0
      %701 = vmatprep.mubr.bf16.mxu0 0
      %702 = vmatmul.mubr.bf16.gmra.mrb[0].mxu0 %v526
      %v703 = vpop.f32.mrb[0].mxu0
      %v704 = vadd.f32 %v451, %v703
      %v705 = vpop.f32.mrb[0].mxu0
      %v706 = vpop.f32.mrb[0].mxu0
      %v707 = vadd.f32 %v451, %v706
      %v708 = vpop.f32.mrb[0].mxu0
      %709 = vmatprep.mubr.bf16.mxu0 0
      %710 = vmatmul.mubr.bf16.gmra.mrb[0].mxu0 %v527
      %v711 = vpop.f32.mrb[0].mxu0
      %v712 = vadd.f32 %v451, %v711
      %v713 = vpop.f32.mrb[0].mxu0
      %v714 = vpop.f32.mrb[0].mxu0
      %v715 = vadd.f32 %v451, %v714
      %v716 = vpop.f32.mrb[0].mxu0
      %717 = vmatprep.mubr.bf16.mxu0 0
      %718 = vmatmul.mubr.bf16.gmra.mrb[0].mxu0 %v528
      %v719 = vpop.f32.mrb[0].mxu0
      %v720 = vadd.f32 %v451, %v719
      %v721 = vpop.f32.mrb[0].mxu0
      %v722 = vpop.f32.mrb[0].mxu0
      %v723 = vadd.f32 %v451, %v722
      %v724 = vpop.f32.mrb[0].mxu0
      %725 = vmatprep.mubr.bf16.mxu0 0
      %726 = vmatmul.mubr.bf16.gmra.mrb[0].mxu0 %v529
      %v727 = vpop.f32.mrb[0].mxu0
      %v728 = vadd.f32 %v451, %v727
      %v729 = vpop.f32.mrb[0].mxu0
      %v730 = vpop.f32.mrb[0].mxu0
      %v731 = vadd.f32 %v451, %v730
      %v732 = vpop.f32.mrb[0].mxu0
      %733 = vmatprep.mubr.bf16.mxu0 0
      %734 = vmatmul.mubr.bf16.gmra.mrb[0].mxu0 %v530
      %v735 = vpop.f32.mrb[0].mxu0
      %v736 = vadd.f32 %v451, %v735
      %v737 = vpop.f32.mrb[0].mxu0
      %v738 = vpop.f32.mrb[0].mxu0
      %v739 = vadd.f32 %v451, %v738
      %v740 = vpop.f32.mrb[0].mxu0
      %741 = vmatprep.mubr.bf16.mxu0 0
      %742 = vmatmul.mubr.bf16.gmra.mrb[0].mxu0 %v531
      %v743 = vpop.f32.mrb[0].mxu0
      %v744 = vadd.f32 %v451, %v743
      %v745 = vpop.f32.mrb[0].mxu0
      %v746 = vpop.f32.mrb[0].mxu0
      %v747 = vadd.f32 %v451, %v746
      %v748 = vpop.f32.mrb[0].mxu0
      %749 = vmatprep.mubr.bf16.mxu0 0
      %750 = vmatmul.mubr.bf16.gmra.mrb[0].mxu0 %v532
      %v751 = vpop.f32.mrb[0].mxu0
      %v752 = vadd.f32 %v451, %v751
      %v753 = vpop.f32.mrb[0].mxu0
      %v754 = vpop.f32.mrb[0].mxu0
      %v755 = vadd.f32 %v451, %v754
      %v756 = vpop.f32.mrb[0].mxu0
      %757 = vdwg.mxu0
      %v758 = vld [vmem:[%s397] sm:$0xf]
      %v759 = vld [vmem:[%s397 + $0x4] sm:$0xf]
      %v760 = vld [vmem:[%s397 + $0x8] sm:$0x1]
      %v761 = vld [vmem:[%s397 + $0xc] sm:$0xf]
      %v762 = vld [vmem:[%s397 + $0x10] sm:$0xf]
      %v763 = vld [vmem:[%s397 + $0x14] sm:$0x1]
      %v764 = vld [vmem:[%s397 + $0x18] sm:$0xf]
      %v765 = vld [vmem:[%s397 + $0x1c] sm:$0xf]
      %v766 = vld [vmem:[%s397 + $0x20] sm:$0x1]
      %v767 = vld [vmem:[%s397 + $0x24] sm:$0xf]
      %v768 = vld [vmem:[%s397 + $0x28] sm:$0xf]
      %v769 = vld [vmem:[%s397 + $0x2c] sm:$0x1]
      %v770 = vld [vmem:[%s397 + $0x30] sm:$0xf]
      %v771 = vld [vmem:[%s397 + $0x34] sm:$0xf]
      %v772 = vld [vmem:[%s397 + $0x38] sm:$0x1]
      %v773 = vld [vmem:[%s397 + $0x3c] sm:$0xf]
      %v774 = vld [vmem:[%s397 + $0x40] sm:$0xf]
      %v775 = vld [vmem:[%s397 + $0x44] sm:$0x1]
      %v776 = vld [vmem:[%s397 + $0x48] sm:$0xf]
      %v777 = vld [vmem:[%s397 + $0x4c] sm:$0xf]
      %v778 = vld [vmem:[%s397 + $0x50] sm:$0x1]
      %v779 = vld [vmem:[%s397 + $0x54] sm:$0xf]
      %v780 = vld [vmem:[%s397 + $0x58] sm:$0xf]
      %v781 = vld [vmem:[%s397 + $0x5c] sm:$0x1]
      %v782 = vld [vmem:[%s397 + $0x60] sm:$0xf]
      %v783 = vld [vmem:[%s397 + $0x64] sm:$0xf]
      %v784 = vld [vmem:[%s397 + $0x68] sm:$0x1]
      %v785 = vld [vmem:[%s397 + $0x6c] sm:$0xf]
      %v786 = vld [vmem:[%s397 + $0x70] sm:$0xf]
      %v787 = vld [vmem:[%s397 + $0x74] sm:$0x1]
      %v788 = vld [vmem:[%s397 + $0x78] sm:$0xf]
      %v789 = vld [vmem:[%s397 + $0x7c] sm:$0xf]
      %v790 = vld [vmem:[%s397 + $0x80] sm:$0x1]
      %v791 = vld [vmem:[%s397 + $0x84] sm:$0xf]
      %v792 = vld [vmem:[%s397 + $0x88] sm:$0xf]
      %v793 = vld [vmem:[%s397 + $0x8c] sm:$0x1]
      %v794 = vld [vmem:[%s397 + $0x90] sm:$0xf]
      %v795 = vld [vmem:[%s397 + $0x94] sm:$0xf]
      %v796 = vld [vmem:[%s397 + $0x98] sm:$0x1]
      %v797 = vld [vmem:[%s397 + $0x9c] sm:$0xf]
      %v798 = vld [vmem:[%s397 + $0xa0] sm:$0xf]
      %v799 = vld [vmem:[%s397 + $0xa4] sm:$0x1]
      %v800 = vld [vmem:[%s397 + $0xa8] sm:$0xf]
      %v801 = vld [vmem:[%s397 + $0xac] sm:$0xf]
      %v802 = vld [vmem:[%s397 + $0xb0] sm:$0x1]
      %v803 = vld [vmem:[%s397 + $0xb4] sm:$0xf]
      %v804 = vld [vmem:[%s397 + $0xb8] sm:$0xf]
      %v805 = vld [vmem:[%s397 + $0xbc] sm:$0x1]
      %vm806 = vsmask.f32 3328
      %vm807 = vsmask.f32 7440
      %vm808 = vmor %vm806, %vm807
      %v810 = vshrl.u32 %v758, 16
      %v812 = vrot.slane %v810, 4
      %v813 = vshll.u32 %v758, 16
      %v815 = vrot.slane %v813, 5
      %v816 = vor.u32 %v812, %v815
      %v817 = vrot.slane %v816, 4
      %v819 = vshll.u32 %v759, 16
      %v821 = vrot.slane %v819, 5
      %v822 = vsel %vm808, %v817, %v821
      %v823 = vshrl.u32 %v759, 16
      %v825 = vrot.slane %v823, 4
      %v826 = vor.u32 %v825, %v821
      %v827 = vrot.slane %v826, 4
      %v829 = vshll.u32 %v760, 16
      %v831 = vrot.slane %v829, 5
      %v832 = vsel %vm808, %v827, %v831
      %v834 = vshrl.u32 %v761, 16
      %v836 = vrot.slane %v834, 4
      %v837 = vshll.u32 %v761, 16
      %v839 = vrot.slane %v837, 5
      %v840 = vor.u32 %v836, %v839
      %v841 = vrot.slane %v840, 4
      %v843 = vshll.u32 %v762, 16
      %v845 = vrot.slane %v843, 5
      %v846 = vsel %vm808, %v841, %v845
      %v847 = vshrl.u32 %v762, 16
      %v849 = vrot.slane %v847, 4
      %v850 = vor.u32 %v849, %v845
      %v851 = vrot.slane %v850, 4
      %v853 = vshll.u32 %v763, 16
      %v855 = vrot.slane %v853, 5
      %v856 = vsel %vm808, %v851, %v855
      %v858 = vshrl.u32 %v764, 16
      %v860 = vrot.slane %v858, 4
      %v861 = vshll.u32 %v764, 16
      %v863 = vrot.slane %v861, 5
      %v864 = vor.u32 %v860, %v863
      %v865 = vrot.slane %v864, 4
      %v867 = vshll.u32 %v765, 16
      %v869 = vrot.slane %v867, 5
      %v870 = vsel %vm808, %v865, %v869
      %v871 = vshrl.u32 %v765, 16
      %v873 = vrot.slane %v871, 4
      %v874 = vor.u32 %v873, %v869
      %v875 = vrot.slane %v874, 4
      %v877 = vshll.u32 %v766, 16
      %v879 = vrot.slane %v877, 5
      %v880 = vsel %vm808, %v875, %v879
      %v882 = vshrl.u32 %v767, 16
      %v884 = vrot.slane %v882, 4
      %v885 = vshll.u32 %v767, 16
      %v887 = vrot.slane %v885, 5
      %v888 = vor.u32 %v884, %v887
      %v889 = vrot.slane %v888, 4
      %v891 = vshll.u32 %v768, 16
      %v893 = vrot.slane %v891, 5
      %v894 = vsel %vm808, %v889, %v893
      %v895 = vshrl.u32 %v768, 16
      %v897 = vrot.slane %v895, 4
      %v898 = vor.u32 %v897, %v893
      %v899 = vrot.slane %v898, 4
      %v901 = vshll.u32 %v769, 16
      %v903 = vrot.slane %v901, 5
      %v904 = vsel %vm808, %v899, %v903
      %v906 = vshrl.u32 %v770, 16
      %v908 = vrot.slane %v906, 4
      %v909 = vshll.u32 %v770, 16
      %v911 = vrot.slane %v909, 5
      %v912 = vor.u32 %v908, %v911
      %v913 = vrot.slane %v912, 4
      %v915 = vshll.u32 %v771, 16
      %v917 = vrot.slane %v915, 5
      %v918 = vsel %vm808, %v913, %v917
      %v919 = vshrl.u32 %v771, 16
      %v921 = vrot.slane %v919, 4
      %v922 = vor.u32 %v921, %v917
      %v923 = vrot.slane %v922, 4
      %v925 = vshll.u32 %v772, 16
      %v927 = vrot.slane %v925, 5
      %v928 = vsel %vm808, %v923, %v927
      %v930 = vshrl.u32 %v773, 16
      %v932 = vrot.slane %v930, 4
      %v933 = vshll.u32 %v773, 16
      %v935 = vrot.slane %v933, 5
      %v936 = vor.u32 %v932, %v935
      %v937 = vrot.slane %v936, 4
      %v939 = vshll.u32 %v774, 16
      %v941 = vrot.slane %v939, 5
      %v942 = vsel %vm808, %v937, %v941
      %v943 = vshrl.u32 %v774, 16
      %v945 = vrot.slane %v943, 4
      %v946 = vor.u32 %v945, %v941
      %v947 = vrot.slane %v946, 4
      %v949 = vshll.u32 %v775, 16
      %v951 = vrot.slane %v949, 5
      %v952 = vsel %vm808, %v947, %v951
      %v954 = vshrl.u32 %v776, 16
      %v956 = vrot.slane %v954, 4
      %v957 = vshll.u32 %v776, 16
      %v959 = vrot.slane %v957, 5
      %v960 = vor.u32 %v956, %v959
      %v961 = vrot.slane %v960, 4
      %v963 = vshll.u32 %v777, 16
      %v965 = vrot.slane %v963, 5
      %v966 = vsel %vm808, %v961, %v965
      %v967 = vshrl.u32 %v777, 16
      %v969 = vrot.slane %v967, 4
      %v970 = vor.u32 %v969, %v965
      %v971 = vrot.slane %v970, 4
      %v973 = vshll.u32 %v778, 16
      %v975 = vrot.slane %v973, 5
      %v976 = vsel %vm808, %v971, %v975
      %v978 = vshrl.u32 %v779, 16
      %v980 = vrot.slane %v978, 4
      %v981 = vshll.u32 %v779, 16
      %v983 = vrot.slane %v981, 5
      %v984 = vor.u32 %v980, %v983
      %v985 = vrot.slane %v984, 4
      %v987 = vshll.u32 %v780, 16
      %v989 = vrot.slane %v987, 5
      %v990 = vsel %vm808, %v985, %v989
      %v991 = vshrl.u32 %v780, 16
      %v993 = vrot.slane %v991, 4
      %v994 = vor.u32 %v993, %v989
      %v995 = vrot.slane %v994, 4
      %v997 = vshll.u32 %v781, 16
      %v999 = vrot.slane %v997, 5
      %v1000 = vsel %vm808, %v995, %v999
      %v1002 = vshrl.u32 %v782, 16
      %v1004 = vrot.slane %v1002, 4
      %v1005 = vshll.u32 %v782, 16
      %v1007 = vrot.slane %v1005, 5
      %v1008 = vor.u32 %v1004, %v1007
      %v1009 = vrot.slane %v1008, 4
      %v1011 = vshll.u32 %v783, 16
      %v1013 = vrot.slane %v1011, 5
      %v1014 = vsel %vm808, %v1009, %v1013
      %v1015 = vshrl.u32 %v783, 16
      %v1017 = vrot.slane %v1015, 4
      %v1018 = vor.u32 %v1017, %v1013
      %v1019 = vrot.slane %v1018, 4
      %v1021 = vshll.u32 %v784, 16
      %v1023 = vrot.slane %v1021, 5
      %v1024 = vsel %vm808, %v1019, %v1023
      %v1026 = vshrl.u32 %v785, 16
      %v1028 = vrot.slane %v1026, 4
      %v1029 = vshll.u32 %v785, 16
      %v1031 = vrot.slane %v1029, 5
      %v1032 = vor.u32 %v1028, %v1031
      %v1033 = vrot.slane %v1032, 4
      %v1035 = vshll.u32 %v786, 16
      %v1037 = vrot.slane %v1035, 5
      %v1038 = vsel %vm808, %v1033, %v1037
      %v1039 = vshrl.u32 %v786, 16
      %v1041 = vrot.slane %v1039, 4
      %v1042 = vor.u32 %v1041, %v1037
      %v1043 = vrot.slane %v1042, 4
      %v1045 = vshll.u32 %v787, 16
      %v1047 = vrot.slane %v1045, 5
      %v1048 = vsel %vm808, %v1043, %v1047
      %v1050 = vshrl.u32 %v788, 16
      %v1052 = vrot.slane %v1050, 4
      %v1053 = vshll.u32 %v788, 16
      %v1055 = vrot.slane %v1053, 5
      %v1056 = vor.u32 %v1052, %v1055
      %v1057 = vrot.slane %v1056, 4
      %v1059 = vshll.u32 %v789, 16
      %v1061 = vrot.slane %v1059, 5
      %v1062 = vsel %vm808, %v1057, %v1061
      %v1063 = vshrl.u32 %v789, 16
      %v1065 = vrot.slane %v1063, 4
      %v1066 = vor.u32 %v1065, %v1061
      %v1067 = vrot.slane %v1066, 4
      %v1069 = vshll.u32 %v790, 16
      %v1071 = vrot.slane %v1069, 5
      %v1072 = vsel %vm808, %v1067, %v1071
      %v1074 = vshrl.u32 %v791, 16
      %v1076 = vrot.slane %v1074, 4
      %v1077 = vshll.u32 %v791, 16
      %v1079 = vrot.slane %v1077, 5
      %v1080 = vor.u32 %v1076, %v1079
      %v1081 = vrot.slane %v1080, 4
      %v1083 = vshll.u32 %v792, 16
      %v1085 = vrot.slane %v1083, 5
      %v1086 = vsel %vm808, %v1081, %v1085
      %v1087 = vshrl.u32 %v792, 16
      %v1089 = vrot.slane %v1087, 4
      %v1090 = vor.u32 %v1089, %v1085
      %v1091 = vrot.slane %v1090, 4
      %v1093 = vshll.u32 %v793, 16
      %v1095 = vrot.slane %v1093, 5
      %v1096 = vsel %vm808, %v1091, %v1095
      %v1098 = vshrl.u32 %v794, 16
      %v1100 = vrot.slane %v1098, 4
      %v1101 = vshll.u32 %v794, 16
      %v1103 = vrot.slane %v1101, 5
      %v1104 = vor.u32 %v1100, %v1103
      %v1105 = vrot.slane %v1104, 4
      %v1107 = vshll.u32 %v795, 16
      %v1109 = vrot.slane %v1107, 5
      %v1110 = vsel %vm808, %v1105, %v1109
      %v1111 = vshrl.u32 %v795, 16
      %v1113 = vrot.slane %v1111, 4
      %v1114 = vor.u32 %v1113, %v1109
      %v1115 = vrot.slane %v1114, 4
      %v1117 = vshll.u32 %v796, 16
      %v1119 = vrot.slane %v1117, 5
      %v1120 = vsel %vm808, %v1115, %v1119
      %v1122 = vshrl.u32 %v797, 16
      %v1124 = vrot.slane %v1122, 4
      %v1125 = vshll.u32 %v797, 16
      %v1127 = vrot.slane %v1125, 5
      %v1128 = vor.u32 %v1124, %v1127
      %v1129 = vrot.slane %v1128, 4
      %v1131 = vshll.u32 %v798, 16
      %v1133 = vrot.slane %v1131, 5
      %v1134 = vsel %vm808, %v1129, %v1133
      %v1135 = vshrl.u32 %v798, 16
      %v1137 = vrot.slane %v1135, 4
      %v1138 = vor.u32 %v1137, %v1133
      %v1139 = vrot.slane %v1138, 4
      %v1141 = vshll.u32 %v799, 16
      %v1143 = vrot.slane %v1141, 5
      %v1144 = vsel %vm808, %v1139, %v1143
      %v1146 = vshrl.u32 %v800, 16
      %v1148 = vrot.slane %v1146, 4
      %v1149 = vshll.u32 %v800, 16
      %v1151 = vrot.slane %v1149, 5
      %v1152 = vor.u32 %v1148, %v1151
      %v1153 = vrot.slane %v1152, 4
      %v1155 = vshll.u32 %v801, 16
      %v1157 = vrot.slane %v1155, 5
      %v1158 = vsel %vm808, %v1153, %v1157
      %v1159 = vshrl.u32 %v801, 16
      %v1161 = vrot.slane %v1159, 4
      %v1162 = vor.u32 %v1161, %v1157
      %v1163 = vrot.slane %v1162, 4
      %v1165 = vshll.u32 %v802, 16
      %v1167 = vrot.slane %v1165, 5
      %v1168 = vsel %vm808, %v1163, %v1167
      %v1170 = vshrl.u32 %v803, 16
      %v1172 = vrot.slane %v1170, 4
      %v1173 = vshll.u32 %v803, 16
      %v1175 = vrot.slane %v1173, 5
      %v1176 = vor.u32 %v1172, %v1175
      %v1177 = vrot.slane %v1176, 4
      %v1179 = vshll.u32 %v804, 16
      %v1181 = vrot.slane %v1179, 5
      %v1182 = vsel %vm808, %v1177, %v1181
      %v1183 = vshrl.u32 %v804, 16
      %v1185 = vrot.slane %v1183, 4
      %v1186 = vor.u32 %v1185, %v1181
      %v1187 = vrot.slane %v1186, 4
      %v1189 = vshll.u32 %v805, 16
      %v1191 = vrot.slane %v1189, 5
      %v1192 = vsel %vm808, %v1187, %v1191
      %s1193 = scalar_lea.vmem %s357, 64
      %v1194 = vld [vmem:[%s1193] sm:$0xf]
      %v1195 = vld [vmem:[%s1193 + $0x4] sm:$0xf]
      %v1196 = vld [vmem:[%s1193 + $0x8] sm:$0xf]
      %v1197 = vld [vmem:[%s1193 + $0xc] sm:$0xf]
      %v1198 = vld [vmem:[%s1193 + $0x10] sm:$0xf]
      %v1199 = vld [vmem:[%s1193 + $0x14] sm:$0xf]
      %v1200 = vld [vmem:[%s1193 + $0x18] sm:$0xf]
      %v1201 = vld [vmem:[%s1193 + $0x1c] sm:$0xf]
      %v1202 = vld [vmem:[%s1193 + $0x20] sm:$0xf]
      %v1203 = vld [vmem:[%s1193 + $0x24] sm:$0xf]
      %v1204 = vld [vmem:[%s1193 + $0x28] sm:$0xf]
      %v1205 = vld [vmem:[%s1193 + $0x2c] sm:$0xf]
      %v1206 = vld [vmem:[%s1193 + $0x30] sm:$0xf]
      %v1207 = vld [vmem:[%s1193 + $0x34] sm:$0xf]
      %v1208 = vld [vmem:[%s1193 + $0x38] sm:$0xf]
      %v1209 = vld [vmem:[%s1193 + $0x3c] sm:$0xf]
      %v1210 = vunpack.c.l.b16 %v822
      %v1211 = vunpack.c.l.b16 %v832
      %v1212 = vunpack.c.l.b16 %v846
      %v1213 = vunpack.c.l.b16 %v856
      %v1214 = vunpack.c.l.b16 %v870
      %v1215 = vunpack.c.l.b16 %v880
      %v1216 = vunpack.c.l.b16 %v894
      %v1217 = vunpack.c.l.b16 %v904
      %v1218 = vunpack.c.l.b16 %v918
      %v1219 = vunpack.c.l.b16 %v928
      %v1220 = vunpack.c.l.b16 %v942
      %v1221 = vunpack.c.l.b16 %v952
      %v1222 = vunpack.c.l.b16 %v966
      %v1223 = vunpack.c.l.b16 %v976
      %v1224 = vunpack.c.l.b16 %v990
      %v1225 = vunpack.c.l.b16 %v1000
      %v1226 = vunpack.c.l.b16 %v1014
      %v1227 = vunpack.c.l.b16 %v1024
      %v1228 = vunpack.c.l.b16 %v1038
      %v1229 = vunpack.c.l.b16 %v1048
      %v1230 = vunpack.c.l.b16 %v1062
      %v1231 = vunpack.c.l.b16 %v1072
      %v1232 = vunpack.c.l.b16 %v1086
      %v1233 = vunpack.c.l.b16 %v1096
      %v1234 = vunpack.c.l.b16 %v1110
      %v1235 = vunpack.c.l.b16 %v1120
      %v1236 = vunpack.c.l.b16 %v1134
      %v1237 = vunpack.c.l.b16 %v1144
      %v1238 = vunpack.c.l.b16 %v1158
      %v1239 = vunpack.c.l.b16 %v1168
      %v1240 = vunpack.c.l.b16 %v1182
      %v1241 = vunpack.c.l.b16 %v1192
      %v1242 = vpack.c.b16 %v1211, %v1210
      %v1243 = vpack.c.b16 %v1213, %v1212
      %v1244 = vpack.c.b16 %v1215, %v1214
      %v1245 = vpack.c.b16 %v1217, %v1216
      %v1246 = vpack.c.b16 %v1219, %v1218
      %v1247 = vpack.c.b16 %v1221, %v1220
      %v1248 = vpack.c.b16 %v1223, %v1222
      %v1249 = vpack.c.b16 %v1225, %v1224
      %v1250 = vpack.c.b16 %v1227, %v1226
      %v1251 = vpack.c.b16 %v1229, %v1228
      %v1252 = vpack.c.b16 %v1231, %v1230
      %v1253 = vpack.c.b16 %v1233, %v1232
      %v1254 = vpack.c.b16 %v1235, %v1234
      %v1255 = vpack.c.b16 %v1237, %v1236
      %v1256 = vpack.c.b16 %v1239, %v1238
      %v1257 = vpack.c.b16 %v1241, %v1240
      %v1290 = vunpack.c.l.b16 %v1194
      %v1291 = vunpack.c.l.b16 %v1195
      %v1292 = vunpack.c.l.b16 %v1196
      %v1293 = vunpack.c.l.b16 %v1197
      %v1294 = vunpack.c.l.b16 %v1198
      %v1295 = vunpack.c.l.b16 %v1199
      %v1296 = vunpack.c.l.b16 %v1200
      %v1297 = vunpack.c.l.b16 %v1201
      %v1298 = vunpack.c.l.b16 %v1202
      %v1299 = vunpack.c.l.b16 %v1203
      %v1300 = vunpack.c.l.b16 %v1204
      %v1301 = vunpack.c.l.b16 %v1205
      %v1302 = vunpack.c.l.b16 %v1206
      %v1303 = vunpack.c.l.b16 %v1207
      %v1304 = vunpack.c.l.b16 %v1208
      %v1305 = vunpack.c.l.b16 %v1209
      %v1306 = vpack.c.b16 %v1291, %v1290
      %v1307 = vpack.c.b16 %v1293, %v1292
      %v1308 = vpack.c.b16 %v1295, %v1294
      %v1309 = vpack.c.b16 %v1297, %v1296
      %v1310 = vpack.c.b16 %v1299, %v1298
      %v1311 = vpack.c.b16 %v1301, %v1300
      %v1312 = vpack.c.b16 %v1303, %v1302
      %v1313 = vpack.c.b16 %v1305, %v1304
      %1322 = vmatprep.subr.bf16.mxu0 0
      %1323 = vmatpush1.bf16.msra.mxu0 %v1306
      %1324 = vmatprep.subr.bf16.mxu0 0
      %1325 = vmatpush1.bf16.msra.mxu0 %v1307
      %1326 = vmatprep.subr.bf16.mxu0 0
      %1327 = vmatpush1.bf16.msra.mxu0 %v1308
      %1328 = vmatprep.subr.bf16.mxu0 0
      %1329 = vmatpush1.bf16.msra.mxu0 %v1309
      %1330 = vmatprep.subr.bf16.mxu0 0
      %1331 = vmatpush1.bf16.msra.mxu0 %v1310
      %1332 = vmatprep.subr.bf16.mxu0 0
      %1333 = vmatpush1.bf16.msra.mxu0 %v1311
      %1334 = vmatprep.subr.bf16.mxu0 0
      %1335 = vmatpush1.bf16.msra.mxu0 %v1312
      %1336 = vmatprep.subr.bf16.mxu0 0
      %1337 = vmatpush1.bf16.msra.mxu0 %v1313
      %1338 = vmatprep.subr.bf16.mxu0 0
      %1339 = vmatpush1.bf16.msra.mxu0 0
      %1340 = vmatprep.subr.bf16.mxu0 0
      %1341 = vmatpush1.bf16.msra.mxu0 0
      %1342 = vmatprep.subr.bf16.mxu0 0
      %1343 = vmatpush1.bf16.msra.mxu0 0
      %1344 = vmatprep.subr.bf16.mxu0 0
      %1345 = vmatpush1.bf16.msra.mxu0 0
      %1346 = vmatprep.subr.bf16.mxu0 0
      %1347 = vmatpush1.bf16.msra.mxu0 0
      %1348 = vmatprep.subr.bf16.mxu0 0
      %1349 = vmatpush1.bf16.msra.mxu0 0
      %1350 = vmatprep.subr.bf16.mxu0 0
      %1351 = vmatpush1.bf16.msra.mxu0 0
      %1352 = vmatprep.subr.bf16.mxu0 0
      %1353 = vmatpush1.bf16.msra.mxu0 0
      %1354 = vmatprep.mubr.bf16.mxu0 0
      %1355 = vmatmul.mubr.bf16.gmra.mrb[0].mxu0 %v1242
      %v1356 = vpop.f32.mrb[0].mxu0
      %v1357 = vadd.f32 0.0, %v1356
      %v1358 = vpop.f32.mrb[0].mxu0
      %v1359 = vpop.f32.mrb[0].mxu0
      %v1360 = vadd.f32 0.0, %v1359
      %v1361 = vpop.f32.mrb[0].mxu0
      %1362 = vmatprep.mubr.bf16.mxu0 0
      %1363 = vmatmul.mubr.bf16.gmra.mrb[0].mxu0 %v1243
      %v1364 = vpop.f32.mrb[0].mxu0
      %v1365 = vadd.f32 0.0, %v1364
      %v1366 = vpop.f32.mrb[0].mxu0
      %v1367 = vpop.f32.mrb[0].mxu0
      %v1368 = vadd.f32 0.0, %v1367
      %v1369 = vpop.f32.mrb[0].mxu0
      %1370 = vmatprep.mubr.bf16.mxu0 0
      %1371 = vmatmul.mubr.bf16.gmra.mrb[0].mxu0 %v1244
      %v1372 = vpop.f32.mrb[0].mxu0
      %v1373 = vadd.f32 0.0, %v1372
      %v1374 = vpop.f32.mrb[0].mxu0
      %v1375 = vpop.f32.mrb[0].mxu0
      %v1376 = vadd.f32 0.0, %v1375
      %v1377 = vpop.f32.mrb[0].mxu0
      %1378 = vmatprep.mubr.bf16.mxu0 0
      %1379 = vmatmul.mubr.bf16.gmra.mrb[0].mxu0 %v1245
      %v1380 = vpop.f32.mrb[0].mxu0
      %v1381 = vadd.f32 0.0, %v1380
      %v1382 = vpop.f32.mrb[0].mxu0
      %v1383 = vpop.f32.mrb[0].mxu0
      %v1384 = vadd.f32 0.0, %v1383
      %v1385 = vpop.f32.mrb[0].mxu0
      %1386 = vmatprep.mubr.bf16.mxu0 0
      %1387 = vmatmul.mubr.bf16.gmra.mrb[0].mxu0 %v1246
      %v1388 = vpop.f32.mrb[0].mxu0
      %v1389 = vadd.f32 0.0, %v1388
      %v1390 = vpop.f32.mrb[0].mxu0
      %v1391 = vpop.f32.mrb[0].mxu0
      %v1392 = vadd.f32 0.0, %v1391
      %v1393 = vpop.f32.mrb[0].mxu0
      %1394 = vmatprep.mubr.bf16.mxu0 0
      %1395 = vmatmul.mubr.bf16.gmra.mrb[0].mxu0 %v1247
      %v1396 = vpop.f32.mrb[0].mxu0
      %v1397 = vadd.f32 0.0, %v1396
      %v1398 = vpop.f32.mrb[0].mxu0
      %v1399 = vpop.f32.mrb[0].mxu0
      %v1400 = vadd.f32 0.0, %v1399
      %v1401 = vpop.f32.mrb[0].mxu0
      %1402 = vmatprep.mubr.bf16.mxu0 0
      %1403 = vmatmul.mubr.bf16.gmra.mrb[0].mxu0 %v1248
      %v1404 = vpop.f32.mrb[0].mxu0
      %v1405 = vadd.f32 0.0, %v1404
      %v1406 = vpop.f32.mrb[0].mxu0
      %v1407 = vpop.f32.mrb[0].mxu0
      %v1408 = vadd.f32 0.0, %v1407
      %v1409 = vpop.f32.mrb[0].mxu0
      %1410 = vmatprep.mubr.bf16.mxu0 0
      %1411 = vmatmul.mubr.bf16.gmra.mrb[0].mxu0 %v1249
      %v1412 = vpop.f32.mrb[0].mxu0
      %v1413 = vadd.f32 0.0, %v1412
      %v1414 = vpop.f32.mrb[0].mxu0
      %v1415 = vpop.f32.mrb[0].mxu0
      %v1416 = vadd.f32 0.0, %v1415
      %v1417 = vpop.f32.mrb[0].mxu0
      %1418 = vmatprep.mubr.bf16.mxu0 0
      %1419 = vmatmul.mubr.bf16.gmra.mrb[0].mxu0 %v1250
      %v1420 = vpop.f32.mrb[0].mxu0
      %v1421 = vadd.f32 0.0, %v1420
      %v1422 = vpop.f32.mrb[0].mxu0
      %v1423 = vpop.f32.mrb[0].mxu0
      %v1424 = vadd.f32 0.0, %v1423
      %v1425 = vpop.f32.mrb[0].mxu0
      %1426 = vmatprep.mubr.bf16.mxu0 0
      %1427 = vmatmul.mubr.bf16.gmra.mrb[0].mxu0 %v1251
      %v1428 = vpop.f32.mrb[0].mxu0
      %v1429 = vadd.f32 0.0, %v1428
      %v1430 = vpop.f32.mrb[0].mxu0
      %v1431 = vpop.f32.mrb[0].mxu0
      %v1432 = vadd.f32 0.0, %v1431
      %v1433 = vpop.f32.mrb[0].mxu0
      %1434 = vmatprep.mubr.bf16.mxu0 0
      %1435 = vmatmul.mubr.bf16.gmra.mrb[0].mxu0 %v1252
      %v1436 = vpop.f32.mrb[0].mxu0
      %v1437 = vadd.f32 0.0, %v1436
      %v1438 = vpop.f32.mrb[0].mxu0
      %v1439 = vpop.f32.mrb[0].mxu0
      %v1440 = vadd.f32 0.0, %v1439
      %v1441 = vpop.f32.mrb[0].mxu0
      %1442 = vmatprep.mubr.bf16.mxu0 0
      %1443 = vmatmul.mubr.bf16.gmra.mrb[0].mxu0 %v1253
      %v1444 = vpop.f32.mrb[0].mxu0
      %v1445 = vadd.f32 0.0, %v1444
      %v1446 = vpop.f32.mrb[0].mxu0
      %v1447 = vpop.f32.mrb[0].mxu0
      %v1448 = vadd.f32 0.0, %v1447
      %v1449 = vpop.f32.mrb[0].mxu0
      %1450 = vmatprep.mubr.bf16.mxu0 0
      %1451 = vmatmul.mubr.bf16.gmra.mrb[0].mxu0 %v1254
      %v1452 = vpop.f32.mrb[0].mxu0
      %v1453 = vadd.f32 0.0, %v1452
      %v1454 = vpop.f32.mrb[0].mxu0
      %v1455 = vpop.f32.mrb[0].mxu0
      %v1456 = vadd.f32 0.0, %v1455
      %v1457 = vpop.f32.mrb[0].mxu0
      %1458 = vmatprep.mubr.bf16.mxu0 0
      %1459 = vmatmul.mubr.bf16.gmra.mrb[0].mxu0 %v1255
      %v1460 = vpop.f32.mrb[0].mxu0
      %v1461 = vadd.f32 0.0, %v1460
      %v1462 = vpop.f32.mrb[0].mxu0
      %v1463 = vpop.f32.mrb[0].mxu0
      %v1464 = vadd.f32 0.0, %v1463
      %v1465 = vpop.f32.mrb[0].mxu0
      %1466 = vmatprep.mubr.bf16.mxu0 0
      %1467 = vmatmul.mubr.bf16.gmra.mrb[0].mxu0 %v1256
      %v1468 = vpop.f32.mrb[0].mxu0
      %v1469 = vadd.f32 0.0, %v1468
      %v1470 = vpop.f32.mrb[0].mxu0
      %v1471 = vpop.f32.mrb[0].mxu0
      %v1472 = vadd.f32 0.0, %v1471
      %v1473 = vpop.f32.mrb[0].mxu0
      %1474 = vmatprep.mubr.bf16.mxu0 0
      %1475 = vmatmul.mubr.bf16.gmra.mrb[0].mxu0 %v1257
      %v1476 = vpop.f32.mrb[0].mxu0
      %v1477 = vadd.f32 0.0, %v1476
      %v1478 = vpop.f32.mrb[0].mxu0
      %v1479 = vpop.f32.mrb[0].mxu0
      %v1480 = vadd.f32 0.0, %v1479
      %v1481 = vpop.f32.mrb[0].mxu0
      %1482 = vdwg.mxu0
      %v1483 = vadd.f32 %v632, %v1357
      %v1484 = vadd.f32 %v635, %v1360
      %v1485 = vadd.f32 %v640, %v1365
      %v1486 = vadd.f32 %v643, %v1368
      %v1487 = vadd.f32 %v648, %v1373
      %v1488 = vadd.f32 %v651, %v1376
      %v1489 = vadd.f32 %v656, %v1381
      %v1490 = vadd.f32 %v659, %v1384
      %v1491 = vadd.f32 %v664, %v1389
      %v1492 = vadd.f32 %v667, %v1392
      %v1493 = vadd.f32 %v672, %v1397
      %v1494 = vadd.f32 %v675, %v1400
      %v1495 = vadd.f32 %v680, %v1405
      %v1496 = vadd.f32 %v683, %v1408
      %v1497 = vadd.f32 %v688, %v1413
      %v1498 = vadd.f32 %v691, %v1416
      %v1499 = vadd.f32 %v696, %v1421
      %v1500 = vadd.f32 %v699, %v1424
      %v1501 = vadd.f32 %v704, %v1429
      %v1502 = vadd.f32 %v707, %v1432
      %v1503 = vadd.f32 %v712, %v1437
      %v1504 = vadd.f32 %v715, %v1440
      %v1505 = vadd.f32 %v720, %v1445
      %v1506 = vadd.f32 %v723, %v1448
      %v1507 = vadd.f32 %v728, %v1453
      %v1508 = vadd.f32 %v731, %v1456
      %v1509 = vadd.f32 %v736, %v1461
      %v1510 = vadd.f32 %v739, %v1464
      %v1511 = vadd.f32 %v744, %v1469
      %v1512 = vadd.f32 %v747, %v1472
      %v1513 = vadd.f32 %v752, %v1477
      %v1514 = vadd.f32 %v755, %v1480
      %v1515 = vld [vmem:[%s397] sm:$0xe]
      %v1516 = vld [vmem:[%s397 + $0xc] sm:$0xe]
      %v1517 = vld [vmem:[%s397 + $0x18] sm:$0xe]
      %v1518 = vld [vmem:[%s397 + $0x24] sm:$0xe]
      %v1519 = vld [vmem:[%s397 + $0x30] sm:$0xe]
      %v1520 = vld [vmem:[%s397 + $0x3c] sm:$0xe]
      %v1521 = vld [vmem:[%s397 + $0x48] sm:$0xe]
      %v1522 = vld [vmem:[%s397 + $0x54] sm:$0xe]
      %v1523 = vld [vmem:[%s397 + $0x60] sm:$0xe]
      %v1524 = vld [vmem:[%s397 + $0x6c] sm:$0xe]
      %v1525 = vld [vmem:[%s397 + $0x78] sm:$0xe]
      %v1526 = vld [vmem:[%s397 + $0x84] sm:$0xe]
      %v1527 = vld [vmem:[%s397 + $0x90] sm:$0xe]
      %v1528 = vld [vmem:[%s397 + $0x9c] sm:$0xe]
      %v1529 = vld [vmem:[%s397 + $0xa8] sm:$0xe]
      %v1530 = vld [vmem:[%s397 + $0xb4] sm:$0xe]
      %vm1579 = vcmask 1042432
      %vm1580 = vcmask 1046532
      %vm1581 = vmor %vm1579, %vm1580
      %v1582 = vrot.slane %v1515, 5
      %v1583 = vrot.slane %v1582, 4
      %v1584 = vrot.slane %v759, 5
      %v1585 = vsel %vm1581, %v1583, %v1584
      %v1586 = vrot.slane %v1584, 4
      %v1587 = vrot.slane %v760, 5
      %v1588 = vsel %vm1581, %v1586, %v1587
      %v1589 = vrot.slane %v1516, 5
      %v1590 = vrot.slane %v1589, 4
      %v1591 = vrot.slane %v762, 5
      %v1592 = vsel %vm1581, %v1590, %v1591
      %v1593 = vrot.slane %v1591, 4
      %v1594 = vrot.slane %v763, 5
      %v1595 = vsel %vm1581, %v1593, %v1594
      %v1596 = vrot.slane %v1517, 5
      %v1597 = vrot.slane %v1596, 4
      %v1598 = vrot.slane %v765, 5
      %v1599 = vsel %vm1581, %v1597, %v1598
      %v1600 = vrot.slane %v1598, 4
      %v1601 = vrot.slane %v766, 5
      %v1602 = vsel %vm1581, %v1600, %v1601
      %v1603 = vrot.slane %v1518, 5
      %v1604 = vrot.slane %v1603, 4
      %v1605 = vrot.slane %v768, 5
      %v1606 = vsel %vm1581, %v1604, %v1605
      %v1607 = vrot.slane %v1605, 4
      %v1608 = vrot.slane %v769, 5
      %v1609 = vsel %vm1581, %v1607, %v1608
      %v1610 = vrot.slane %v1519, 5
      %v1611 = vrot.slane %v1610, 4
      %v1612 = vrot.slane %v771, 5
      %v1613 = vsel %vm1581, %v1611, %v1612
      %v1614 = vrot.slane %v1612, 4
      %v1615 = vrot.slane %v772, 5
      %v1616 = vsel %vm1581, %v1614, %v1615
      %v1617 = vrot.slane %v1520, 5
      %v1618 = vrot.slane %v1617, 4
      %v1619 = vrot.slane %v774, 5
      %v1620 = vsel %vm1581, %v1618, %v1619
      %v1621 = vrot.slane %v1619, 4
      %v1622 = vrot.slane %v775, 5
      %v1623 = vsel %vm1581, %v1621, %v1622
      %v1624 = vrot.slane %v1521, 5
      %v1625 = vrot.slane %v1624, 4
      %v1626 = vrot.slane %v777, 5
      %v1627 = vsel %vm1581, %v1625, %v1626
      %v1628 = vrot.slane %v1626, 4
      %v1629 = vrot.slane %v778, 5
      %v1630 = vsel %vm1581, %v1628, %v1629
      %v1631 = vrot.slane %v1522, 5
      %v1632 = vrot.slane %v1631, 4
      %v1633 = vrot.slane %v780, 5
      %v1634 = vsel %vm1581, %v1632, %v1633
      %v1635 = vrot.slane %v1633, 4
      %v1636 = vrot.slane %v781, 5
      %v1637 = vsel %vm1581, %v1635, %v1636
      %v1638 = vrot.slane %v1523, 5
      %v1639 = vrot.slane %v1638, 4
      %v1640 = vrot.slane %v783, 5
      %v1641 = vsel %vm1581, %v1639, %v1640
      %v1642 = vrot.slane %v1640, 4
      %v1643 = vrot.slane %v784, 5
      %v1644 = vsel %vm1581, %v1642, %v1643
      %v1645 = vrot.slane %v1524, 5
      %v1646 = vrot.slane %v1645, 4
      %v1647 = vrot.slane %v786, 5
      %v1648 = vsel %vm1581, %v1646, %v1647
      %v1649 = vrot.slane %v1647, 4
      %v1650 = vrot.slane %v787, 5
      %v1651 = vsel %vm1581, %v1649, %v1650
      %v1652 = vrot.slane %v1525, 5
      %v1653 = vrot.slane %v1652, 4
      %v1654 = vrot.slane %v789, 5
      %v1655 = vsel %vm1581, %v1653, %v1654
      %v1656 = vrot.slane %v1654, 4
      %v1657 = vrot.slane %v790, 5
      %v1658 = vsel %vm1581, %v1656, %v1657
      %v1659 = vrot.slane %v1526, 5
      %v1660 = vrot.slane %v1659, 4
      %v1661 = vrot.slane %v792, 5
      %v1662 = vsel %vm1581, %v1660, %v1661
      %v1663 = vrot.slane %v1661, 4
      %v1664 = vrot.slane %v793, 5
      %v1665 = vsel %vm1581, %v1663, %v1664
      %v1666 = vrot.slane %v1527, 5
      %v1667 = vrot.slane %v1666, 4
      %v1668 = vrot.slane %v795, 5
      %v1669 = vsel %vm1581, %v1667, %v1668
      %v1670 = vrot.slane %v1668, 4
      %v1671 = vrot.slane %v796, 5
      %v1672 = vsel %vm1581, %v1670, %v1671
      %v1673 = vrot.slane %v1528, 5
      %v1674 = vrot.slane %v1673, 4
      %v1675 = vrot.slane %v798, 5
      %v1676 = vsel %vm1581, %v1674, %v1675
      %v1677 = vrot.slane %v1675, 4
      %v1678 = vrot.slane %v799, 5
      %v1679 = vsel %vm1581, %v1677, %v1678
      %v1680 = vrot.slane %v1529, 5
      %v1681 = vrot.slane %v1680, 4
      %v1682 = vrot.slane %v801, 5
      %v1683 = vsel %vm1581, %v1681, %v1682
      %v1684 = vrot.slane %v1682, 4
      %v1685 = vrot.slane %v802, 5
      %v1686 = vsel %vm1581, %v1684, %v1685
      %v1687 = vrot.slane %v1530, 5
      %v1688 = vrot.slane %v1687, 4
      %v1689 = vrot.slane %v804, 5
      %v1690 = vsel %vm1581, %v1688, %v1689
      %v1691 = vrot.slane %v1689, 4
      %v1692 = vrot.slane %v805, 5
      %v1693 = vsel %vm1581, %v1691, %v1692
      %s1694 = scalar_lea.vmem %s357, 128
      %v1695 = vld [vmem:[%s1694] sm:$0xf]
      %v1696 = vld [vmem:[%s1694 + $0x4] sm:$0xf]
      %v1697 = vld [vmem:[%s1694 + $0x8] sm:$0xf]
      %v1698 = vld [vmem:[%s1694 + $0xc] sm:$0xf]
      %v1699 = vld [vmem:[%s1694 + $0x10] sm:$0xf]
      %v1700 = vld [vmem:[%s1694 + $0x14] sm:$0xf]
      %v1701 = vld [vmem:[%s1694 + $0x18] sm:$0xf]
      %v1702 = vld [vmem:[%s1694 + $0x1c] sm:$0xf]
      %v1703 = vld [vmem:[%s1694 + $0x20] sm:$0xf]
      %v1704 = vld [vmem:[%s1694 + $0x24] sm:$0xf]
      %v1705 = vld [vmem:[%s1694 + $0x28] sm:$0xf]
      %v1706 = vld [vmem:[%s1694 + $0x2c] sm:$0xf]
      %v1707 = vld [vmem:[%s1694 + $0x30] sm:$0xf]
      %v1708 = vld [vmem:[%s1694 + $0x34] sm:$0xf]
      %v1709 = vld [vmem:[%s1694 + $0x38] sm:$0xf]
      %v1710 = vld [vmem:[%s1694 + $0x3c] sm:$0xf]
      %v1711 = vunpack.c.l.b16 %v1585
      %v1712 = vunpack.c.l.b16 %v1588
      %v1713 = vunpack.c.l.b16 %v1592
      %v1714 = vunpack.c.l.b16 %v1595
      %v1715 = vunpack.c.l.b16 %v1599
      %v1716 = vunpack.c.l.b16 %v1602
      %v1717 = vunpack.c.l.b16 %v1606
      %v1718 = vunpack.c.l.b16 %v1609
      %v1719 = vunpack.c.l.b16 %v1613
      %v1720 = vunpack.c.l.b16 %v1616
      %v1721 = vunpack.c.l.b16 %v1620
      %v1722 = vunpack.c.l.b16 %v1623
      %v1723 = vunpack.c.l.b16 %v1627
      %v1724 = vunpack.c.l.b16 %v1630
      %v1725 = vunpack.c.l.b16 %v1634
      %v1726 = vunpack.c.l.b16 %v1637
      %v1727 = vunpack.c.l.b16 %v1641
      %v1728 = vunpack.c.l.b16 %v1644
      %v1729 = vunpack.c.l.b16 %v1648
      %v1730 = vunpack.c.l.b16 %v1651
      %v1731 = vunpack.c.l.b16 %v1655
      %v1732 = vunpack.c.l.b16 %v1658
      %v1733 = vunpack.c.l.b16 %v1662
      %v1734 = vunpack.c.l.b16 %v1665
      %v1735 = vunpack.c.l.b16 %v1669
      %v1736 = vunpack.c.l.b16 %v1672
      %v1737 = vunpack.c.l.b16 %v1676
      %v1738 = vunpack.c.l.b16 %v1679
      %v1739 = vunpack.c.l.b16 %v1683
      %v1740 = vunpack.c.l.b16 %v1686
      %v1741 = vunpack.c.l.b16 %v1690
      %v1742 = vunpack.c.l.b16 %v1693
      %v1743 = vpack.c.b16 %v1712, %v1711
      %v1744 = vpack.c.b16 %v1714, %v1713
      %v1745 = vpack.c.b16 %v1716, %v1715
      %v1746 = vpack.c.b16 %v1718, %v1717
      %v1747 = vpack.c.b16 %v1720, %v1719
      %v1748 = vpack.c.b16 %v1722, %v1721
      %v1749 = vpack.c.b16 %v1724, %v1723
      %v1750 = vpack.c.b16 %v1726, %v1725
      %v1751 = vpack.c.b16 %v1728, %v1727
      %v1752 = vpack.c.b16 %v1730, %v1729
      %v1753 = vpack.c.b16 %v1732, %v1731
      %v1754 = vpack.c.b16 %v1734, %v1733
      %v1755 = vpack.c.b16 %v1736, %v1735
      %v1756 = vpack.c.b16 %v1738, %v1737
      %v1757 = vpack.c.b16 %v1740, %v1739
      %v1758 = vpack.c.b16 %v1742, %v1741
      %v1791 = vunpack.c.l.b16 %v1695
      %v1792 = vunpack.c.l.b16 %v1696
      %v1793 = vunpack.c.l.b16 %v1697
      %v1794 = vunpack.c.l.b16 %v1698
      %v1795 = vunpack.c.l.b16 %v1699
      %v1796 = vunpack.c.l.b16 %v1700
      %v1797 = vunpack.c.l.b16 %v1701
      %v1798 = vunpack.c.l.b16 %v1702
      %v1799 = vunpack.c.l.b16 %v1703
      %v1800 = vunpack.c.l.b16 %v1704
      %v1801 = vunpack.c.l.b16 %v1705
      %v1802 = vunpack.c.l.b16 %v1706
      %v1803 = vunpack.c.l.b16 %v1707
      %v1804 = vunpack.c.l.b16 %v1708
      %v1805 = vunpack.c.l.b16 %v1709
      %v1806 = vunpack.c.l.b16 %v1710
      %v1807 = vpack.c.b16 %v1792, %v1791
      %v1808 = vpack.c.b16 %v1794, %v1793
      %v1809 = vpack.c.b16 %v1796, %v1795
      %v1810 = vpack.c.b16 %v1798, %v1797
      %v1811 = vpack.c.b16 %v1800, %v1799
      %v1812 = vpack.c.b16 %v1802, %v1801
      %v1813 = vpack.c.b16 %v1804, %v1803
      %v1814 = vpack.c.b16 %v1806, %v1805
      %1823 = vmatprep.subr.bf16.mxu0 0
      %1824 = vmatpush1.bf16.msra.mxu0 %v1807
      %1825 = vmatprep.subr.bf16.mxu0 0
      %1826 = vmatpush1.bf16.msra.mxu0 %v1808
      %1827 = vmatprep.subr.bf16.mxu0 0
      %1828 = vmatpush1.bf16.msra.mxu0 %v1809
      %1829 = vmatprep.subr.bf16.mxu0 0
      %1830 = vmatpush1.bf16.msra.mxu0 %v1810
      %1831 = vmatprep.subr.bf16.mxu0 0
      %1832 = vmatpush1.bf16.msra.mxu0 %v1811
      %1833 = vmatprep.subr.bf16.mxu0 0
      %1834 = vmatpush1.bf16.msra.mxu0 %v1812
      %1835 = vmatprep.subr.bf16.mxu0 0
      %1836 = vmatpush1.bf16.msra.mxu0 %v1813
      %1837 = vmatprep.subr.bf16.mxu0 0
      %1838 = vmatpush1.bf16.msra.mxu0 %v1814
      %1839 = vmatprep.subr.bf16.mxu0 0
      %1840 = vmatpush1.bf16.msra.mxu0 0
      %1841 = vmatprep.subr.bf16.mxu0 0
      %1842 = vmatpush1.bf16.msra.mxu0 0
      %1843 = vmatprep.subr.bf16.mxu0 0
      %1844 = vmatpush1.bf16.msra.mxu0 0
      %1845 = vmatprep.subr.bf16.mxu0 0
      %1846 = vmatpush1.bf16.msra.mxu0 0
      %1847 = vmatprep.subr.bf16.mxu0 0
      %1848 = vmatpush1.bf16.msra.mxu0 0
      %1849 = vmatprep.subr.bf16.mxu0 0
      %1850 = vmatpush1.bf16.msra.mxu0 0
      %1851 = vmatprep.subr.bf16.mxu0 0
      %1852 = vmatpush1.bf16.msra.mxu0 0
      %1853 = vmatprep.subr.bf16.mxu0 0
      %1854 = vmatpush1.bf16.msra.mxu0 0
      %1855 = vmatprep.mubr.bf16.mxu0 0
      %1856 = vmatmul.mubr.bf16.gmra.mrb[0].mxu0 %v1743
      %v1857 = vpop.f32.mrb[0].mxu0
      %v1858 = vadd.f32 0.0, %v1857
      %v1859 = vpop.f32.mrb[0].mxu0
      %v1860 = vpop.f32.mrb[0].mxu0
      %v1861 = vadd.f32 0.0, %v1860
      %v1862 = vpop.f32.mrb[0].mxu0
      %1863 = vmatprep.mubr.bf16.mxu0 0
      %1864 = vmatmul.mubr.bf16.gmra.mrb[0].mxu0 %v1744
      %v1865 = vpop.f32.mrb[0].mxu0
      %v1866 = vadd.f32 0.0, %v1865
      %v1867 = vpop.f32.mrb[0].mxu0
      %v1868 = vpop.f32.mrb[0].mxu0
      %v1869 = vadd.f32 0.0, %v1868
      %v1870 = vpop.f32.mrb[0].mxu0
      %1871 = vmatprep.mubr.bf16.mxu0 0
      %1872 = vmatmul.mubr.bf16.gmra.mrb[0].mxu0 %v1745
      %v1873 = vpop.f32.mrb[0].mxu0
      %v1874 = vadd.f32 0.0, %v1873
      %v1875 = vpop.f32.mrb[0].mxu0
      %v1876 = vpop.f32.mrb[0].mxu0
      %v1877 = vadd.f32 0.0, %v1876
      %v1878 = vpop.f32.mrb[0].mxu0
      %1879 = vmatprep.mubr.bf16.mxu0 0
      %1880 = vmatmul.mubr.bf16.gmra.mrb[0].mxu0 %v1746
      %v1881 = vpop.f32.mrb[0].mxu0
      %v1882 = vadd.f32 0.0, %v1881
      %v1883 = vpop.f32.mrb[0].mxu0
      %v1884 = vpop.f32.mrb[0].mxu0
      %v1885 = vadd.f32 0.0, %v1884
      %v1886 = vpop.f32.mrb[0].mxu0
      %1887 = vmatprep.mubr.bf16.mxu0 0
      %1888 = vmatmul.mubr.bf16.gmra.mrb[0].mxu0 %v1747
      %v1889 = vpop.f32.mrb[0].mxu0
      %v1890 = vadd.f32 0.0, %v1889
      %v1891 = vpop.f32.mrb[0].mxu0
      %v1892 = vpop.f32.mrb[0].mxu0
      %v1893 = vadd.f32 0.0, %v1892
      %v1894 = vpop.f32.mrb[0].mxu0
      %1895 = vmatprep.mubr.bf16.mxu0 0
      %1896 = vmatmul.mubr.bf16.gmra.mrb[0].mxu0 %v1748
      %v1897 = vpop.f32.mrb[0].mxu0
      %v1898 = vadd.f32 0.0, %v1897
      %v1899 = vpop.f32.mrb[0].mxu0
      %v1900 = vpop.f32.mrb[0].mxu0
      %v1901 = vadd.f32 0.0, %v1900
      %v1902 = vpop.f32.mrb[0].mxu0
      %1903 = vmatprep.mubr.bf16.mxu0 0
      %1904 = vmatmul.mubr.bf16.gmra.mrb[0].mxu0 %v1749
      %v1905 = vpop.f32.mrb[0].mxu0
      %v1906 = vadd.f32 0.0, %v1905
      %v1907 = vpop.f32.mrb[0].mxu0
      %v1908 = vpop.f32.mrb[0].mxu0
      %v1909 = vadd.f32 0.0, %v1908
      %v1910 = vpop.f32.mrb[0].mxu0
      %1911 = vmatprep.mubr.bf16.mxu0 0
      %1912 = vmatmul.mubr.bf16.gmra.mrb[0].mxu0 %v1750
      %v1913 = vpop.f32.mrb[0].mxu0
      %v1914 = vadd.f32 0.0, %v1913
      %v1915 = vpop.f32.mrb[0].mxu0
      %v1916 = vpop.f32.mrb[0].mxu0
      %v1917 = vadd.f32 0.0, %v1916
      %v1918 = vpop.f32.mrb[0].mxu0
      %1919 = vmatprep.mubr.bf16.mxu0 0
      %1920 = vmatmul.mubr.bf16.gmra.mrb[0].mxu0 %v1751
      %v1921 = vpop.f32.mrb[0].mxu0
      %v1922 = vadd.f32 0.0, %v1921
      %v1923 = vpop.f32.mrb[0].mxu0
      %v1924 = vpop.f32.mrb[0].mxu0
      %v1925 = vadd.f32 0.0, %v1924
      %v1926 = vpop.f32.mrb[0].mxu0
      %1927 = vmatprep.mubr.bf16.mxu0 0
      %1928 = vmatmul.mubr.bf16.gmra.mrb[0].mxu0 %v1752
      %v1929 = vpop.f32.mrb[0].mxu0
      %v1930 = vadd.f32 0.0, %v1929
      %v1931 = vpop.f32.mrb[0].mxu0
      %v1932 = vpop.f32.mrb[0].mxu0
      %v1933 = vadd.f32 0.0, %v1932
      %v1934 = vpop.f32.mrb[0].mxu0
      %1935 = vmatprep.mubr.bf16.mxu0 0
      %1936 = vmatmul.mubr.bf16.gmra.mrb[0].mxu0 %v1753
      %v1937 = vpop.f32.mrb[0].mxu0
      %v1938 = vadd.f32 0.0, %v1937
      %v1939 = vpop.f32.mrb[0].mxu0
      %v1940 = vpop.f32.mrb[0].mxu0
      %v1941 = vadd.f32 0.0, %v1940
      %v1942 = vpop.f32.mrb[0].mxu0
      %1943 = vmatprep.mubr.bf16.mxu0 0
      %1944 = vmatmul.mubr.bf16.gmra.mrb[0].mxu0 %v1754
      %v1945 = vpop.f32.mrb[0].mxu0
      %v1946 = vadd.f32 0.0, %v1945
      %v1947 = vpop.f32.mrb[0].mxu0
      %v1948 = vpop.f32.mrb[0].mxu0
      %v1949 = vadd.f32 0.0, %v1948
      %v1950 = vpop.f32.mrb[0].mxu0
      %1951 = vmatprep.mubr.bf16.mxu0 0
      %1952 = vmatmul.mubr.bf16.gmra.mrb[0].mxu0 %v1755
      %v1953 = vpop.f32.mrb[0].mxu0
      %v1954 = vadd.f32 0.0, %v1953
      %v1955 = vpop.f32.mrb[0].mxu0
      %v1956 = vpop.f32.mrb[0].mxu0
      %v1957 = vadd.f32 0.0, %v1956
      %v1958 = vpop.f32.mrb[0].mxu0
      %1959 = vmatprep.mubr.bf16.mxu0 0
      %1960 = vmatmul.mubr.bf16.gmra.mrb[0].mxu0 %v1756
      %v1961 = vpop.f32.mrb[0].mxu0
      %v1962 = vadd.f32 0.0, %v1961
      %v1963 = vpop.f32.mrb[0].mxu0
      %v1964 = vpop.f32.mrb[0].mxu0
      %v1965 = vadd.f32 0.0, %v1964
      %v1966 = vpop.f32.mrb[0].mxu0
      %1967 = vmatprep.mubr.bf16.mxu0 0
      %1968 = vmatmul.mubr.bf16.gmra.mrb[0].mxu0 %v1757
      %v1969 = vpop.f32.mrb[0].mxu0
      %v1970 = vadd.f32 0.0, %v1969
      %v1971 = vpop.f32.mrb[0].mxu0
      %v1972 = vpop.f32.mrb[0].mxu0
      %v1973 = vadd.f32 0.0, %v1972
      %v1974 = vpop.f32.mrb[0].mxu0
      %1975 = vmatprep.mubr.bf16.mxu0 0
      %1976 = vmatmul.mubr.bf16.gmra.mrb[0].mxu0 %v1758
      %v1977 = vpop.f32.mrb[0].mxu0
      %v1978 = vadd.f32 0.0, %v1977
      %v1979 = vpop.f32.mrb[0].mxu0
      %v1980 = vpop.f32.mrb[0].mxu0
      %v1981 = vadd.f32 0.0, %v1980
      %v1982 = vpop.f32.mrb[0].mxu0
      %1983 = vdwg.mxu0
      %v1984 = vadd.f32 %v1483, %v1858
      %v1985 = vadd.f32 %v1484, %v1861
      %v1986 = vadd.f32 %v1485, %v1866
      %v1987 = vadd.f32 %v1486, %v1869
      %v1988 = vadd.f32 %v1487, %v1874
      %v1989 = vadd.f32 %v1488, %v1877
      %v1990 = vadd.f32 %v1489, %v1882
      %v1991 = vadd.f32 %v1490, %v1885
      %v1992 = vadd.f32 %v1491, %v1890
      %v1993 = vadd.f32 %v1492, %v1893
      %v1994 = vadd.f32 %v1493, %v1898
      %v1995 = vadd.f32 %v1494, %v1901
      %v1996 = vadd.f32 %v1495, %v1906
      %v1997 = vadd.f32 %v1496, %v1909
      %v1998 = vadd.f32 %v1497, %v1914
      %v1999 = vadd.f32 %v1498, %v1917
      %v2000 = vadd.f32 %v1499, %v1922
      %v2001 = vadd.f32 %v1500, %v1925
      %v2002 = vadd.f32 %v1501, %v1930
      %v2003 = vadd.f32 %v1502, %v1933
      %v2004 = vadd.f32 %v1503, %v1938
      %v2005 = vadd.f32 %v1504, %v1941
      %v2006 = vadd.f32 %v1505, %v1946
      %v2007 = vadd.f32 %v1506, %v1949
      %v2008 = vadd.f32 %v1507, %v1954
      %v2009 = vadd.f32 %v1508, %v1957
      %v2010 = vadd.f32 %v1509, %v1962
      %v2011 = vadd.f32 %v1510, %v1965
      %v2012 = vadd.f32 %v1511, %v1970
      %v2013 = vadd.f32 %v1512, %v1973
      %v2014 = vadd.f32 %v1513, %v1978
      %v2015 = vadd.f32 %v1514, %v1981
      %s2016 = sadd.s32 %s394, 1
      %s2017 = smul.u32 %s2016, 3
      %s2018 = smul.addr %s2017, 4
      %s2019 = scalar_lea.vmem %s353, %s2018
      %v2020 = vld [vmem:[%s2019] sm:$0xf]
      %v2021 = vld [vmem:[%s2019 + $0x4] sm:$0xf]
      %v2022 = vld [vmem:[%s2019 + $0xc] sm:$0xf]
      %v2023 = vld [vmem:[%s2019 + $0x10] sm:$0xf]
      %v2024 = vld [vmem:[%s2019 + $0x18] sm:$0xf]
      %v2025 = vld [vmem:[%s2019 + $0x1c] sm:$0xf]
      %v2026 = vld [vmem:[%s2019 + $0x24] sm:$0xf]
      %v2027 = vld [vmem:[%s2019 + $0x28] sm:$0xf]
      %v2028 = vld [vmem:[%s2019 + $0x30] sm:$0xf]
      %v2029 = vld [vmem:[%s2019 + $0x34] sm:$0xf]
      %v2030 = vld [vmem:[%s2019 + $0x3c] sm:$0xf]
      %v2031 = vld [vmem:[%s2019 + $0x40] sm:$0xf]
      %v2032 = vld [vmem:[%s2019 + $0x48] sm:$0xf]
      %v2033 = vld [vmem:[%s2019 + $0x4c] sm:$0xf]
      %v2034 = vld [vmem:[%s2019 + $0x54] sm:$0xf]
      %v2035 = vld [vmem:[%s2019 + $0x58] sm:$0xf]
      %v2036 = vld [vmem:[%s2019 + $0x60] sm:$0xf]
      %v2037 = vld [vmem:[%s2019 + $0x64] sm:$0xf]
      %v2038 = vld [vmem:[%s2019 + $0x6c] sm:$0xf]
      %v2039 = vld [vmem:[%s2019 + $0x70] sm:$0xf]
      %v2040 = vld [vmem:[%s2019 + $0x78] sm:$0xf]
      %v2041 = vld [vmem:[%s2019 + $0x7c] sm:$0xf]
      %v2042 = vld [vmem:[%s2019 + $0x84] sm:$0xf]
      %v2043 = vld [vmem:[%s2019 + $0x88] sm:$0xf]
      %v2044 = vld [vmem:[%s2019 + $0x90] sm:$0xf]
      %v2045 = vld [vmem:[%s2019 + $0x94] sm:$0xf]
      %v2046 = vld [vmem:[%s2019 + $0x9c] sm:$0xf]
      %v2047 = vld [vmem:[%s2019 + $0xa0] sm:$0xf]
      %v2048 = vld [vmem:[%s2019 + $0xa8] sm:$0xf]
      %v2049 = vld [vmem:[%s2019 + $0xac] sm:$0xf]
      %v2050 = vld [vmem:[%s2019 + $0xb4] sm:$0xf]
      %v2051 = vld [vmem:[%s2019 + $0xb8] sm:$0xf]
      %s2052 = scalar_lea.vmem %s357, 192
      %v2053 = vld [vmem:[%s2052] sm:$0xf]
      %v2054 = vld [vmem:[%s2052 + $0x4] sm:$0xf]
      %v2055 = vld [vmem:[%s2052 + $0x8] sm:$0xf]
      %v2056 = vld [vmem:[%s2052 + $0xc] sm:$0xf]
      %v2057 = vld [vmem:[%s2052 + $0x10] sm:$0xf]
      %v2058 = vld [vmem:[%s2052 + $0x14] sm:$0xf]
      %v2059 = vld [vmem:[%s2052 + $0x18] sm:$0xf]
      %v2060 = vld [vmem:[%s2052 + $0x1c] sm:$0xf]
      %v2061 = vld [vmem:[%s2052 + $0x20] sm:$0xf]
      %v2062 = vld [vmem:[%s2052 + $0x24] sm:$0xf]
      %v2063 = vld [vmem:[%s2052 + $0x28] sm:$0xf]
      %v2064 = vld [vmem:[%s2052 + $0x2c] sm:$0xf]
      %v2065 = vld [vmem:[%s2052 + $0x30] sm:$0xf]
      %v2066 = vld [vmem:[%s2052 + $0x34] sm:$0xf]
      %v2067 = vld [vmem:[%s2052 + $0x38] sm:$0xf]
      %v2068 = vld [vmem:[%s2052 + $0x3c] sm:$0xf]
      %v2101 = vunpack.c.l.b16 %v2020
      %v2102 = vunpack.c.l.b16 %v2021
      %v2103 = vunpack.c.l.b16 %v2022
      %v2104 = vunpack.c.l.b16 %v2023
      %v2105 = vunpack.c.l.b16 %v2024
      %v2106 = vunpack.c.l.b16 %v2025
      %v2107 = vunpack.c.l.b16 %v2026
      %v2108 = vunpack.c.l.b16 %v2027
      %v2109 = vunpack.c.l.b16 %v2028
      %v2110 = vunpack.c.l.b16 %v2029
      %v2111 = vunpack.c.l.b16 %v2030
      %v2112 = vunpack.c.l.b16 %v2031
      %v2113 = vunpack.c.l.b16 %v2032
      %v2114 = vunpack.c.l.b16 %v2033
      %v2115 = vunpack.c.l.b16 %v2034
      %v2116 = vunpack.c.l.b16 %v2035
      %v2117 = vunpack.c.l.b16 %v2036
      %v2118 = vunpack.c.l.b16 %v2037
      %v2119 = vunpack.c.l.b16 %v2038
      %v2120 = vunpack.c.l.b16 %v2039
      %v2121 = vunpack.c.l.b16 %v2040
      %v2122 = vunpack.c.l.b16 %v2041
      %v2123 = vunpack.c.l.b16 %v2042
      %v2124 = vunpack.c.l.b16 %v2043
      %v2125 = vunpack.c.l.b16 %v2044
      %v2126 = vunpack.c.l.b16 %v2045
      %v2127 = vunpack.c.l.b16 %v2046
      %v2128 = vunpack.c.l.b16 %v2047
      %v2129 = vunpack.c.l.b16 %v2048
      %v2130 = vunpack.c.l.b16 %v2049
      %v2131 = vunpack.c.l.b16 %v2050
      %v2132 = vunpack.c.l.b16 %v2051
      %v2133 = vpack.c.b16 %v2102, %v2101
      %v2134 = vpack.c.b16 %v2104, %v2103
      %v2135 = vpack.c.b16 %v2106, %v2105
      %v2136 = vpack.c.b16 %v2108, %v2107
      %v2137 = vpack.c.b16 %v2110, %v2109
      %v2138 = vpack.c.b16 %v2112, %v2111
      %v2139 = vpack.c.b16 %v2114, %v2113
      %v2140 = vpack.c.b16 %v2116, %v2115
      %v2141 = vpack.c.b16 %v2118, %v2117
      %v2142 = vpack.c.b16 %v2120, %v2119
      %v2143 = vpack.c.b16 %v2122, %v2121
      %v2144 = vpack.c.b16 %v2124, %v2123
      %v2145 = vpack.c.b16 %v2126, %v2125
      %v2146 = vpack.c.b16 %v2128, %v2127
      %v2147 = vpack.c.b16 %v2130, %v2129
      %v2148 = vpack.c.b16 %v2132, %v2131
      %v2181 = vunpack.c.l.b16 %v2053
      %v2182 = vunpack.c.l.b16 %v2054
      %v2183 = vunpack.c.l.b16 %v2055
      %v2184 = vunpack.c.l.b16 %v2056
      %v2185 = vunpack.c.l.b16 %v2057
      %v2186 = vunpack.c.l.b16 %v2058
      %v2187 = vunpack.c.l.b16 %v2059
      %v2188 = vunpack.c.l.b16 %v2060
      %v2189 = vunpack.c.l.b16 %v2061
      %v2190 = vunpack.c.l.b16 %v2062
      %v2191 = vunpack.c.l.b16 %v2063
      %v2192 = vunpack.c.l.b16 %v2064
      %v2193 = vunpack.c.l.b16 %v2065
      %v2194 = vunpack.c.l.b16 %v2066
      %v2195 = vunpack.c.l.b16 %v2067
      %v2196 = vunpack.c.l.b16 %v2068
      %v2197 = vpack.c.b16 %v2182, %v2181
      %v2198 = vpack.c.b16 %v2184, %v2183
      %v2199 = vpack.c.b16 %v2186, %v2185
      %v2200 = vpack.c.b16 %v2188, %v2187
      %v2201 = vpack.c.b16 %v2190, %v2189
      %v2202 = vpack.c.b16 %v2192, %v2191
      %v2203 = vpack.c.b16 %v2194, %v2193
      %v2204 = vpack.c.b16 %v2196, %v2195
      %2213 = vmatprep.subr.bf16.mxu0 0
      %2214 = vmatpush1.bf16.msra.mxu0 %v2197
      %2215 = vmatprep.subr.bf16.mxu0 0
      %2216 = vmatpush1.bf16.msra.mxu0 %v2198
      %2217 = vmatprep.subr.bf16.mxu0 0
      %2218 = vmatpush1.bf16.msra.mxu0 %v2199
      %2219 = vmatprep.subr.bf16.mxu0 0
      %2220 = vmatpush1.bf16.msra.mxu0 %v2200
      %2221 = vmatprep.subr.bf16.mxu0 0
      %2222 = vmatpush1.bf16.msra.mxu0 %v2201
      %2223 = vmatprep.subr.bf16.mxu0 0
      %2224 = vmatpush1.bf16.msra.mxu0 %v2202
      %2225 = vmatprep.subr.bf16.mxu0 0
      %2226 = vmatpush1.bf16.msra.mxu0 %v2203
      %2227 = vmatprep.subr.bf16.mxu0 0
      %2228 = vmatpush1.bf16.msra.mxu0 %v2204
      %2229 = vmatprep.subr.bf16.mxu0 0
      %2230 = vmatpush1.bf16.msra.mxu0 0
      %2231 = vmatprep.subr.bf16.mxu0 0
      %2232 = vmatpush1.bf16.msra.mxu0 0
      %2233 = vmatprep.subr.bf16.mxu0 0
      %2234 = vmatpush1.bf16.msra.mxu0 0
      %2235 = vmatprep.subr.bf16.mxu0 0
      %2236 = vmatpush1.bf16.msra.mxu0 0
      %2237 = vmatprep.subr.bf16.mxu0 0
      %2238 = vmatpush1.bf16.msra.mxu0 0
      %2239 = vmatprep.subr.bf16.mxu0 0
      %2240 = vmatpush1.bf16.msra.mxu0 0
      %2241 = vmatprep.subr.bf16.mxu0 0
      %2242 = vmatpush1.bf16.msra.mxu0 0
      %2243 = vmatprep.subr.bf16.mxu0 0
      %2244 = vmatpush1.bf16.msra.mxu0 0
      %2245 = vmatprep.mubr.bf16.mxu0 0
      %2246 = vmatmul.mubr.bf16.gmra.mrb[0].mxu0 %v2133
      %v2247 = vpop.f32.mrb[0].mxu0
      %v2248 = vadd.f32 0.0, %v2247
      %v2249 = vpop.f32.mrb[0].mxu0
      %v2250 = vpop.f32.mrb[0].mxu0
      %v2251 = vadd.f32 0.0, %v2250
      %v2252 = vpop.f32.mrb[0].mxu0
      %2253 = vmatprep.mubr.bf16.mxu0 0
      %2254 = vmatmul.mubr.bf16.gmra.mrb[0].mxu0 %v2134
      %v2255 = vpop.f32.mrb[0].mxu0
      %v2256 = vadd.f32 0.0, %v2255
      %v2257 = vpop.f32.mrb[0].mxu0
      %v2258 = vpop.f32.mrb[0].mxu0
      %v2259 = vadd.f32 0.0, %v2258
      %v2260 = vpop.f32.mrb[0].mxu0
      %2261 = vmatprep.mubr.bf16.mxu0 0
      %2262 = vmatmul.mubr.bf16.gmra.mrb[0].mxu0 %v2135
      %v2263 = vpop.f32.mrb[0].mxu0
      %v2264 = vadd.f32 0.0, %v2263
      %v2265 = vpop.f32.mrb[0].mxu0
      %v2266 = vpop.f32.mrb[0].mxu0
      %v2267 = vadd.f32 0.0, %v2266
      %v2268 = vpop.f32.mrb[0].mxu0
      %2269 = vmatprep.mubr.bf16.mxu0 0
      %2270 = vmatmul.mubr.bf16.gmra.mrb[0].mxu0 %v2136
      %v2271 = vpop.f32.mrb[0].mxu0
      %v2272 = vadd.f32 0.0, %v2271
      %v2273 = vpop.f32.mrb[0].mxu0
      %v2274 = vpop.f32.mrb[0].mxu0
      %v2275 = vadd.f32 0.0, %v2274
      %v2276 = vpop.f32.mrb[0].mxu0
      %2277 = vmatprep.mubr.bf16.mxu0 0
      %2278 = vmatmul.mubr.bf16.gmra.mrb[0].mxu0 %v2137
      %v2279 = vpop.f32.mrb[0].mxu0
      %v2280 = vadd.f32 0.0, %v2279
      %v2281 = vpop.f32.mrb[0].mxu0
      %v2282 = vpop.f32.mrb[0].mxu0
      %v2283 = vadd.f32 0.0, %v2282
      %v2284 = vpop.f32.mrb[0].mxu0
      %2285 = vmatprep.mubr.bf16.mxu0 0
      %2286 = vmatmul.mubr.bf16.gmra.mrb[0].mxu0 %v2138
      %v2287 = vpop.f32.mrb[0].mxu0
      %v2288 = vadd.f32 0.0, %v2287
      %v2289 = vpop.f32.mrb[0].mxu0
      %v2290 = vpop.f32.mrb[0].mxu0
      %v2291 = vadd.f32 0.0, %v2290
      %v2292 = vpop.f32.mrb[0].mxu0
      %2293 = vmatprep.mubr.bf16.mxu0 0
      %2294 = vmatmul.mubr.bf16.gmra.mrb[0].mxu0 %v2139
      %v2295 = vpop.f32.mrb[0].mxu0
      %v2296 = vadd.f32 0.0, %v2295
      %v2297 = vpop.f32.mrb[0].mxu0
      %v2298 = vpop.f32.mrb[0].mxu0
      %v2299 = vadd.f32 0.0, %v2298
      %v2300 = vpop.f32.mrb[0].mxu0
      %2301 = vmatprep.mubr.bf16.mxu0 0
      %2302 = vmatmul.mubr.bf16.gmra.mrb[0].mxu0 %v2140
      %v2303 = vpop.f32.mrb[0].mxu0
      %v2304 = vadd.f32 0.0, %v2303
      %v2305 = vpop.f32.mrb[0].mxu0
      %v2306 = vpop.f32.mrb[0].mxu0
      %v2307 = vadd.f32 0.0, %v2306
      %v2308 = vpop.f32.mrb[0].mxu0
      %2309 = vmatprep.mubr.bf16.mxu0 0
      %2310 = vmatmul.mubr.bf16.gmra.mrb[0].mxu0 %v2141
      %v2311 = vpop.f32.mrb[0].mxu0
      %v2312 = vadd.f32 0.0, %v2311
      %v2313 = vpop.f32.mrb[0].mxu0
      %v2314 = vpop.f32.mrb[0].mxu0
      %v2315 = vadd.f32 0.0, %v2314
      %v2316 = vpop.f32.mrb[0].mxu0
      %2317 = vmatprep.mubr.bf16.mxu0 0
      %2318 = vmatmul.mubr.bf16.gmra.mrb[0].mxu0 %v2142
      %v2319 = vpop.f32.mrb[0].mxu0
      %v2320 = vadd.f32 0.0, %v2319
      %v2321 = vpop.f32.mrb[0].mxu0
      %v2322 = vpop.f32.mrb[0].mxu0
      %v2323 = vadd.f32 0.0, %v2322
      %v2324 = vpop.f32.mrb[0].mxu0
      %2325 = vmatprep.mubr.bf16.mxu0 0
      %2326 = vmatmul.mubr.bf16.gmra.mrb[0].mxu0 %v2143
      %v2327 = vpop.f32.mrb[0].mxu0
      %v2328 = vadd.f32 0.0, %v2327
      %v2329 = vpop.f32.mrb[0].mxu0
      %v2330 = vpop.f32.mrb[0].mxu0
      %v2331 = vadd.f32 0.0, %v2330
      %v2332 = vpop.f32.mrb[0].mxu0
      %2333 = vmatprep.mubr.bf16.mxu0 0
      %2334 = vmatmul.mubr.bf16.gmra.mrb[0].mxu0 %v2144
      %v2335 = vpop.f32.mrb[0].mxu0
      %v2336 = vadd.f32 0.0, %v2335
      %v2337 = vpop.f32.mrb[0].mxu0
      %v2338 = vpop.f32.mrb[0].mxu0
      %v2339 = vadd.f32 0.0, %v2338
      %v2340 = vpop.f32.mrb[0].mxu0
      %2341 = vmatprep.mubr.bf16.mxu0 0
      %2342 = vmatmul.mubr.bf16.gmra.mrb[0].mxu0 %v2145
      %v2343 = vpop.f32.mrb[0].mxu0
      %v2344 = vadd.f32 0.0, %v2343
      %v2345 = vpop.f32.mrb[0].mxu0
      %v2346 = vpop.f32.mrb[0].mxu0
      %v2347 = vadd.f32 0.0, %v2346
      %v2348 = vpop.f32.mrb[0].mxu0
      %2349 = vmatprep.mubr.bf16.mxu0 0
      %2350 = vmatmul.mubr.bf16.gmra.mrb[0].mxu0 %v2146
      %v2351 = vpop.f32.mrb[0].mxu0
      %v2352 = vadd.f32 0.0, %v2351
      %v2353 = vpop.f32.mrb[0].mxu0
      %v2354 = vpop.f32.mrb[0].mxu0
      %v2355 = vadd.f32 0.0, %v2354
      %v2356 = vpop.f32.mrb[0].mxu0
      %2357 = vmatprep.mubr.bf16.mxu0 0
      %2358 = vmatmul.mubr.bf16.gmra.mrb[0].mxu0 %v2147
      %v2359 = vpop.f32.mrb[0].mxu0
      %v2360 = vadd.f32 0.0, %v2359
      %v2361 = vpop.f32.mrb[0].mxu0
      %v2362 = vpop.f32.mrb[0].mxu0
      %v2363 = vadd.f32 0.0, %v2362
      %v2364 = vpop.f32.mrb[0].mxu0
      %2365 = vmatprep.mubr.bf16.mxu0 0
      %2366 = vmatmul.mubr.bf16.gmra.mrb[0].mxu0 %v2148
      %v2367 = vpop.f32.mrb[0].mxu0
      %v2368 = vadd.f32 0.0, %v2367
      %v2369 = vpop.f32.mrb[0].mxu0
      %v2370 = vpop.f32.mrb[0].mxu0
      %v2371 = vadd.f32 0.0, %v2370
      %v2372 = vpop.f32.mrb[0].mxu0
      %2373 = vdwg.mxu0
      %v2374 = vadd.f32 %v1984, %v2248
      %v2375 = vadd.f32 %v1985, %v2251
      %v2376 = vadd.f32 %v1986, %v2256
      %v2377 = vadd.f32 %v1987, %v2259
      %v2378 = vadd.f32 %v1988, %v2264
      %v2379 = vadd.f32 %v1989, %v2267
      %v2380 = vadd.f32 %v1990, %v2272
      %v2381 = vadd.f32 %v1991, %v2275
      %v2382 = vadd.f32 %v1992, %v2280
      %v2383 = vadd.f32 %v1993, %v2283
      %v2384 = vadd.f32 %v1994, %v2288
      %v2385 = vadd.f32 %v1995, %v2291
      %v2386 = vadd.f32 %v1996, %v2296
      %v2387 = vadd.f32 %v1997, %v2299
      %v2388 = vadd.f32 %v1998, %v2304
      %v2389 = vadd.f32 %v1999, %v2307
      %v2390 = vadd.f32 %v2000, %v2312
      %v2391 = vadd.f32 %v2001, %v2315
      %v2392 = vadd.f32 %v2002, %v2320
      %v2393 = vadd.f32 %v2003, %v2323
      %v2394 = vadd.f32 %v2004, %v2328
      %v2395 = vadd.f32 %v2005, %v2331
      %v2396 = vadd.f32 %v2006, %v2336
      %v2397 = vadd.f32 %v2007, %v2339
      %v2398 = vadd.f32 %v2008, %v2344
      %v2399 = vadd.f32 %v2009, %v2347
      %v2400 = vadd.f32 %v2010, %v2352
      %v2401 = vadd.f32 %v2011, %v2355
      %v2402 = vadd.f32 %v2012, %v2360
      %v2403 = vadd.f32 %v2013, %v2363
      %v2404 = vadd.f32 %v2014, %v2368
      %v2405 = vadd.f32 %v2015, %v2371
      %v2406 = vld [vmem:[%s2019] sm:$0xf]
      %v2407 = vld [vmem:[%s2019 + $0x4] sm:$0xf]
      %v2408 = vld [vmem:[%s2019 + $0x8] sm:$0x1]
      %v2409 = vld [vmem:[%s2019 + $0xc] sm:$0xf]
      %v2410 = vld [vmem:[%s2019 + $0x10] sm:$0xf]
      %v2411 = vld [vmem:[%s2019 + $0x14] sm:$0x1]
      %v2412 = vld [vmem:[%s2019 + $0x18] sm:$0xf]
      %v2413 = vld [vmem:[%s2019 + $0x1c] sm:$0xf]
      %v2414 = vld [vmem:[%s2019 + $0x20] sm:$0x1]
      %v2415 = vld [vmem:[%s2019 + $0x24] sm:$0xf]
      %v2416 = vld [vmem:[%s2019 + $0x28] sm:$0xf]
      %v2417 = vld [vmem:[%s2019 + $0x2c] sm:$0x1]
      %v2418 = vld [vmem:[%s2019 + $0x30] sm:$0xf]
      %v2419 = vld [vmem:[%s2019 + $0x34] sm:$0xf]
      %v2420 = vld [vmem:[%s2019 + $0x38] sm:$0x1]
      %v2421 = vld [vmem:[%s2019 + $0x3c] sm:$0xf]
      %v2422 = vld [vmem:[%s2019 + $0x40] sm:$0xf]
      %v2423 = vld [vmem:[%s2019 + $0x44] sm:$0x1]
      %v2424 = vld [vmem:[%s2019 + $0x48] sm:$0xf]
      %v2425 = vld [vmem:[%s2019 + $0x4c] sm:$0xf]
      %v2426 = vld [vmem:[%s2019 + $0x50] sm:$0x1]
      %v2427 = vld [vmem:[%s2019 + $0x54] sm:$0xf]
      %v2428 = vld [vmem:[%s2019 + $0x58] sm:$0xf]
      %v2429 = vld [vmem:[%s2019 + $0x5c] sm:$0x1]
      %v2430 = vld [vmem:[%s2019 + $0x60] sm:$0xf]
      %v2431 = vld [vmem:[%s2019 + $0x64] sm:$0xf]
      %v2432 = vld [vmem:[%s2019 + $0x68] sm:$0x1]
      %v2433 = vld [vmem:[%s2019 + $0x6c] sm:$0xf]
      %v2434 = vld [vmem:[%s2019 + $0x70] sm:$0xf]
      %v2435 = vld [vmem:[%s2019 + $0x74] sm:$0x1]
      %v2436 = vld [vmem:[%s2019 + $0x78] sm:$0xf]
      %v2437 = vld [vmem:[%s2019 + $0x7c] sm:$0xf]
      %v2438 = vld [vmem:[%s2019 + $0x80] sm:$0x1]
      %v2439 = vld [vmem:[%s2019 + $0x84] sm:$0xf]
      %v2440 = vld [vmem:[%s2019 + $0x88] sm:$0xf]
      %v2441 = vld [vmem:[%s2019 + $0x8c] sm:$0x1]
      %v2442 = vld [vmem:[%s2019 + $0x90] sm:$0xf]
      %v2443 = vld [vmem:[%s2019 + $0x94] sm:$0xf]
      %v2444 = vld [vmem:[%s2019 + $0x98] sm:$0x1]
      %v2445 = vld [vmem:[%s2019 + $0x9c] sm:$0xf]
      %v2446 = vld [vmem:[%s2019 + $0xa0] sm:$0xf]
      %v2447 = vld [vmem:[%s2019 + $0xa4] sm:$0x1]
      %v2448 = vld [vmem:[%s2019 + $0xa8] sm:$0xf]
      %v2449 = vld [vmem:[%s2019 + $0xac] sm:$0xf]
      %v2450 = vld [vmem:[%s2019 + $0xb0] sm:$0x1]
      %v2451 = vld [vmem:[%s2019 + $0xb4] sm:$0xf]
      %v2452 = vld [vmem:[%s2019 + $0xb8] sm:$0xf]
      %v2453 = vld [vmem:[%s2019 + $0xbc] sm:$0x1]
      %v2455 = vshrl.u32 %v2406, 16
      %v2457 = vrot.slane %v2455, 4
      %v2458 = vshll.u32 %v2406, 16
      %v2460 = vrot.slane %v2458, 5
      %v2461 = vor.u32 %v2457, %v2460
      %v2462 = vrot.slane %v2461, 4
      %v2464 = vshll.u32 %v2407, 16
      %v2466 = vrot.slane %v2464, 5
      %v2467 = vsel %vm808, %v2462, %v2466
      %v2468 = vshrl.u32 %v2407, 16
      %v2470 = vrot.slane %v2468, 4
      %v2471 = vor.u32 %v2470, %v2466
      %v2472 = vrot.slane %v2471, 4
      %v2474 = vshll.u32 %v2408, 16
      %v2476 = vrot.slane %v2474, 5
      %v2477 = vsel %vm808, %v2472, %v2476
      %v2479 = vshrl.u32 %v2409, 16
      %v2481 = vrot.slane %v2479, 4
      %v2482 = vshll.u32 %v2409, 16
      %v2484 = vrot.slane %v2482, 5
      %v2485 = vor.u32 %v2481, %v2484
      %v2486 = vrot.slane %v2485, 4
      %v2488 = vshll.u32 %v2410, 16
      %v2490 = vrot.slane %v2488, 5
      %v2491 = vsel %vm808, %v2486, %v2490
      %v2492 = vshrl.u32 %v2410, 16
      %v2494 = vrot.slane %v2492, 4
      %v2495 = vor.u32 %v2494, %v2490
      %v2496 = vrot.slane %v2495, 4
      %v2498 = vshll.u32 %v2411, 16
      %v2500 = vrot.slane %v2498, 5
      %v2501 = vsel %vm808, %v2496, %v2500
      %v2503 = vshrl.u32 %v2412, 16
      %v2505 = vrot.slane %v2503, 4
      %v2506 = vshll.u32 %v2412, 16
      %v2508 = vrot.slane %v2506, 5
      %v2509 = vor.u32 %v2505, %v2508
      %v2510 = vrot.slane %v2509, 4
      %v2512 = vshll.u32 %v2413, 16
      %v2514 = vrot.slane %v2512, 5
      %v2515 = vsel %vm808, %v2510, %v2514
      %v2516 = vshrl.u32 %v2413, 16
      %v2518 = vrot.slane %v2516, 4
      %v2519 = vor.u32 %v2518, %v2514
      %v2520 = vrot.slane %v2519, 4
      %v2522 = vshll.u32 %v2414, 16
      %v2524 = vrot.slane %v2522, 5
      %v2525 = vsel %vm808, %v2520, %v2524
      %v2527 = vshrl.u32 %v2415, 16
      %v2529 = vrot.slane %v2527, 4
      %v2530 = vshll.u32 %v2415, 16
      %v2532 = vrot.slane %v2530, 5
      %v2533 = vor.u32 %v2529, %v2532
      %v2534 = vrot.slane %v2533, 4
      %v2536 = vshll.u32 %v2416, 16
      %v2538 = vrot.slane %v2536, 5
      %v2539 = vsel %vm808, %v2534, %v2538
      %v2540 = vshrl.u32 %v2416, 16
      %v2542 = vrot.slane %v2540, 4
      %v2543 = vor.u32 %v2542, %v2538
      %v2544 = vrot.slane %v2543, 4
      %v2546 = vshll.u32 %v2417, 16
      %v2548 = vrot.slane %v2546, 5
      %v2549 = vsel %vm808, %v2544, %v2548
      %v2551 = vshrl.u32 %v2418, 16
      %v2553 = vrot.slane %v2551, 4
      %v2554 = vshll.u32 %v2418, 16
      %v2556 = vrot.slane %v2554, 5
      %v2557 = vor.u32 %v2553, %v2556
      %v2558 = vrot.slane %v2557, 4
      %v2560 = vshll.u32 %v2419, 16
      %v2562 = vrot.slane %v2560, 5
      %v2563 = vsel %vm808, %v2558, %v2562
      %v2564 = vshrl.u32 %v2419, 16
      %v2566 = vrot.slane %v2564, 4
      %v2567 = vor.u32 %v2566, %v2562
      %v2568 = vrot.slane %v2567, 4
      %v2570 = vshll.u32 %v2420, 16
      %v2572 = vrot.slane %v2570, 5
      %v2573 = vsel %vm808, %v2568, %v2572
      %v2575 = vshrl.u32 %v2421, 16
      %v2577 = vrot.slane %v2575, 4
      %v2578 = vshll.u32 %v2421, 16
      %v2580 = vrot.slane %v2578, 5
      %v2581 = vor.u32 %v2577, %v2580
      %v2582 = vrot.slane %v2581, 4
      %v2584 = vshll.u32 %v2422, 16
      %v2586 = vrot.slane %v2584, 5
      %v2587 = vsel %vm808, %v2582, %v2586
      %v2588 = vshrl.u32 %v2422, 16
      %v2590 = vrot.slane %v2588, 4
      %v2591 = vor.u32 %v2590, %v2586
      %v2592 = vrot.slane %v2591, 4
      %v2594 = vshll.u32 %v2423, 16
      %v2596 = vrot.slane %v2594, 5
      %v2597 = vsel %vm808, %v2592, %v2596
      %v2599 = vshrl.u32 %v2424, 16
      %v2601 = vrot.slane %v2599, 4
      %v2602 = vshll.u32 %v2424, 16
      %v2604 = vrot.slane %v2602, 5
      %v2605 = vor.u32 %v2601, %v2604
      %v2606 = vrot.slane %v2605, 4
      %v2608 = vshll.u32 %v2425, 16
      %v2610 = vrot.slane %v2608, 5
      %v2611 = vsel %vm808, %v2606, %v2610
      %v2612 = vshrl.u32 %v2425, 16
      %v2614 = vrot.slane %v2612, 4
      %v2615 = vor.u32 %v2614, %v2610
      %v2616 = vrot.slane %v2615, 4
      %v2618 = vshll.u32 %v2426, 16
      %v2620 = vrot.slane %v2618, 5
      %v2621 = vsel %vm808, %v2616, %v2620
      %v2623 = vshrl.u32 %v2427, 16
      %v2625 = vrot.slane %v2623, 4
      %v2626 = vshll.u32 %v2427, 16
      %v2628 = vrot.slane %v2626, 5
      %v2629 = vor.u32 %v2625, %v2628
      %v2630 = vrot.slane %v2629, 4
      %v2632 = vshll.u32 %v2428, 16
      %v2634 = vrot.slane %v2632, 5
      %v2635 = vsel %vm808, %v2630, %v2634
      %v2636 = vshrl.u32 %v2428, 16
      %v2638 = vrot.slane %v2636, 4
      %v2639 = vor.u32 %v2638, %v2634
      %v2640 = vrot.slane %v2639, 4
      %v2642 = vshll.u32 %v2429, 16
      %v2644 = vrot.slane %v2642, 5
      %v2645 = vsel %vm808, %v2640, %v2644
      %v2647 = vshrl.u32 %v2430, 16
      %v2649 = vrot.slane %v2647, 4
      %v2650 = vshll.u32 %v2430, 16
      %v2652 = vrot.slane %v2650, 5
      %v2653 = vor.u32 %v2649, %v2652
      %v2654 = vrot.slane %v2653, 4
      %v2656 = vshll.u32 %v2431, 16
      %v2658 = vrot.slane %v2656, 5
      %v2659 = vsel %vm808, %v2654, %v2658
      %v2660 = vshrl.u32 %v2431, 16
      %v2662 = vrot.slane %v2660, 4
      %v2663 = vor.u32 %v2662, %v2658
      %v2664 = vrot.slane %v2663, 4
      %v2666 = vshll.u32 %v2432, 16
      %v2668 = vrot.slane %v2666, 5
      %v2669 = vsel %vm808, %v2664, %v2668
      %v2671 = vshrl.u32 %v2433, 16
      %v2673 = vrot.slane %v2671, 4
      %v2674 = vshll.u32 %v2433, 16
      %v2676 = vrot.slane %v2674, 5
      %v2677 = vor.u32 %v2673, %v2676
      %v2678 = vrot.slane %v2677, 4
      %v2680 = vshll.u32 %v2434, 16
      %v2682 = vrot.slane %v2680, 5
      %v2683 = vsel %vm808, %v2678, %v2682
      %v2684 = vshrl.u32 %v2434, 16
      %v2686 = vrot.slane %v2684, 4
      %v2687 = vor.u32 %v2686, %v2682
      %v2688 = vrot.slane %v2687, 4
      %v2690 = vshll.u32 %v2435, 16
      %v2692 = vrot.slane %v2690, 5
      %v2693 = vsel %vm808, %v2688, %v2692
      %v2695 = vshrl.u32 %v2436, 16
      %v2697 = vrot.slane %v2695, 4
      %v2698 = vshll.u32 %v2436, 16
      %v2700 = vrot.slane %v2698, 5
      %v2701 = vor.u32 %v2697, %v2700
      %v2702 = vrot.slane %v2701, 4
      %v2704 = vshll.u32 %v2437, 16
      %v2706 = vrot.slane %v2704, 5
      %v2707 = vsel %vm808, %v2702, %v2706
      %v2708 = vshrl.u32 %v2437, 16
      %v2710 = vrot.slane %v2708, 4
      %v2711 = vor.u32 %v2710, %v2706
      %v2712 = vrot.slane %v2711, 4
      %v2714 = vshll.u32 %v2438, 16
      %v2716 = vrot.slane %v2714, 5
      %v2717 = vsel %vm808, %v2712, %v2716
      %v2719 = vshrl.u32 %v2439, 16
      %v2721 = vrot.slane %v2719, 4
      %v2722 = vshll.u32 %v2439, 16
      %v2724 = vrot.slane %v2722, 5
      %v2725 = vor.u32 %v2721, %v2724
      %v2726 = vrot.slane %v2725, 4
      %v2728 = vshll.u32 %v2440, 16
      %v2730 = vrot.slane %v2728, 5
      %v2731 = vsel %vm808, %v2726, %v2730
      %v2732 = vshrl.u32 %v2440, 16
      %v2734 = vrot.slane %v2732, 4
      %v2735 = vor.u32 %v2734, %v2730
      %v2736 = vrot.slane %v2735, 4
      %v2738 = vshll.u32 %v2441, 16
      %v2740 = vrot.slane %v2738, 5
      %v2741 = vsel %vm808, %v2736, %v2740
      %v2743 = vshrl.u32 %v2442, 16
      %v2745 = vrot.slane %v2743, 4
      %v2746 = vshll.u32 %v2442, 16
      %v2748 = vrot.slane %v2746, 5
      %v2749 = vor.u32 %v2745, %v2748
      %v2750 = vrot.slane %v2749, 4
      %v2752 = vshll.u32 %v2443, 16
      %v2754 = vrot.slane %v2752, 5
      %v2755 = vsel %vm808, %v2750, %v2754
      %v2756 = vshrl.u32 %v2443, 16
      %v2758 = vrot.slane %v2756, 4
      %v2759 = vor.u32 %v2758, %v2754
      %v2760 = vrot.slane %v2759, 4
      %v2762 = vshll.u32 %v2444, 16
      %v2764 = vrot.slane %v2762, 5
      %v2765 = vsel %vm808, %v2760, %v2764
      %v2767 = vshrl.u32 %v2445, 16
      %v2769 = vrot.slane %v2767, 4
      %v2770 = vshll.u32 %v2445, 16
      %v2772 = vrot.slane %v2770, 5
      %v2773 = vor.u32 %v2769, %v2772
      %v2774 = vrot.slane %v2773, 4
      %v2776 = vshll.u32 %v2446, 16
      %v2778 = vrot.slane %v2776, 5
      %v2779 = vsel %vm808, %v2774, %v2778
      %v2780 = vshrl.u32 %v2446, 16
      %v2782 = vrot.slane %v2780, 4
      %v2783 = vor.u32 %v2782, %v2778
      %v2784 = vrot.slane %v2783, 4
      %v2786 = vshll.u32 %v2447, 16
      %v2788 = vrot.slane %v2786, 5
      %v2789 = vsel %vm808, %v2784, %v2788
      %v2791 = vshrl.u32 %v2448, 16
      %v2793 = vrot.slane %v2791, 4
      %v2794 = vshll.u32 %v2448, 16
      %v2796 = vrot.slane %v2794, 5
      %v2797 = vor.u32 %v2793, %v2796
      %v2798 = vrot.slane %v2797, 4
      %v2800 = vshll.u32 %v2449, 16
      %v2802 = vrot.slane %v2800, 5
      %v2803 = vsel %vm808, %v2798, %v2802
      %v2804 = vshrl.u32 %v2449, 16
      %v2806 = vrot.slane %v2804, 4
      %v2807 = vor.u32 %v2806, %v2802
      %v2808 = vrot.slane %v2807, 4
      %v2810 = vshll.u32 %v2450, 16
      %v2812 = vrot.slane %v2810, 5
      %v2813 = vsel %vm808, %v2808, %v2812
      %v2815 = vshrl.u32 %v2451, 16
      %v2817 = vrot.slane %v2815, 4
      %v2818 = vshll.u32 %v2451, 16
      %v2820 = vrot.slane %v2818, 5
      %v2821 = vor.u32 %v2817, %v2820
      %v2822 = vrot.slane %v2821, 4
      %v2824 = vshll.u32 %v2452, 16
      %v2826 = vrot.slane %v2824, 5
      %v2827 = vsel %vm808, %v2822, %v2826
      %v2828 = vshrl.u32 %v2452, 16
      %v2830 = vrot.slane %v2828, 4
      %v2831 = vor.u32 %v2830, %v2826
      %v2832 = vrot.slane %v2831, 4
      %v2834 = vshll.u32 %v2453, 16
      %v2836 = vrot.slane %v2834, 5
      %v2837 = vsel %vm808, %v2832, %v2836
      %s2838 = scalar_lea.vmem %s357, 256
      %v2839 = vld [vmem:[%s2838] sm:$0xf]
      %v2840 = vld [vmem:[%s2838 + $0x4] sm:$0xf]
      %v2841 = vld [vmem:[%s2838 + $0x8] sm:$0xf]
      %v2842 = vld [vmem:[%s2838 + $0xc] sm:$0xf]
      %v2843 = vld [vmem:[%s2838 + $0x10] sm:$0xf]
      %v2844 = vld [vmem:[%s2838 + $0x14] sm:$0xf]
      %v2845 = vld [vmem:[%s2838 + $0x18] sm:$0xf]
      %v2846 = vld [vmem:[%s2838 + $0x1c] sm:$0xf]
      %v2847 = vld [vmem:[%s2838 + $0x20] sm:$0xf]
      %v2848 = vld [vmem:[%s2838 + $0x24] sm:$0xf]
      %v2849 = vld [vmem:[%s2838 + $0x28] sm:$0xf]
      %v2850 = vld [vmem:[%s2838 + $0x2c] sm:$0xf]
      %v2851 = vld [vmem:[%s2838 + $0x30] sm:$0xf]
      %v2852 = vld [vmem:[%s2838 + $0x34] sm:$0xf]
      %v2853 = vld [vmem:[%s2838 + $0x38] sm:$0xf]
      %v2854 = vld [vmem:[%s2838 + $0x3c] sm:$0xf]
      %v2855 = vunpack.c.l.b16 %v2467
      %v2856 = vunpack.c.l.b16 %v2477
      %v2857 = vunpack.c.l.b16 %v2491
      %v2858 = vunpack.c.l.b16 %v2501
      %v2859 = vunpack.c.l.b16 %v2515
      %v2860 = vunpack.c.l.b16 %v2525
      %v2861 = vunpack.c.l.b16 %v2539
      %v2862 = vunpack.c.l.b16 %v2549
      %v2863 = vunpack.c.l.b16 %v2563
      %v2864 = vunpack.c.l.b16 %v2573
      %v2865 = vunpack.c.l.b16 %v2587
      %v2866 = vunpack.c.l.b16 %v2597
      %v2867 = vunpack.c.l.b16 %v2611
      %v2868 = vunpack.c.l.b16 %v2621
      %v2869 = vunpack.c.l.b16 %v2635
      %v2870 = vunpack.c.l.b16 %v2645
      %v2871 = vunpack.c.l.b16 %v2659
      %v2872 = vunpack.c.l.b16 %v2669
      %v2873 = vunpack.c.l.b16 %v2683
      %v2874 = vunpack.c.l.b16 %v2693
      %v2875 = vunpack.c.l.b16 %v2707
      %v2876 = vunpack.c.l.b16 %v2717
      %v2877 = vunpack.c.l.b16 %v2731
      %v2878 = vunpack.c.l.b16 %v2741
      %v2879 = vunpack.c.l.b16 %v2755
      %v2880 = vunpack.c.l.b16 %v2765
      %v2881 = vunpack.c.l.b16 %v2779
      %v2882 = vunpack.c.l.b16 %v2789
      %v2883 = vunpack.c.l.b16 %v2803
      %v2884 = vunpack.c.l.b16 %v2813
      %v2885 = vunpack.c.l.b16 %v2827
      %v2886 = vunpack.c.l.b16 %v2837
      %v2887 = vpack.c.b16 %v2856, %v2855
      %v2888 = vpack.c.b16 %v2858, %v2857
      %v2889 = vpack.c.b16 %v2860, %v2859
      %v2890 = vpack.c.b16 %v2862, %v2861
      %v2891 = vpack.c.b16 %v2864, %v2863
      %v2892 = vpack.c.b16 %v2866, %v2865
      %v2893 = vpack.c.b16 %v2868, %v2867
      %v2894 = vpack.c.b16 %v2870, %v2869
      %v2895 = vpack.c.b16 %v2872, %v2871
      %v2896 = vpack.c.b16 %v2874, %v2873
      %v2897 = vpack.c.b16 %v2876, %v2875
      %v2898 = vpack.c.b16 %v2878, %v2877
      %v2899 = vpack.c.b16 %v2880, %v2879
      %v2900 = vpack.c.b16 %v2882, %v2881
      %v2901 = vpack.c.b16 %v2884, %v2883
      %v2902 = vpack.c.b16 %v2886, %v2885
      %v2935 = vunpack.c.l.b16 %v2839
      %v2936 = vunpack.c.l.b16 %v2840
      %v2937 = vunpack.c.l.b16 %v2841
      %v2938 = vunpack.c.l.b16 %v2842
      %v2939 = vunpack.c.l.b16 %v2843
      %v2940 = vunpack.c.l.b16 %v2844
      %v2941 = vunpack.c.l.b16 %v2845
      %v2942 = vunpack.c.l.b16 %v2846
      %v2943 = vunpack.c.l.b16 %v2847
      %v2944 = vunpack.c.l.b16 %v2848
      %v2945 = vunpack.c.l.b16 %v2849
      %v2946 = vunpack.c.l.b16 %v2850
      %v2947 = vunpack.c.l.b16 %v2851
      %v2948 = vunpack.c.l.b16 %v2852
      %v2949 = vunpack.c.l.b16 %v2853
      %v2950 = vunpack.c.l.b16 %v2854
      %v2951 = vpack.c.b16 %v2936, %v2935
      %v2952 = vpack.c.b16 %v2938, %v2937
      %v2953 = vpack.c.b16 %v2940, %v2939
      %v2954 = vpack.c.b16 %v2942, %v2941
      %v2955 = vpack.c.b16 %v2944, %v2943
      %v2956 = vpack.c.b16 %v2946, %v2945
      %v2957 = vpack.c.b16 %v2948, %v2947
      %v2958 = vpack.c.b16 %v2950, %v2949
      %2967 = vmatprep.subr.bf16.mxu0 0
      %2968 = vmatpush1.bf16.msra.mxu0 %v2951
      %2969 = vmatprep.subr.bf16.mxu0 0
      %2970 = vmatpush1.bf16.msra.mxu0 %v2952
      %2971 = vmatprep.subr.bf16.mxu0 0
      %2972 = vmatpush1.bf16.msra.mxu0 %v2953
      %2973 = vmatprep.subr.bf16.mxu0 0
      %2974 = vmatpush1.bf16.msra.mxu0 %v2954
      %2975 = vmatprep.subr.bf16.mxu0 0
      %2976 = vmatpush1.bf16.msra.mxu0 %v2955
      %2977 = vmatprep.subr.bf16.mxu0 0
      %2978 = vmatpush1.bf16.msra.mxu0 %v2956
      %2979 = vmatprep.subr.bf16.mxu0 0
      %2980 = vmatpush1.bf16.msra.mxu0 %v2957
      %2981 = vmatprep.subr.bf16.mxu0 0
      %2982 = vmatpush1.bf16.msra.mxu0 %v2958
      %2983 = vmatprep.subr.bf16.mxu0 0
      %2984 = vmatpush1.bf16.msra.mxu0 0
      %2985 = vmatprep.subr.bf16.mxu0 0
      %2986 = vmatpush1.bf16.msra.mxu0 0
      %2987 = vmatprep.subr.bf16.mxu0 0
      %2988 = vmatpush1.bf16.msra.mxu0 0
      %2989 = vmatprep.subr.bf16.mxu0 0
      %2990 = vmatpush1.bf16.msra.mxu0 0
      %2991 = vmatprep.subr.bf16.mxu0 0
      %2992 = vmatpush1.bf16.msra.mxu0 0
      %2993 = vmatprep.subr.bf16.mxu0 0
      %2994 = vmatpush1.bf16.msra.mxu0 0
      %2995 = vmatprep.subr.bf16.mxu0 0
      %2996 = vmatpush1.bf16.msra.mxu0 0
      %2997 = vmatprep.subr.bf16.mxu0 0
      %2998 = vmatpush1.bf16.msra.mxu0 0
      %2999 = vmatprep.mubr.bf16.mxu0 0
      %3000 = vmatmul.mubr.bf16.gmra.mrb[0].mxu0 %v2887
      %v3001 = vpop.f32.mrb[0].mxu0
      %v3002 = vadd.f32 0.0, %v3001
      %v3003 = vpop.f32.mrb[0].mxu0
      %v3004 = vpop.f32.mrb[0].mxu0
      %v3005 = vadd.f32 0.0, %v3004
      %v3006 = vpop.f32.mrb[0].mxu0
      %3007 = vmatprep.mubr.bf16.mxu0 0
      %3008 = vmatmul.mubr.bf16.gmra.mrb[0].mxu0 %v2888
      %v3009 = vpop.f32.mrb[0].mxu0
      %v3010 = vadd.f32 0.0, %v3009
      %v3011 = vpop.f32.mrb[0].mxu0
      %v3012 = vpop.f32.mrb[0].mxu0
      %v3013 = vadd.f32 0.0, %v3012
      %v3014 = vpop.f32.mrb[0].mxu0
      %3015 = vmatprep.mubr.bf16.mxu0 0
      %3016 = vmatmul.mubr.bf16.gmra.mrb[0].mxu0 %v2889
      %v3017 = vpop.f32.mrb[0].mxu0
      %v3018 = vadd.f32 0.0, %v3017
      %v3019 = vpop.f32.mrb[0].mxu0
      %v3020 = vpop.f32.mrb[0].mxu0
      %v3021 = vadd.f32 0.0, %v3020
      %v3022 = vpop.f32.mrb[0].mxu0
      %3023 = vmatprep.mubr.bf16.mxu0 0
      %3024 = vmatmul.mubr.bf16.gmra.mrb[0].mxu0 %v2890
      %v3025 = vpop.f32.mrb[0].mxu0
      %v3026 = vadd.f32 0.0, %v3025
      %v3027 = vpop.f32.mrb[0].mxu0
      %v3028 = vpop.f32.mrb[0].mxu0
      %v3029 = vadd.f32 0.0, %v3028
      %v3030 = vpop.f32.mrb[0].mxu0
      %3031 = vmatprep.mubr.bf16.mxu0 0
      %3032 = vmatmul.mubr.bf16.gmra.mrb[0].mxu0 %v2891
      %v3033 = vpop.f32.mrb[0].mxu0
      %v3034 = vadd.f32 0.0, %v3033
      %v3035 = vpop.f32.mrb[0].mxu0
      %v3036 = vpop.f32.mrb[0].mxu0
      %v3037 = vadd.f32 0.0, %v3036
      %v3038 = vpop.f32.mrb[0].mxu0
      %3039 = vmatprep.mubr.bf16.mxu0 0
      %3040 = vmatmul.mubr.bf16.gmra.mrb[0].mxu0 %v2892
      %v3041 = vpop.f32.mrb[0].mxu0
      %v3042 = vadd.f32 0.0, %v3041
      %v3043 = vpop.f32.mrb[0].mxu0
      %v3044 = vpop.f32.mrb[0].mxu0
      %v3045 = vadd.f32 0.0, %v3044
      %v3046 = vpop.f32.mrb[0].mxu0
      %3047 = vmatprep.mubr.bf16.mxu0 0
      %3048 = vmatmul.mubr.bf16.gmra.mrb[0].mxu0 %v2893
      %v3049 = vpop.f32.mrb[0].mxu0
      %v3050 = vadd.f32 0.0, %v3049
      %v3051 = vpop.f32.mrb[0].mxu0
      %v3052 = vpop.f32.mrb[0].mxu0
      %v3053 = vadd.f32 0.0, %v3052
      %v3054 = vpop.f32.mrb[0].mxu0
      %3055 = vmatprep.mubr.bf16.mxu0 0
      %3056 = vmatmul.mubr.bf16.gmra.mrb[0].mxu0 %v2894
      %v3057 = vpop.f32.mrb[0].mxu0
      %v3058 = vadd.f32 0.0, %v3057
      %v3059 = vpop.f32.mrb[0].mxu0
      %v3060 = vpop.f32.mrb[0].mxu0
      %v3061 = vadd.f32 0.0, %v3060
      %v3062 = vpop.f32.mrb[0].mxu0
      %3063 = vmatprep.mubr.bf16.mxu0 0
      %3064 = vmatmul.mubr.bf16.gmra.mrb[0].mxu0 %v2895
      %v3065 = vpop.f32.mrb[0].mxu0
      %v3066 = vadd.f32 0.0, %v3065
      %v3067 = vpop.f32.mrb[0].mxu0
      %v3068 = vpop.f32.mrb[0].mxu0
      %v3069 = vadd.f32 0.0, %v3068
      %v3070 = vpop.f32.mrb[0].mxu0
      %3071 = vmatprep.mubr.bf16.mxu0 0
      %3072 = vmatmul.mubr.bf16.gmra.mrb[0].mxu0 %v2896
      %v3073 = vpop.f32.mrb[0].mxu0
      %v3074 = vadd.f32 0.0, %v3073
      %v3075 = vpop.f32.mrb[0].mxu0
      %v3076 = vpop.f32.mrb[0].mxu0
      %v3077 = vadd.f32 0.0, %v3076
      %v3078 = vpop.f32.mrb[0].mxu0
      %3079 = vmatprep.mubr.bf16.mxu0 0
      %3080 = vmatmul.mubr.bf16.gmra.mrb[0].mxu0 %v2897
      %v3081 = vpop.f32.mrb[0].mxu0
      %v3082 = vadd.f32 0.0, %v3081
      %v3083 = vpop.f32.mrb[0].mxu0
      %v3084 = vpop.f32.mrb[0].mxu0
      %v3085 = vadd.f32 0.0, %v3084
      %v3086 = vpop.f32.mrb[0].mxu0
      %3087 = vmatprep.mubr.bf16.mxu0 0
      %3088 = vmatmul.mubr.bf16.gmra.mrb[0].mxu0 %v2898
      %v3089 = vpop.f32.mrb[0].mxu0
      %v3090 = vadd.f32 0.0, %v3089
      %v3091 = vpop.f32.mrb[0].mxu0
      %v3092 = vpop.f32.mrb[0].mxu0
      %v3093 = vadd.f32 0.0, %v3092
      %v3094 = vpop.f32.mrb[0].mxu0
      %3095 = vmatprep.mubr.bf16.mxu0 0
      %3096 = vmatmul.mubr.bf16.gmra.mrb[0].mxu0 %v2899
      %v3097 = vpop.f32.mrb[0].mxu0
      %v3098 = vadd.f32 0.0, %v3097
      %v3099 = vpop.f32.mrb[0].mxu0
      %v3100 = vpop.f32.mrb[0].mxu0
      %v3101 = vadd.f32 0.0, %v3100
      %v3102 = vpop.f32.mrb[0].mxu0
      %3103 = vmatprep.mubr.bf16.mxu0 0
      %3104 = vmatmul.mubr.bf16.gmra.mrb[0].mxu0 %v2900
      %v3105 = vpop.f32.mrb[0].mxu0
      %v3106 = vadd.f32 0.0, %v3105
      %v3107 = vpop.f32.mrb[0].mxu0
      %v3108 = vpop.f32.mrb[0].mxu0
      %v3109 = vadd.f32 0.0, %v3108
      %v3110 = vpop.f32.mrb[0].mxu0
      %3111 = vmatprep.mubr.bf16.mxu0 0
      %3112 = vmatmul.mubr.bf16.gmra.mrb[0].mxu0 %v2901
      %v3113 = vpop.f32.mrb[0].mxu0
      %v3114 = vadd.f32 0.0, %v3113
      %v3115 = vpop.f32.mrb[0].mxu0
      %v3116 = vpop.f32.mrb[0].mxu0
      %v3117 = vadd.f32 0.0, %v3116
      %v3118 = vpop.f32.mrb[0].mxu0
      %3119 = vmatprep.mubr.bf16.mxu0 0
      %3120 = vmatmul.mubr.bf16.gmra.mrb[0].mxu0 %v2902
      %v3121 = vpop.f32.mrb[0].mxu0
      %v3122 = vadd.f32 0.0, %v3121
      %v3123 = vpop.f32.mrb[0].mxu0
      %v3124 = vpop.f32.mrb[0].mxu0
      %v3125 = vadd.f32 0.0, %v3124
      %v3126 = vpop.f32.mrb[0].mxu0
      %3127 = vdwg.mxu0
      %v3128 = vadd.f32 %v2374, %v3002
      %v3129 = vadd.f32 %v2375, %v3005
      %v3130 = vadd.f32 %v2376, %v3010
      %v3131 = vadd.f32 %v2377, %v3013
      %v3132 = vadd.f32 %v2378, %v3018
      %v3133 = vadd.f32 %v2379, %v3021
      %v3134 = vadd.f32 %v2380, %v3026
      %v3135 = vadd.f32 %v2381, %v3029
      %v3136 = vadd.f32 %v2382, %v3034
      %v3137 = vadd.f32 %v2383, %v3037
      %v3138 = vadd.f32 %v2384, %v3042
      %v3139 = vadd.f32 %v2385, %v3045
      %v3140 = vadd.f32 %v2386, %v3050
      %v3141 = vadd.f32 %v2387, %v3053
      %v3142 = vadd.f32 %v2388, %v3058
      %v3143 = vadd.f32 %v2389, %v3061
      %v3144 = vadd.f32 %v2390, %v3066
      %v3145 = vadd.f32 %v2391, %v3069
      %v3146 = vadd.f32 %v2392, %v3074
      %v3147 = vadd.f32 %v2393, %v3077
      %v3148 = vadd.f32 %v2394, %v3082
      %v3149 = vadd.f32 %v2395, %v3085
      %v3150 = vadd.f32 %v2396, %v3090
      %v3151 = vadd.f32 %v2397, %v3093
      %v3152 = vadd.f32 %v2398, %v3098
      %v3153 = vadd.f32 %v2399, %v3101
      %v3154 = vadd.f32 %v2400, %v3106
      %v3155 = vadd.f32 %v2401, %v3109
      %v3156 = vadd.f32 %v2402, %v3114
      %v3157 = vadd.f32 %v2403, %v3117
      %v3158 = vadd.f32 %v2404, %v3122
      %v3159 = vadd.f32 %v2405, %v3125
      %v3160 = vld [vmem:[%s2019] sm:$0xe]
      %v3161 = vld [vmem:[%s2019 + $0xc] sm:$0xe]
      %v3162 = vld [vmem:[%s2019 + $0x18] sm:$0xe]
      %v3163 = vld [vmem:[%s2019 + $0x24] sm:$0xe]
      %v3164 = vld [vmem:[%s2019 + $0x30] sm:$0xe]
      %v3165 = vld [vmem:[%s2019 + $0x3c] sm:$0xe]
      %v3166 = vld [vmem:[%s2019 + $0x48] sm:$0xe]
      %v3167 = vld [vmem:[%s2019 + $0x54] sm:$0xe]
      %v3168 = vld [vmem:[%s2019 + $0x60] sm:$0xe]
      %v3169 = vld [vmem:[%s2019 + $0x6c] sm:$0xe]
      %v3170 = vld [vmem:[%s2019 + $0x78] sm:$0xe]
      %v3171 = vld [vmem:[%s2019 + $0x84] sm:$0xe]
      %v3172 = vld [vmem:[%s2019 + $0x90] sm:$0xe]
      %v3173 = vld [vmem:[%s2019 + $0x9c] sm:$0xe]
      %v3174 = vld [vmem:[%s2019 + $0xa8] sm:$0xe]
      %v3175 = vld [vmem:[%s2019 + $0xb4] sm:$0xe]
      %v3224 = vrot.slane %v3160, 5
      %v3225 = vrot.slane %v3224, 4
      %v3226 = vrot.slane %v2407, 5
      %v3227 = vsel %vm1581, %v3225, %v3226
      %v3228 = vrot.slane %v3226, 4
      %v3229 = vrot.slane %v2408, 5
      %v3230 = vsel %vm1581, %v3228, %v3229
      %v3231 = vrot.slane %v3161, 5
      %v3232 = vrot.slane %v3231, 4
      %v3233 = vrot.slane %v2410, 5
      %v3234 = vsel %vm1581, %v3232, %v3233
      %v3235 = vrot.slane %v3233, 4
      %v3236 = vrot.slane %v2411, 5
      %v3237 = vsel %vm1581, %v3235, %v3236
      %v3238 = vrot.slane %v3162, 5
      %v3239 = vrot.slane %v3238, 4
      %v3240 = vrot.slane %v2413, 5
      %v3241 = vsel %vm1581, %v3239, %v3240
      %v3242 = vrot.slane %v3240, 4
      %v3243 = vrot.slane %v2414, 5
      %v3244 = vsel %vm1581, %v3242, %v3243
      %v3245 = vrot.slane %v3163, 5
      %v3246 = vrot.slane %v3245, 4
      %v3247 = vrot.slane %v2416, 5
      %v3248 = vsel %vm1581, %v3246, %v3247
      %v3249 = vrot.slane %v3247, 4
      %v3250 = vrot.slane %v2417, 5
      %v3251 = vsel %vm1581, %v3249, %v3250
      %v3252 = vrot.slane %v3164, 5
      %v3253 = vrot.slane %v3252, 4
      %v3254 = vrot.slane %v2419, 5
      %v3255 = vsel %vm1581, %v3253, %v3254
      %v3256 = vrot.slane %v3254, 4
      %v3257 = vrot.slane %v2420, 5
      %v3258 = vsel %vm1581, %v3256, %v3257
      %v3259 = vrot.slane %v3165, 5
      %v3260 = vrot.slane %v3259, 4
      %v3261 = vrot.slane %v2422, 5
      %v3262 = vsel %vm1581, %v3260, %v3261
      %v3263 = vrot.slane %v3261, 4
      %v3264 = vrot.slane %v2423, 5
      %v3265 = vsel %vm1581, %v3263, %v3264
      %v3266 = vrot.slane %v3166, 5
      %v3267 = vrot.slane %v3266, 4
      %v3268 = vrot.slane %v2425, 5
      %v3269 = vsel %vm1581, %v3267, %v3268
      %v3270 = vrot.slane %v3268, 4
      %v3271 = vrot.slane %v2426, 5
      %v3272 = vsel %vm1581, %v3270, %v3271
      %v3273 = vrot.slane %v3167, 5
      %v3274 = vrot.slane %v3273, 4
      %v3275 = vrot.slane %v2428, 5
      %v3276 = vsel %vm1581, %v3274, %v3275
      %v3277 = vrot.slane %v3275, 4
      %v3278 = vrot.slane %v2429, 5
      %v3279 = vsel %vm1581, %v3277, %v3278
      %v3280 = vrot.slane %v3168, 5
      %v3281 = vrot.slane %v3280, 4
      %v3282 = vrot.slane %v2431, 5
      %v3283 = vsel %vm1581, %v3281, %v3282
      %v3284 = vrot.slane %v3282, 4
      %v3285 = vrot.slane %v2432, 5
      %v3286 = vsel %vm1581, %v3284, %v3285
      %v3287 = vrot.slane %v3169, 5
      %v3288 = vrot.slane %v3287, 4
      %v3289 = vrot.slane %v2434, 5
      %v3290 = vsel %vm1581, %v3288, %v3289
      %v3291 = vrot.slane %v3289, 4
      %v3292 = vrot.slane %v2435, 5
      %v3293 = vsel %vm1581, %v3291, %v3292
      %v3294 = vrot.slane %v3170, 5
      %v3295 = vrot.slane %v3294, 4
      %v3296 = vrot.slane %v2437, 5
      %v3297 = vsel %vm1581, %v3295, %v3296
      %v3298 = vrot.slane %v3296, 4
      %v3299 = vrot.slane %v2438, 5
      %v3300 = vsel %vm1581, %v3298, %v3299
      %v3301 = vrot.slane %v3171, 5
      %v3302 = vrot.slane %v3301, 4
      %v3303 = vrot.slane %v2440, 5
      %v3304 = vsel %vm1581, %v3302, %v3303
      %v3305 = vrot.slane %v3303, 4
      %v3306 = vrot.slane %v2441, 5
      %v3307 = vsel %vm1581, %v3305, %v3306
      %v3308 = vrot.slane %v3172, 5
      %v3309 = vrot.slane %v3308, 4
      %v3310 = vrot.slane %v2443, 5
      %v3311 = vsel %vm1581, %v3309, %v3310
      %v3312 = vrot.slane %v3310, 4
      %v3313 = vrot.slane %v2444, 5
      %v3314 = vsel %vm1581, %v3312, %v3313
      %v3315 = vrot.slane %v3173, 5
      %v3316 = vrot.slane %v3315, 4
      %v3317 = vrot.slane %v2446, 5
      %v3318 = vsel %vm1581, %v3316, %v3317
      %v3319 = vrot.slane %v3317, 4
      %v3320 = vrot.slane %v2447, 5
      %v3321 = vsel %vm1581, %v3319, %v3320
      %v3322 = vrot.slane %v3174, 5
      %v3323 = vrot.slane %v3322, 4
      %v3324 = vrot.slane %v2449, 5
      %v3325 = vsel %vm1581, %v3323, %v3324
      %v3326 = vrot.slane %v3324, 4
      %v3327 = vrot.slane %v2450, 5
      %v3328 = vsel %vm1581, %v3326, %v3327
      %v3329 = vrot.slane %v3175, 5
      %v3330 = vrot.slane %v3329, 4
      %v3331 = vrot.slane %v2452, 5
      %v3332 = vsel %vm1581, %v3330, %v3331
      %v3333 = vrot.slane %v3331, 4
      %v3334 = vrot.slane %v2453, 5
      %v3335 = vsel %vm1581, %v3333, %v3334
      %s3336 = scalar_lea.vmem %s357, 320
      %v3337 = vld [vmem:[%s3336] sm:$0xf]
      %v3338 = vld [vmem:[%s3336 + $0x4] sm:$0xf]
      %v3339 = vld [vmem:[%s3336 + $0x8] sm:$0xf]
      %v3340 = vld [vmem:[%s3336 + $0xc] sm:$0xf]
      %v3341 = vld [vmem:[%s3336 + $0x10] sm:$0xf]
      %v3342 = vld [vmem:[%s3336 + $0x14] sm:$0xf]
      %v3343 = vld [vmem:[%s3336 + $0x18] sm:$0xf]
      %v3344 = vld [vmem:[%s3336 + $0x1c] sm:$0xf]
      %v3345 = vld [vmem:[%s3336 + $0x20] sm:$0xf]
      %v3346 = vld [vmem:[%s3336 + $0x24] sm:$0xf]
      %v3347 = vld [vmem:[%s3336 + $0x28] sm:$0xf]
      %v3348 = vld [vmem:[%s3336 + $0x2c] sm:$0xf]
      %v3349 = vld [vmem:[%s3336 + $0x30] sm:$0xf]
      %v3350 = vld [vmem:[%s3336 + $0x34] sm:$0xf]
      %v3351 = vld [vmem:[%s3336 + $0x38] sm:$0xf]
      %v3352 = vld [vmem:[%s3336 + $0x3c] sm:$0xf]
      %v3353 = vunpack.c.l.b16 %v3227
      %v3354 = vunpack.c.l.b16 %v3230
      %v3355 = vunpack.c.l.b16 %v3234
      %v3356 = vunpack.c.l.b16 %v3237
      %v3357 = vunpack.c.l.b16 %v3241
      %v3358 = vunpack.c.l.b16 %v3244
      %v3359 = vunpack.c.l.b16 %v3248
      %v3360 = vunpack.c.l.b16 %v3251
      %v3361 = vunpack.c.l.b16 %v3255
      %v3362 = vunpack.c.l.b16 %v3258
      %v3363 = vunpack.c.l.b16 %v3262
      %v3364 = vunpack.c.l.b16 %v3265
      %v3365 = vunpack.c.l.b16 %v3269
      %v3366 = vunpack.c.l.b16 %v3272
      %v3367 = vunpack.c.l.b16 %v3276
      %v3368 = vunpack.c.l.b16 %v3279
      %v3369 = vunpack.c.l.b16 %v3283
      %v3370 = vunpack.c.l.b16 %v3286
      %v3371 = vunpack.c.l.b16 %v3290
      %v3372 = vunpack.c.l.b16 %v3293
      %v3373 = vunpack.c.l.b16 %v3297
      %v3374 = vunpack.c.l.b16 %v3300
      %v3375 = vunpack.c.l.b16 %v3304
      %v3376 = vunpack.c.l.b16 %v3307
      %v3377 = vunpack.c.l.b16 %v3311
      %v3378 = vunpack.c.l.b16 %v3314
      %v3379 = vunpack.c.l.b16 %v3318
      %v3380 = vunpack.c.l.b16 %v3321
      %v3381 = vunpack.c.l.b16 %v3325
      %v3382 = vunpack.c.l.b16 %v3328
      %v3383 = vunpack.c.l.b16 %v3332
      %v3384 = vunpack.c.l.b16 %v3335
      %v3385 = vpack.c.b16 %v3354, %v3353
      %v3386 = vpack.c.b16 %v3356, %v3355
      %v3387 = vpack.c.b16 %v3358, %v3357
      %v3388 = vpack.c.b16 %v3360, %v3359
      %v3389 = vpack.c.b16 %v3362, %v3361
      %v3390 = vpack.c.b16 %v3364, %v3363
      %v3391 = vpack.c.b16 %v3366, %v3365
      %v3392 = vpack.c.b16 %v3368, %v3367
      %v3393 = vpack.c.b16 %v3370, %v3369
      %v3394 = vpack.c.b16 %v3372, %v3371
      %v3395 = vpack.c.b16 %v3374, %v3373
      %v3396 = vpack.c.b16 %v3376, %v3375
      %v3397 = vpack.c.b16 %v3378, %v3377
      %v3398 = vpack.c.b16 %v3380, %v3379
      %v3399 = vpack.c.b16 %v3382, %v3381
      %v3400 = vpack.c.b16 %v3384, %v3383
      %v3433 = vunpack.c.l.b16 %v3337
      %v3434 = vunpack.c.l.b16 %v3338
      %v3435 = vunpack.c.l.b16 %v3339
      %v3436 = vunpack.c.l.b16 %v3340
      %v3437 = vunpack.c.l.b16 %v3341
      %v3438 = vunpack.c.l.b16 %v3342
      %v3439 = vunpack.c.l.b16 %v3343
      %v3440 = vunpack.c.l.b16 %v3344
      %v3441 = vunpack.c.l.b16 %v3345
      %v3442 = vunpack.c.l.b16 %v3346
      %v3443 = vunpack.c.l.b16 %v3347
      %v3444 = vunpack.c.l.b16 %v3348
      %v3445 = vunpack.c.l.b16 %v3349
      %v3446 = vunpack.c.l.b16 %v3350
      %v3447 = vunpack.c.l.b16 %v3351
      %v3448 = vunpack.c.l.b16 %v3352
      %v3449 = vpack.c.b16 %v3434, %v3433
      %v3450 = vpack.c.b16 %v3436, %v3435
      %v3451 = vpack.c.b16 %v3438, %v3437
      %v3452 = vpack.c.b16 %v3440, %v3439
      %v3453 = vpack.c.b16 %v3442, %v3441
      %v3454 = vpack.c.b16 %v3444, %v3443
      %v3455 = vpack.c.b16 %v3446, %v3445
      %v3456 = vpack.c.b16 %v3448, %v3447
      %3465 = vmatprep.subr.bf16.mxu0 0
      %3466 = vmatpush1.bf16.msra.mxu0 %v3449
      %3467 = vmatprep.subr.bf16.mxu0 0
      %3468 = vmatpush1.bf16.msra.mxu0 %v3450
      %3469 = vmatprep.subr.bf16.mxu0 0
      %3470 = vmatpush1.bf16.msra.mxu0 %v3451
      %3471 = vmatprep.subr.bf16.mxu0 0
      %3472 = vmatpush1.bf16.msra.mxu0 %v3452
      %3473 = vmatprep.subr.bf16.mxu0 0
      %3474 = vmatpush1.bf16.msra.mxu0 %v3453
      %3475 = vmatprep.subr.bf16.mxu0 0
      %3476 = vmatpush1.bf16.msra.mxu0 %v3454
      %3477 = vmatprep.subr.bf16.mxu0 0
      %3478 = vmatpush1.bf16.msra.mxu0 %v3455
      %3479 = vmatprep.subr.bf16.mxu0 0
      %3480 = vmatpush1.bf16.msra.mxu0 %v3456
      %3481 = vmatprep.subr.bf16.mxu0 0
      %3482 = vmatpush1.bf16.msra.mxu0 0
      %3483 = vmatprep.subr.bf16.mxu0 0
      %3484 = vmatpush1.bf16.msra.mxu0 0
      %3485 = vmatprep.subr.bf16.mxu0 0
      %3486 = vmatpush1.bf16.msra.mxu0 0
      %3487 = vmatprep.subr.bf16.mxu0 0
      %3488 = vmatpush1.bf16.msra.mxu0 0
      %3489 = vmatprep.subr.bf16.mxu0 0
      %3490 = vmatpush1.bf16.msra.mxu0 0
      %3491 = vmatprep.subr.bf16.mxu0 0
      %3492 = vmatpush1.bf16.msra.mxu0 0
      %3493 = vmatprep.subr.bf16.mxu0 0
      %3494 = vmatpush1.bf16.msra.mxu0 0
      %3495 = vmatprep.subr.bf16.mxu0 0
      %3496 = vmatpush1.bf16.msra.mxu0 0
      %3497 = vmatprep.mubr.bf16.mxu0 0
      %3498 = vmatmul.mubr.bf16.gmra.mrb[0].mxu0 %v3385
      %v3499 = vpop.f32.mrb[0].mxu0
      %v3500 = vadd.f32 0.0, %v3499
      %v3501 = vpop.f32.mrb[0].mxu0
      %v3502 = vpop.f32.mrb[0].mxu0
      %v3503 = vadd.f32 0.0, %v3502
      %v3504 = vpop.f32.mrb[0].mxu0
      %3505 = vmatprep.mubr.bf16.mxu0 0
      %3506 = vmatmul.mubr.bf16.gmra.mrb[0].mxu0 %v3386
      %v3507 = vpop.f32.mrb[0].mxu0
      %v3508 = vadd.f32 0.0, %v3507
      %v3509 = vpop.f32.mrb[0].mxu0
      %v3510 = vpop.f32.mrb[0].mxu0
      %v3511 = vadd.f32 0.0, %v3510
      %v3512 = vpop.f32.mrb[0].mxu0
      %3513 = vmatprep.mubr.bf16.mxu0 0
      %3514 = vmatmul.mubr.bf16.gmra.mrb[0].mxu0 %v3387
      %v3515 = vpop.f32.mrb[0].mxu0
      %v3516 = vadd.f32 0.0, %v3515
      %v3517 = vpop.f32.mrb[0].mxu0
      %v3518 = vpop.f32.mrb[0].mxu0
      %v3519 = vadd.f32 0.0, %v3518
      %v3520 = vpop.f32.mrb[0].mxu0
      %3521 = vmatprep.mubr.bf16.mxu0 0
      %3522 = vmatmul.mubr.bf16.gmra.mrb[0].mxu0 %v3388
      %v3523 = vpop.f32.mrb[0].mxu0
      %v3524 = vadd.f32 0.0, %v3523
      %v3525 = vpop.f32.mrb[0].mxu0
      %v3526 = vpop.f32.mrb[0].mxu0
      %v3527 = vadd.f32 0.0, %v3526
      %v3528 = vpop.f32.mrb[0].mxu0
      %3529 = vmatprep.mubr.bf16.mxu0 0
      %3530 = vmatmul.mubr.bf16.gmra.mrb[0].mxu0 %v3389
      %v3531 = vpop.f32.mrb[0].mxu0
      %v3532 = vadd.f32 0.0, %v3531
      %v3533 = vpop.f32.mrb[0].mxu0
      %v3534 = vpop.f32.mrb[0].mxu0
      %v3535 = vadd.f32 0.0, %v3534
      %v3536 = vpop.f32.mrb[0].mxu0
      %3537 = vmatprep.mubr.bf16.mxu0 0
      %3538 = vmatmul.mubr.bf16.gmra.mrb[0].mxu0 %v3390
      %v3539 = vpop.f32.mrb[0].mxu0
      %v3540 = vadd.f32 0.0, %v3539
      %v3541 = vpop.f32.mrb[0].mxu0
      %v3542 = vpop.f32.mrb[0].mxu0
      %v3543 = vadd.f32 0.0, %v3542
      %v3544 = vpop.f32.mrb[0].mxu0
      %3545 = vmatprep.mubr.bf16.mxu0 0
      %3546 = vmatmul.mubr.bf16.gmra.mrb[0].mxu0 %v3391
      %v3547 = vpop.f32.mrb[0].mxu0
      %v3548 = vadd.f32 0.0, %v3547
      %v3549 = vpop.f32.mrb[0].mxu0
      %v3550 = vpop.f32.mrb[0].mxu0
      %v3551 = vadd.f32 0.0, %v3550
      %v3552 = vpop.f32.mrb[0].mxu0
      %3553 = vmatprep.mubr.bf16.mxu0 0
      %3554 = vmatmul.mubr.bf16.gmra.mrb[0].mxu0 %v3392
      %v3555 = vpop.f32.mrb[0].mxu0
      %v3556 = vadd.f32 0.0, %v3555
      %v3557 = vpop.f32.mrb[0].mxu0
      %v3558 = vpop.f32.mrb[0].mxu0
      %v3559 = vadd.f32 0.0, %v3558
      %v3560 = vpop.f32.mrb[0].mxu0
      %3561 = vmatprep.mubr.bf16.mxu0 0
      %3562 = vmatmul.mubr.bf16.gmra.mrb[0].mxu0 %v3393
      %v3563 = vpop.f32.mrb[0].mxu0
      %v3564 = vadd.f32 0.0, %v3563
      %v3565 = vpop.f32.mrb[0].mxu0
      %v3566 = vpop.f32.mrb[0].mxu0
      %v3567 = vadd.f32 0.0, %v3566
      %v3568 = vpop.f32.mrb[0].mxu0
      %3569 = vmatprep.mubr.bf16.mxu0 0
      %3570 = vmatmul.mubr.bf16.gmra.mrb[0].mxu0 %v3394
      %v3571 = vpop.f32.mrb[0].mxu0
      %v3572 = vadd.f32 0.0, %v3571
      %v3573 = vpop.f32.mrb[0].mxu0
      %v3574 = vpop.f32.mrb[0].mxu0
      %v3575 = vadd.f32 0.0, %v3574
      %v3576 = vpop.f32.mrb[0].mxu0
      %3577 = vmatprep.mubr.bf16.mxu0 0
      %3578 = vmatmul.mubr.bf16.gmra.mrb[0].mxu0 %v3395
      %v3579 = vpop.f32.mrb[0].mxu0
      %v3580 = vadd.f32 0.0, %v3579
      %v3581 = vpop.f32.mrb[0].mxu0
      %v3582 = vpop.f32.mrb[0].mxu0
      %v3583 = vadd.f32 0.0, %v3582
      %v3584 = vpop.f32.mrb[0].mxu0
      %3585 = vmatprep.mubr.bf16.mxu0 0
      %3586 = vmatmul.mubr.bf16.gmra.mrb[0].mxu0 %v3396
      %v3587 = vpop.f32.mrb[0].mxu0
      %v3588 = vadd.f32 0.0, %v3587
      %v3589 = vpop.f32.mrb[0].mxu0
      %v3590 = vpop.f32.mrb[0].mxu0
      %v3591 = vadd.f32 0.0, %v3590
      %v3592 = vpop.f32.mrb[0].mxu0
      %3593 = vmatprep.mubr.bf16.mxu0 0
      %3594 = vmatmul.mubr.bf16.gmra.mrb[0].mxu0 %v3397
      %v3595 = vpop.f32.mrb[0].mxu0
      %v3596 = vadd.f32 0.0, %v3595
      %v3597 = vpop.f32.mrb[0].mxu0
      %v3598 = vpop.f32.mrb[0].mxu0
      %v3599 = vadd.f32 0.0, %v3598
      %v3600 = vpop.f32.mrb[0].mxu0
      %3601 = vmatprep.mubr.bf16.mxu0 0
      %3602 = vmatmul.mubr.bf16.gmra.mrb[0].mxu0 %v3398
      %v3603 = vpop.f32.mrb[0].mxu0
      %v3604 = vadd.f32 0.0, %v3603
      %v3605 = vpop.f32.mrb[0].mxu0
      %v3606 = vpop.f32.mrb[0].mxu0
      %v3607 = vadd.f32 0.0, %v3606
      %v3608 = vpop.f32.mrb[0].mxu0
      %3609 = vmatprep.mubr.bf16.mxu0 0
      %3610 = vmatmul.mubr.bf16.gmra.mrb[0].mxu0 %v3399
      %v3611 = vpop.f32.mrb[0].mxu0
      %v3612 = vadd.f32 0.0, %v3611
      %v3613 = vpop.f32.mrb[0].mxu0
      %v3614 = vpop.f32.mrb[0].mxu0
      %v3615 = vadd.f32 0.0, %v3614
      %v3616 = vpop.f32.mrb[0].mxu0
      %3617 = vmatprep.mubr.bf16.mxu0 0
      %3618 = vmatmul.mubr.bf16.gmra.mrb[0].mxu0 %v3400
      %v3619 = vpop.f32.mrb[0].mxu0
      %v3620 = vadd.f32 0.0, %v3619
      %v3621 = vpop.f32.mrb[0].mxu0
      %v3622 = vpop.f32.mrb[0].mxu0
      %v3623 = vadd.f32 0.0, %v3622
      %v3624 = vpop.f32.mrb[0].mxu0
      %3625 = vdwg.mxu0
      %v3626 = vadd.f32 %v3128, %v3500
      %v3627 = vadd.f32 %v3129, %v3503
      %v3628 = vadd.f32 %v3130, %v3508
      %v3629 = vadd.f32 %v3131, %v3511
      %v3630 = vadd.f32 %v3132, %v3516
      %v3631 = vadd.f32 %v3133, %v3519
      %v3632 = vadd.f32 %v3134, %v3524
      %v3633 = vadd.f32 %v3135, %v3527
      %v3634 = vadd.f32 %v3136, %v3532
      %v3635 = vadd.f32 %v3137, %v3535
      %v3636 = vadd.f32 %v3138, %v3540
      %v3637 = vadd.f32 %v3139, %v3543
      %v3638 = vadd.f32 %v3140, %v3548
      %v3639 = vadd.f32 %v3141, %v3551
      %v3640 = vadd.f32 %v3142, %v3556
      %v3641 = vadd.f32 %v3143, %v3559
      %v3642 = vadd.f32 %v3144, %v3564
      %v3643 = vadd.f32 %v3145, %v3567
      %v3644 = vadd.f32 %v3146, %v3572
      %v3645 = vadd.f32 %v3147, %v3575
      %v3646 = vadd.f32 %v3148, %v3580
      %v3647 = vadd.f32 %v3149, %v3583
      %v3648 = vadd.f32 %v3150, %v3588
      %v3649 = vadd.f32 %v3151, %v3591
      %v3650 = vadd.f32 %v3152, %v3596
      %v3651 = vadd.f32 %v3153, %v3599
      %v3652 = vadd.f32 %v3154, %v3604
      %v3653 = vadd.f32 %v3155, %v3607
      %v3654 = vadd.f32 %v3156, %v3612
      %v3655 = vadd.f32 %v3157, %v3615
      %v3656 = vadd.f32 %v3158, %v3620
      %v3657 = vadd.f32 %v3159, %v3623
      %s3658 = sadd.s32 %s394, 2
      %s3659 = smul.u32 %s3658, 3
      %s3660 = smul.addr %s3659, 4
      %s3661 = scalar_lea.vmem %s353, %s3660
      %v3662 = vld [vmem:[%s3661] sm:$0xf]
      %v3663 = vld [vmem:[%s3661 + $0x4] sm:$0xf]
      %v3664 = vld [vmem:[%s3661 + $0xc] sm:$0xf]
      %v3665 = vld [vmem:[%s3661 + $0x10] sm:$0xf]
      %v3666 = vld [vmem:[%s3661 + $0x18] sm:$0xf]
      %v3667 = vld [vmem:[%s3661 + $0x1c] sm:$0xf]
      %v3668 = vld [vmem:[%s3661 + $0x24] sm:$0xf]
      %v3669 = vld [vmem:[%s3661 + $0x28] sm:$0xf]
      %v3670 = vld [vmem:[%s3661 + $0x30] sm:$0xf]
      %v3671 = vld [vmem:[%s3661 + $0x34] sm:$0xf]
      %v3672 = vld [vmem:[%s3661 + $0x3c] sm:$0xf]
      %v3673 = vld [vmem:[%s3661 + $0x40] sm:$0xf]
      %v3674 = vld [vmem:[%s3661 + $0x48] sm:$0xf]
      %v3675 = vld [vmem:[%s3661 + $0x4c] sm:$0xf]
      %v3676 = vld [vmem:[%s3661 + $0x54] sm:$0xf]
      %v3677 = vld [vmem:[%s3661 + $0x58] sm:$0xf]
      %v3678 = vld [vmem:[%s3661 + $0x60] sm:$0xf]
      %v3679 = vld [vmem:[%s3661 + $0x64] sm:$0xf]
      %v3680 = vld [vmem:[%s3661 + $0x6c] sm:$0xf]
      %v3681 = vld [vmem:[%s3661 + $0x70] sm:$0xf]
      %v3682 = vld [vmem:[%s3661 + $0x78] sm:$0xf]
      %v3683 = vld [vmem:[%s3661 + $0x7c] sm:$0xf]
      %v3684 = vld [vmem:[%s3661 + $0x84] sm:$0xf]
      %v3685 = vld [vmem:[%s3661 + $0x88] sm:$0xf]
      %v3686 = vld [vmem:[%s3661 + $0x90] sm:$0xf]
      %v3687 = vld [vmem:[%s3661 + $0x94] sm:$0xf]
      %v3688 = vld [vmem:[%s3661 + $0x9c] sm:$0xf]
      %v3689 = vld [vmem:[%s3661 + $0xa0] sm:$0xf]
      %v3690 = vld [vmem:[%s3661 + $0xa8] sm:$0xf]
      %v3691 = vld [vmem:[%s3661 + $0xac] sm:$0xf]
      %v3692 = vld [vmem:[%s3661 + $0xb4] sm:$0xf]
      %v3693 = vld [vmem:[%s3661 + $0xb8] sm:$0xf]
      %s3694 = scalar_lea.vmem %s357, 384
      %v3695 = vld [vmem:[%s3694] sm:$0xf]
      %v3696 = vld [vmem:[%s3694 + $0x4] sm:$0xf]
      %v3697 = vld [vmem:[%s3694 + $0x8] sm:$0xf]
      %v3698 = vld [vmem:[%s3694 + $0xc] sm:$0xf]
      %v3699 = vld [vmem:[%s3694 + $0x10] sm:$0xf]
      %v3700 = vld [vmem:[%s3694 + $0x14] sm:$0xf]
      %v3701 = vld [vmem:[%s3694 + $0x18] sm:$0xf]
      %v3702 = vld [vmem:[%s3694 + $0x1c] sm:$0xf]
      %v3703 = vld [vmem:[%s3694 + $0x20] sm:$0xf]
      %v3704 = vld [vmem:[%s3694 + $0x24] sm:$0xf]
      %v3705 = vld [vmem:[%s3694 + $0x28] sm:$0xf]
      %v3706 = vld [vmem:[%s3694 + $0x2c] sm:$0xf]
      %v3707 = vld [vmem:[%s3694 + $0x30] sm:$0xf]
      %v3708 = vld [vmem:[%s3694 + $0x34] sm:$0xf]
      %v3709 = vld [vmem:[%s3694 + $0x38] sm:$0xf]
      %v3710 = vld [vmem:[%s3694 + $0x3c] sm:$0xf]
      %v3743 = vunpack.c.l.b16 %v3662
      %v3744 = vunpack.c.l.b16 %v3663
      %v3745 = vunpack.c.l.b16 %v3664
      %v3746 = vunpack.c.l.b16 %v3665
      %v3747 = vunpack.c.l.b16 %v3666
      %v3748 = vunpack.c.l.b16 %v3667
      %v3749 = vunpack.c.l.b16 %v3668
      %v3750 = vunpack.c.l.b16 %v3669
      %v3751 = vunpack.c.l.b16 %v3670
      %v3752 = vunpack.c.l.b16 %v3671
      %v3753 = vunpack.c.l.b16 %v3672
      %v3754 = vunpack.c.l.b16 %v3673
      %v3755 = vunpack.c.l.b16 %v3674
      %v3756 = vunpack.c.l.b16 %v3675
      %v3757 = vunpack.c.l.b16 %v3676
      %v3758 = vunpack.c.l.b16 %v3677
      %v3759 = vunpack.c.l.b16 %v3678
      %v3760 = vunpack.c.l.b16 %v3679
      %v3761 = vunpack.c.l.b16 %v3680
      %v3762 = vunpack.c.l.b16 %v3681
      %v3763 = vunpack.c.l.b16 %v3682
      %v3764 = vunpack.c.l.b16 %v3683
      %v3765 = vunpack.c.l.b16 %v3684
      %v3766 = vunpack.c.l.b16 %v3685
      %v3767 = vunpack.c.l.b16 %v3686
      %v3768 = vunpack.c.l.b16 %v3687
      %v3769 = vunpack.c.l.b16 %v3688
      %v3770 = vunpack.c.l.b16 %v3689
      %v3771 = vunpack.c.l.b16 %v3690
      %v3772 = vunpack.c.l.b16 %v3691
      %v3773 = vunpack.c.l.b16 %v3692
      %v3774 = vunpack.c.l.b16 %v3693
      %v3775 = vpack.c.b16 %v3744, %v3743
      %v3776 = vpack.c.b16 %v3746, %v3745
      %v3777 = vpack.c.b16 %v3748, %v3747
      %v3778 = vpack.c.b16 %v3750, %v3749
      %v3779 = vpack.c.b16 %v3752, %v3751
      %v3780 = vpack.c.b16 %v3754, %v3753
      %v3781 = vpack.c.b16 %v3756, %v3755
      %v3782 = vpack.c.b16 %v3758, %v3757
      %v3783 = vpack.c.b16 %v3760, %v3759
      %v3784 = vpack.c.b16 %v3762, %v3761
      %v3785 = vpack.c.b16 %v3764, %v3763
      %v3786 = vpack.c.b16 %v3766, %v3765
      %v3787 = vpack.c.b16 %v3768, %v3767
      %v3788 = vpack.c.b16 %v3770, %v3769
      %v3789 = vpack.c.b16 %v3772, %v3771
      %v3790 = vpack.c.b16 %v3774, %v3773
      %v3823 = vunpack.c.l.b16 %v3695
      %v3824 = vunpack.c.l.b16 %v3696
      %v3825 = vunpack.c.l.b16 %v3697
      %v3826 = vunpack.c.l.b16 %v3698
      %v3827 = vunpack.c.l.b16 %v3699
      %v3828 = vunpack.c.l.b16 %v3700
      %v3829 = vunpack.c.l.b16 %v3701
      %v3830 = vunpack.c.l.b16 %v3702
      %v3831 = vunpack.c.l.b16 %v3703
      %v3832 = vunpack.c.l.b16 %v3704
      %v3833 = vunpack.c.l.b16 %v3705
      %v3834 = vunpack.c.l.b16 %v3706
      %v3835 = vunpack.c.l.b16 %v3707
      %v3836 = vunpack.c.l.b16 %v3708
      %v3837 = vunpack.c.l.b16 %v3709
      %v3838 = vunpack.c.l.b16 %v3710
      %v3839 = vpack.c.b16 %v3824, %v3823
      %v3840 = vpack.c.b16 %v3826, %v3825
      %v3841 = vpack.c.b16 %v3828, %v3827
      %v3842 = vpack.c.b16 %v3830, %v3829
      %v3843 = vpack.c.b16 %v3832, %v3831
      %v3844 = vpack.c.b16 %v3834, %v3833
      %v3845 = vpack.c.b16 %v3836, %v3835
      %v3846 = vpack.c.b16 %v3838, %v3837
      %3855 = vmatprep.subr.bf16.mxu0 0
      %3856 = vmatpush1.bf16.msra.mxu0 %v3839
      %3857 = vmatprep.subr.bf16.mxu0 0
      %3858 = vmatpush1.bf16.msra.mxu0 %v3840
      %3859 = vmatprep.subr.bf16.mxu0 0
      %3860 = vmatpush1.bf16.msra.mxu0 %v3841
      %3861 = vmatprep.subr.bf16.mxu0 0
      %3862 = vmatpush1.bf16.msra.mxu0 %v3842
      %3863 = vmatprep.subr.bf16.mxu0 0
      %3864 = vmatpush1.bf16.msra.mxu0 %v3843
      %3865 = vmatprep.subr.bf16.mxu0 0
      %3866 = vmatpush1.bf16.msra.mxu0 %v3844
      %3867 = vmatprep.subr.bf16.mxu0 0
      %3868 = vmatpush1.bf16.msra.mxu0 %v3845
      %3869 = vmatprep.subr.bf16.mxu0 0
      %3870 = vmatpush1.bf16.msra.mxu0 %v3846
      %3871 = vmatprep.subr.bf16.mxu0 0
      %3872 = vmatpush1.bf16.msra.mxu0 0
      %3873 = vmatprep.subr.bf16.mxu0 0
      %3874 = vmatpush1.bf16.msra.mxu0 0
      %3875 = vmatprep.subr.bf16.mxu0 0
      %3876 = vmatpush1.bf16.msra.mxu0 0
      %3877 = vmatprep.subr.bf16.mxu0 0
      %3878 = vmatpush1.bf16.msra.mxu0 0
      %3879 = vmatprep.subr.bf16.mxu0 0
      %3880 = vmatpush1.bf16.msra.mxu0 0
      %3881 = vmatprep.subr.bf16.mxu0 0
      %3882 = vmatpush1.bf16.msra.mxu0 0
      %3883 = vmatprep.subr.bf16.mxu0 0
      %3884 = vmatpush1.bf16.msra.mxu0 0
      %3885 = vmatprep.subr.bf16.mxu0 0
      %3886 = vmatpush1.bf16.msra.mxu0 0
      %3887 = vmatprep.mubr.bf16.mxu0 0
      %3888 = vmatmul.mubr.bf16.gmra.mrb[0].mxu0 %v3775
      %v3889 = vpop.f32.mrb[0].mxu0
      %v3890 = vadd.f32 0.0, %v3889
      %v3891 = vpop.f32.mrb[0].mxu0
      %v3892 = vpop.f32.mrb[0].mxu0
      %v3893 = vadd.f32 0.0, %v3892
      %v3894 = vpop.f32.mrb[0].mxu0
      %3895 = vmatprep.mubr.bf16.mxu0 0
      %3896 = vmatmul.mubr.bf16.gmra.mrb[0].mxu0 %v3776
      %v3897 = vpop.f32.mrb[0].mxu0
      %v3898 = vadd.f32 0.0, %v3897
      %v3899 = vpop.f32.mrb[0].mxu0
      %v3900 = vpop.f32.mrb[0].mxu0
      %v3901 = vadd.f32 0.0, %v3900
      %v3902 = vpop.f32.mrb[0].mxu0
      %3903 = vmatprep.mubr.bf16.mxu0 0
      %3904 = vmatmul.mubr.bf16.gmra.mrb[0].mxu0 %v3777
      %v3905 = vpop.f32.mrb[0].mxu0
      %v3906 = vadd.f32 0.0, %v3905
      %v3907 = vpop.f32.mrb[0].mxu0
      %v3908 = vpop.f32.mrb[0].mxu0
      %v3909 = vadd.f32 0.0, %v3908
      %v3910 = vpop.f32.mrb[0].mxu0
      %3911 = vmatprep.mubr.bf16.mxu0 0
      %3912 = vmatmul.mubr.bf16.gmra.mrb[0].mxu0 %v3778
      %v3913 = vpop.f32.mrb[0].mxu0
      %v3914 = vadd.f32 0.0, %v3913
      %v3915 = vpop.f32.mrb[0].mxu0
      %v3916 = vpop.f32.mrb[0].mxu0
      %v3917 = vadd.f32 0.0, %v3916
      %v3918 = vpop.f32.mrb[0].mxu0
      %3919 = vmatprep.mubr.bf16.mxu0 0
      %3920 = vmatmul.mubr.bf16.gmra.mrb[0].mxu0 %v3779
      %v3921 = vpop.f32.mrb[0].mxu0
      %v3922 = vadd.f32 0.0, %v3921
      %v3923 = vpop.f32.mrb[0].mxu0
      %v3924 = vpop.f32.mrb[0].mxu0
      %v3925 = vadd.f32 0.0, %v3924
      %v3926 = vpop.f32.mrb[0].mxu0
      %3927 = vmatprep.mubr.bf16.mxu0 0
      %3928 = vmatmul.mubr.bf16.gmra.mrb[0].mxu0 %v3780
      %v3929 = vpop.f32.mrb[0].mxu0
      %v3930 = vadd.f32 0.0, %v3929
      %v3931 = vpop.f32.mrb[0].mxu0
      %v3932 = vpop.f32.mrb[0].mxu0
      %v3933 = vadd.f32 0.0, %v3932
      %v3934 = vpop.f32.mrb[0].mxu0
      %3935 = vmatprep.mubr.bf16.mxu0 0
      %3936 = vmatmul.mubr.bf16.gmra.mrb[0].mxu0 %v3781
      %v3937 = vpop.f32.mrb[0].mxu0
      %v3938 = vadd.f32 0.0, %v3937
      %v3939 = vpop.f32.mrb[0].mxu0
      %v3940 = vpop.f32.mrb[0].mxu0
      %v3941 = vadd.f32 0.0, %v3940
      %v3942 = vpop.f32.mrb[0].mxu0
      %3943 = vmatprep.mubr.bf16.mxu0 0
      %3944 = vmatmul.mubr.bf16.gmra.mrb[0].mxu0 %v3782
      %v3945 = vpop.f32.mrb[0].mxu0
      %v3946 = vadd.f32 0.0, %v3945
      %v3947 = vpop.f32.mrb[0].mxu0
      %v3948 = vpop.f32.mrb[0].mxu0
      %v3949 = vadd.f32 0.0, %v3948
      %v3950 = vpop.f32.mrb[0].mxu0
      %3951 = vmatprep.mubr.bf16.mxu0 0
      %3952 = vmatmul.mubr.bf16.gmra.mrb[0].mxu0 %v3783
      %v3953 = vpop.f32.mrb[0].mxu0
      %v3954 = vadd.f32 0.0, %v3953
      %v3955 = vpop.f32.mrb[0].mxu0
      %v3956 = vpop.f32.mrb[0].mxu0
      %v3957 = vadd.f32 0.0, %v3956
      %v3958 = vpop.f32.mrb[0].mxu0
      %3959 = vmatprep.mubr.bf16.mxu0 0
      %3960 = vmatmul.mubr.bf16.gmra.mrb[0].mxu0 %v3784
      %v3961 = vpop.f32.mrb[0].mxu0
      %v3962 = vadd.f32 0.0, %v3961
      %v3963 = vpop.f32.mrb[0].mxu0
      %v3964 = vpop.f32.mrb[0].mxu0
      %v3965 = vadd.f32 0.0, %v3964
      %v3966 = vpop.f32.mrb[0].mxu0
      %3967 = vmatprep.mubr.bf16.mxu0 0
      %3968 = vmatmul.mubr.bf16.gmra.mrb[0].mxu0 %v3785
      %v3969 = vpop.f32.mrb[0].mxu0
      %v3970 = vadd.f32 0.0, %v3969
      %v3971 = vpop.f32.mrb[0].mxu0
      %v3972 = vpop.f32.mrb[0].mxu0
      %v3973 = vadd.f32 0.0, %v3972
      %v3974 = vpop.f32.mrb[0].mxu0
      %3975 = vmatprep.mubr.bf16.mxu0 0
      %3976 = vmatmul.mubr.bf16.gmra.mrb[0].mxu0 %v3786
      %v3977 = vpop.f32.mrb[0].mxu0
      %v3978 = vadd.f32 0.0, %v3977
      %v3979 = vpop.f32.mrb[0].mxu0
      %v3980 = vpop.f32.mrb[0].mxu0
      %v3981 = vadd.f32 0.0, %v3980
      %v3982 = vpop.f32.mrb[0].mxu0
      %3983 = vmatprep.mubr.bf16.mxu0 0
      %3984 = vmatmul.mubr.bf16.gmra.mrb[0].mxu0 %v3787
      %v3985 = vpop.f32.mrb[0].mxu0
      %v3986 = vadd.f32 0.0, %v3985
      %v3987 = vpop.f32.mrb[0].mxu0
      %v3988 = vpop.f32.mrb[0].mxu0
      %v3989 = vadd.f32 0.0, %v3988
      %v3990 = vpop.f32.mrb[0].mxu0
      %3991 = vmatprep.mubr.bf16.mxu0 0
      %3992 = vmatmul.mubr.bf16.gmra.mrb[0].mxu0 %v3788
      %v3993 = vpop.f32.mrb[0].mxu0
      %v3994 = vadd.f32 0.0, %v3993
      %v3995 = vpop.f32.mrb[0].mxu0
      %v3996 = vpop.f32.mrb[0].mxu0
      %v3997 = vadd.f32 0.0, %v3996
      %v3998 = vpop.f32.mrb[0].mxu0
      %3999 = vmatprep.mubr.bf16.mxu0 0
      %4000 = vmatmul.mubr.bf16.gmra.mrb[0].mxu0 %v3789
      %v4001 = vpop.f32.mrb[0].mxu0
      %v4002 = vadd.f32 0.0, %v4001
      %v4003 = vpop.f32.mrb[0].mxu0
      %v4004 = vpop.f32.mrb[0].mxu0
      %v4005 = vadd.f32 0.0, %v4004
      %v4006 = vpop.f32.mrb[0].mxu0
      %4007 = vmatprep.mubr.bf16.mxu0 0
      %4008 = vmatmul.mubr.bf16.gmra.mrb[0].mxu0 %v3790
      %v4009 = vpop.f32.mrb[0].mxu0
      %v4010 = vadd.f32 0.0, %v4009
      %v4011 = vpop.f32.mrb[0].mxu0
      %v4012 = vpop.f32.mrb[0].mxu0
      %v4013 = vadd.f32 0.0, %v4012
      %v4014 = vpop.f32.mrb[0].mxu0
      %4015 = vdwg.mxu0
      %v4016 = vadd.f32 %v3626, %v3890
      %v4017 = vadd.f32 %v3627, %v3893
      %v4018 = vadd.f32 %v3628, %v3898
      %v4019 = vadd.f32 %v3629, %v3901
      %v4020 = vadd.f32 %v3630, %v3906
      %v4021 = vadd.f32 %v3631, %v3909
      %v4022 = vadd.f32 %v3632, %v3914
      %v4023 = vadd.f32 %v3633, %v3917
      %v4024 = vadd.f32 %v3634, %v3922
      %v4025 = vadd.f32 %v3635, %v3925
      %v4026 = vadd.f32 %v3636, %v3930
      %v4027 = vadd.f32 %v3637, %v3933
      %v4028 = vadd.f32 %v3638, %v3938
      %v4029 = vadd.f32 %v3639, %v3941
      %v4030 = vadd.f32 %v3640, %v3946
      %v4031 = vadd.f32 %v3641, %v3949
      %v4032 = vadd.f32 %v3642, %v3954
      %v4033 = vadd.f32 %v3643, %v3957
      %v4034 = vadd.f32 %v3644, %v3962
      %v4035 = vadd.f32 %v3645, %v3965
      %v4036 = vadd.f32 %v3646, %v3970
      %v4037 = vadd.f32 %v3647, %v3973
      %v4038 = vadd.f32 %v3648, %v3978
      %v4039 = vadd.f32 %v3649, %v3981
      %v4040 = vadd.f32 %v3650, %v3986
      %v4041 = vadd.f32 %v3651, %v3989
      %v4042 = vadd.f32 %v3652, %v3994
      %v4043 = vadd.f32 %v3653, %v3997
      %v4044 = vadd.f32 %v3654, %v4002
      %v4045 = vadd.f32 %v3655, %v4005
      %v4046 = vadd.f32 %v3656, %v4010
      %v4047 = vadd.f32 %v3657, %v4013
      %v4048 = vld [vmem:[%s3661] sm:$0xf]
      %v4049 = vld [vmem:[%s3661 + $0x4] sm:$0xf]
      %v4050 = vld [vmem:[%s3661 + $0x8] sm:$0x1]
      %v4051 = vld [vmem:[%s3661 + $0xc] sm:$0xf]
      %v4052 = vld [vmem:[%s3661 + $0x10] sm:$0xf]
      %v4053 = vld [vmem:[%s3661 + $0x14] sm:$0x1]
      %v4054 = vld [vmem:[%s3661 + $0x18] sm:$0xf]
      %v4055 = vld [vmem:[%s3661 + $0x1c] sm:$0xf]
      %v4056 = vld [vmem:[%s3661 + $0x20] sm:$0x1]
      %v4057 = vld [vmem:[%s3661 + $0x24] sm:$0xf]
      %v4058 = vld [vmem:[%s3661 + $0x28] sm:$0xf]
      %v4059 = vld [vmem:[%s3661 + $0x2c] sm:$0x1]
      %v4060 = vld [vmem:[%s3661 + $0x30] sm:$0xf]
      %v4061 = vld [vmem:[%s3661 + $0x34] sm:$0xf]
      %v4062 = vld [vmem:[%s3661 + $0x38] sm:$0x1]
      %v4063 = vld [vmem:[%s3661 + $0x3c] sm:$0xf]
      %v4064 = vld [vmem:[%s3661 + $0x40] sm:$0xf]
      %v4065 = vld [vmem:[%s3661 + $0x44] sm:$0x1]
      %v4066 = vld [vmem:[%s3661 + $0x48] sm:$0xf]
      %v4067 = vld [vmem:[%s3661 + $0x4c] sm:$0xf]
      %v4068 = vld [vmem:[%s3661 + $0x50] sm:$0x1]
      %v4069 = vld [vmem:[%s3661 + $0x54] sm:$0xf]
      %v4070 = vld [vmem:[%s3661 + $0x58] sm:$0xf]
      %v4071 = vld [vmem:[%s3661 + $0x5c] sm:$0x1]
      %v4072 = vld [vmem:[%s3661 + $0x60] sm:$0xf]
      %v4073 = vld [vmem:[%s3661 + $0x64] sm:$0xf]
      %v4074 = vld [vmem:[%s3661 + $0x68] sm:$0x1]
      %v4075 = vld [vmem:[%s3661 + $0x6c] sm:$0xf]
      %v4076 = vld [vmem:[%s3661 + $0x70] sm:$0xf]
      %v4077 = vld [vmem:[%s3661 + $0x74] sm:$0x1]
      %v4078 = vld [vmem:[%s3661 + $0x78] sm:$0xf]
      %v4079 = vld [vmem:[%s3661 + $0x7c] sm:$0xf]
      %v4080 = vld [vmem:[%s3661 + $0x80] sm:$0x1]
      %v4081 = vld [vmem:[%s3661 + $0x84] sm:$0xf]
      %v4082 = vld [vmem:[%s3661 + $0x88] sm:$0xf]
      %v4083 = vld [vmem:[%s3661 + $0x8c] sm:$0x1]
      %v4084 = vld [vmem:[%s3661 + $0x90] sm:$0xf]
      %v4085 = vld [vmem:[%s3661 + $0x94] sm:$0xf]
      %v4086 = vld [vmem:[%s3661 + $0x98] sm:$0x1]
      %v4087 = vld [vmem:[%s3661 + $0x9c] sm:$0xf]
      %v4088 = vld [vmem:[%s3661 + $0xa0] sm:$0xf]
      %v4089 = vld [vmem:[%s3661 + $0xa4] sm:$0x1]
      %v4090 = vld [vmem:[%s3661 + $0xa8] sm:$0xf]
      %v4091 = vld [vmem:[%s3661 + $0xac] sm:$0xf]
      %v4092 = vld [vmem:[%s3661 + $0xb0] sm:$0x1]
      %v4093 = vld [vmem:[%s3661 + $0xb4] sm:$0xf]
      %v4094 = vld [vmem:[%s3661 + $0xb8] sm:$0xf]
      %v4095 = vld [vmem:[%s3661 + $0xbc] sm:$0x1]
      %v4097 = vshrl.u32 %v4048, 16
      %v4099 = vrot.slane %v4097, 4
      %v4100 = vshll.u32 %v4048, 16
      %v4102 = vrot.slane %v4100, 5
      %v4103 = vor.u32 %v4099, %v4102
      %v4104 = vrot.slane %v4103, 4
      %v4106 = vshll.u32 %v4049, 16
      %v4108 = vrot.slane %v4106, 5
      %v4109 = vsel %vm808, %v4104, %v4108
      %v4110 = vshrl.u32 %v4049, 16
      %v4112 = vrot.slane %v4110, 4
      %v4113 = vor.u32 %v4112, %v4108
      %v4114 = vrot.slane %v4113, 4
      %v4116 = vshll.u32 %v4050, 16
      %v4118 = vrot.slane %v4116, 5
      %v4119 = vsel %vm808, %v4114, %v4118
      %v4121 = vshrl.u32 %v4051, 16
      %v4123 = vrot.slane %v4121, 4
      %v4124 = vshll.u32 %v4051, 16
      %v4126 = vrot.slane %v4124, 5
      %v4127 = vor.u32 %v4123, %v4126
      %v4128 = vrot.slane %v4127, 4
      %v4130 = vshll.u32 %v4052, 16
      %v4132 = vrot.slane %v4130, 5
      %v4133 = vsel %vm808, %v4128, %v4132
      %v4134 = vshrl.u32 %v4052, 16
      %v4136 = vrot.slane %v4134, 4
      %v4137 = vor.u32 %v4136, %v4132
      %v4138 = vrot.slane %v4137, 4
      %v4140 = vshll.u32 %v4053, 16
      %v4142 = vrot.slane %v4140, 5
      %v4143 = vsel %vm808, %v4138, %v4142
      %v4145 = vshrl.u32 %v4054, 16
      %v4147 = vrot.slane %v4145, 4
      %v4148 = vshll.u32 %v4054, 16
      %v4150 = vrot.slane %v4148, 5
      %v4151 = vor.u32 %v4147, %v4150
      %v4152 = vrot.slane %v4151, 4
      %v4154 = vshll.u32 %v4055, 16
      %v4156 = vrot.slane %v4154, 5
      %v4157 = vsel %vm808, %v4152, %v4156
      %v4158 = vshrl.u32 %v4055, 16
      %v4160 = vrot.slane %v4158, 4
      %v4161 = vor.u32 %v4160, %v4156
      %v4162 = vrot.slane %v4161, 4
      %v4164 = vshll.u32 %v4056, 16
      %v4166 = vrot.slane %v4164, 5
      %v4167 = vsel %vm808, %v4162, %v4166
      %v4169 = vshrl.u32 %v4057, 16
      %v4171 = vrot.slane %v4169, 4
      %v4172 = vshll.u32 %v4057, 16
      %v4174 = vrot.slane %v4172, 5
      %v4175 = vor.u32 %v4171, %v4174
      %v4176 = vrot.slane %v4175, 4
      %v4178 = vshll.u32 %v4058, 16
      %v4180 = vrot.slane %v4178, 5
      %v4181 = vsel %vm808, %v4176, %v4180
      %v4182 = vshrl.u32 %v4058, 16
      %v4184 = vrot.slane %v4182, 4
      %v4185 = vor.u32 %v4184, %v4180
      %v4186 = vrot.slane %v4185, 4
      %v4188 = vshll.u32 %v4059, 16
      %v4190 = vrot.slane %v4188, 5
      %v4191 = vsel %vm808, %v4186, %v4190
      %v4193 = vshrl.u32 %v4060, 16
      %v4195 = vrot.slane %v4193, 4
      %v4196 = vshll.u32 %v4060, 16
      %v4198 = vrot.slane %v4196, 5
      %v4199 = vor.u32 %v4195, %v4198
      %v4200 = vrot.slane %v4199, 4
      %v4202 = vshll.u32 %v4061, 16
      %v4204 = vrot.slane %v4202, 5
      %v4205 = vsel %vm808, %v4200, %v4204
      %v4206 = vshrl.u32 %v4061, 16
      %v4208 = vrot.slane %v4206, 4
      %v4209 = vor.u32 %v4208, %v4204
      %v4210 = vrot.slane %v4209, 4
      %v4212 = vshll.u32 %v4062, 16
      %v4214 = vrot.slane %v4212, 5
      %v4215 = vsel %vm808, %v4210, %v4214
      %v4217 = vshrl.u32 %v4063, 16
      %v4219 = vrot.slane %v4217, 4
      %v4220 = vshll.u32 %v4063, 16
      %v4222 = vrot.slane %v4220, 5
      %v4223 = vor.u32 %v4219, %v4222
      %v4224 = vrot.slane %v4223, 4
      %v4226 = vshll.u32 %v4064, 16
      %v4228 = vrot.slane %v4226, 5
      %v4229 = vsel %vm808, %v4224, %v4228
      %v4230 = vshrl.u32 %v4064, 16
      %v4232 = vrot.slane %v4230, 4
      %v4233 = vor.u32 %v4232, %v4228
      %v4234 = vrot.slane %v4233, 4
      %v4236 = vshll.u32 %v4065, 16
      %v4238 = vrot.slane %v4236, 5
      %v4239 = vsel %vm808, %v4234, %v4238
      %v4241 = vshrl.u32 %v4066, 16
      %v4243 = vrot.slane %v4241, 4
      %v4244 = vshll.u32 %v4066, 16
      %v4246 = vrot.slane %v4244, 5
      %v4247 = vor.u32 %v4243, %v4246
      %v4248 = vrot.slane %v4247, 4
      %v4250 = vshll.u32 %v4067, 16
      %v4252 = vrot.slane %v4250, 5
      %v4253 = vsel %vm808, %v4248, %v4252
      %v4254 = vshrl.u32 %v4067, 16
      %v4256 = vrot.slane %v4254, 4
      %v4257 = vor.u32 %v4256, %v4252
      %v4258 = vrot.slane %v4257, 4
      %v4260 = vshll.u32 %v4068, 16
      %v4262 = vrot.slane %v4260, 5
      %v4263 = vsel %vm808, %v4258, %v4262
      %v4265 = vshrl.u32 %v4069, 16
      %v4267 = vrot.slane %v4265, 4
      %v4268 = vshll.u32 %v4069, 16
      %v4270 = vrot.slane %v4268, 5
      %v4271 = vor.u32 %v4267, %v4270
      %v4272 = vrot.slane %v4271, 4
      %v4274 = vshll.u32 %v4070, 16
      %v4276 = vrot.slane %v4274, 5
      %v4277 = vsel %vm808, %v4272, %v4276
      %v4278 = vshrl.u32 %v4070, 16
      %v4280 = vrot.slane %v4278, 4
      %v4281 = vor.u32 %v4280, %v4276
      %v4282 = vrot.slane %v4281, 4
      %v4284 = vshll.u32 %v4071, 16
      %v4286 = vrot.slane %v4284, 5
      %v4287 = vsel %vm808, %v4282, %v4286
      %v4289 = vshrl.u32 %v4072, 16
      %v4291 = vrot.slane %v4289, 4
      %v4292 = vshll.u32 %v4072, 16
      %v4294 = vrot.slane %v4292, 5
      %v4295 = vor.u32 %v4291, %v4294
      %v4296 = vrot.slane %v4295, 4
      %v4298 = vshll.u32 %v4073, 16
      %v4300 = vrot.slane %v4298, 5
      %v4301 = vsel %vm808, %v4296, %v4300
      %v4302 = vshrl.u32 %v4073, 16
      %v4304 = vrot.slane %v4302, 4
      %v4305 = vor.u32 %v4304, %v4300
      %v4306 = vrot.slane %v4305, 4
      %v4308 = vshll.u32 %v4074, 16
      %v4310 = vrot.slane %v4308, 5
      %v4311 = vsel %vm808, %v4306, %v4310
      %v4313 = vshrl.u32 %v4075, 16
      %v4315 = vrot.slane %v4313, 4
      %v4316 = vshll.u32 %v4075, 16
      %v4318 = vrot.slane %v4316, 5
      %v4319 = vor.u32 %v4315, %v4318
      %v4320 = vrot.slane %v4319, 4
      %v4322 = vshll.u32 %v4076, 16
      %v4324 = vrot.slane %v4322, 5
      %v4325 = vsel %vm808, %v4320, %v4324
      %v4326 = vshrl.u32 %v4076, 16
      %v4328 = vrot.slane %v4326, 4
      %v4329 = vor.u32 %v4328, %v4324
      %v4330 = vrot.slane %v4329, 4
      %v4332 = vshll.u32 %v4077, 16
      %v4334 = vrot.slane %v4332, 5
      %v4335 = vsel %vm808, %v4330, %v4334
      %v4337 = vshrl.u32 %v4078, 16
      %v4339 = vrot.slane %v4337, 4
      %v4340 = vshll.u32 %v4078, 16
      %v4342 = vrot.slane %v4340, 5
      %v4343 = vor.u32 %v4339, %v4342
      %v4344 = vrot.slane %v4343, 4
      %v4346 = vshll.u32 %v4079, 16
      %v4348 = vrot.slane %v4346, 5
      %v4349 = vsel %vm808, %v4344, %v4348
      %v4350 = vshrl.u32 %v4079, 16
      %v4352 = vrot.slane %v4350, 4
      %v4353 = vor.u32 %v4352, %v4348
      %v4354 = vrot.slane %v4353, 4
      %v4356 = vshll.u32 %v4080, 16
      %v4358 = vrot.slane %v4356, 5
      %v4359 = vsel %vm808, %v4354, %v4358
      %v4361 = vshrl.u32 %v4081, 16
      %v4363 = vrot.slane %v4361, 4
      %v4364 = vshll.u32 %v4081, 16
      %v4366 = vrot.slane %v4364, 5
      %v4367 = vor.u32 %v4363, %v4366
      %v4368 = vrot.slane %v4367, 4
      %v4370 = vshll.u32 %v4082, 16
      %v4372 = vrot.slane %v4370, 5
      %v4373 = vsel %vm808, %v4368, %v4372
      %v4374 = vshrl.u32 %v4082, 16
      %v4376 = vrot.slane %v4374, 4
      %v4377 = vor.u32 %v4376, %v4372
      %v4378 = vrot.slane %v4377, 4
      %v4380 = vshll.u32 %v4083, 16
      %v4382 = vrot.slane %v4380, 5
      %v4383 = vsel %vm808, %v4378, %v4382
      %v4385 = vshrl.u32 %v4084, 16
      %v4387 = vrot.slane %v4385, 4
      %v4388 = vshll.u32 %v4084, 16
      %v4390 = vrot.slane %v4388, 5
      %v4391 = vor.u32 %v4387, %v4390
      %v4392 = vrot.slane %v4391, 4
      %v4394 = vshll.u32 %v4085, 16
      %v4396 = vrot.slane %v4394, 5
      %v4397 = vsel %vm808, %v4392, %v4396
      %v4398 = vshrl.u32 %v4085, 16
      %v4400 = vrot.slane %v4398, 4
      %v4401 = vor.u32 %v4400, %v4396
      %v4402 = vrot.slane %v4401, 4
      %v4404 = vshll.u32 %v4086, 16
      %v4406 = vrot.slane %v4404, 5
      %v4407 = vsel %vm808, %v4402, %v4406
      %v4409 = vshrl.u32 %v4087, 16
      %v4411 = vrot.slane %v4409, 4
      %v4412 = vshll.u32 %v4087, 16
      %v4414 = vrot.slane %v4412, 5
      %v4415 = vor.u32 %v4411, %v4414
      %v4416 = vrot.slane %v4415, 4
      %v4418 = vshll.u32 %v4088, 16
      %v4420 = vrot.slane %v4418, 5
      %v4421 = vsel %vm808, %v4416, %v4420
      %v4422 = vshrl.u32 %v4088, 16
      %v4424 = vrot.slane %v4422, 4
      %v4425 = vor.u32 %v4424, %v4420
      %v4426 = vrot.slane %v4425, 4
      %v4428 = vshll.u32 %v4089, 16
      %v4430 = vrot.slane %v4428, 5
      %v4431 = vsel %vm808, %v4426, %v4430
      %v4433 = vshrl.u32 %v4090, 16
      %v4435 = vrot.slane %v4433, 4
      %v4436 = vshll.u32 %v4090, 16
      %v4438 = vrot.slane %v4436, 5
      %v4439 = vor.u32 %v4435, %v4438
      %v4440 = vrot.slane %v4439, 4
      %v4442 = vshll.u32 %v4091, 16
      %v4444 = vrot.slane %v4442, 5
      %v4445 = vsel %vm808, %v4440, %v4444
      %v4446 = vshrl.u32 %v4091, 16
      %v4448 = vrot.slane %v4446, 4
      %v4449 = vor.u32 %v4448, %v4444
      %v4450 = vrot.slane %v4449, 4
      %v4452 = vshll.u32 %v4092, 16
      %v4454 = vrot.slane %v4452, 5
      %v4455 = vsel %vm808, %v4450, %v4454
      %v4457 = vshrl.u32 %v4093, 16
      %v4459 = vrot.slane %v4457, 4
      %v4460 = vshll.u32 %v4093, 16
      %v4462 = vrot.slane %v4460, 5
      %v4463 = vor.u32 %v4459, %v4462
      %v4464 = vrot.slane %v4463, 4
      %v4466 = vshll.u32 %v4094, 16
      %v4468 = vrot.slane %v4466, 5
      %v4469 = vsel %vm808, %v4464, %v4468
      %v4470 = vshrl.u32 %v4094, 16
      %v4472 = vrot.slane %v4470, 4
      %v4473 = vor.u32 %v4472, %v4468
      %v4474 = vrot.slane %v4473, 4
      %v4476 = vshll.u32 %v4095, 16
      %v4478 = vrot.slane %v4476, 5
      %v4479 = vsel %vm808, %v4474, %v4478
      %s4480 = scalar_lea.vmem %s357, 448
      %v4481 = vld [vmem:[%s4480] sm:$0xf]
      %v4482 = vld [vmem:[%s4480 + $0x4] sm:$0xf]
      %v4483 = vld [vmem:[%s4480 + $0x8] sm:$0xf]
      %v4484 = vld [vmem:[%s4480 + $0xc] sm:$0xf]
      %v4485 = vld [vmem:[%s4480 + $0x10] sm:$0xf]
      %v4486 = vld [vmem:[%s4480 + $0x14] sm:$0xf]
      %v4487 = vld [vmem:[%s4480 + $0x18] sm:$0xf]
      %v4488 = vld [vmem:[%s4480 + $0x1c] sm:$0xf]
      %v4489 = vld [vmem:[%s4480 + $0x20] sm:$0xf]
      %v4490 = vld [vmem:[%s4480 + $0x24] sm:$0xf]
      %v4491 = vld [vmem:[%s4480 + $0x28] sm:$0xf]
      %v4492 = vld [vmem:[%s4480 + $0x2c] sm:$0xf]
      %v4493 = vld [vmem:[%s4480 + $0x30] sm:$0xf]
      %v4494 = vld [vmem:[%s4480 + $0x34] sm:$0xf]
      %v4495 = vld [vmem:[%s4480 + $0x38] sm:$0xf]
      %v4496 = vld [vmem:[%s4480 + $0x3c] sm:$0xf]
      %v4497 = vunpack.c.l.b16 %v4109
      %v4498 = vunpack.c.l.b16 %v4119
      %v4499 = vunpack.c.l.b16 %v4133
      %v4500 = vunpack.c.l.b16 %v4143
      %v4501 = vunpack.c.l.b16 %v4157
      %v4502 = vunpack.c.l.b16 %v4167
      %v4503 = vunpack.c.l.b16 %v4181
      %v4504 = vunpack.c.l.b16 %v4191
      %v4505 = vunpack.c.l.b16 %v4205
      %v4506 = vunpack.c.l.b16 %v4215
      %v4507 = vunpack.c.l.b16 %v4229
      %v4508 = vunpack.c.l.b16 %v4239
      %v4509 = vunpack.c.l.b16 %v4253
      %v4510 = vunpack.c.l.b16 %v4263
      %v4511 = vunpack.c.l.b16 %v4277
      %v4512 = vunpack.c.l.b16 %v4287
      %v4513 = vunpack.c.l.b16 %v4301
      %v4514 = vunpack.c.l.b16 %v4311
      %v4515 = vunpack.c.l.b16 %v4325
      %v4516 = vunpack.c.l.b16 %v4335
      %v4517 = vunpack.c.l.b16 %v4349
      %v4518 = vunpack.c.l.b16 %v4359
      %v4519 = vunpack.c.l.b16 %v4373
      %v4520 = vunpack.c.l.b16 %v4383
      %v4521 = vunpack.c.l.b16 %v4397
      %v4522 = vunpack.c.l.b16 %v4407
      %v4523 = vunpack.c.l.b16 %v4421
      %v4524 = vunpack.c.l.b16 %v4431
      %v4525 = vunpack.c.l.b16 %v4445
      %v4526 = vunpack.c.l.b16 %v4455
      %v4527 = vunpack.c.l.b16 %v4469
      %v4528 = vunpack.c.l.b16 %v4479
      %v4529 = vpack.c.b16 %v4498, %v4497
      %v4530 = vpack.c.b16 %v4500, %v4499
      %v4531 = vpack.c.b16 %v4502, %v4501
      %v4532 = vpack.c.b16 %v4504, %v4503
      %v4533 = vpack.c.b16 %v4506, %v4505
      %v4534 = vpack.c.b16 %v4508, %v4507
      %v4535 = vpack.c.b16 %v4510, %v4509
      %v4536 = vpack.c.b16 %v4512, %v4511
      %v4537 = vpack.c.b16 %v4514, %v4513
      %v4538 = vpack.c.b16 %v4516, %v4515
      %v4539 = vpack.c.b16 %v4518, %v4517
      %v4540 = vpack.c.b16 %v4520, %v4519
      %v4541 = vpack.c.b16 %v4522, %v4521
      %v4542 = vpack.c.b16 %v4524, %v4523
      %v4543 = vpack.c.b16 %v4526, %v4525
      %v4544 = vpack.c.b16 %v4528, %v4527
      %v4577 = vunpack.c.l.b16 %v4481
      %v4578 = vunpack.c.l.b16 %v4482
      %v4579 = vunpack.c.l.b16 %v4483
      %v4580 = vunpack.c.l.b16 %v4484
      %v4581 = vunpack.c.l.b16 %v4485
      %v4582 = vunpack.c.l.b16 %v4486
      %v4583 = vunpack.c.l.b16 %v4487
      %v4584 = vunpack.c.l.b16 %v4488
      %v4585 = vunpack.c.l.b16 %v4489
      %v4586 = vunpack.c.l.b16 %v4490
      %v4587 = vunpack.c.l.b16 %v4491
      %v4588 = vunpack.c.l.b16 %v4492
      %v4589 = vunpack.c.l.b16 %v4493
      %v4590 = vunpack.c.l.b16 %v4494
      %v4591 = vunpack.c.l.b16 %v4495
      %v4592 = vunpack.c.l.b16 %v4496
      %v4593 = vpack.c.b16 %v4578, %v4577
      %v4594 = vpack.c.b16 %v4580, %v4579
      %v4595 = vpack.c.b16 %v4582, %v4581
      %v4596 = vpack.c.b16 %v4584, %v4583
      %v4597 = vpack.c.b16 %v4586, %v4585
      %v4598 = vpack.c.b16 %v4588, %v4587
      %v4599 = vpack.c.b16 %v4590, %v4589
      %v4600 = vpack.c.b16 %v4592, %v4591
      %4609 = vmatprep.subr.bf16.mxu0 0
      %4610 = vmatpush1.bf16.msra.mxu0 %v4593
      %4611 = vmatprep.subr.bf16.mxu0 0
      %4612 = vmatpush1.bf16.msra.mxu0 %v4594
      %4613 = vmatprep.subr.bf16.mxu0 0
      %4614 = vmatpush1.bf16.msra.mxu0 %v4595
      %4615 = vmatprep.subr.bf16.mxu0 0
      %4616 = vmatpush1.bf16.msra.mxu0 %v4596
      %4617 = vmatprep.subr.bf16.mxu0 0
      %4618 = vmatpush1.bf16.msra.mxu0 %v4597
      %4619 = vmatprep.subr.bf16.mxu0 0
      %4620 = vmatpush1.bf16.msra.mxu0 %v4598
      %4621 = vmatprep.subr.bf16.mxu0 0
      %4622 = vmatpush1.bf16.msra.mxu0 %v4599
      %4623 = vmatprep.subr.bf16.mxu0 0
      %4624 = vmatpush1.bf16.msra.mxu0 %v4600
      %4625 = vmatprep.subr.bf16.mxu0 0
      %4626 = vmatpush1.bf16.msra.mxu0 0
      %4627 = vmatprep.subr.bf16.mxu0 0
      %4628 = vmatpush1.bf16.msra.mxu0 0
      %4629 = vmatprep.subr.bf16.mxu0 0
      %4630 = vmatpush1.bf16.msra.mxu0 0
      %4631 = vmatprep.subr.bf16.mxu0 0
      %4632 = vmatpush1.bf16.msra.mxu0 0
      %4633 = vmatprep.subr.bf16.mxu0 0
      %4634 = vmatpush1.bf16.msra.mxu0 0
      %4635 = vmatprep.subr.bf16.mxu0 0
      %4636 = vmatpush1.bf16.msra.mxu0 0
      %4637 = vmatprep.subr.bf16.mxu0 0
      %4638 = vmatpush1.bf16.msra.mxu0 0
      %4639 = vmatprep.subr.bf16.mxu0 0
      %4640 = vmatpush1.bf16.msra.mxu0 0
      %4641 = vmatprep.mubr.bf16.mxu0 0
      %4642 = vmatmul.mubr.bf16.gmra.mrb[0].mxu0 %v4529
      %v4643 = vpop.f32.mrb[0].mxu0
      %v4644 = vadd.f32 0.0, %v4643
      %v4645 = vpop.f32.mrb[0].mxu0
      %v4646 = vpop.f32.mrb[0].mxu0
      %v4647 = vadd.f32 0.0, %v4646
      %v4648 = vpop.f32.mrb[0].mxu0
      %4649 = vmatprep.mubr.bf16.mxu0 0
      %4650 = vmatmul.mubr.bf16.gmra.mrb[0].mxu0 %v4530
      %v4651 = vpop.f32.mrb[0].mxu0
      %v4652 = vadd.f32 0.0, %v4651
      %v4653 = vpop.f32.mrb[0].mxu0
      %v4654 = vpop.f32.mrb[0].mxu0
      %v4655 = vadd.f32 0.0, %v4654
      %v4656 = vpop.f32.mrb[0].mxu0
      %4657 = vmatprep.mubr.bf16.mxu0 0
      %4658 = vmatmul.mubr.bf16.gmra.mrb[0].mxu0 %v4531
      %v4659 = vpop.f32.mrb[0].mxu0
      %v4660 = vadd.f32 0.0, %v4659
      %v4661 = vpop.f32.mrb[0].mxu0
      %v4662 = vpop.f32.mrb[0].mxu0
      %v4663 = vadd.f32 0.0, %v4662
      %v4664 = vpop.f32.mrb[0].mxu0
      %4665 = vmatprep.mubr.bf16.mxu0 0
      %4666 = vmatmul.mubr.bf16.gmra.mrb[0].mxu0 %v4532
      %v4667 = vpop.f32.mrb[0].mxu0
      %v4668 = vadd.f32 0.0, %v4667
      %v4669 = vpop.f32.mrb[0].mxu0
      %v4670 = vpop.f32.mrb[0].mxu0
      %v4671 = vadd.f32 0.0, %v4670
      %v4672 = vpop.f32.mrb[0].mxu0
      %4673 = vmatprep.mubr.bf16.mxu0 0
      %4674 = vmatmul.mubr.bf16.gmra.mrb[0].mxu0 %v4533
      %v4675 = vpop.f32.mrb[0].mxu0
      %v4676 = vadd.f32 0.0, %v4675
      %v4677 = vpop.f32.mrb[0].mxu0
      %v4678 = vpop.f32.mrb[0].mxu0
      %v4679 = vadd.f32 0.0, %v4678
      %v4680 = vpop.f32.mrb[0].mxu0
      %4681 = vmatprep.mubr.bf16.mxu0 0
      %4682 = vmatmul.mubr.bf16.gmra.mrb[0].mxu0 %v4534
      %v4683 = vpop.f32.mrb[0].mxu0
      %v4684 = vadd.f32 0.0, %v4683
      %v4685 = vpop.f32.mrb[0].mxu0
      %v4686 = vpop.f32.mrb[0].mxu0
      %v4687 = vadd.f32 0.0, %v4686
      %v4688 = vpop.f32.mrb[0].mxu0
      %4689 = vmatprep.mubr.bf16.mxu0 0
      %4690 = vmatmul.mubr.bf16.gmra.mrb[0].mxu0 %v4535
      %v4691 = vpop.f32.mrb[0].mxu0
      %v4692 = vadd.f32 0.0, %v4691
      %v4693 = vpop.f32.mrb[0].mxu0
      %v4694 = vpop.f32.mrb[0].mxu0
      %v4695 = vadd.f32 0.0, %v4694
      %v4696 = vpop.f32.mrb[0].mxu0
      %4697 = vmatprep.mubr.bf16.mxu0 0
      %4698 = vmatmul.mubr.bf16.gmra.mrb[0].mxu0 %v4536
      %v4699 = vpop.f32.mrb[0].mxu0
      %v4700 = vadd.f32 0.0, %v4699
      %v4701 = vpop.f32.mrb[0].mxu0
      %v4702 = vpop.f32.mrb[0].mxu0
      %v4703 = vadd.f32 0.0, %v4702
      %v4704 = vpop.f32.mrb[0].mxu0
      %4705 = vmatprep.mubr.bf16.mxu0 0
      %4706 = vmatmul.mubr.bf16.gmra.mrb[0].mxu0 %v4537
      %v4707 = vpop.f32.mrb[0].mxu0
      %v4708 = vadd.f32 0.0, %v4707
      %v4709 = vpop.f32.mrb[0].mxu0
      %v4710 = vpop.f32.mrb[0].mxu0
      %v4711 = vadd.f32 0.0, %v4710
      %v4712 = vpop.f32.mrb[0].mxu0
      %4713 = vmatprep.mubr.bf16.mxu0 0
      %4714 = vmatmul.mubr.bf16.gmra.mrb[0].mxu0 %v4538
      %v4715 = vpop.f32.mrb[0].mxu0
      %v4716 = vadd.f32 0.0, %v4715
      %v4717 = vpop.f32.mrb[0].mxu0
      %v4718 = vpop.f32.mrb[0].mxu0
      %v4719 = vadd.f32 0.0, %v4718
      %v4720 = vpop.f32.mrb[0].mxu0
      %4721 = vmatprep.mubr.bf16.mxu0 0
      %4722 = vmatmul.mubr.bf16.gmra.mrb[0].mxu0 %v4539
      %v4723 = vpop.f32.mrb[0].mxu0
      %v4724 = vadd.f32 0.0, %v4723
      %v4725 = vpop.f32.mrb[0].mxu0
      %v4726 = vpop.f32.mrb[0].mxu0
      %v4727 = vadd.f32 0.0, %v4726
      %v4728 = vpop.f32.mrb[0].mxu0
      %4729 = vmatprep.mubr.bf16.mxu0 0
      %4730 = vmatmul.mubr.bf16.gmra.mrb[0].mxu0 %v4540
      %v4731 = vpop.f32.mrb[0].mxu0
      %v4732 = vadd.f32 0.0, %v4731
      %v4733 = vpop.f32.mrb[0].mxu0
      %v4734 = vpop.f32.mrb[0].mxu0
      %v4735 = vadd.f32 0.0, %v4734
      %v4736 = vpop.f32.mrb[0].mxu0
      %4737 = vmatprep.mubr.bf16.mxu0 0
      %4738 = vmatmul.mubr.bf16.gmra.mrb[0].mxu0 %v4541
      %v4739 = vpop.f32.mrb[0].mxu0
      %v4740 = vadd.f32 0.0, %v4739
      %v4741 = vpop.f32.mrb[0].mxu0
      %v4742 = vpop.f32.mrb[0].mxu0
      %v4743 = vadd.f32 0.0, %v4742
      %v4744 = vpop.f32.mrb[0].mxu0
      %4745 = vmatprep.mubr.bf16.mxu0 0
      %4746 = vmatmul.mubr.bf16.gmra.mrb[0].mxu0 %v4542
      %v4747 = vpop.f32.mrb[0].mxu0
      %v4748 = vadd.f32 0.0, %v4747
      %v4749 = vpop.f32.mrb[0].mxu0
      %v4750 = vpop.f32.mrb[0].mxu0
      %v4751 = vadd.f32 0.0, %v4750
      %v4752 = vpop.f32.mrb[0].mxu0
      %4753 = vmatprep.mubr.bf16.mxu0 0
      %4754 = vmatmul.mubr.bf16.gmra.mrb[0].mxu0 %v4543
      %v4755 = vpop.f32.mrb[0].mxu0
      %v4756 = vadd.f32 0.0, %v4755
      %v4757 = vpop.f32.mrb[0].mxu0
      %v4758 = vpop.f32.mrb[0].mxu0
      %v4759 = vadd.f32 0.0, %v4758
      %v4760 = vpop.f32.mrb[0].mxu0
      %4761 = vmatprep.mubr.bf16.mxu0 0
      %4762 = vmatmul.mubr.bf16.gmra.mrb[0].mxu0 %v4544
      %v4763 = vpop.f32.mrb[0].mxu0
      %v4764 = vadd.f32 0.0, %v4763
      %v4765 = vpop.f32.mrb[0].mxu0
      %v4766 = vpop.f32.mrb[0].mxu0
      %v4767 = vadd.f32 0.0, %v4766
      %v4768 = vpop.f32.mrb[0].mxu0
      %4769 = vdwg.mxu0
      %v4770 = vadd.f32 %v4016, %v4644
      %v4771 = vadd.f32 %v4017, %v4647
      %v4772 = vadd.f32 %v4018, %v4652
      %v4773 = vadd.f32 %v4019, %v4655
      %v4774 = vadd.f32 %v4020, %v4660
      %v4775 = vadd.f32 %v4021, %v4663
      %v4776 = vadd.f32 %v4022, %v4668
      %v4777 = vadd.f32 %v4023, %v4671
      %v4778 = vadd.f32 %v4024, %v4676
      %v4779 = vadd.f32 %v4025, %v4679
      %v4780 = vadd.f32 %v4026, %v4684
      %v4781 = vadd.f32 %v4027, %v4687
      %v4782 = vadd.f32 %v4028, %v4692
      %v4783 = vadd.f32 %v4029, %v4695
      %v4784 = vadd.f32 %v4030, %v4700
      %v4785 = vadd.f32 %v4031, %v4703
      %v4786 = vadd.f32 %v4032, %v4708
      %v4787 = vadd.f32 %v4033, %v4711
      %v4788 = vadd.f32 %v4034, %v4716
      %v4789 = vadd.f32 %v4035, %v4719
      %v4790 = vadd.f32 %v4036, %v4724
      %v4791 = vadd.f32 %v4037, %v4727
      %v4792 = vadd.f32 %v4038, %v4732
      %v4793 = vadd.f32 %v4039, %v4735
      %v4794 = vadd.f32 %v4040, %v4740
      %v4795 = vadd.f32 %v4041, %v4743
      %v4796 = vadd.f32 %v4042, %v4748
      %v4797 = vadd.f32 %v4043, %v4751
      %v4798 = vadd.f32 %v4044, %v4756
      %v4799 = vadd.f32 %v4045, %v4759
      %v4800 = vadd.f32 %v4046, %v4764
      %v4801 = vadd.f32 %v4047, %v4767
      %v4802 = vld [vmem:[%s3661] sm:$0xe]
      %v4803 = vld [vmem:[%s3661 + $0xc] sm:$0xe]
      %v4804 = vld [vmem:[%s3661 + $0x18] sm:$0xe]
      %v4805 = vld [vmem:[%s3661 + $0x24] sm:$0xe]
      %v4806 = vld [vmem:[%s3661 + $0x30] sm:$0xe]
      %v4807 = vld [vmem:[%s3661 + $0x3c] sm:$0xe]
      %v4808 = vld [vmem:[%s3661 + $0x48] sm:$0xe]
      %v4809 = vld [vmem:[%s3661 + $0x54] sm:$0xe]
      %v4810 = vld [vmem:[%s3661 + $0x60] sm:$0xe]
      %v4811 = vld [vmem:[%s3661 + $0x6c] sm:$0xe]
      %v4812 = vld [vmem:[%s3661 + $0x78] sm:$0xe]
      %v4813 = vld [vmem:[%s3661 + $0x84] sm:$0xe]
      %v4814 = vld [vmem:[%s3661 + $0x90] sm:$0xe]
      %v4815 = vld [vmem:[%s3661 + $0x9c] sm:$0xe]
      %v4816 = vld [vmem:[%s3661 + $0xa8] sm:$0xe]
      %v4817 = vld [vmem:[%s3661 + $0xb4] sm:$0xe]
      %v4866 = vrot.slane %v4802, 5
      %v4867 = vrot.slane %v4866, 4
      %v4868 = vrot.slane %v4049, 5
      %v4869 = vsel %vm1581, %v4867, %v4868
      %v4870 = vrot.slane %v4868, 4
      %v4871 = vrot.slane %v4050, 5
      %v4872 = vsel %vm1581, %v4870, %v4871
      %v4873 = vrot.slane %v4803, 5
      %v4874 = vrot.slane %v4873, 4
      %v4875 = vrot.slane %v4052, 5
      %v4876 = vsel %vm1581, %v4874, %v4875
      %v4877 = vrot.slane %v4875, 4
      %v4878 = vrot.slane %v4053, 5
      %v4879 = vsel %vm1581, %v4877, %v4878
      %v4880 = vrot.slane %v4804, 5
      %v4881 = vrot.slane %v4880, 4
      %v4882 = vrot.slane %v4055, 5
      %v4883 = vsel %vm1581, %v4881, %v4882
      %v4884 = vrot.slane %v4882, 4
      %v4885 = vrot.slane %v4056, 5
      %v4886 = vsel %vm1581, %v4884, %v4885
      %v4887 = vrot.slane %v4805, 5
      %v4888 = vrot.slane %v4887, 4
      %v4889 = vrot.slane %v4058, 5
      %v4890 = vsel %vm1581, %v4888, %v4889
      %v4891 = vrot.slane %v4889, 4
      %v4892 = vrot.slane %v4059, 5
      %v4893 = vsel %vm1581, %v4891, %v4892
      %v4894 = vrot.slane %v4806, 5
      %v4895 = vrot.slane %v4894, 4
      %v4896 = vrot.slane %v4061, 5
      %v4897 = vsel %vm1581, %v4895, %v4896
      %v4898 = vrot.slane %v4896, 4
      %v4899 = vrot.slane %v4062, 5
      %v4900 = vsel %vm1581, %v4898, %v4899
      %v4901 = vrot.slane %v4807, 5
      %v4902 = vrot.slane %v4901, 4
      %v4903 = vrot.slane %v4064, 5
      %v4904 = vsel %vm1581, %v4902, %v4903
      %v4905 = vrot.slane %v4903, 4
      %v4906 = vrot.slane %v4065, 5
      %v4907 = vsel %vm1581, %v4905, %v4906
      %v4908 = vrot.slane %v4808, 5
      %v4909 = vrot.slane %v4908, 4
      %v4910 = vrot.slane %v4067, 5
      %v4911 = vsel %vm1581, %v4909, %v4910
      %v4912 = vrot.slane %v4910, 4
      %v4913 = vrot.slane %v4068, 5
      %v4914 = vsel %vm1581, %v4912, %v4913
      %v4915 = vrot.slane %v4809, 5
      %v4916 = vrot.slane %v4915, 4
      %v4917 = vrot.slane %v4070, 5
      %v4918 = vsel %vm1581, %v4916, %v4917
      %v4919 = vrot.slane %v4917, 4
      %v4920 = vrot.slane %v4071, 5
      %v4921 = vsel %vm1581, %v4919, %v4920
      %v4922 = vrot.slane %v4810, 5
      %v4923 = vrot.slane %v4922, 4
      %v4924 = vrot.slane %v4073, 5
      %v4925 = vsel %vm1581, %v4923, %v4924
      %v4926 = vrot.slane %v4924, 4
      %v4927 = vrot.slane %v4074, 5
      %v4928 = vsel %vm1581, %v4926, %v4927
      %v4929 = vrot.slane %v4811, 5
      %v4930 = vrot.slane %v4929, 4
      %v4931 = vrot.slane %v4076, 5
      %v4932 = vsel %vm1581, %v4930, %v4931
      %v4933 = vrot.slane %v4931, 4
      %v4934 = vrot.slane %v4077, 5
      %v4935 = vsel %vm1581, %v4933, %v4934
      %v4936 = vrot.slane %v4812, 5
      %v4937 = vrot.slane %v4936, 4
      %v4938 = vrot.slane %v4079, 5
      %v4939 = vsel %vm1581, %v4937, %v4938
      %v4940 = vrot.slane %v4938, 4
      %v4941 = vrot.slane %v4080, 5
      %v4942 = vsel %vm1581, %v4940, %v4941
      %v4943 = vrot.slane %v4813, 5
      %v4944 = vrot.slane %v4943, 4
      %v4945 = vrot.slane %v4082, 5
      %v4946 = vsel %vm1581, %v4944, %v4945
      %v4947 = vrot.slane %v4945, 4
      %v4948 = vrot.slane %v4083, 5
      %v4949 = vsel %vm1581, %v4947, %v4948
      %v4950 = vrot.slane %v4814, 5
      %v4951 = vrot.slane %v4950, 4
      %v4952 = vrot.slane %v4085, 5
      %v4953 = vsel %vm1581, %v4951, %v4952
      %v4954 = vrot.slane %v4952, 4
      %v4955 = vrot.slane %v4086, 5
      %v4956 = vsel %vm1581, %v4954, %v4955
      %v4957 = vrot.slane %v4815, 5
      %v4958 = vrot.slane %v4957, 4
      %v4959 = vrot.slane %v4088, 5
      %v4960 = vsel %vm1581, %v4958, %v4959
      %v4961 = vrot.slane %v4959, 4
      %v4962 = vrot.slane %v4089, 5
      %v4963 = vsel %vm1581, %v4961, %v4962
      %v4964 = vrot.slane %v4816, 5
      %v4965 = vrot.slane %v4964, 4
      %v4966 = vrot.slane %v4091, 5
      %v4967 = vsel %vm1581, %v4965, %v4966
      %v4968 = vrot.slane %v4966, 4
      %v4969 = vrot.slane %v4092, 5
      %v4970 = vsel %vm1581, %v4968, %v4969
      %v4971 = vrot.slane %v4817, 5
      %v4972 = vrot.slane %v4971, 4
      %v4973 = vrot.slane %v4094, 5
      %v4974 = vsel %vm1581, %v4972, %v4973
      %v4975 = vrot.slane %v4973, 4
      %v4976 = vrot.slane %v4095, 5
      %v4977 = vsel %vm1581, %v4975, %v4976
      %s4978 = scalar_lea.vmem %s357, 512
      %v4979 = vld [vmem:[%s4978] sm:$0xf]
      %v4980 = vld [vmem:[%s4978 + $0x4] sm:$0xf]
      %v4981 = vld [vmem:[%s4978 + $0x8] sm:$0xf]
      %v4982 = vld [vmem:[%s4978 + $0xc] sm:$0xf]
      %v4983 = vld [vmem:[%s4978 + $0x10] sm:$0xf]
      %v4984 = vld [vmem:[%s4978 + $0x14] sm:$0xf]
      %v4985 = vld [vmem:[%s4978 + $0x18] sm:$0xf]
      %v4986 = vld [vmem:[%s4978 + $0x1c] sm:$0xf]
      %v4987 = vld [vmem:[%s4978 + $0x20] sm:$0xf]
      %v4988 = vld [vmem:[%s4978 + $0x24] sm:$0xf]
      %v4989 = vld [vmem:[%s4978 + $0x28] sm:$0xf]
      %v4990 = vld [vmem:[%s4978 + $0x2c] sm:$0xf]
      %v4991 = vld [vmem:[%s4978 + $0x30] sm:$0xf]
      %v4992 = vld [vmem:[%s4978 + $0x34] sm:$0xf]
      %v4993 = vld [vmem:[%s4978 + $0x38] sm:$0xf]
      %v4994 = vld [vmem:[%s4978 + $0x3c] sm:$0xf]
      %v4995 = vunpack.c.l.b16 %v4869
      %v4996 = vunpack.c.l.b16 %v4872
      %v4997 = vunpack.c.l.b16 %v4876
      %v4998 = vunpack.c.l.b16 %v4879
      %v4999 = vunpack.c.l.b16 %v4883
      %v5000 = vunpack.c.l.b16 %v4886
      %v5001 = vunpack.c.l.b16 %v4890
      %v5002 = vunpack.c.l.b16 %v4893
      %v5003 = vunpack.c.l.b16 %v4897
      %v5004 = vunpack.c.l.b16 %v4900
      %v5005 = vunpack.c.l.b16 %v4904
      %v5006 = vunpack.c.l.b16 %v4907
      %v5007 = vunpack.c.l.b16 %v4911
      %v5008 = vunpack.c.l.b16 %v4914
      %v5009 = vunpack.c.l.b16 %v4918
      %v5010 = vunpack.c.l.b16 %v4921
      %v5011 = vunpack.c.l.b16 %v4925
      %v5012 = vunpack.c.l.b16 %v4928
      %v5013 = vunpack.c.l.b16 %v4932
      %v5014 = vunpack.c.l.b16 %v4935
      %v5015 = vunpack.c.l.b16 %v4939
      %v5016 = vunpack.c.l.b16 %v4942
      %v5017 = vunpack.c.l.b16 %v4946
      %v5018 = vunpack.c.l.b16 %v4949
      %v5019 = vunpack.c.l.b16 %v4953
      %v5020 = vunpack.c.l.b16 %v4956
      %v5021 = vunpack.c.l.b16 %v4960
      %v5022 = vunpack.c.l.b16 %v4963
      %v5023 = vunpack.c.l.b16 %v4967
      %v5024 = vunpack.c.l.b16 %v4970
      %v5025 = vunpack.c.l.b16 %v4974
      %v5026 = vunpack.c.l.b16 %v4977
      %v5027 = vpack.c.b16 %v4996, %v4995
      %v5028 = vpack.c.b16 %v4998, %v4997
      %v5029 = vpack.c.b16 %v5000, %v4999
      %v5030 = vpack.c.b16 %v5002, %v5001
      %v5031 = vpack.c.b16 %v5004, %v5003
      %v5032 = vpack.c.b16 %v5006, %v5005
      %v5033 = vpack.c.b16 %v5008, %v5007
      %v5034 = vpack.c.b16 %v5010, %v5009
      %v5035 = vpack.c.b16 %v5012, %v5011
      %v5036 = vpack.c.b16 %v5014, %v5013
      %v5037 = vpack.c.b16 %v5016, %v5015
      %v5038 = vpack.c.b16 %v5018, %v5017
      %v5039 = vpack.c.b16 %v5020, %v5019
      %v5040 = vpack.c.b16 %v5022, %v5021
      %v5041 = vpack.c.b16 %v5024, %v5023
      %v5042 = vpack.c.b16 %v5026, %v5025
      %v5075 = vunpack.c.l.b16 %v4979
      %v5076 = vunpack.c.l.b16 %v4980
      %v5077 = vunpack.c.l.b16 %v4981
      %v5078 = vunpack.c.l.b16 %v4982
      %v5079 = vunpack.c.l.b16 %v4983
      %v5080 = vunpack.c.l.b16 %v4984
      %v5081 = vunpack.c.l.b16 %v4985
      %v5082 = vunpack.c.l.b16 %v4986
      %v5083 = vunpack.c.l.b16 %v4987
      %v5084 = vunpack.c.l.b16 %v4988
      %v5085 = vunpack.c.l.b16 %v4989
      %v5086 = vunpack.c.l.b16 %v4990
      %v5087 = vunpack.c.l.b16 %v4991
      %v5088 = vunpack.c.l.b16 %v4992
      %v5089 = vunpack.c.l.b16 %v4993
      %v5090 = vunpack.c.l.b16 %v4994
      %v5091 = vpack.c.b16 %v5076, %v5075
      %v5092 = vpack.c.b16 %v5078, %v5077
      %v5093 = vpack.c.b16 %v5080, %v5079
      %v5094 = vpack.c.b16 %v5082, %v5081
      %v5095 = vpack.c.b16 %v5084, %v5083
      %v5096 = vpack.c.b16 %v5086, %v5085
      %v5097 = vpack.c.b16 %v5088, %v5087
      %v5098 = vpack.c.b16 %v5090, %v5089
      %5107 = vmatprep.subr.bf16.mxu0 0
      %5108 = vmatpush1.bf16.msra.mxu0 %v5091
      %5109 = vmatprep.subr.bf16.mxu0 0
      %5110 = vmatpush1.bf16.msra.mxu0 %v5092
      %5111 = vmatprep.subr.bf16.mxu0 0
      %5112 = vmatpush1.bf16.msra.mxu0 %v5093
      %5113 = vmatprep.subr.bf16.mxu0 0
      %5114 = vmatpush1.bf16.msra.mxu0 %v5094
      %5115 = vmatprep.subr.bf16.mxu0 0
      %5116 = vmatpush1.bf16.msra.mxu0 %v5095
      %5117 = vmatprep.subr.bf16.mxu0 0
      %5118 = vmatpush1.bf16.msra.mxu0 %v5096
      %5119 = vmatprep.subr.bf16.mxu0 0
      %5120 = vmatpush1.bf16.msra.mxu0 %v5097
      %5121 = vmatprep.subr.bf16.mxu0 0
      %5122 = vmatpush1.bf16.msra.mxu0 %v5098
      %5123 = vmatprep.subr.bf16.mxu0 0
      %5124 = vmatpush1.bf16.msra.mxu0 0
      %5125 = vmatprep.subr.bf16.mxu0 0
      %5126 = vmatpush1.bf16.msra.mxu0 0
      %5127 = vmatprep.subr.bf16.mxu0 0
      %5128 = vmatpush1.bf16.msra.mxu0 0
      %5129 = vmatprep.subr.bf16.mxu0 0
      %5130 = vmatpush1.bf16.msra.mxu0 0
      %5131 = vmatprep.subr.bf16.mxu0 0
      %5132 = vmatpush1.bf16.msra.mxu0 0
      %5133 = vmatprep.subr.bf16.mxu0 0
      %5134 = vmatpush1.bf16.msra.mxu0 0
      %5135 = vmatprep.subr.bf16.mxu0 0
      %5136 = vmatpush1.bf16.msra.mxu0 0
      %5137 = vmatprep.subr.bf16.mxu0 0
      %5138 = vmatpush1.bf16.msra.mxu0 0
      %5139 = vmatprep.mubr.bf16.mxu0 0
      %5140 = vmatmul.mubr.bf16.gmra.mrb[0].mxu0 %v5027
      %v5141 = vpop.f32.mrb[0].mxu0
      %v5142 = vadd.f32 0.0, %v5141
      %v5143 = vpop.f32.mrb[0].mxu0
      %v5144 = vpop.f32.mrb[0].mxu0
      %v5145 = vadd.f32 0.0, %v5144
      %v5146 = vpop.f32.mrb[0].mxu0
      %5147 = vmatprep.mubr.bf16.mxu0 0
      %5148 = vmatmul.mubr.bf16.gmra.mrb[0].mxu0 %v5028
      %v5149 = vpop.f32.mrb[0].mxu0
      %v5150 = vadd.f32 0.0, %v5149
      %v5151 = vpop.f32.mrb[0].mxu0
      %v5152 = vpop.f32.mrb[0].mxu0
      %v5153 = vadd.f32 0.0, %v5152
      %v5154 = vpop.f32.mrb[0].mxu0
      %5155 = vmatprep.mubr.bf16.mxu0 0
      %5156 = vmatmul.mubr.bf16.gmra.mrb[0].mxu0 %v5029
      %v5157 = vpop.f32.mrb[0].mxu0
      %v5158 = vadd.f32 0.0, %v5157
      %v5159 = vpop.f32.mrb[0].mxu0
      %v5160 = vpop.f32.mrb[0].mxu0
      %v5161 = vadd.f32 0.0, %v5160
      %v5162 = vpop.f32.mrb[0].mxu0
      %5163 = vmatprep.mubr.bf16.mxu0 0
      %5164 = vmatmul.mubr.bf16.gmra.mrb[0].mxu0 %v5030
      %v5165 = vpop.f32.mrb[0].mxu0
      %v5166 = vadd.f32 0.0, %v5165
      %v5167 = vpop.f32.mrb[0].mxu0
      %v5168 = vpop.f32.mrb[0].mxu0
      %v5169 = vadd.f32 0.0, %v5168
      %v5170 = vpop.f32.mrb[0].mxu0
      %5171 = vmatprep.mubr.bf16.mxu0 0
      %5172 = vmatmul.mubr.bf16.gmra.mrb[0].mxu0 %v5031
      %v5173 = vpop.f32.mrb[0].mxu0
      %v5174 = vadd.f32 0.0, %v5173
      %v5175 = vpop.f32.mrb[0].mxu0
      %v5176 = vpop.f32.mrb[0].mxu0
      %v5177 = vadd.f32 0.0, %v5176
      %v5178 = vpop.f32.mrb[0].mxu0
      %5179 = vmatprep.mubr.bf16.mxu0 0
      %5180 = vmatmul.mubr.bf16.gmra.mrb[0].mxu0 %v5032
      %v5181 = vpop.f32.mrb[0].mxu0
      %v5182 = vadd.f32 0.0, %v5181
      %v5183 = vpop.f32.mrb[0].mxu0
      %v5184 = vpop.f32.mrb[0].mxu0
      %v5185 = vadd.f32 0.0, %v5184
      %v5186 = vpop.f32.mrb[0].mxu0
      %5187 = vmatprep.mubr.bf16.mxu0 0
      %5188 = vmatmul.mubr.bf16.gmra.mrb[0].mxu0 %v5033
      %v5189 = vpop.f32.mrb[0].mxu0
      %v5190 = vadd.f32 0.0, %v5189
      %v5191 = vpop.f32.mrb[0].mxu0
      %v5192 = vpop.f32.mrb[0].mxu0
      %v5193 = vadd.f32 0.0, %v5192
      %v5194 = vpop.f32.mrb[0].mxu0
      %5195 = vmatprep.mubr.bf16.mxu0 0
      %5196 = vmatmul.mubr.bf16.gmra.mrb[0].mxu0 %v5034
      %v5197 = vpop.f32.mrb[0].mxu0
      %v5198 = vadd.f32 0.0, %v5197
      %v5199 = vpop.f32.mrb[0].mxu0
      %v5200 = vpop.f32.mrb[0].mxu0
      %v5201 = vadd.f32 0.0, %v5200
      %v5202 = vpop.f32.mrb[0].mxu0
      %5203 = vmatprep.mubr.bf16.mxu0 0
      %5204 = vmatmul.mubr.bf16.gmra.mrb[0].mxu0 %v5035
      %v5205 = vpop.f32.mrb[0].mxu0
      %v5206 = vadd.f32 0.0, %v5205
      %v5207 = vpop.f32.mrb[0].mxu0
      %v5208 = vpop.f32.mrb[0].mxu0
      %v5209 = vadd.f32 0.0, %v5208
      %v5210 = vpop.f32.mrb[0].mxu0
      %5211 = vmatprep.mubr.bf16.mxu0 0
      %5212 = vmatmul.mubr.bf16.gmra.mrb[0].mxu0 %v5036
      %v5213 = vpop.f32.mrb[0].mxu0
      %v5214 = vadd.f32 0.0, %v5213
      %v5215 = vpop.f32.mrb[0].mxu0
      %v5216 = vpop.f32.mrb[0].mxu0
      %v5217 = vadd.f32 0.0, %v5216
      %v5218 = vpop.f32.mrb[0].mxu0
      %5219 = vmatprep.mubr.bf16.mxu0 0
      %5220 = vmatmul.mubr.bf16.gmra.mrb[0].mxu0 %v5037
      %v5221 = vpop.f32.mrb[0].mxu0
      %v5222 = vadd.f32 0.0, %v5221
      %v5223 = vpop.f32.mrb[0].mxu0
      %v5224 = vpop.f32.mrb[0].mxu0
      %v5225 = vadd.f32 0.0, %v5224
      %v5226 = vpop.f32.mrb[0].mxu0
      %5227 = vmatprep.mubr.bf16.mxu0 0
      %5228 = vmatmul.mubr.bf16.gmra.mrb[0].mxu0 %v5038
      %v5229 = vpop.f32.mrb[0].mxu0
      %v5230 = vadd.f32 0.0, %v5229
      %v5231 = vpop.f32.mrb[0].mxu0
      %v5232 = vpop.f32.mrb[0].mxu0
      %v5233 = vadd.f32 0.0, %v5232
      %v5234 = vpop.f32.mrb[0].mxu0
      %5235 = vmatprep.mubr.bf16.mxu0 0
      %5236 = vmatmul.mubr.bf16.gmra.mrb[0].mxu0 %v5039
      %v5237 = vpop.f32.mrb[0].mxu0
      %v5238 = vadd.f32 0.0, %v5237
      %v5239 = vpop.f32.mrb[0].mxu0
      %v5240 = vpop.f32.mrb[0].mxu0
      %v5241 = vadd.f32 0.0, %v5240
      %v5242 = vpop.f32.mrb[0].mxu0
      %5243 = vmatprep.mubr.bf16.mxu0 0
      %5244 = vmatmul.mubr.bf16.gmra.mrb[0].mxu0 %v5040
      %v5245 = vpop.f32.mrb[0].mxu0
      %v5246 = vadd.f32 0.0, %v5245
      %v5247 = vpop.f32.mrb[0].mxu0
      %v5248 = vpop.f32.mrb[0].mxu0
      %v5249 = vadd.f32 0.0, %v5248
      %v5250 = vpop.f32.mrb[0].mxu0
      %5251 = vmatprep.mubr.bf16.mxu0 0
      %5252 = vmatmul.mubr.bf16.gmra.mrb[0].mxu0 %v5041
      %v5253 = vpop.f32.mrb[0].mxu0
      %v5254 = vadd.f32 0.0, %v5253
      %v5255 = vpop.f32.mrb[0].mxu0
      %v5256 = vpop.f32.mrb[0].mxu0
      %v5257 = vadd.f32 0.0, %v5256
      %v5258 = vpop.f32.mrb[0].mxu0
      %5259 = vmatprep.mubr.bf16.mxu0 0
      %5260 = vmatmul.mubr.bf16.gmra.mrb[0].mxu0 %v5042
      %v5261 = vpop.f32.mrb[0].mxu0
      %v5262 = vadd.f32 0.0, %v5261
      %v5263 = vpop.f32.mrb[0].mxu0
      %v5264 = vpop.f32.mrb[0].mxu0
      %v5265 = vadd.f32 0.0, %v5264
      %v5266 = vpop.f32.mrb[0].mxu0
      %5267 = vdwg.mxu0
      %v5268 = vadd.f32 %v4770, %v5142
      %v5269 = vadd.f32 %v4771, %v5145
      %v5270 = vadd.f32 %v4772, %v5150
      %v5271 = vadd.f32 %v4773, %v5153
      %v5272 = vadd.f32 %v4774, %v5158
      %v5273 = vadd.f32 %v4775, %v5161
      %v5274 = vadd.f32 %v4776, %v5166
      %v5275 = vadd.f32 %v4777, %v5169
      %v5276 = vadd.f32 %v4778, %v5174
      %v5277 = vadd.f32 %v4779, %v5177
      %v5278 = vadd.f32 %v4780, %v5182
      %v5279 = vadd.f32 %v4781, %v5185
      %v5280 = vadd.f32 %v4782, %v5190
      %v5281 = vadd.f32 %v4783, %v5193
      %v5282 = vadd.f32 %v4784, %v5198
      %v5283 = vadd.f32 %v4785, %v5201
      %v5284 = vadd.f32 %v4786, %v5206
      %v5285 = vadd.f32 %v4787, %v5209
      %v5286 = vadd.f32 %v4788, %v5214
      %v5287 = vadd.f32 %v4789, %v5217
      %v5288 = vadd.f32 %v4790, %v5222
      %v5289 = vadd.f32 %v4791, %v5225
      %v5290 = vadd.f32 %v4792, %v5230
      %v5291 = vadd.f32 %v4793, %v5233
      %v5292 = vadd.f32 %v4794, %v5238
      %v5293 = vadd.f32 %v4795, %v5241
      %v5294 = vadd.f32 %v4796, %v5246
      %v5295 = vadd.f32 %v4797, %v5249
      %v5296 = vadd.f32 %v4798, %v5254
      %v5297 = vadd.f32 %v4799, %v5257
      %v5298 = vadd.f32 %v4800, %v5262
      %v5299 = vadd.f32 %v4801, %v5265
      %v5300 = vld [vmem:[%s370] sm:$0xf]
      %v5301 = vld [vmem:[%s370 + $0x4] sm:$0xf]
      %v5302 = vld [vmem:[%s370 + $0x8] sm:$0xf]
      %v5303 = vld [vmem:[%s370 + $0xc] sm:$0xf]
      %v5304 = vld [vmem:[%s370 + $0x10] sm:$0xf]
      %v5305 = vld [vmem:[%s370 + $0x14] sm:$0xf]
      %v5306 = vld [vmem:[%s370 + $0x18] sm:$0xf]
      %v5307 = vld [vmem:[%s370 + $0x1c] sm:$0xf]
      %v5308 = vld [vmem:[%s370 + $0x20] sm:$0xf]
      %v5309 = vld [vmem:[%s370 + $0x24] sm:$0xf]
      %v5310 = vld [vmem:[%s370 + $0x28] sm:$0xf]
      %v5311 = vld [vmem:[%s370 + $0x2c] sm:$0xf]
      %v5312 = vld [vmem:[%s370 + $0x30] sm:$0xf]
      %v5313 = vld [vmem:[%s370 + $0x34] sm:$0xf]
      %v5314 = vld [vmem:[%s370 + $0x38] sm:$0xf]
      %v5315 = vld [vmem:[%s370 + $0x3c] sm:$0xf]
      %v5316 = vld [vmem:[%s370 + $0x40] sm:$0xf]
      %v5317 = vld [vmem:[%s370 + $0x44] sm:$0xf]
      %v5318 = vld [vmem:[%s370 + $0x48] sm:$0xf]
      %v5319 = vld [vmem:[%s370 + $0x4c] sm:$0xf]
      %v5320 = vld [vmem:[%s370 + $0x50] sm:$0xf]
      %v5321 = vld [vmem:[%s370 + $0x54] sm:$0xf]
      %v5322 = vld [vmem:[%s370 + $0x58] sm:$0xf]
      %v5323 = vld [vmem:[%s370 + $0x5c] sm:$0xf]
      %v5324 = vld [vmem:[%s370 + $0x60] sm:$0xf]
      %v5325 = vld [vmem:[%s370 + $0x64] sm:$0xf]
      %v5326 = vld [vmem:[%s370 + $0x68] sm:$0xf]
      %v5327 = vld [vmem:[%s370 + $0x6c] sm:$0xf]
      %v5328 = vld [vmem:[%s370 + $0x70] sm:$0xf]
      %v5329 = vld [vmem:[%s370 + $0x74] sm:$0xf]
      %v5330 = vld [vmem:[%s370 + $0x78] sm:$0xf]
      %v5331 = vld [vmem:[%s370 + $0x7c] sm:$0xf]
      %v5332 = vld [vmem:[%s375] sm:$0xf]
      %v5333 = vld [vmem:[%s375 + $0x4] sm:$0xf]
      %v5334 = vld [vmem:[%s375 + $0x8] sm:$0xf]
      %v5335 = vld [vmem:[%s375 + $0xc] sm:$0xf]
      %v5336 = vld [vmem:[%s375 + $0x10] sm:$0xf]
      %v5337 = vld [vmem:[%s375 + $0x14] sm:$0xf]
      %v5338 = vld [vmem:[%s375 + $0x18] sm:$0xf]
      %v5339 = vld [vmem:[%s375 + $0x1c] sm:$0xf]
      %v5340 = vld [vmem:[%s375 + $0x20] sm:$0xf]
      %v5341 = vld [vmem:[%s375 + $0x24] sm:$0xf]
      %v5342 = vld [vmem:[%s375 + $0x28] sm:$0xf]
      %v5343 = vld [vmem:[%s375 + $0x2c] sm:$0xf]
      %v5344 = vld [vmem:[%s375 + $0x30] sm:$0xf]
      %v5345 = vld [vmem:[%s375 + $0x34] sm:$0xf]
      %v5346 = vld [vmem:[%s375 + $0x38] sm:$0xf]
      %v5347 = vld [vmem:[%s375 + $0x3c] sm:$0xf]
      %v5348 = vld [vmem:[%s378] sm:$0x1]
      %v5350 = vlaneseq
      %v5351 = vshrl.u32 %v5350, 7
      %v5352 = vsub.s32 0, %v5351
      %v5353 = vrot.slane %v5348, %v5352
      %v5387 = vunpack.c.l.b16 %v5300
      %v5388 = vunpack.c.l.b16 %v5301
      %v5389 = vunpack.c.l.b16 %v5302
      %v5390 = vunpack.c.l.b16 %v5303
      %v5391 = vunpack.c.l.b16 %v5304
      %v5392 = vunpack.c.l.b16 %v5305
      %v5393 = vunpack.c.l.b16 %v5306
      %v5394 = vunpack.c.l.b16 %v5307
      %v5395 = vunpack.c.l.b16 %v5308
      %v5396 = vunpack.c.l.b16 %v5309
      %v5397 = vunpack.c.l.b16 %v5310
      %v5398 = vunpack.c.l.b16 %v5311
      %v5399 = vunpack.c.l.b16 %v5312
      %v5400 = vunpack.c.l.b16 %v5313
      %v5401 = vunpack.c.l.b16 %v5314
      %v5402 = vunpack.c.l.b16 %v5315
      %v5403 = vunpack.c.l.b16 %v5316
      %v5404 = vunpack.c.l.b16 %v5317
      %v5405 = vunpack.c.l.b16 %v5318
      %v5406 = vunpack.c.l.b16 %v5319
      %v5407 = vunpack.c.l.b16 %v5320
      %v5408 = vunpack.c.l.b16 %v5321
      %v5409 = vunpack.c.l.b16 %v5322
      %v5410 = vunpack.c.l.b16 %v5323
      %v5411 = vunpack.c.l.b16 %v5324
      %v5412 = vunpack.c.l.b16 %v5325
      %v5413 = vunpack.c.l.b16 %v5326
      %v5414 = vunpack.c.l.b16 %v5327
      %v5415 = vunpack.c.l.b16 %v5328
      %v5416 = vunpack.c.l.b16 %v5329
      %v5417 = vunpack.c.l.b16 %v5330
      %v5418 = vunpack.c.l.b16 %v5331
      %v5419 = vpack.c.b16 %v5388, %v5387
      %v5420 = vpack.c.b16 %v5390, %v5389
      %v5421 = vpack.c.b16 %v5392, %v5391
      %v5422 = vpack.c.b16 %v5394, %v5393
      %v5423 = vpack.c.b16 %v5396, %v5395
      %v5424 = vpack.c.b16 %v5398, %v5397
      %v5425 = vpack.c.b16 %v5400, %v5399
      %v5426 = vpack.c.b16 %v5402, %v5401
      %v5427 = vpack.c.b16 %v5404, %v5403
      %v5428 = vpack.c.b16 %v5406, %v5405
      %v5429 = vpack.c.b16 %v5408, %v5407
      %v5430 = vpack.c.b16 %v5410, %v5409
      %v5431 = vpack.c.b16 %v5412, %v5411
      %v5432 = vpack.c.b16 %v5414, %v5413
      %v5433 = vpack.c.b16 %v5416, %v5415
      %v5434 = vpack.c.b16 %v5418, %v5417
      %v5467 = vunpack.c.l.b16 %v5332
      %v5468 = vunpack.c.l.b16 %v5333
      %v5469 = vunpack.c.l.b16 %v5334
      %v5470 = vunpack.c.l.b16 %v5335
      %v5471 = vunpack.c.l.b16 %v5336
      %v5472 = vunpack.c.l.b16 %v5337
      %v5473 = vunpack.c.l.b16 %v5338
      %v5474 = vunpack.c.l.b16 %v5339
      %v5475 = vunpack.c.l.b16 %v5340
      %v5476 = vunpack.c.l.b16 %v5341
      %v5477 = vunpack.c.l.b16 %v5342
      %v5478 = vunpack.c.l.b16 %v5343
      %v5479 = vunpack.c.l.b16 %v5344
      %v5480 = vunpack.c.l.b16 %v5345
      %v5481 = vunpack.c.l.b16 %v5346
      %v5482 = vunpack.c.l.b16 %v5347
      %v5483 = vpack.c.b16 %v5468, %v5467
      %v5484 = vpack.c.b16 %v5470, %v5469
      %v5485 = vpack.c.b16 %v5472, %v5471
      %v5486 = vpack.c.b16 %v5474, %v5473
      %v5487 = vpack.c.b16 %v5476, %v5475
      %v5488 = vpack.c.b16 %v5478, %v5477
      %v5489 = vpack.c.b16 %v5480, %v5479
      %v5490 = vpack.c.b16 %v5482, %v5481
      %5499 = vmatprep.subr.bf16.mxu0 0
      %5500 = vmatpush1.bf16.msra.mxu0 %v5483
      %5501 = vmatprep.subr.bf16.mxu0 0
      %5502 = vmatpush1.bf16.msra.mxu0 %v5484
      %5503 = vmatprep.subr.bf16.mxu0 0
      %5504 = vmatpush1.bf16.msra.mxu0 %v5485
      %5505 = vmatprep.subr.bf16.mxu0 0
      %5506 = vmatpush1.bf16.msra.mxu0 %v5486
      %5507 = vmatprep.subr.bf16.mxu0 0
      %5508 = vmatpush1.bf16.msra.mxu0 %v5487
      %5509 = vmatprep.subr.bf16.mxu0 0
      %5510 = vmatpush1.bf16.msra.mxu0 %v5488
      %5511 = vmatprep.subr.bf16.mxu0 0
      %5512 = vmatpush1.bf16.msra.mxu0 %v5489
      %5513 = vmatprep.subr.bf16.mxu0 0
      %5514 = vmatpush1.bf16.msra.mxu0 %v5490
      %5515 = vmatprep.subr.bf16.mxu0 0
      %5516 = vmatpush1.bf16.msra.mxu0 0
      %5517 = vmatprep.subr.bf16.mxu0 0
      %5518 = vmatpush1.bf16.msra.mxu0 0
      %5519 = vmatprep.subr.bf16.mxu0 0
      %5520 = vmatpush1.bf16.msra.mxu0 0
      %5521 = vmatprep.subr.bf16.mxu0 0
      %5522 = vmatpush1.bf16.msra.mxu0 0
      %5523 = vmatprep.subr.bf16.mxu0 0
      %5524 = vmatpush1.bf16.msra.mxu0 0
      %5525 = vmatprep.subr.bf16.mxu0 0
      %5526 = vmatpush1.bf16.msra.mxu0 0
      %5527 = vmatprep.subr.bf16.mxu0 0
      %5528 = vmatpush1.bf16.msra.mxu0 0
      %5529 = vmatprep.subr.bf16.mxu0 0
      %5530 = vmatpush1.bf16.msra.mxu0 0
      %5531 = vmatprep.mubr.bf16.mxu0 0
      %5532 = vmatmul.mubr.bf16.gmra.mrb[0].mxu0 %v5419
      %v5533 = vpop.f32.mrb[0].mxu0
      %v5534 = vadd.f32 %v5353, %v5533
      %v5535 = vpop.f32.mrb[0].mxu0
      %v5536 = vpop.f32.mrb[0].mxu0
      %v5537 = vadd.f32 %v5353, %v5536
      %v5538 = vpop.f32.mrb[0].mxu0
      %5539 = vmatprep.mubr.bf16.mxu0 0
      %5540 = vmatmul.mubr.bf16.gmra.mrb[0].mxu0 %v5420
      %v5541 = vpop.f32.mrb[0].mxu0
      %v5542 = vadd.f32 %v5353, %v5541
      %v5543 = vpop.f32.mrb[0].mxu0
      %v5544 = vpop.f32.mrb[0].mxu0
      %v5545 = vadd.f32 %v5353, %v5544
      %v5546 = vpop.f32.mrb[0].mxu0
      %5547 = vmatprep.mubr.bf16.mxu0 0
      %5548 = vmatmul.mubr.bf16.gmra.mrb[0].mxu0 %v5421
      %v5549 = vpop.f32.mrb[0].mxu0
      %v5550 = vadd.f32 %v5353, %v5549
      %v5551 = vpop.f32.mrb[0].mxu0
      %v5552 = vpop.f32.mrb[0].mxu0
      %v5553 = vadd.f32 %v5353, %v5552
      %v5554 = vpop.f32.mrb[0].mxu0
      %5555 = vmatprep.mubr.bf16.mxu0 0
      %5556 = vmatmul.mubr.bf16.gmra.mrb[0].mxu0 %v5422
      %v5557 = vpop.f32.mrb[0].mxu0
      %v5558 = vadd.f32 %v5353, %v5557
      %v5559 = vpop.f32.mrb[0].mxu0
      %v5560 = vpop.f32.mrb[0].mxu0
      %v5561 = vadd.f32 %v5353, %v5560
      %v5562 = vpop.f32.mrb[0].mxu0
      %5563 = vmatprep.mubr.bf16.mxu0 0
      %5564 = vmatmul.mubr.bf16.gmra.mrb[0].mxu0 %v5423
      %v5565 = vpop.f32.mrb[0].mxu0
      %v5566 = vadd.f32 %v5353, %v5565
      %v5567 = vpop.f32.mrb[0].mxu0
      %v5568 = vpop.f32.mrb[0].mxu0
      %v5569 = vadd.f32 %v5353, %v5568
      %v5570 = vpop.f32.mrb[0].mxu0
      %5571 = vmatprep.mubr.bf16.mxu0 0
      %5572 = vmatmul.mubr.bf16.gmra.mrb[0].mxu0 %v5424
      %v5573 = vpop.f32.mrb[0].mxu0
      %v5574 = vadd.f32 %v5353, %v5573
      %v5575 = vpop.f32.mrb[0].mxu0
      %v5576 = vpop.f32.mrb[0].mxu0
      %v5577 = vadd.f32 %v5353, %v5576
      %v5578 = vpop.f32.mrb[0].mxu0
      %5579 = vmatprep.mubr.bf16.mxu0 0
      %5580 = vmatmul.mubr.bf16.gmra.mrb[0].mxu0 %v5425
      %v5581 = vpop.f32.mrb[0].mxu0
      %v5582 = vadd.f32 %v5353, %v5581
      %v5583 = vpop.f32.mrb[0].mxu0
      %v5584 = vpop.f32.mrb[0].mxu0
      %v5585 = vadd.f32 %v5353, %v5584
      %v5586 = vpop.f32.mrb[0].mxu0
      %5587 = vmatprep.mubr.bf16.mxu0 0
      %5588 = vmatmul.mubr.bf16.gmra.mrb[0].mxu0 %v5426
      %v5589 = vpop.f32.mrb[0].mxu0
      %v5590 = vadd.f32 %v5353, %v5589
      %v5591 = vpop.f32.mrb[0].mxu0
      %v5592 = vpop.f32.mrb[0].mxu0
      %v5593 = vadd.f32 %v5353, %v5592
      %v5594 = vpop.f32.mrb[0].mxu0
      %5595 = vmatprep.mubr.bf16.mxu0 0
      %5596 = vmatmul.mubr.bf16.gmra.mrb[0].mxu0 %v5427
      %v5597 = vpop.f32.mrb[0].mxu0
      %v5598 = vadd.f32 %v5353, %v5597
      %v5599 = vpop.f32.mrb[0].mxu0
      %v5600 = vpop.f32.mrb[0].mxu0
      %v5601 = vadd.f32 %v5353, %v5600
      %v5602 = vpop.f32.mrb[0].mxu0
      %5603 = vmatprep.mubr.bf16.mxu0 0
      %5604 = vmatmul.mubr.bf16.gmra.mrb[0].mxu0 %v5428
      %v5605 = vpop.f32.mrb[0].mxu0
      %v5606 = vadd.f32 %v5353, %v5605
      %v5607 = vpop.f32.mrb[0].mxu0
      %v5608 = vpop.f32.mrb[0].mxu0
      %v5609 = vadd.f32 %v5353, %v5608
      %v5610 = vpop.f32.mrb[0].mxu0
      %5611 = vmatprep.mubr.bf16.mxu0 0
      %5612 = vmatmul.mubr.bf16.gmra.mrb[0].mxu0 %v5429
      %v5613 = vpop.f32.mrb[0].mxu0
      %v5614 = vadd.f32 %v5353, %v5613
      %v5615 = vpop.f32.mrb[0].mxu0
      %v5616 = vpop.f32.mrb[0].mxu0
      %v5617 = vadd.f32 %v5353, %v5616
      %v5618 = vpop.f32.mrb[0].mxu0
      %5619 = vmatprep.mubr.bf16.mxu0 0
      %5620 = vmatmul.mubr.bf16.gmra.mrb[0].mxu0 %v5430
      %v5621 = vpop.f32.mrb[0].mxu0
      %v5622 = vadd.f32 %v5353, %v5621
      %v5623 = vpop.f32.mrb[0].mxu0
      %v5624 = vpop.f32.mrb[0].mxu0
      %v5625 = vadd.f32 %v5353, %v5624
      %v5626 = vpop.f32.mrb[0].mxu0
      %5627 = vmatprep.mubr.bf16.mxu0 0
      %5628 = vmatmul.mubr.bf16.gmra.mrb[0].mxu0 %v5431
      %v5629 = vpop.f32.mrb[0].mxu0
      %v5630 = vadd.f32 %v5353, %v5629
      %v5631 = vpop.f32.mrb[0].mxu0
      %v5632 = vpop.f32.mrb[0].mxu0
      %v5633 = vadd.f32 %v5353, %v5632
      %v5634 = vpop.f32.mrb[0].mxu0
      %5635 = vmatprep.mubr.bf16.mxu0 0
      %5636 = vmatmul.mubr.bf16.gmra.mrb[0].mxu0 %v5432
      %v5637 = vpop.f32.mrb[0].mxu0
      %v5638 = vadd.f32 %v5353, %v5637
      %v5639 = vpop.f32.mrb[0].mxu0
      %v5640 = vpop.f32.mrb[0].mxu0
      %v5641 = vadd.f32 %v5353, %v5640
      %v5642 = vpop.f32.mrb[0].mxu0
      %5643 = vmatprep.mubr.bf16.mxu0 0
      %5644 = vmatmul.mubr.bf16.gmra.mrb[0].mxu0 %v5433
      %v5645 = vpop.f32.mrb[0].mxu0
      %v5646 = vadd.f32 %v5353, %v5645
      %v5647 = vpop.f32.mrb[0].mxu0
      %v5648 = vpop.f32.mrb[0].mxu0
      %v5649 = vadd.f32 %v5353, %v5648
      %v5650 = vpop.f32.mrb[0].mxu0
      %5651 = vmatprep.mubr.bf16.mxu0 0
      %5652 = vmatmul.mubr.bf16.gmra.mrb[0].mxu0 %v5434
      %v5653 = vpop.f32.mrb[0].mxu0
      %v5654 = vadd.f32 %v5353, %v5653
      %v5655 = vpop.f32.mrb[0].mxu0
      %v5656 = vpop.f32.mrb[0].mxu0
      %v5657 = vadd.f32 %v5353, %v5656
      %v5658 = vpop.f32.mrb[0].mxu0
      %5659 = vdwg.mxu0
      %v5660 = vadd.f32 %v5268, %v5534
      %v5661 = vadd.f32 %v5269, %v5537
      %v5662 = vadd.f32 %v5270, %v5542
      %v5663 = vadd.f32 %v5271, %v5545
      %v5664 = vadd.f32 %v5272, %v5550
      %v5665 = vadd.f32 %v5273, %v5553
      %v5666 = vadd.f32 %v5274, %v5558
      %v5667 = vadd.f32 %v5275, %v5561
      %v5668 = vadd.f32 %v5276, %v5566
      %v5669 = vadd.f32 %v5277, %v5569
      %v5670 = vadd.f32 %v5278, %v5574
      %v5671 = vadd.f32 %v5279, %v5577
      %v5672 = vadd.f32 %v5280, %v5582
      %v5673 = vadd.f32 %v5281, %v5585
      %v5674 = vadd.f32 %v5282, %v5590
      %v5675 = vadd.f32 %v5283, %v5593
      %v5676 = vadd.f32 %v5284, %v5598
      %v5677 = vadd.f32 %v5285, %v5601
      %v5678 = vadd.f32 %v5286, %v5606
      %v5679 = vadd.f32 %v5287, %v5609
      %v5680 = vadd.f32 %v5288, %v5614
      %v5681 = vadd.f32 %v5289, %v5617
      %v5682 = vadd.f32 %v5290, %v5622
      %v5683 = vadd.f32 %v5291, %v5625
      %v5684 = vadd.f32 %v5292, %v5630
      %v5685 = vadd.f32 %v5293, %v5633
      %v5686 = vadd.f32 %v5294, %v5638
      %v5687 = vadd.f32 %v5295, %v5641
      %v5688 = vadd.f32 %v5296, %v5646
      %v5689 = vadd.f32 %v5297, %v5649
      %v5690 = vadd.f32 %v5298, %v5654
      %v5691 = vadd.f32 %v5299, %v5657
      %v5692 = vmax.f32 %v5660, 0.0
      %v5693 = vmax.f32 %v5661, 0.0
      %v5694 = vmax.f32 %v5662, 0.0
      %v5695 = vmax.f32 %v5663, 0.0
      %v5696 = vmax.f32 %v5664, 0.0
      %v5697 = vmax.f32 %v5665, 0.0
      %v5698 = vmax.f32 %v5666, 0.0
      %v5699 = vmax.f32 %v5667, 0.0
      %v5700 = vmax.f32 %v5668, 0.0
      %v5701 = vmax.f32 %v5669, 0.0
      %v5702 = vmax.f32 %v5670, 0.0
      %v5703 = vmax.f32 %v5671, 0.0
      %v5704 = vmax.f32 %v5672, 0.0
      %v5705 = vmax.f32 %v5673, 0.0
      %v5706 = vmax.f32 %v5674, 0.0
      %v5707 = vmax.f32 %v5675, 0.0
      %v5708 = vmax.f32 %v5676, 0.0
      %v5709 = vmax.f32 %v5677, 0.0
      %v5710 = vmax.f32 %v5678, 0.0
      %v5711 = vmax.f32 %v5679, 0.0
      %v5712 = vmax.f32 %v5680, 0.0
      %v5713 = vmax.f32 %v5681, 0.0
      %v5714 = vmax.f32 %v5682, 0.0
      %v5715 = vmax.f32 %v5683, 0.0
      %v5716 = vmax.f32 %v5684, 0.0
      %v5717 = vmax.f32 %v5685, 0.0
      %v5718 = vmax.f32 %v5686, 0.0
      %v5719 = vmax.f32 %v5687, 0.0
      %v5720 = vmax.f32 %v5688, 0.0
      %v5721 = vmax.f32 %v5689, 0.0
      %v5722 = vmax.f32 %v5690, 0.0
      %v5723 = vmax.f32 %v5691, 0.0
      %5724 = vst [vmem:[%s391] sm:$0xff] %v5692
      %5725 = vst [vmem:[%s391 + $0x8] sm:$0xff] %v5693
      %5726 = vst [vmem:[%s391 + $0x10] sm:$0xff] %v5694
      %5727 = vst [vmem:[%s391 + $0x18] sm:$0xff] %v5695
      %5728 = vst [vmem:[%s391 + $0x20] sm:$0xff] %v5696
      %5729 = vst [vmem:[%s391 + $0x28] sm:$0xff] %v5697
      %5730 = vst [vmem:[%s391 + $0x30] sm:$0xff] %v5698
      %5731 = vst [vmem:[%s391 + $0x38] sm:$0xff] %v5699
      %5732 = vst [vmem:[%s391 + $0x40] sm:$0xff] %v5700
      %5733 = vst [vmem:[%s391 + $0x48] sm:$0xff] %v5701
      %5734 = vst [vmem:[%s391 + $0x50] sm:$0xff] %v5702
      %5735 = vst [vmem:[%s391 + $0x58] sm:$0xff] %v5703
      %5736 = vst [vmem:[%s391 + $0x60] sm:$0xff] %v5704
      %5737 = vst [vmem:[%s391 + $0x68] sm:$0xff] %v5705
      %5738 = vst [vmem:[%s391 + $0x70] sm:$0xff] %v5706
      %5739 = vst [vmem:[%s391 + $0x78] sm:$0xff] %v5707
      %5740 = vst [vmem:[%s391 + $0x80] sm:$0xff] %v5708
      %5741 = vst [vmem:[%s391 + $0x88] sm:$0xff] %v5709
      %5742 = vst [vmem:[%s391 + $0x90] sm:$0xff] %v5710
      %5743 = vst [vmem:[%s391 + $0x98] sm:$0xff] %v5711
      %5744 = vst [vmem:[%s391 + $0xa0] sm:$0xff] %v5712
      %5745 = vst [vmem:[%s391 + $0xa8] sm:$0xff] %v5713
      %5746 = vst [vmem:[%s391 + $0xb0] sm:$0xff] %v5714
      %5747 = vst [vmem:[%s391 + $0xb8] sm:$0xff] %v5715
      %5748 = vst [vmem:[%s391 + $0xc0] sm:$0xff] %v5716
      %5749 = vst [vmem:[%s391 + $0xc8] sm:$0xff] %v5717
      %5750 = vst [vmem:[%s391 + $0xd0] sm:$0xff] %v5718
      %5751 = vst [vmem:[%s391 + $0xd8] sm:$0xff] %v5719
      %5752 = vst [vmem:[%s391 + $0xe0] sm:$0xff] %v5720
      %5753 = vst [vmem:[%s391 + $0xe8] sm:$0xff] %v5721
      %5754 = vst [vmem:[%s391 + $0xf0] sm:$0xff] %v5722
      %5755 = vst [vmem:[%s391 + $0xf8] sm:$0xff] %v5723
      %s5756 = smul.u32 16, %s24
      %p5757 = scmp.lt.s32.totalorder %s22, 1
      %s5758 = scalar_select %p5757, %s22, 1
      %p5759 = scmp.lt.s32.totalorder %s5756, 15
      %s5760 = scalar_select %p5759, %s5756, 15
      %p5761 = scmp.lt.s32.totalorder %s23, 0
      %s5762 = scalar_select %p5761, %s23, 0
      %s5763 = smul.addr %s5760, 2
      %s5764 = sadd.s32 %s5762, %s5763
      %s5765 = smul.addr %s5758, 32
      %s5766 = sadd.s32 %s5764, %s5765
      %s5767 = smul.addr %s5766, 8
      %s5768 = scalar_lea.vmem %s6, %s5767
      // Predicated region
      $region45: #{residual_block_forward.3} parent=43 // pred_check
        %p5769 = pneg %p216
      $region46: #{residual_block_forward.3} parent=43 // pred_check_branch
        %5771 = sbr.rel (%p5769) target = $region48
      $region47: #{residual_block_forward.3} parent=43 // pred_region
        %s5772 = smul.u32 16, %s24
      $region48: #{residual_block_forward.3} parent=43 // pred_fallthru
        _
    $region44: #{residual_block_forward.3} parent=5 // pred_fallthru
      _
    %p5773 = scmp.le.s32.totalorder 2, %s12
    // Predicated region
    $region49: #{residual_block_forward.3} parent=5 // pred_check
      %p5774 = pneg %p5773
    $region50: #{residual_block_forward.3} parent=5 // pred_check_branch
      %5776 = sbr.rel (%p5774) target = $region52
    $region51: #{residual_block_forward.3} parent=5 // pred_region
      %s5777 = ssub.s32 %s12, 2
      // Predicated region
      $region53: #{residual_block_forward.3} parent=51 // pred_check
        %p5778 = pneg %p222
      $region54: #{residual_block_forward.3} parent=51 // pred_check_branch
        %5780 = sbr.rel (%p5778) target = $region56
      $region55: #{residual_block_forward.3} parent=51 // pred_region
        %s5781 = smul.u32 16, %s27
        %p5782 = scmp.lt.s32.totalorder %s25, 1
        %s5783 = scalar_select %p5782, %s25, 1
        %p5784 = scmp.lt.s32.totalorder %s5781, 15
        %s5785 = scalar_select %p5784, %s5781, 15
        %p5786 = scmp.lt.s32.totalorder %s26, 0
        %s5787 = scalar_select %p5786, %s26, 0
        %s5788 = smul.addr %s5785, 2
        %s5789 = sadd.s32 %s5787, %s5788
        %s5790 = smul.addr %s5783, 32
        %s5791 = sadd.s32 %s5789, %s5790
        %s5792 = smul.addr %s5791, 8
        %s5793 = scalar_lea.vmem %s6, %s5792
      $region56: #{residual_block_forward.3} parent=51 // pred_fallthru
        _
    $region52: #{residual_block_forward.3} parent=5 // pred_fallthru
      _
  $region6: #{residual_block_forward.3} parent=0 // loop_footer
    %s16 = sadd.s32 1, %s12
  $region7: #{residual_block_forward.3} parent=0 // loop_footer_branch
    %11 = sbr.rel target = $region3
  $region8: #{residual_block_forward.3} parent=0 // loop_exit
    _

</llo_original>
